<compile_context>
chip_gen: v5e
topology: v5e:2x2
jax: 0.10.0
libtpu: 0.0.40
codegen_flags: <defaults>
</compile_context>

<pallas_src>
import jax
import jax.numpy as jnp
import numpy as np
from jax import lax
from jax.experimental import pallas as pl
from jax.experimental.pallas import tpu as pltpu

_OUTP = 128  # lane-dense output width (>= A + 1)


def _round_up(x, m):
    return ((x + m - 1) // m) * m


def _make_net_kernel(H, W, A, Btile):
    # static conv / pool output sizes
    H1, W1 = H - 1, W - 1                 # conv1 (k=2, stride 1, VALID)
    H2, W2 = H1 // 2, W1 // 2             # maxpool 2x2 stride 2
    H3, W3 = H2 - 1, W2 - 1               # conv2
    H4, W4 = H3 - 1, W3 - 1               # conv3
    S4 = H4 * W4

    def kernel(x_ref,
               w1_ref, b1_ref, w2_ref, b2_ref, w3_ref, b3_ref,
               wh1_ref, bh1_ref, wh2_ref, bh2_ref,
               out_ref):
        f32 = jnp.float32
        x = x_ref[...]                                        # (Bt, H, W, 3)

        def taps(src, ho, wo):
            # K-fused im2col: lane-concat of the four (dh, dw) shifted slices.
            return jnp.concatenate(
                [src[:, dh:dh + ho, dw:dw + wo, :]
                 for dh in range(2) for dw in range(2)], axis=-1)

        # ---- conv1: in-kernel im2col (K = 4*3 = 12), ONE matmul, bias, ReLU --
        x1 = taps(x, H1, W1)                                  # (Bt, H1, W1, 12)
        a1 = jnp.dot(x1.reshape(Btile * H1 * W1, 4 * 3), w1_ref[...],
                     preferred_element_type=f32)
        y1 = jnp.maximum(a1 + b1_ref[...], 0.0).reshape(Btile, H1, W1, 16)

        # ---- maxpool 2x2 stride 2 (vectorized: 3 elementwise maxima) --------
        t = y1[:, :2 * H2, :2 * W2, :].reshape(Btile, H2, 2, 2 * W2, 16)
        t = jnp.maximum(t[:, :, 0], t[:, :, 1])               # (Bt, H2, 2W2, 16)
        t = t.reshape(Btile, H2, W2, 2, 16)
        y2 = jnp.maximum(t[:, :, :, 0, :], t[:, :, :, 1, :])  # (Bt, H2, W2, 16)

        # ---- conv2: 16 -> 32, K fused to 64, ONE matmul, bias, ReLU ----------
        x2 = taps(y2, H3, W3)                                 # (Bt, H3, W3, 64)
        a2 = jnp.dot(x2.reshape(Btile * H3 * W3, 4 * 16), w2_ref[...],
                     preferred_element_type=f32)
        y3 = jnp.maximum(a2 + b2_ref[...], 0.0).reshape(Btile, H3, W3, 32)

        # ---- conv3: 32 -> 64, K fused to 128, ONE matmul, bias, ReLU ---------
        x3 = taps(y3, H4, W4)                                 # (Bt, H4, W4, 128)
        a3 = jnp.dot(x3.reshape(Btile * S4, 4 * 32), w3_ref[...],
                     preferred_element_type=f32)
        y4 = jnp.maximum(a3 + b3_ref[...], 0.0)               # (Bt*S4, 64)

        # ---- fused actor|critic first layer: (Bt, S4*64) @ (S4*64, 128) ------
        # wh1 rows were permuted/reshaped host-side (channels-last flatten),
        # so no NCHW transpose and no per-s loop is needed.
        emb = y4.reshape(Btile, S4 * 64)
        h = jnp.tanh(jnp.dot(emb, wh1_ref[...], preferred_element_type=f32)
                     + bh1_ref[...])                          # [actor64|critic64]

        # ---- fused second layer: cols [0:A) actor logits, col A = value -----
        o = jnp.dot(h, wh2_ref[...], preferred_element_type=f32) + bh2_ref[...]

        # Masked log-softmax over the actor columns only.  Mask BEFORE the exp
        # so the unbounded value column can never produce an inf lane.
        col = lax.broadcasted_iota(jnp.int32, (Btile, _OUTP), 1)
        amask = col < A
        om = jnp.where(amask, o, -1e30)
        m = jnp.max(om, axis=1, keepdims=True)
        p = jnp.exp(om - m)                                   # masked lanes -> 0
        lse = m + jnp.log(jnp.sum(p, axis=1, keepdims=True))
        logp = o - lse
        out_ref[...] = jnp.where(amask, logp,
                                 jnp.where(col == A, o, 0.0))

    return kernel


def net_forward(image, params, btile=256):
    """image: (B, H, W, 3) float32 NHWC (obs['image'] before torch transposes).

    Returns (log_probs (B, A), value (B,))."""
    B, H, W, C = image.shape
    assert C == 3
    H1, W1 = H - 1, W - 1
    H2, W2 = H1 // 2, W1 // 2
    H3, W3 = H2 - 1, W2 - 1
    H4, W4 = H3 - 1, W3 - 1
    S4 = H4 * W4
    assert H3 >= 1 and W3 >= 1 and H4 >= 1 and W4 >= 1
    A = params["aw2"].shape[1]
    assert 1 <= A and A + 1 <= _OUTP

    # ---- host-side weight fusion / layout plumbing (done once) --------------
    # Conv weights flattened tap-major (dh, dw, cin) to match the kernel's
    # lane-concat order, so each conv is one K-fused matmul.
    w1 = params["c1w"].reshape(4 * 3, 16)
    b1 = params["c1b"].reshape(1, 16)
    w2 = params["c2w"].reshape(4 * 16, 32)
    b2 = params["c2b"].reshape(1, 32)
    w3 = params["c3w"].reshape(4 * 32, 64)
    b3 = params["c3b"].reshape(1, 64)

    # Head-1 rows are in PyTorch NCHW-flatten order (c*S4 + s); permute to the
    # kernel's channels-last order (s*64 + c), fuse actor|critic, and flatten
    # to a single (S4*64, 128) matmul operand.
    aw1p = params["aw1"].reshape(64, S4, 64).transpose(1, 0, 2)
    cw1p = params["cw1"].reshape(64, S4, 64).transpose(1, 0, 2)
    wh1 = jnp.concatenate([aw1p, cw1p], axis=-1).reshape(S4 * 64, 128)
    bh1 = jnp.concatenate([params["ab1"], params["cb1"]], axis=-1)   # (1, 128)

    wh2 = jnp.zeros((128, _OUTP), jnp.float32)
    wh2 = wh2.at[:64, :A].set(params["aw2"])
    wh2 = wh2.at[64:, A].set(params["cw2"][:, 0])
    bh2 = jnp.zeros((1, _OUTP), jnp.float32)
    bh2 = bh2.at[0, :A].set(params["ab2"][0])
    bh2 = bh2.at[0, A].set(params["cb2"][0, 0])

    # ---- batch tiling --------------------------------------------------------
    # At least two grid steps so v7x's two TensorCores both get work and the
    # next input block's DMA overlaps this step's compute; tile capped (default
    # 256, sweepable) to stay inside the per-generation VMEM budget.
    Btile = int(min(_round_up(btile, 8), _round_up(B, 8)))
    if B > 8:
        Btile = int(min(Btile, _round_up((B + 1) // 2, 8)))
    Bp = _round_up(B, Btile)
    x = image.astype(jnp.float32)
    if Bp != B:
        x = jnp.concatenate([x, jnp.zeros((Bp - B, H, W, C), x.dtype)], axis=0)

    weights = [w1, b1, w2, b2, w3, b3, wh1, bh1, wh2, bh2]

    def const_spec(arr):
        # Constant-index blocks are DMA'd once; single-buffer them to free VMEM.
        nd = arr.ndim
        return pl.BlockSpec(arr.shape, lambda b, _nd=nd: (0,) * _nd,
                            pipeline_mode=pl.Buffered(1))

    in_specs = [pl.BlockSpec((Btile, H, W, C), lambda b: (b, 0, 0, 0))]
    in_specs += [const_spec(wt) for wt in weights]
    out_specs = pl.BlockSpec((Btile, _OUTP), lambda b: (b, 0))

    kernel = _make_net_kernel(H, W, A, Btile)
    out = pl.pallas_call(
        kernel,
        out_shape=jax.ShapeDtypeStruct((Bp, _OUTP), jnp.float32),
        grid_spec=pltpu.PrefetchScalarGridSpec(
            num_scalar_prefetch=0,
            grid=(Bp // Btile,),
            in_specs=in_specs,
            out_specs=out_specs),
        compiler_params=pltpu.CompilerParams(
            dimension_semantics=("parallel",),
            vmem_limit_bytes=48 * 1024 * 1024),
    )(x, *weights)

    logp = out[:B, :A]
    value = out[:B, A]
    return logp, value


def init_params(key, H, W, A):
    """Deterministic synthetic weights. Conv weights stored as (kh,kw,Cin,Cout);
    linear weights stored as (in,out) (i.e. PyTorch weight transposed), with the
    head input rows in PyTorch NCHW-flatten order."""
    E = ((H - 1) // 2 - 2) * ((W - 1) // 2 - 2) * 64
    ks = jax.random.split(key, 14)

    def w(k, shape, scale):
        return jax.random.normal(k, shape, jnp.float32) * scale

    return {
        "c1w": w(ks[0], (2, 2, 3, 16), 0.2),
        "c1b": w(ks[1], (1, 16), 0.1),
        "c2w": w(ks[2], (2, 2, 16, 32), 0.1),
        "c2b": w(ks[3], (1, 32), 0.1),
        "c3w": w(ks[4], (2, 2, 32, 64), 0.05),
        "c3b": w(ks[5], (1, 64), 0.1),
        "aw1": w(ks[6], (E, 64), 0.1),
        "ab1": w(ks[7], (1, 64), 0.1),
        "aw2": w(ks[8], (64, A), 0.1),
        "ab2": w(ks[9], (1, A), 0.1),
        "cw1": w(ks[10], (E, 64), 0.1),
        "cb1": w(ks[11], (1, 64), 0.1),
        "cw2": w(ks[12], (64, 1), 0.1),
        "cb2": w(ks[13], (1, 1), 0.1),
    }


def ref_forward(image, p):
    """Pure-JAX/XLA reference (lax.conv + reduce_window) for verification."""
    def conv(x, w, b):
        dn = lax.conv_dimension_numbers(x.shape, w.shape, ('NHWC', 'HWIO', 'NHWC'))
        y = lax.conv_general_dilated(x, w, (1, 1), 'VALID', dimension_numbers=dn)
        return jax.nn.relu(y + b.reshape(1, 1, 1, -1))

    x = conv(image, p["c1w"], p["c1b"])
    x = lax.reduce_window(x, -jnp.inf, lax.max, (1, 2, 2, 1), (1, 2, 2, 1), 'VALID')
    x = conv(x, p["c2w"], p["c2b"])
    x = conv(x, p["c3w"], p["c3b"])
    x = jnp.transpose(x, (0, 3, 1, 2)).reshape(x.shape[0], -1)   # NCHW flatten

    ha = jnp.tanh(x @ p["aw1"] + p["ab1"])
    logp = jax.nn.log_softmax(ha @ p["aw2"] + p["ab2"], axis=1)
    hc = jnp.tanh(x @ p["cw1"] + p["cb1"])
    value = (hc @ p["cw2"] + p["cb2"])[:, 0]
    return logp, value


if __name__ == "__main__":
    key = jax.random.PRNGKey(0)
    k_img, k_par = jax.random.split(key)

    B, H, W, A = 64, 7, 7, 5           # MiniGrid-style 7x7x3 obs, 5 actions
    image = jax.random.uniform(k_img, (B, H, W, 3), jnp.float32)
    params = init_params(k_par, H, W, A)

    logp, value = net_forward(image, params)
    jax.block_until_ready((logp, value))

    ref_logp, ref_value = ref_forward(image, params)
    np.testing.assert_allclose(np.asarray(logp), np.asarray(ref_logp),
                               atol=1e-4, rtol=1e-4)
    np.testing.assert_allclose(np.asarray(value), np.asarray(ref_value),
                               atol=1e-4, rtol=1e-4)

    print("KERNEL_OK")
</pallas_src>

<mosaic_0001>
module attributes {stable_mosaic.version = 11 : i64} {
  func.func @kernel(%arg0: i32, %arg1: memref<32x7x7x3xf32, #tpu.memory_space<vmem>>, %arg2: memref<12x16xf32, #tpu.memory_space<vmem>>, %arg3: memref<1x16xf32, #tpu.memory_space<vmem>>, %arg4: memref<64x32xf32, #tpu.memory_space<vmem>>, %arg5: memref<1x32xf32, #tpu.memory_space<vmem>>, %arg6: memref<128x64xf32, #tpu.memory_space<vmem>>, %arg7: memref<1x64xf32, #tpu.memory_space<vmem>>, %arg8: memref<64x128xf32, #tpu.memory_space<vmem>>, %arg9: memref<1x128xf32, #tpu.memory_space<vmem>>, %arg10: memref<128x128xf32, #tpu.memory_space<vmem>>, %arg11: memref<1x128xf32, #tpu.memory_space<vmem>>, %arg12: memref<32x128xf32, #tpu.memory_space<vmem>>) attributes {dimension_semantics = [#tpu.dimension_semantics<parallel>], iteration_bounds = array<i64: 2>, scalar_prefetch = 0 : i64, scratch_operands = 0 : i64, tpu.core_type = #tpu.core_type<tc>, window_params = [{transform_indices = @transform_0, window_bounds = array<i64: 32, 7, 7, 3>}, {pipeline_mode = #tpu.pipeline_mode<synchronous>, transform_indices = @transform_1, window_bounds = array<i64: 12, 16>}, {pipeline_mode = #tpu.pipeline_mode<synchronous>, transform_indices = @transform_2, window_bounds = array<i64: 1, 16>}, {pipeline_mode = #tpu.pipeline_mode<synchronous>, transform_indices = @transform_3, window_bounds = array<i64: 64, 32>}, {pipeline_mode = #tpu.pipeline_mode<synchronous>, transform_indices = @transform_4, window_bounds = array<i64: 1, 32>}, {pipeline_mode = #tpu.pipeline_mode<synchronous>, transform_indices = @transform_5, window_bounds = array<i64: 128, 64>}, {pipeline_mode = #tpu.pipeline_mode<synchronous>, transform_indices = @transform_6, window_bounds = array<i64: 1, 64>}, {pipeline_mode = #tpu.pipeline_mode<synchronous>, transform_indices = @transform_7, window_bounds = array<i64: 64, 128>}, {pipeline_mode = #tpu.pipeline_mode<synchronous>, transform_indices = @transform_8, window_bounds = array<i64: 1, 128>}, {pipeline_mode = #tpu.pipeline_mode<synchronous>, transform_indices = @transform_9, window_bounds = array<i64: 128, 128>}, {pipeline_mode = #tpu.pipeline_mode<synchronous>, transform_indices = @transform_10, window_bounds = array<i64: 1, 128>}, {transform_indices = @transform_11, window_bounds = array<i64: 32, 128>}]} {
    %c0 = arith.constant 0 : index
    %c0_0 = arith.constant 0 : index
    %c0_1 = arith.constant 0 : index
    %c0_2 = arith.constant 0 : index
    %0 = vector.load %arg1[%c0, %c0_0, %c0_1, %c0_2] : memref<32x7x7x3xf32, #tpu.memory_space<vmem>>, vector<32x7x7x3xf32>
    %1 = vector.extract_strided_slice %0 {offsets = [0, 0, 0, 0], sizes = [32, 6, 6, 3], strides = [1, 1, 1, 1]} : vector<32x7x7x3xf32> to vector<32x6x6x3xf32>
    %2 = vector.extract_strided_slice %0 {offsets = [0, 0, 1, 0], sizes = [32, 6, 6, 3], strides = [1, 1, 1, 1]} : vector<32x7x7x3xf32> to vector<32x6x6x3xf32>
    %3 = vector.extract_strided_slice %0 {offsets = [0, 1, 0, 0], sizes = [32, 6, 6, 3], strides = [1, 1, 1, 1]} : vector<32x7x7x3xf32> to vector<32x6x6x3xf32>
    %4 = vector.extract_strided_slice %0 {offsets = [0, 1, 1, 0], sizes = [32, 6, 6, 3], strides = [1, 1, 1, 1]} : vector<32x7x7x3xf32> to vector<32x6x6x3xf32>
    %5 = tpu.concatenate %1, %2, %3, %4 in 3 : vector<32x6x6x3xf32>, vector<32x6x6x3xf32>, vector<32x6x6x3xf32>, vector<32x6x6x3xf32> -> vector<32x6x6x12xf32>
    %6 = vector.shape_cast %5 : vector<32x6x6x12xf32> to vector<1152x12xf32>
    %c0_3 = arith.constant 0 : index
    %c0_4 = arith.constant 0 : index
    %7 = vector.load %arg2[%c0_3, %c0_4] : memref<12x16xf32, #tpu.memory_space<vmem>>, vector<12x16xf32>
    %cst = arith.constant dense<0.000000e+00> : vector<1152x16xf32>
    %8 = tpu.matmul %6, %7, %cst {dimension_numbers = #tpu.dot_dimension_numbers<[1], [0], [0], [1], [0, 0, 1, 1], [], []>} : vector<1152x12xf32>, vector<12x16xf32>, vector<1152x16xf32> -> vector<1152x16xf32>
    %c0_5 = arith.constant 0 : index
    %c0_6 = arith.constant 0 : index
    %9 = vector.load %arg3[%c0_5, %c0_6] : memref<1x16xf32, #tpu.memory_space<vmem>>, vector<1x16xf32>
    %10 = vector.broadcast %9 : vector<1x16xf32> to vector<1152x16xf32>
    %11 = arith.addf %8, %10 : vector<1152x16xf32>
    %cst_7 = arith.constant 0.000000e+00 : f32
    %12 = vector.broadcast %cst_7 : f32 to vector<1152x16xf32>
    %13 = arith.maximumf %11, %12 : vector<1152x16xf32>
    %14 = vector.shape_cast %13 : vector<1152x16xf32> to vector<32x6x6x16xf32>
    %15 = vector.shape_cast %14 : vector<32x6x6x16xf32> to vector<32x3x2x6x16xf32>
    %16 = vector.extract_strided_slice %15 {offsets = [0, 0, 0, 0, 0], sizes = [32, 3, 1, 6, 16], strides = [1, 1, 1, 1, 1]} : vector<32x3x2x6x16xf32> to vector<32x3x1x6x16xf32>
    %17 = vector.shape_cast %16 : vector<32x3x1x6x16xf32> to vector<32x3x6x16xf32>
    %18 = vector.extract_strided_slice %15 {offsets = [0, 0, 1, 0, 0], sizes = [32, 3, 1, 6, 16], strides = [1, 1, 1, 1, 1]} : vector<32x3x2x6x16xf32> to vector<32x3x1x6x16xf32>
    %19 = vector.shape_cast %18 : vector<32x3x1x6x16xf32> to vector<32x3x6x16xf32>
    %20 = arith.maximumf %17, %19 : vector<32x3x6x16xf32>
    %21 = vector.shape_cast %20 : vector<32x3x6x16xf32> to vector<32x3x3x2x16xf32>
    %22 = vector.extract_strided_slice %21 {offsets = [0, 0, 0, 0, 0], sizes = [32, 3, 3, 1, 16], strides = [1, 1, 1, 1, 1]} : vector<32x3x3x2x16xf32> to vector<32x3x3x1x16xf32>
    %23 = vector.shape_cast %22 : vector<32x3x3x1x16xf32> to vector<32x3x3x16xf32>
    %24 = vector.extract_strided_slice %21 {offsets = [0, 0, 0, 1, 0], sizes = [32, 3, 3, 1, 16], strides = [1, 1, 1, 1, 1]} : vector<32x3x3x2x16xf32> to vector<32x3x3x1x16xf32>
    %25 = vector.shape_cast %24 : vector<32x3x3x1x16xf32> to vector<32x3x3x16xf32>
    %26 = arith.maximumf %23, %25 : vector<32x3x3x16xf32>
    %27 = vector.extract_strided_slice %26 {offsets = [0, 0, 0, 0], sizes = [32, 2, 2, 16], strides = [1, 1, 1, 1]} : vector<32x3x3x16xf32> to vector<32x2x2x16xf32>
    %28 = vector.extract_strided_slice %26 {offsets = [0, 0, 1, 0], sizes = [32, 2, 2, 16], strides = [1, 1, 1, 1]} : vector<32x3x3x16xf32> to vector<32x2x2x16xf32>
    %29 = vector.extract_strided_slice %26 {offsets = [0, 1, 0, 0], sizes = [32, 2, 2, 16], strides = [1, 1, 1, 1]} : vector<32x3x3x16xf32> to vector<32x2x2x16xf32>
    %30 = vector.extract_strided_slice %26 {offsets = [0, 1, 1, 0], sizes = [32, 2, 2, 16], strides = [1, 1, 1, 1]} : vector<32x3x3x16xf32> to vector<32x2x2x16xf32>
    %31 = tpu.concatenate %27, %28, %29, %30 in 3 : vector<32x2x2x16xf32>, vector<32x2x2x16xf32>, vector<32x2x2x16xf32>, vector<32x2x2x16xf32> -> vector<32x2x2x64xf32>
    %32 = vector.shape_cast %31 : vector<32x2x2x64xf32> to vector<128x64xf32>
    %c0_8 = arith.constant 0 : index
    %c0_9 = arith.constant 0 : index
    %33 = vector.load %arg4[%c0_8, %c0_9] : memref<64x32xf32, #tpu.memory_space<vmem>>, vector<64x32xf32>
    %cst_10 = arith.constant dense<0.000000e+00> : vector<128x32xf32>
    %34 = tpu.matmul %32, %33, %cst_10 {dimension_numbers = #tpu.dot_dimension_numbers<[1], [0], [0], [1], [0, 0, 1, 1], [], []>} : vector<128x64xf32>, vector<64x32xf32>, vector<128x32xf32> -> vector<128x32xf32>
    %c0_11 = arith.constant 0 : index
    %c0_12 = arith.constant 0 : index
    %35 = vector.load %arg5[%c0_11, %c0_12] : memref<1x32xf32, #tpu.memory_space<vmem>>, vector<1x32xf32>
    %36 = vector.broadcast %35 : vector<1x32xf32> to vector<128x32xf32>
    %37 = arith.addf %34, %36 : vector<128x32xf32>
    %cst_13 = arith.constant 0.000000e+00 : f32
    %38 = vector.broadcast %cst_13 : f32 to vector<128x32xf32>
    %39 = arith.maximumf %37, %38 : vector<128x32xf32>
    %40 = vector.shape_cast %39 : vector<128x32xf32> to vector<32x2x2x32xf32>
    %41 = vector.extract_strided_slice %40 {offsets = [0, 0, 0, 0], sizes = [32, 1, 1, 32], strides = [1, 1, 1, 1]} : vector<32x2x2x32xf32> to vector<32x1x1x32xf32>
    %42 = vector.extract_strided_slice %40 {offsets = [0, 0, 1, 0], sizes = [32, 1, 1, 32], strides = [1, 1, 1, 1]} : vector<32x2x2x32xf32> to vector<32x1x1x32xf32>
    %43 = vector.extract_strided_slice %40 {offsets = [0, 1, 0, 0], sizes = [32, 1, 1, 32], strides = [1, 1, 1, 1]} : vector<32x2x2x32xf32> to vector<32x1x1x32xf32>
    %44 = vector.extract_strided_slice %40 {offsets = [0, 1, 1, 0], sizes = [32, 1, 1, 32], strides = [1, 1, 1, 1]} : vector<32x2x2x32xf32> to vector<32x1x1x32xf32>
    %45 = tpu.concatenate %41, %42, %43, %44 in 3 : vector<32x1x1x32xf32>, vector<32x1x1x32xf32>, vector<32x1x1x32xf32>, vector<32x1x1x32xf32> -> vector<32x1x1x128xf32>
    %46 = vector.shape_cast %45 : vector<32x1x1x128xf32> to vector<32x128xf32>
    %c0_14 = arith.constant 0 : index
    %c0_15 = arith.constant 0 : index
    %47 = vector.load %arg6[%c0_14, %c0_15] : memref<128x64xf32, #tpu.memory_space<vmem>>, vector<128x64xf32>
    %cst_16 = arith.constant dense<0.000000e+00> : vector<32x64xf32>
    %48 = tpu.matmul %46, %47, %cst_16 {dimension_numbers = #tpu.dot_dimension_numbers<[1], [0], [0], [1], [0, 0, 1, 1], [], []>} : vector<32x128xf32>, vector<128x64xf32>, vector<32x64xf32> -> vector<32x64xf32>
    %c0_17 = arith.constant 0 : index
    %c0_18 = arith.constant 0 : index
    %49 = vector.load %arg7[%c0_17, %c0_18] : memref<1x64xf32, #tpu.memory_space<vmem>>, vector<1x64xf32>
    %50 = vector.broadcast %49 : vector<1x64xf32> to vector<32x64xf32>
    %51 = arith.addf %48, %50 : vector<32x64xf32>
    %cst_19 = arith.constant 0.000000e+00 : f32
    %52 = vector.broadcast %cst_19 : f32 to vector<32x64xf32>
    %53 = arith.maximumf %51, %52 : vector<32x64xf32>
    %c0_20 = arith.constant 0 : index
    %c0_21 = arith.constant 0 : index
    %54 = vector.load %arg8[%c0_20, %c0_21] : memref<64x128xf32, #tpu.memory_space<vmem>>, vector<64x128xf32>
    %cst_22 = arith.constant dense<0.000000e+00> : vector<32x128xf32>
    %55 = tpu.matmul %53, %54, %cst_22 {dimension_numbers = #tpu.dot_dimension_numbers<[1], [0], [0], [1], [0, 0, 1, 1], [], []>} : vector<32x64xf32>, vector<64x128xf32>, vector<32x128xf32> -> vector<32x128xf32>
    %c0_23 = arith.constant 0 : index
    %c0_24 = arith.constant 0 : index
    %56 = vector.load %arg9[%c0_23, %c0_24] : memref<1x128xf32, #tpu.memory_space<vmem>>, vector<1x128xf32>
    %57 = vector.broadcast %56 : vector<1x128xf32> to vector<32x128xf32>
    %58 = arith.addf %55, %57 : vector<32x128xf32>
    %59 = math.tanh %58 : vector<32x128xf32>
    %c0_25 = arith.constant 0 : index
    %c0_26 = arith.constant 0 : index
    %60 = vector.load %arg10[%c0_25, %c0_26] : memref<128x128xf32, #tpu.memory_space<vmem>>, vector<128x128xf32>
    %cst_27 = arith.constant dense<0.000000e+00> : vector<32x128xf32>
    %61 = tpu.matmul %59, %60, %cst_27 {dimension_numbers = #tpu.dot_dimension_numbers<[1], [0], [0], [1], [0, 0, 1, 1], [], []>} : vector<32x128xf32>, vector<128x128xf32>, vector<32x128xf32> -> vector<32x128xf32>
    %c0_28 = arith.constant 0 : index
    %c0_29 = arith.constant 0 : index
    %62 = vector.load %arg11[%c0_28, %c0_29] : memref<1x128xf32, #tpu.memory_space<vmem>>, vector<1x128xf32>
    %63 = vector.broadcast %62 : vector<1x128xf32> to vector<32x128xf32>
    %64 = arith.addf %61, %63 : vector<32x128xf32>
    %65 = tpu.iota {dimensions = array<i32: 1>} : vector<32x128xi32>
    %c5_i32 = arith.constant 5 : i32
    %66 = vector.broadcast %c5_i32 : i32 to vector<32x128xi32>
    %67 = arith.cmpi slt, %65, %66 : vector<32x128xi32>
    %cst_30 = arith.constant -1.000000e+30 : f32
    %68 = vector.broadcast %cst_30 : f32 to vector<32x128xf32>
    %69 = arith.select %67, %64, %68 : vector<32x128xi1>, vector<32x128xf32>
    %cst_31 = arith.constant dense<0xFF800000> : vector<32xf32>
    %70 = vector.multi_reduction <maximumf>, %69, %cst_31 [1] : vector<32x128xf32> to vector<32xf32>
    %71 = vector.shape_cast %70 : vector<32xf32> to vector<32x1xf32>
    %72 = vector.broadcast %71 : vector<32x1xf32> to vector<32x128xf32>
    %73 = arith.subf %69, %72 : vector<32x128xf32>
    %74 = math.exp %73 : vector<32x128xf32>
    %cst_32 = arith.constant dense<0.000000e+00> : vector<32xf32>
    %75 = vector.multi_reduction <add>, %74, %cst_32 [1] : vector<32x128xf32> to vector<32xf32>
    %76 = vector.shape_cast %75 : vector<32xf32> to vector<32x1xf32>
    %77 = math.log %76 : vector<32x1xf32>
    %78 = arith.addf %71, %77 : vector<32x1xf32>
    %79 = vector.broadcast %78 : vector<32x1xf32> to vector<32x128xf32>
    %80 = arith.subf %64, %79 : vector<32x128xf32>
    %c5_i32_33 = arith.constant 5 : i32
    %81 = vector.broadcast %c5_i32_33 : i32 to vector<32x128xi32>
    %82 = arith.cmpi eq, %65, %81 : vector<32x128xi32>
    %cst_34 = arith.constant 0.000000e+00 : f32
    %83 = vector.broadcast %cst_34 : f32 to vector<32x128xf32>
    %84 = arith.select %82, %64, %83 : vector<32x128xi1>, vector<32x128xf32>
    %85 = arith.select %67, %80, %84 : vector<32x128xi1>, vector<32x128xf32>
    %c0_35 = arith.constant 0 : index
    %c0_36 = arith.constant 0 : index
    %86 = vector.load %arg12[%c0_35, %c0_36] : memref<32x128xf32, #tpu.memory_space<vmem>>, vector<32x128xf32>
    tpu.vector_store %arg12[%c0_35, %c0_36], %85 {strides = array<i32>} : memref<32x128xf32, #tpu.memory_space<vmem>>, vector<32x128xf32>,
    return
  }
  func.func @transform_0(%arg0: i32) -> (i32, i32, i32, i32) {
    %c0_i32 = arith.constant 0 : i32
    %c0_i32_0 = arith.constant 0 : i32
    %c0_i32_1 = arith.constant 0 : i32
    %c0_i32_2 = arith.constant 0 : i32
    return %arg0, %c0_i32, %c0_i32_0, %c0_i32_1 : i32, i32, i32, i32
  }
  func.func @transform_1(%arg0: i32) -> (i32, i32) {
    %c0_i32 = arith.constant 0 : i32
    %c0_i32_0 = arith.constant 0 : i32
    %c0_i32_1 = arith.constant 0 : i32
    return %c0_i32, %c0_i32_0 : i32, i32
  }
  func.func @transform_2(%arg0: i32) -> (i32, i32) {
    %c0_i32 = arith.constant 0 : i32
    %c0_i32_0 = arith.constant 0 : i32
    %c0_i32_1 = arith.constant 0 : i32
    return %c0_i32, %c0_i32_0 : i32, i32
  }
  func.func @transform_3(%arg0: i32) -> (i32, i32) {
    %c0_i32 = arith.constant 0 : i32
    %c0_i32_0 = arith.constant 0 : i32
    %c0_i32_1 = arith.constant 0 : i32
    return %c0_i32, %c0_i32_0 : i32, i32
  }
  func.func @transform_4(%arg0: i32) -> (i32, i32) {
    %c0_i32 = arith.constant 0 : i32
    %c0_i32_0 = arith.constant 0 : i32
    %c0_i32_1 = arith.constant 0 : i32
    return %c0_i32, %c0_i32_0 : i32, i32
  }
  func.func @transform_5(%arg0: i32) -> (i32, i32) {
    %c0_i32 = arith.constant 0 : i32
    %c0_i32_0 = arith.constant 0 : i32
    %c0_i32_1 = arith.constant 0 : i32
    return %c0_i32, %c0_i32_0 : i32, i32
  }
  func.func @transform_6(%arg0: i32) -> (i32, i32) {
    %c0_i32 = arith.constant 0 : i32
    %c0_i32_0 = arith.constant 0 : i32
    %c0_i32_1 = arith.constant 0 : i32
    return %c0_i32, %c0_i32_0 : i32, i32
  }
  func.func @transform_7(%arg0: i32) -> (i32, i32) {
    %c0_i32 = arith.constant 0 : i32
    %c0_i32_0 = arith.constant 0 : i32
    %c0_i32_1 = arith.constant 0 : i32
    return %c0_i32, %c0_i32_0 : i32, i32
  }
  func.func @transform_8(%arg0: i32) -> (i32, i32) {
    %c0_i32 = arith.constant 0 : i32
    %c0_i32_0 = arith.constant 0 : i32
    %c0_i32_1 = arith.constant 0 : i32
    return %c0_i32, %c0_i32_0 : i32, i32
  }
  func.func @transform_9(%arg0: i32) -> (i32, i32) {
    %c0_i32 = arith.constant 0 : i32
    %c0_i32_0 = arith.constant 0 : i32
    %c0_i32_1 = arith.constant 0 : i32
    return %c0_i32, %c0_i32_0 : i32, i32
  }
  func.func @transform_10(%arg0: i32) -> (i32, i32) {
    %c0_i32 = arith.constant 0 : i32
    %c0_i32_0 = arith.constant 0 : i32
    %c0_i32_1 = arith.constant 0 : i32
    return %c0_i32, %c0_i32_0 : i32, i32
  }
  func.func @transform_11(%arg0: i32) -> (i32, i32) {
    %c0_i32 = arith.constant 0 : i32
    %c0_i32_0 = arith.constant 0 : i32
    return %arg0, %c0_i32 : i32, i32
  }
}

</mosaic_0001>

<llo_original>
// kernel: tpu_custom_call.1
$region0: #{tpu_custom_call.1}
  #allocation0 [shape = 'u32[]', space=smem, size = 0x4, offset = 0x4, fixed_abs, tag = 'smem constant byte address 0x4 - core index']
  #allocation1 [shape = 'u32[72,128]{1,0:T(1,128)}', space=vmem, size = 0x9000, scoped, tag = 'internal scratch']
  %s0 = inlined_call_operand.vmem [shape: f32[64,7,7,3], index: 0, kind: input, shape index: {}]
  %s1 = inlined_call_operand.vmem [shape: f32[12,16], index: 1, kind: input, shape index: {}]
  %s2 = inlined_call_operand.vmem [shape: f32[1,16], index: 2, kind: input, shape index: {}]
  %s3 = inlined_call_operand.vmem [shape: f32[64,32], index: 3, kind: input, shape index: {}]
  %s4 = inlined_call_operand.vmem [shape: f32[1,32], index: 4, kind: input, shape index: {}]
  %s5 = inlined_call_operand.vmem [shape: f32[128,64], index: 5, kind: input, shape index: {}]
  %s6 = inlined_call_operand.vmem [shape: f32[1,64], index: 6, kind: input, shape index: {}]
  %s7 = inlined_call_operand.vmem [shape: f32[64,128], index: 7, kind: input, shape index: {}]
  %s8 = inlined_call_operand.vmem [shape: f32[1,128], index: 8, kind: input, shape index: {}]
  %s9 = inlined_call_operand.vmem [shape: f32[128,128], index: 9, kind: input, shape index: {}]
  %s10 = inlined_call_operand.vmem [shape: f32[1,128], index: 10, kind: input, shape index: {}]
  %s11 = inlined_call_operand.hbm [shape: f32[64,128], index: 11, kind: output, shape index: {}]
  %s12 = sld [smem:[#allocation0]]
  $region77: #{tpu_custom_call.1} parent=0
    _
  %s14 = ssub.s32 1, %s12
  %s15 = scalar_select 0, %s14, %s12
  $region1: #{tpu_custom_call.1} parent=0
    #allocation2 [shape = 'u8[32768]{0}', space=vmem, size = 0x8000, scoped, tag = 'output window, operand 0']
    #allocation3 [shape = 's32[2]{0}', space=sflag, size = 0x8, scoped, tag = 'scoped memory for tpu_custom_call.1']
    %16 = vsyncpa [#allocation3], 0
    %s17 = scalar_lea.sflag [#allocation3], 1
    %18 = vsyncpa %s17, 0
    loop: start=0, step=1, limit=4
    $region2: #{tpu_custom_call.1} parent=1 // loop_pre_header
      _
    $region3: #{tpu_custom_call.1} parent=1 // loop_header
      %s20 = sphi 0, %s24
      %p21 = scmp.ge.s32.totalorder %s20, 4
      %s30 = sphi 0, %s32
      %s33 = sphi 0, %s30
      %s34 = sphi 0, %s33
      %s50 = sphi 0, %s34
      %s54 = sphi 0, %s54
      %s56 = sphi 0, %s54
      %s57 = sphi 0, %s56
      %s71 = sphi 0, %s57
      %s75 = sphi 0, %s75
      %s77 = sphi 0, %s75
      %s78 = sphi 0, %s77
      %s92 = sphi 0, %s78
      %s96 = sphi 0, %s96
      %s98 = sphi 0, %s96
      %s99 = sphi 0, %s98
      %s113 = sphi 0, %s99
      %s117 = sphi 0, %s117
      %s119 = sphi 0, %s117
      %s120 = sphi 0, %s119
      %s134 = sphi 0, %s120
      %s138 = sphi 0, %s138
      %s140 = sphi 0, %s138
      %s141 = sphi 0, %s140
      %s155 = sphi 0, %s141
      %s159 = sphi 0, %s159
      %s161 = sphi 0, %s159
      %s162 = sphi 0, %s161
      %s176 = sphi 0, %s162
      %s180 = sphi 0, %s180
      %s182 = sphi 0, %s180
      %s183 = sphi 0, %s182
      %s197 = sphi 0, %s183
      %s201 = sphi 0, %s201
      %s203 = sphi 0, %s201
      %s204 = sphi 0, %s203
      %s218 = sphi 0, %s204
      %s222 = sphi 0, %s222
      %s224 = sphi 0, %s222
      %s225 = sphi 0, %s224
      %s239 = sphi 0, %s225
      %s243 = sphi 0, %s243
      %s245 = sphi 0, %s243
      %s246 = sphi 0, %s245
      %s260 = sphi 0, %s246
      %s266 = sphi 0, %s268
      %s269 = sphi 0, %s266
      %s270 = sphi 0, %s269
      %s286 = sphi 0, %s270
    $region4: #{tpu_custom_call.1} parent=1 // loop_header_branch
      %23 = sbr.rel (%p21) target = $region8
    $region5: #{tpu_custom_call.1} parent=1 // loop_body
      %s25 = ssub.s32 %s20, 1
      %s26 = ssub.s32 %s20, 2
      %s27 = sadd.s32 %s20, 1
      %s28 = ssub.s32 %s20, %s27
      %p29 = scmp.eq.s32.totalorder %s28, 0
      %s31 = sadd.s32 %s30, 1
      %s32 = scalar_select %p29, %s30, %s31
      %p35 = pneg %p29
      %p36 = scmp.eq.s32.totalorder %s20, 1
      %p37 = por %p35, %p36
      %p38 = scmp.ne.s32.totalorder %s30, %s33
      %p39 = scmp.eq.s32.totalorder %s20, 0
      %p40 = por %p38, %p39
      %p41 = scmp.ne.s32.totalorder %s30, %s33
      %p42 = scmp.eq.s32.totalorder %s25, 1
      %p43 = por %p41, %p42
      %p44 = scmp.ne.s32.totalorder %s33, %s34
      %p45 = scmp.eq.s32.totalorder %s25, 0
      %p46 = por %p44, %p45
      %p47 = scmp.ne.s32.totalorder %s33, %s34
      %p48 = scmp.eq.s32.totalorder %s26, 1
      %p49 = por %p47, %p48
      %p51 = scmp.ne.s32.totalorder %s34, %s50
      %p52 = scmp.eq.s32.totalorder %s26, 0
      %p53 = por %p51, %p52
      %s55 = sadd.s32 %s54, 1
      %p58 = scmp.eq.s32.totalorder %s20, 1
      %p59 = scmp.ne.s32.totalorder %s54, %s56
      %p60 = scmp.eq.s32.totalorder %s20, 0
      %p61 = por %p59, %p60
      %p62 = scmp.ne.s32.totalorder %s54, %s56
      %p63 = scmp.eq.s32.totalorder %s25, 1
      %p64 = por %p62, %p63
      %p65 = scmp.ne.s32.totalorder %s56, %s57
      %p66 = scmp.eq.s32.totalorder %s25, 0
      %p67 = por %p65, %p66
      %p68 = scmp.ne.s32.totalorder %s56, %s57
      %p69 = scmp.eq.s32.totalorder %s26, 1
      %p70 = por %p68, %p69
      %p72 = scmp.ne.s32.totalorder %s57, %s71
      %p73 = scmp.eq.s32.totalorder %s26, 0
      %p74 = por %p72, %p73
      %s76 = sadd.s32 %s75, 1
      %p79 = scmp.eq.s32.totalorder %s20, 1
      %p80 = scmp.ne.s32.totalorder %s75, %s77
      %p81 = scmp.eq.s32.totalorder %s20, 0
      %p82 = por %p80, %p81
      %p83 = scmp.ne.s32.totalorder %s75, %s77
      %p84 = scmp.eq.s32.totalorder %s25, 1
      %p85 = por %p83, %p84
      %p86 = scmp.ne.s32.totalorder %s77, %s78
      %p87 = scmp.eq.s32.totalorder %s25, 0
      %p88 = por %p86, %p87
      %p89 = scmp.ne.s32.totalorder %s77, %s78
      %p90 = scmp.eq.s32.totalorder %s26, 1
      %p91 = por %p89, %p90
      %p93 = scmp.ne.s32.totalorder %s78, %s92
      %p94 = scmp.eq.s32.totalorder %s26, 0
      %p95 = por %p93, %p94
      %s97 = sadd.s32 %s96, 1
      %p100 = scmp.eq.s32.totalorder %s20, 1
      %p101 = scmp.ne.s32.totalorder %s96, %s98
      %p102 = scmp.eq.s32.totalorder %s20, 0
      %p103 = por %p101, %p102
      %p104 = scmp.ne.s32.totalorder %s96, %s98
      %p105 = scmp.eq.s32.totalorder %s25, 1
      %p106 = por %p104, %p105
      %p107 = scmp.ne.s32.totalorder %s98, %s99
      %p108 = scmp.eq.s32.totalorder %s25, 0
      %p109 = por %p107, %p108
      %p110 = scmp.ne.s32.totalorder %s98, %s99
      %p111 = scmp.eq.s32.totalorder %s26, 1
      %p112 = por %p110, %p111
      %p114 = scmp.ne.s32.totalorder %s99, %s113
      %p115 = scmp.eq.s32.totalorder %s26, 0
      %p116 = por %p114, %p115
      %s118 = sadd.s32 %s117, 1
      %p121 = scmp.eq.s32.totalorder %s20, 1
      %p122 = scmp.ne.s32.totalorder %s117, %s119
      %p123 = scmp.eq.s32.totalorder %s20, 0
      %p124 = por %p122, %p123
      %p125 = scmp.ne.s32.totalorder %s117, %s119
      %p126 = scmp.eq.s32.totalorder %s25, 1
      %p127 = por %p125, %p126
      %p128 = scmp.ne.s32.totalorder %s119, %s120
      %p129 = scmp.eq.s32.totalorder %s25, 0
      %p130 = por %p128, %p129
      %p131 = scmp.ne.s32.totalorder %s119, %s120
      %p132 = scmp.eq.s32.totalorder %s26, 1
      %p133 = por %p131, %p132
      %p135 = scmp.ne.s32.totalorder %s120, %s134
      %p136 = scmp.eq.s32.totalorder %s26, 0
      %p137 = por %p135, %p136
      %s139 = sadd.s32 %s138, 1
      %p142 = scmp.eq.s32.totalorder %s20, 1
      %p143 = scmp.ne.s32.totalorder %s138, %s140
      %p144 = scmp.eq.s32.totalorder %s20, 0
      %p145 = por %p143, %p144
      %p146 = scmp.ne.s32.totalorder %s138, %s140
      %p147 = scmp.eq.s32.totalorder %s25, 1
      %p148 = por %p146, %p147
      %p149 = scmp.ne.s32.totalorder %s140, %s141
      %p150 = scmp.eq.s32.totalorder %s25, 0
      %p151 = por %p149, %p150
      %p152 = scmp.ne.s32.totalorder %s140, %s141
      %p153 = scmp.eq.s32.totalorder %s26, 1
      %p154 = por %p152, %p153
      %p156 = scmp.ne.s32.totalorder %s141, %s155
      %p157 = scmp.eq.s32.totalorder %s26, 0
      %p158 = por %p156, %p157
      %s160 = sadd.s32 %s159, 1
      %p163 = scmp.eq.s32.totalorder %s20, 1
      %p164 = scmp.ne.s32.totalorder %s159, %s161
      %p165 = scmp.eq.s32.totalorder %s20, 0
      %p166 = por %p164, %p165
      %p167 = scmp.ne.s32.totalorder %s159, %s161
      %p168 = scmp.eq.s32.totalorder %s25, 1
      %p169 = por %p167, %p168
      %p170 = scmp.ne.s32.totalorder %s161, %s162
      %p171 = scmp.eq.s32.totalorder %s25, 0
      %p172 = por %p170, %p171
      %p173 = scmp.ne.s32.totalorder %s161, %s162
      %p174 = scmp.eq.s32.totalorder %s26, 1
      %p175 = por %p173, %p174
      %p177 = scmp.ne.s32.totalorder %s162, %s176
      %p178 = scmp.eq.s32.totalorder %s26, 0
      %p179 = por %p177, %p178
      %s181 = sadd.s32 %s180, 1
      %p184 = scmp.eq.s32.totalorder %s20, 1
      %p185 = scmp.ne.s32.totalorder %s180, %s182
      %p186 = scmp.eq.s32.totalorder %s20, 0
      %p187 = por %p185, %p186
      %p188 = scmp.ne.s32.totalorder %s180, %s182
      %p189 = scmp.eq.s32.totalorder %s25, 1
      %p190 = por %p188, %p189
      %p191 = scmp.ne.s32.totalorder %s182, %s183
      %p192 = scmp.eq.s32.totalorder %s25, 0
      %p193 = por %p191, %p192
      %p194 = scmp.ne.s32.totalorder %s182, %s183
      %p195 = scmp.eq.s32.totalorder %s26, 1
      %p196 = por %p194, %p195
      %p198 = scmp.ne.s32.totalorder %s183, %s197
      %p199 = scmp.eq.s32.totalorder %s26, 0
      %p200 = por %p198, %p199
      %s202 = sadd.s32 %s201, 1
      %p205 = scmp.eq.s32.totalorder %s20, 1
      %p206 = scmp.ne.s32.totalorder %s201, %s203
      %p207 = scmp.eq.s32.totalorder %s20, 0
      %p208 = por %p206, %p207
      %p209 = scmp.ne.s32.totalorder %s201, %s203
      %p210 = scmp.eq.s32.totalorder %s25, 1
      %p211 = por %p209, %p210
      %p212 = scmp.ne.s32.totalorder %s203, %s204
      %p213 = scmp.eq.s32.totalorder %s25, 0
      %p214 = por %p212, %p213
      %p215 = scmp.ne.s32.totalorder %s203, %s204
      %p216 = scmp.eq.s32.totalorder %s26, 1
      %p217 = por %p215, %p216
      %p219 = scmp.ne.s32.totalorder %s204, %s218
      %p220 = scmp.eq.s32.totalorder %s26, 0
      %p221 = por %p219, %p220
      %s223 = sadd.s32 %s222, 1
      %p226 = scmp.eq.s32.totalorder %s20, 1
      %p227 = scmp.ne.s32.totalorder %s222, %s224
      %p228 = scmp.eq.s32.totalorder %s20, 0
      %p229 = por %p227, %p228
      %p230 = scmp.ne.s32.totalorder %s222, %s224
      %p231 = scmp.eq.s32.totalorder %s25, 1
      %p232 = por %p230, %p231
      %p233 = scmp.ne.s32.totalorder %s224, %s225
      %p234 = scmp.eq.s32.totalorder %s25, 0
      %p235 = por %p233, %p234
      %p236 = scmp.ne.s32.totalorder %s224, %s225
      %p237 = scmp.eq.s32.totalorder %s26, 1
      %p238 = por %p236, %p237
      %p240 = scmp.ne.s32.totalorder %s225, %s239
      %p241 = scmp.eq.s32.totalorder %s26, 0
      %p242 = por %p240, %p241
      %s244 = sadd.s32 %s243, 1
      %p247 = scmp.eq.s32.totalorder %s20, 1
      %p248 = scmp.ne.s32.totalorder %s243, %s245
      %p249 = scmp.eq.s32.totalorder %s20, 0
      %p250 = por %p248, %p249
      %p251 = scmp.ne.s32.totalorder %s243, %s245
      %p252 = scmp.eq.s32.totalorder %s25, 1
      %p253 = por %p251, %p252
      %p254 = scmp.ne.s32.totalorder %s245, %s246
      %p255 = scmp.eq.s32.totalorder %s25, 0
      %p256 = por %p254, %p255
      %p257 = scmp.ne.s32.totalorder %s245, %s246
      %p258 = scmp.eq.s32.totalorder %s26, 1
      %p259 = por %p257, %p258
      %p261 = scmp.ne.s32.totalorder %s246, %s260
      %p262 = scmp.eq.s32.totalorder %s26, 0
      %p263 = por %p261, %p262
      %s264 = ssub.s32 %s20, %s27
      %p265 = scmp.eq.s32.totalorder %s264, 0
      %s267 = sadd.s32 %s266, 1
      %s268 = scalar_select %p265, %s266, %s267
      %p271 = pneg %p265
      %p272 = scmp.eq.s32.totalorder %s20, 1
      %p273 = por %p271, %p272
      %p274 = scmp.ne.s32.totalorder %s266, %s269
      %p275 = scmp.eq.s32.totalorder %s20, 0
      %p276 = por %p274, %p275
      %p277 = scmp.ne.s32.totalorder %s266, %s269
      %p278 = scmp.eq.s32.totalorder %s25, 1
      %p279 = por %p277, %p278
      %p280 = scmp.ne.s32.totalorder %s269, %s270
      %p281 = scmp.eq.s32.totalorder %s25, 0
      %p282 = por %p280, %p281
      %p283 = scmp.ne.s32.totalorder %s269, %s270
      %p284 = scmp.eq.s32.totalorder %s26, 1
      %p285 = por %p283, %p284
      %p287 = scmp.ne.s32.totalorder %s270, %s286
      %p288 = scmp.eq.s32.totalorder %s26, 0
      %p289 = por %p287, %p288
      %p290 = scmp.le.s32.totalorder 1, %s20
      %p291 = scmp.lt.s32.totalorder %s20, 3
      %p292 = pnand %p290, %p291
      %p293 = pneg %p292
      // Predicated region
      $region9: #{tpu_custom_call.1} parent=5 // pred_check
        _
      $region10: #{tpu_custom_call.1} parent=5 // pred_check_branch
        %295 = sbr.rel (%p292) target = $region12
      $region11: #{tpu_custom_call.1} parent=5 // pred_region
        %s296 = ssub.s32 %s20, 1
        // Predicated region
        $region13: #{tpu_custom_call.1} parent=11 // pred_check
          %p297 = pneg %p67
        $region14: #{tpu_custom_call.1} parent=11 // pred_check_branch
          %299 = sbr.rel (%p297) target = $region16
        $region15: #{tpu_custom_call.1} parent=11 // pred_region
          _
        $region16: #{tpu_custom_call.1} parent=11 // pred_fallthru
          _
        // Predicated region
        $region17: #{tpu_custom_call.1} parent=11 // pred_check
          %p300 = pneg %p88
        $region18: #{tpu_custom_call.1} parent=11 // pred_check_branch
          %302 = sbr.rel (%p300) target = $region20
        $region19: #{tpu_custom_call.1} parent=11 // pred_region
          _
        $region20: #{tpu_custom_call.1} parent=11 // pred_fallthru
          _
        // Predicated region
        $region21: #{tpu_custom_call.1} parent=11 // pred_check
          %p303 = pneg %p109
        $region22: #{tpu_custom_call.1} parent=11 // pred_check_branch
          %305 = sbr.rel (%p303) target = $region24
        $region23: #{tpu_custom_call.1} parent=11 // pred_region
          _
        $region24: #{tpu_custom_call.1} parent=11 // pred_fallthru
          _
        // Predicated region
        $region25: #{tpu_custom_call.1} parent=11 // pred_check
          %p306 = pneg %p130
        $region26: #{tpu_custom_call.1} parent=11 // pred_check_branch
          %308 = sbr.rel (%p306) target = $region28
        $region27: #{tpu_custom_call.1} parent=11 // pred_region
          _
        $region28: #{tpu_custom_call.1} parent=11 // pred_fallthru
          _
        // Predicated region
        $region29: #{tpu_custom_call.1} parent=11 // pred_check
          %p309 = pneg %p151
        $region30: #{tpu_custom_call.1} parent=11 // pred_check_branch
          %311 = sbr.rel (%p309) target = $region32
        $region31: #{tpu_custom_call.1} parent=11 // pred_region
          _
        $region32: #{tpu_custom_call.1} parent=11 // pred_fallthru
          _
        // Predicated region
        $region33: #{tpu_custom_call.1} parent=11 // pred_check
          %p312 = pneg %p172
        $region34: #{tpu_custom_call.1} parent=11 // pred_check_branch
          %314 = sbr.rel (%p312) target = $region36
        $region35: #{tpu_custom_call.1} parent=11 // pred_region
          _
        $region36: #{tpu_custom_call.1} parent=11 // pred_fallthru
          _
        // Predicated region
        $region37: #{tpu_custom_call.1} parent=11 // pred_check
          %p315 = pneg %p193
        $region38: #{tpu_custom_call.1} parent=11 // pred_check_branch
          %317 = sbr.rel (%p315) target = $region40
        $region39: #{tpu_custom_call.1} parent=11 // pred_region
          _
        $region40: #{tpu_custom_call.1} parent=11 // pred_fallthru
          _
        // Predicated region
        $region41: #{tpu_custom_call.1} parent=11 // pred_check
          %p318 = pneg %p214
        $region42: #{tpu_custom_call.1} parent=11 // pred_check_branch
          %320 = sbr.rel (%p318) target = $region44
        $region43: #{tpu_custom_call.1} parent=11 // pred_region
          _
        $region44: #{tpu_custom_call.1} parent=11 // pred_fallthru
          _
        // Predicated region
        $region45: #{tpu_custom_call.1} parent=11 // pred_check
          %p321 = pneg %p235
        $region46: #{tpu_custom_call.1} parent=11 // pred_check_branch
          %323 = sbr.rel (%p321) target = $region48
        $region47: #{tpu_custom_call.1} parent=11 // pred_region
          _
        $region48: #{tpu_custom_call.1} parent=11 // pred_fallthru
          _
        // Predicated region
        $region49: #{tpu_custom_call.1} parent=11 // pred_check
          %p324 = pneg %p256
        $region50: #{tpu_custom_call.1} parent=11 // pred_check_branch
          %326 = sbr.rel (%p324) target = $region52
        $region51: #{tpu_custom_call.1} parent=11 // pred_region
          _
        $region52: #{tpu_custom_call.1} parent=11 // pred_fallthru
          _
      $region12: #{tpu_custom_call.1} parent=5 // pred_fallthru
        _
      %p327 = scmp.lt.s32.totalorder %s20, 2
      // Predicated region
      $region53: #{tpu_custom_call.1} parent=5 // pred_check
        %p328 = pneg %p327
      $region54: #{tpu_custom_call.1} parent=5 // pred_check_branch
        %330 = sbr.rel (%p328) target = $region56
      $region55: #{tpu_custom_call.1} parent=5 // pred_region
        // Predicated region
        $region57: #{tpu_custom_call.1} parent=55 // pred_check
          %p331 = pneg %p40
        $region58: #{tpu_custom_call.1} parent=55 // pred_check_branch
          %333 = sbr.rel (%p331) target = $region60
        $region59: #{tpu_custom_call.1} parent=55 // pred_region
          %s334 = smul.u32 32, %s20
          %p335 = scmp.lt.s32.totalorder %s334, 63
          %s336 = scalar_select %p335, %s334, 63
          %s337 = smul.addr %s336, 7
          %s338 = smul.addr %s337, 8
          %s339 = scalar_lea.vmem %s0, %s338
          %s340 = smul.u32 32, %s20
        $region60: #{tpu_custom_call.1} parent=55 // pred_fallthru
          _
      $region56: #{tpu_custom_call.1} parent=5 // pred_fallthru
        _
      %p341 = scmp.le.s32.totalorder 1, %s20
      %p342 = scmp.lt.s32.totalorder %s20, 3
      %p343 = pnand %p341, %p342
      %p344 = pneg %p343
      // Predicated region
      $region61: #{tpu_custom_call.1} parent=5 // pred_check
        _
      $region62: #{tpu_custom_call.1} parent=5 // pred_check_branch
        %346 = sbr.rel (%p343) target = $region64
      $region63: #{tpu_custom_call.1} parent=5 // pred_region
        %s347 = ssub.s32 %s20, 1
        %s348 = smul.u32 32, %s25
        %p349 = scmp.lt.s32.totalorder %s348, 63
        %s350 = scalar_select %p349, %s348, 63
        %s351 = smul.addr %s350, 7
        %s352 = smul.addr %s351, 8
        %s353 = scalar_lea.vmem %s0, %s352
        %p354 = pneg %p46
        %p355 = pneg %p43
        %p356 = pneg %p67
        %p357 = pneg %p64
        %p358 = pneg %p88
        %p359 = pneg %p85
        %p360 = pneg %p109
        %p361 = pneg %p106
        %p362 = pneg %p130
        %p363 = pneg %p127
        %p364 = pneg %p151
        %p365 = pneg %p148
        %p366 = pneg %p172
        %p367 = pneg %p169
        %p368 = pneg %p193
        %p369 = pneg %p190
        %p370 = pneg %p214
        %p371 = pneg %p211
        %p372 = pneg %p235
        %p373 = pneg %p232
        %p374 = pneg %p256
        %p375 = pneg %p253
        %p376 = pneg %p282
        %p377 = pneg %p279
        %s378 = sand.u32 %s269, 1
        %s379 = scalar_lea.sflag [#allocation3], %s378
        %s380 = sand.u32 %s269, 1
        %s381 = smul.addr %s380, 32
        %s382 = scalar_lea.vmem [#allocation2], %s381
        %s383 = smul.u32 32, %s25
        %p384 = scmp.lt.s32.totalorder %s383, 63
        %s385 = scalar_select %p384, %s383, 63
        %s386 = smul.addr %s385, 7
        %s387 = smul.addr %s386, 8
        %s388 = scalar_lea.vmem %s0, %s387
        %s389 = smul.u32 32, %s25
        %s390 = smul.u32 4, %s25
        %v391 = vld [vmem:[%s388] sm:$0x7f]
        %v392 = vld [vmem:[%s388 + $0x8] sm:$0x7f]
        %v393 = vld [vmem:[%s388 + $0x10] sm:$0x7f]
        %v394 = vld [vmem:[%s388 + $0x18] sm:$0x7f]
        %v395 = vld [vmem:[%s388 + $0x20] sm:$0x7f]
        %v396 = vld [vmem:[%s388 + $0x28] sm:$0x7f]
        %v397 = vld [vmem:[%s388 + $0x30] sm:$0x7f]
        %v398 = vld [vmem:[%s388 + $0x38] sm:$0x7f]
        %v399 = vld [vmem:[%s388 + $0x40] sm:$0x7f]
        %v400 = vld [vmem:[%s388 + $0x48] sm:$0x7f]
        %v401 = vld [vmem:[%s388 + $0x50] sm:$0x7f]
        %v402 = vld [vmem:[%s388 + $0x58] sm:$0x7f]
        %v403 = vld [vmem:[%s388 + $0x60] sm:$0x7f]
        %v404 = vld [vmem:[%s388 + $0x68] sm:$0x7f]
        %v405 = vld [vmem:[%s388 + $0x70] sm:$0x7f]
        %v406 = vld [vmem:[%s388 + $0x78] sm:$0x7f]
        %v407 = vld [vmem:[%s388 + $0x80] sm:$0x7f]
        %v408 = vld [vmem:[%s388 + $0x88] sm:$0x7f]
        %v409 = vld [vmem:[%s388 + $0x90] sm:$0x7f]
        %v410 = vld [vmem:[%s388 + $0x98] sm:$0x7f]
        %v411 = vld [vmem:[%s388 + $0xa0] sm:$0x7f]
        %v412 = vld [vmem:[%s388 + $0xa8] sm:$0x7f]
        %v413 = vld [vmem:[%s388 + $0xb0] sm:$0x7f]
        %v414 = vld [vmem:[%s388 + $0xb8] sm:$0x7f]
        %v415 = vld [vmem:[%s388 + $0xc0] sm:$0x7f]
        %v416 = vld [vmem:[%s388 + $0xc8] sm:$0x7f]
        %v417 = vld [vmem:[%s388 + $0xd0] sm:$0x7f]
        %v418 = vld [vmem:[%s388 + $0xd8] sm:$0x7f]
        %v419 = vld [vmem:[%s388 + $0xe0] sm:$0x7f]
        %v420 = vld [vmem:[%s388 + $0xe8] sm:$0x7f]
        %v421 = vld [vmem:[%s388 + $0xf0] sm:$0x7f]
        %v422 = vld [vmem:[%s388 + $0xf8] sm:$0x7f]
        %v423 = vld [vmem:[%s388 + $0x100] sm:$0x7f]
        %v424 = vld [vmem:[%s388 + $0x108] sm:$0x7f]
        %v425 = vld [vmem:[%s388 + $0x110] sm:$0x7f]
        %v426 = vld [vmem:[%s388 + $0x118] sm:$0x7f]
        %v427 = vld [vmem:[%s388 + $0x120] sm:$0x7f]
        %v428 = vld [vmem:[%s388 + $0x128] sm:$0x7f]
        %v429 = vld [vmem:[%s388 + $0x130] sm:$0x7f]
        %v430 = vld [vmem:[%s388 + $0x138] sm:$0x7f]
        %v431 = vld [vmem:[%s388 + $0x140] sm:$0x7f]
        %v432 = vld [vmem:[%s388 + $0x148] sm:$0x7f]
        %v433 = vld [vmem:[%s388 + $0x150] sm:$0x7f]
        %v434 = vld [vmem:[%s388 + $0x158] sm:$0x7f]
        %v435 = vld [vmem:[%s388 + $0x160] sm:$0x7f]
        %v436 = vld [vmem:[%s388 + $0x168] sm:$0x7f]
        %v437 = vld [vmem:[%s388 + $0x170] sm:$0x7f]
        %v438 = vld [vmem:[%s388 + $0x178] sm:$0x7f]
        %v439 = vld [vmem:[%s388 + $0x180] sm:$0x7f]
        %v440 = vld [vmem:[%s388 + $0x188] sm:$0x7f]
        %v441 = vld [vmem:[%s388 + $0x190] sm:$0x7f]
        %v442 = vld [vmem:[%s388 + $0x198] sm:$0x7f]
        %v443 = vld [vmem:[%s388 + $0x1a0] sm:$0x7f]
        %v444 = vld [vmem:[%s388 + $0x1a8] sm:$0x7f]
        %v445 = vld [vmem:[%s388 + $0x1b0] sm:$0x7f]
        %v446 = vld [vmem:[%s388 + $0x1b8] sm:$0x7f]
        %v447 = vld [vmem:[%s388 + $0x1c0] sm:$0x7f]
        %v448 = vld [vmem:[%s388 + $0x1c8] sm:$0x7f]
        %v449 = vld [vmem:[%s388 + $0x1d0] sm:$0x7f]
        %v450 = vld [vmem:[%s388 + $0x1d8] sm:$0x7f]
        %v451 = vld [vmem:[%s388 + $0x1e0] sm:$0x7f]
        %v452 = vld [vmem:[%s388 + $0x1e8] sm:$0x7f]
        %v453 = vld [vmem:[%s388 + $0x1f0] sm:$0x7f]
        %v454 = vld [vmem:[%s388 + $0x1f8] sm:$0x7f]
        %v455 = vld [vmem:[%s388 + $0x200] sm:$0x7f]
        %v456 = vld [vmem:[%s388 + $0x208] sm:$0x7f]
        %v457 = vld [vmem:[%s388 + $0x210] sm:$0x7f]
        %v458 = vld [vmem:[%s388 + $0x218] sm:$0x7f]
        %v459 = vld [vmem:[%s388 + $0x220] sm:$0x7f]
        %v460 = vld [vmem:[%s388 + $0x228] sm:$0x7f]
        %v461 = vld [vmem:[%s388 + $0x230] sm:$0x7f]
        %v462 = vld [vmem:[%s388 + $0x238] sm:$0x7f]
        %v463 = vld [vmem:[%s388 + $0x240] sm:$0x7f]
        %v464 = vld [vmem:[%s388 + $0x248] sm:$0x7f]
        %v465 = vld [vmem:[%s388 + $0x250] sm:$0x7f]
        %v466 = vld [vmem:[%s388 + $0x258] sm:$0x7f]
        %v467 = vld [vmem:[%s388 + $0x260] sm:$0x7f]
        %v468 = vld [vmem:[%s388 + $0x268] sm:$0x7f]
        %v469 = vld [vmem:[%s388 + $0x270] sm:$0x7f]
        %v470 = vld [vmem:[%s388 + $0x278] sm:$0x7f]
        %v471 = vld [vmem:[%s388 + $0x280] sm:$0x7f]
        %v472 = vld [vmem:[%s388 + $0x288] sm:$0x7f]
        %v473 = vld [vmem:[%s388 + $0x290] sm:$0x7f]
        %v474 = vld [vmem:[%s388 + $0x298] sm:$0x7f]
        %v475 = vld [vmem:[%s388 + $0x2a0] sm:$0x7f]
        %v476 = vld [vmem:[%s388 + $0x2a8] sm:$0x7f]
        %v477 = vld [vmem:[%s388 + $0x2b0] sm:$0x7f]
        %v478 = vld [vmem:[%s388 + $0x2b8] sm:$0x7f]
        %v479 = vld [vmem:[%s388 + $0x2c0] sm:$0x7f]
        %v480 = vld [vmem:[%s388 + $0x2c8] sm:$0x7f]
        %v481 = vld [vmem:[%s388 + $0x2d0] sm:$0x7f]
        %v482 = vld [vmem:[%s388 + $0x2d8] sm:$0x7f]
        %v483 = vld [vmem:[%s388 + $0x2e0] sm:$0x7f]
        %v484 = vld [vmem:[%s388 + $0x2e8] sm:$0x7f]
        %v485 = vld [vmem:[%s388 + $0x2f0] sm:$0x7f]
        %v486 = vld [vmem:[%s388 + $0x2f8] sm:$0x7f]
        %v487 = vld [vmem:[%s388 + $0x300] sm:$0x7f]
        %v488 = vld [vmem:[%s388 + $0x308] sm:$0x7f]
        %v489 = vld [vmem:[%s388 + $0x310] sm:$0x7f]
        %v490 = vld [vmem:[%s388 + $0x318] sm:$0x7f]
        %v491 = vld [vmem:[%s388 + $0x320] sm:$0x7f]
        %v492 = vld [vmem:[%s388 + $0x328] sm:$0x7f]
        %v493 = vld [vmem:[%s388 + $0x330] sm:$0x7f]
        %v494 = vld [vmem:[%s388 + $0x338] sm:$0x7f]
        %v495 = vld [vmem:[%s388 + $0x340] sm:$0x7f]
        %v496 = vld [vmem:[%s388 + $0x348] sm:$0x7f]
        %v497 = vld [vmem:[%s388 + $0x350] sm:$0x7f]
        %v498 = vld [vmem:[%s388 + $0x358] sm:$0x7f]
        %v499 = vld [vmem:[%s388 + $0x360] sm:$0x7f]
        %v500 = vld [vmem:[%s388 + $0x368] sm:$0x7f]
        %v501 = vld [vmem:[%s388 + $0x370] sm:$0x7f]
        %v502 = vld [vmem:[%s388 + $0x378] sm:$0x7f]
        %v503 = vld [vmem:[%s388 + $0x380] sm:$0x7f]
        %v504 = vld [vmem:[%s388 + $0x388] sm:$0x7f]
        %v505 = vld [vmem:[%s388 + $0x390] sm:$0x7f]
        %v506 = vld [vmem:[%s388 + $0x398] sm:$0x7f]
        %v507 = vld [vmem:[%s388 + $0x3a0] sm:$0x7f]
        %v508 = vld [vmem:[%s388 + $0x3a8] sm:$0x7f]
        %v509 = vld [vmem:[%s388 + $0x3b0] sm:$0x7f]
        %v510 = vld [vmem:[%s388 + $0x3b8] sm:$0x7f]
        %v511 = vld [vmem:[%s388 + $0x3c0] sm:$0x7f]
        %v512 = vld [vmem:[%s388 + $0x3c8] sm:$0x7f]
        %v513 = vld [vmem:[%s388 + $0x3d0] sm:$0x7f]
        %v514 = vld [vmem:[%s388 + $0x3d8] sm:$0x7f]
        %v515 = vld [vmem:[%s388 + $0x3e0] sm:$0x7f]
        %v516 = vld [vmem:[%s388 + $0x3e8] sm:$0x7f]
        %v517 = vld [vmem:[%s388 + $0x3f0] sm:$0x7f]
        %v518 = vld [vmem:[%s388 + $0x3f8] sm:$0x7f]
        %v519 = vld [vmem:[%s388 + $0x400] sm:$0x7f]
        %v520 = vld [vmem:[%s388 + $0x408] sm:$0x7f]
        %v521 = vld [vmem:[%s388 + $0x410] sm:$0x7f]
        %v522 = vld [vmem:[%s388 + $0x418] sm:$0x7f]
        %v523 = vld [vmem:[%s388 + $0x420] sm:$0x7f]
        %v524 = vld [vmem:[%s388 + $0x428] sm:$0x7f]
        %v525 = vld [vmem:[%s388 + $0x430] sm:$0x7f]
        %v526 = vld [vmem:[%s388 + $0x438] sm:$0x7f]
        %v527 = vld [vmem:[%s388 + $0x440] sm:$0x7f]
        %v528 = vld [vmem:[%s388 + $0x448] sm:$0x7f]
        %v529 = vld [vmem:[%s388 + $0x450] sm:$0x7f]
        %v530 = vld [vmem:[%s388 + $0x458] sm:$0x7f]
        %v531 = vld [vmem:[%s388 + $0x460] sm:$0x7f]
        %v532 = vld [vmem:[%s388 + $0x468] sm:$0x7f]
        %v533 = vld [vmem:[%s388 + $0x470] sm:$0x7f]
        %v534 = vld [vmem:[%s388 + $0x478] sm:$0x7f]
        %v535 = vld [vmem:[%s388 + $0x480] sm:$0x7f]
        %v536 = vld [vmem:[%s388 + $0x488] sm:$0x7f]
        %v537 = vld [vmem:[%s388 + $0x490] sm:$0x7f]
        %v538 = vld [vmem:[%s388 + $0x498] sm:$0x7f]
        %v539 = vld [vmem:[%s388 + $0x4a0] sm:$0x7f]
        %v540 = vld [vmem:[%s388 + $0x4a8] sm:$0x7f]
        %v541 = vld [vmem:[%s388 + $0x4b0] sm:$0x7f]
        %v542 = vld [vmem:[%s388 + $0x4b8] sm:$0x7f]
        %v543 = vld [vmem:[%s388 + $0x4c0] sm:$0x7f]
        %v544 = vld [vmem:[%s388 + $0x4c8] sm:$0x7f]
        %v545 = vld [vmem:[%s388 + $0x4d0] sm:$0x7f]
        %v546 = vld [vmem:[%s388 + $0x4d8] sm:$0x7f]
        %v547 = vld [vmem:[%s388 + $0x4e0] sm:$0x7f]
        %v548 = vld [vmem:[%s388 + $0x4e8] sm:$0x7f]
        %v549 = vld [vmem:[%s388 + $0x4f0] sm:$0x7f]
        %v550 = vld [vmem:[%s388 + $0x4f8] sm:$0x7f]
        %v551 = vld [vmem:[%s388 + $0x500] sm:$0x7f]
        %v552 = vld [vmem:[%s388 + $0x508] sm:$0x7f]
        %v553 = vld [vmem:[%s388 + $0x510] sm:$0x7f]
        %v554 = vld [vmem:[%s388 + $0x518] sm:$0x7f]
        %v555 = vld [vmem:[%s388 + $0x520] sm:$0x7f]
        %v556 = vld [vmem:[%s388 + $0x528] sm:$0x7f]
        %v557 = vld [vmem:[%s388 + $0x530] sm:$0x7f]
        %v558 = vld [vmem:[%s388 + $0x538] sm:$0x7f]
        %v559 = vld [vmem:[%s388 + $0x540] sm:$0x7f]
        %v560 = vld [vmem:[%s388 + $0x548] sm:$0x7f]
        %v561 = vld [vmem:[%s388 + $0x550] sm:$0x7f]
        %v562 = vld [vmem:[%s388 + $0x558] sm:$0x7f]
        %v563 = vld [vmem:[%s388 + $0x560] sm:$0x7f]
        %v564 = vld [vmem:[%s388 + $0x568] sm:$0x7f]
        %v565 = vld [vmem:[%s388 + $0x570] sm:$0x7f]
        %v566 = vld [vmem:[%s388 + $0x578] sm:$0x7f]
        %v567 = vld [vmem:[%s388 + $0x580] sm:$0x7f]
        %v568 = vld [vmem:[%s388 + $0x588] sm:$0x7f]
        %v569 = vld [vmem:[%s388 + $0x590] sm:$0x7f]
        %v570 = vld [vmem:[%s388 + $0x598] sm:$0x7f]
        %v571 = vld [vmem:[%s388 + $0x5a0] sm:$0x7f]
        %v572 = vld [vmem:[%s388 + $0x5a8] sm:$0x7f]
        %v573 = vld [vmem:[%s388 + $0x5b0] sm:$0x7f]
        %v574 = vld [vmem:[%s388 + $0x5b8] sm:$0x7f]
        %v575 = vld [vmem:[%s388 + $0x5c0] sm:$0x7f]
        %v576 = vld [vmem:[%s388 + $0x5c8] sm:$0x7f]
        %v577 = vld [vmem:[%s388 + $0x5d0] sm:$0x7f]
        %v578 = vld [vmem:[%s388 + $0x5d8] sm:$0x7f]
        %v579 = vld [vmem:[%s388 + $0x5e0] sm:$0x7f]
        %v580 = vld [vmem:[%s388 + $0x5e8] sm:$0x7f]
        %v581 = vld [vmem:[%s388 + $0x5f0] sm:$0x7f]
        %v582 = vld [vmem:[%s388 + $0x5f8] sm:$0x7f]
        %v583 = vld [vmem:[%s388 + $0x600] sm:$0x7f]
        %v584 = vld [vmem:[%s388 + $0x608] sm:$0x7f]
        %v585 = vld [vmem:[%s388 + $0x610] sm:$0x7f]
        %v586 = vld [vmem:[%s388 + $0x618] sm:$0x7f]
        %v587 = vld [vmem:[%s388 + $0x620] sm:$0x7f]
        %v588 = vld [vmem:[%s388 + $0x628] sm:$0x7f]
        %v589 = vld [vmem:[%s388 + $0x630] sm:$0x7f]
        %v590 = vld [vmem:[%s388 + $0x638] sm:$0x7f]
        %v591 = vld [vmem:[%s388 + $0x640] sm:$0x7f]
        %v592 = vld [vmem:[%s388 + $0x648] sm:$0x7f]
        %v593 = vld [vmem:[%s388 + $0x650] sm:$0x7f]
        %v594 = vld [vmem:[%s388 + $0x658] sm:$0x7f]
        %v595 = vld [vmem:[%s388 + $0x660] sm:$0x7f]
        %v596 = vld [vmem:[%s388 + $0x668] sm:$0x7f]
        %v597 = vld [vmem:[%s388 + $0x670] sm:$0x7f]
        %v598 = vld [vmem:[%s388 + $0x678] sm:$0x7f]
        %v599 = vld [vmem:[%s388 + $0x680] sm:$0x7f]
        %v600 = vld [vmem:[%s388 + $0x688] sm:$0x7f]
        %v601 = vld [vmem:[%s388 + $0x690] sm:$0x7f]
        %v602 = vld [vmem:[%s388 + $0x698] sm:$0x7f]
        %v603 = vld [vmem:[%s388 + $0x6a0] sm:$0x7f]
        %v604 = vld [vmem:[%s388 + $0x6a8] sm:$0x7f]
        %v605 = vld [vmem:[%s388 + $0x6b0] sm:$0x7f]
        %v606 = vld [vmem:[%s388 + $0x6b8] sm:$0x7f]
        %v607 = vld [vmem:[%s388 + $0x6c0] sm:$0x7f]
        %v608 = vld [vmem:[%s388 + $0x6c8] sm:$0x7f]
        %v609 = vld [vmem:[%s388 + $0x6d0] sm:$0x7f]
        %v610 = vld [vmem:[%s388 + $0x6d8] sm:$0x7f]
        %v611 = vld [vmem:[%s388 + $0x6e0] sm:$0x7f]
        %v612 = vld [vmem:[%s388 + $0x6e8] sm:$0x7f]
        %v613 = vld [vmem:[%s388 + $0x6f0] sm:$0x7f]
        %v614 = vld [vmem:[%s388 + $0x6f8] sm:$0x7f]
        %v807 = vrot.slane %v391, 1
        %v808 = vrot.slane %v392, 1
        %v809 = vrot.slane %v393, 1
        %v810 = vrot.slane %v394, 1
        %v811 = vrot.slane %v395, 1
        %v812 = vrot.slane %v396, 1
        %v813 = vrot.slane %v398, 1
        %v814 = vrot.slane %v399, 1
        %v815 = vrot.slane %v400, 1
        %v816 = vrot.slane %v401, 1
        %v817 = vrot.slane %v402, 1
        %v818 = vrot.slane %v403, 1
        %v819 = vrot.slane %v405, 1
        %v820 = vrot.slane %v406, 1
        %v821 = vrot.slane %v407, 1
        %v822 = vrot.slane %v408, 1
        %v823 = vrot.slane %v409, 1
        %v824 = vrot.slane %v410, 1
        %v825 = vrot.slane %v412, 1
        %v826 = vrot.slane %v413, 1
        %v827 = vrot.slane %v414, 1
        %v828 = vrot.slane %v415, 1
        %v829 = vrot.slane %v416, 1
        %v830 = vrot.slane %v417, 1
        %v831 = vrot.slane %v419, 1
        %v832 = vrot.slane %v420, 1
        %v833 = vrot.slane %v421, 1
        %v834 = vrot.slane %v422, 1
        %v835 = vrot.slane %v423, 1
        %v836 = vrot.slane %v424, 1
        %v837 = vrot.slane %v426, 1
        %v838 = vrot.slane %v427, 1
        %v839 = vrot.slane %v428, 1
        %v840 = vrot.slane %v429, 1
        %v841 = vrot.slane %v430, 1
        %v842 = vrot.slane %v431, 1
        %v843 = vrot.slane %v433, 1
        %v844 = vrot.slane %v434, 1
        %v845 = vrot.slane %v435, 1
        %v846 = vrot.slane %v436, 1
        %v847 = vrot.slane %v437, 1
        %v848 = vrot.slane %v438, 1
        %v849 = vrot.slane %v440, 1
        %v850 = vrot.slane %v441, 1
        %v851 = vrot.slane %v442, 1
        %v852 = vrot.slane %v443, 1
        %v853 = vrot.slane %v444, 1
        %v854 = vrot.slane %v445, 1
        %v855 = vrot.slane %v447, 1
        %v856 = vrot.slane %v448, 1
        %v857 = vrot.slane %v449, 1
        %v858 = vrot.slane %v450, 1
        %v859 = vrot.slane %v451, 1
        %v860 = vrot.slane %v452, 1
        %v861 = vrot.slane %v454, 1
        %v862 = vrot.slane %v455, 1
        %v863 = vrot.slane %v456, 1
        %v864 = vrot.slane %v457, 1
        %v865 = vrot.slane %v458, 1
        %v866 = vrot.slane %v459, 1
        %v867 = vrot.slane %v461, 1
        %v868 = vrot.slane %v462, 1
        %v869 = vrot.slane %v463, 1
        %v870 = vrot.slane %v464, 1
        %v871 = vrot.slane %v465, 1
        %v872 = vrot.slane %v466, 1
        %v873 = vrot.slane %v468, 1
        %v874 = vrot.slane %v469, 1
        %v875 = vrot.slane %v470, 1
        %v876 = vrot.slane %v471, 1
        %v877 = vrot.slane %v472, 1
        %v878 = vrot.slane %v473, 1
        %v879 = vrot.slane %v475, 1
        %v880 = vrot.slane %v476, 1
        %v881 = vrot.slane %v477, 1
        %v882 = vrot.slane %v478, 1
        %v883 = vrot.slane %v479, 1
        %v884 = vrot.slane %v480, 1
        %v885 = vrot.slane %v482, 1
        %v886 = vrot.slane %v483, 1
        %v887 = vrot.slane %v484, 1
        %v888 = vrot.slane %v485, 1
        %v889 = vrot.slane %v486, 1
        %v890 = vrot.slane %v487, 1
        %v891 = vrot.slane %v489, 1
        %v892 = vrot.slane %v490, 1
        %v893 = vrot.slane %v491, 1
        %v894 = vrot.slane %v492, 1
        %v895 = vrot.slane %v493, 1
        %v896 = vrot.slane %v494, 1
        %v897 = vrot.slane %v496, 1
        %v898 = vrot.slane %v497, 1
        %v899 = vrot.slane %v498, 1
        %v900 = vrot.slane %v499, 1
        %v901 = vrot.slane %v500, 1
        %v902 = vrot.slane %v501, 1
        %v903 = vrot.slane %v503, 1
        %v904 = vrot.slane %v504, 1
        %v905 = vrot.slane %v505, 1
        %v906 = vrot.slane %v506, 1
        %v907 = vrot.slane %v507, 1
        %v908 = vrot.slane %v508, 1
        %v909 = vrot.slane %v510, 1
        %v910 = vrot.slane %v511, 1
        %v911 = vrot.slane %v512, 1
        %v912 = vrot.slane %v513, 1
        %v913 = vrot.slane %v514, 1
        %v914 = vrot.slane %v515, 1
        %v915 = vrot.slane %v517, 1
        %v916 = vrot.slane %v518, 1
        %v917 = vrot.slane %v519, 1
        %v918 = vrot.slane %v520, 1
        %v919 = vrot.slane %v521, 1
        %v920 = vrot.slane %v522, 1
        %v921 = vrot.slane %v524, 1
        %v922 = vrot.slane %v525, 1
        %v923 = vrot.slane %v526, 1
        %v924 = vrot.slane %v527, 1
        %v925 = vrot.slane %v528, 1
        %v926 = vrot.slane %v529, 1
        %v927 = vrot.slane %v531, 1
        %v928 = vrot.slane %v532, 1
        %v929 = vrot.slane %v533, 1
        %v930 = vrot.slane %v534, 1
        %v931 = vrot.slane %v535, 1
        %v932 = vrot.slane %v536, 1
        %v933 = vrot.slane %v538, 1
        %v934 = vrot.slane %v539, 1
        %v935 = vrot.slane %v540, 1
        %v936 = vrot.slane %v541, 1
        %v937 = vrot.slane %v542, 1
        %v938 = vrot.slane %v543, 1
        %v939 = vrot.slane %v545, 1
        %v940 = vrot.slane %v546, 1
        %v941 = vrot.slane %v547, 1
        %v942 = vrot.slane %v548, 1
        %v943 = vrot.slane %v549, 1
        %v944 = vrot.slane %v550, 1
        %v945 = vrot.slane %v552, 1
        %v946 = vrot.slane %v553, 1
        %v947 = vrot.slane %v554, 1
        %v948 = vrot.slane %v555, 1
        %v949 = vrot.slane %v556, 1
        %v950 = vrot.slane %v557, 1
        %v951 = vrot.slane %v559, 1
        %v952 = vrot.slane %v560, 1
        %v953 = vrot.slane %v561, 1
        %v954 = vrot.slane %v562, 1
        %v955 = vrot.slane %v563, 1
        %v956 = vrot.slane %v564, 1
        %v957 = vrot.slane %v566, 1
        %v958 = vrot.slane %v567, 1
        %v959 = vrot.slane %v568, 1
        %v960 = vrot.slane %v569, 1
        %v961 = vrot.slane %v570, 1
        %v962 = vrot.slane %v571, 1
        %v963 = vrot.slane %v573, 1
        %v964 = vrot.slane %v574, 1
        %v965 = vrot.slane %v575, 1
        %v966 = vrot.slane %v576, 1
        %v967 = vrot.slane %v577, 1
        %v968 = vrot.slane %v578, 1
        %v969 = vrot.slane %v580, 1
        %v970 = vrot.slane %v581, 1
        %v971 = vrot.slane %v582, 1
        %v972 = vrot.slane %v583, 1
        %v973 = vrot.slane %v584, 1
        %v974 = vrot.slane %v585, 1
        %v975 = vrot.slane %v587, 1
        %v976 = vrot.slane %v588, 1
        %v977 = vrot.slane %v589, 1
        %v978 = vrot.slane %v590, 1
        %v979 = vrot.slane %v591, 1
        %v980 = vrot.slane %v592, 1
        %v981 = vrot.slane %v594, 1
        %v982 = vrot.slane %v595, 1
        %v983 = vrot.slane %v596, 1
        %v984 = vrot.slane %v597, 1
        %v985 = vrot.slane %v598, 1
        %v986 = vrot.slane %v599, 1
        %v987 = vrot.slane %v601, 1
        %v988 = vrot.slane %v602, 1
        %v989 = vrot.slane %v603, 1
        %v990 = vrot.slane %v604, 1
        %v991 = vrot.slane %v605, 1
        %v992 = vrot.slane %v606, 1
        %v993 = vrot.slane %v608, 1
        %v994 = vrot.slane %v609, 1
        %v995 = vrot.slane %v610, 1
        %v996 = vrot.slane %v611, 1
        %v997 = vrot.slane %v612, 1
        %v998 = vrot.slane %v613, 1
        %999 = vrot.lane.b32.xlu0 %v807, 3
        %v1000 = vpop.permute.xlu0 %999
        %1001 = vrot.lane.b32.xlu0 %v808, 3
        %v1002 = vpop.permute.xlu0 %1001
        %1003 = vrot.lane.b32.xlu0 %v809, 3
        %v1004 = vpop.permute.xlu0 %1003
        %1005 = vrot.lane.b32.xlu0 %v810, 3
        %v1006 = vpop.permute.xlu0 %1005
        %1007 = vrot.lane.b32.xlu0 %v811, 3
        %v1008 = vpop.permute.xlu0 %1007
        %1009 = vrot.lane.b32.xlu0 %v812, 3
        %v1010 = vpop.permute.xlu0 %1009
        %1011 = vrot.lane.b32.xlu0 %v813, 3
        %v1012 = vpop.permute.xlu0 %1011
        %1013 = vrot.lane.b32.xlu0 %v814, 3
        %v1014 = vpop.permute.xlu0 %1013
        %1015 = vrot.lane.b32.xlu0 %v815, 3
        %v1016 = vpop.permute.xlu0 %1015
        %1017 = vrot.lane.b32.xlu0 %v816, 3
        %v1018 = vpop.permute.xlu0 %1017
        %1019 = vrot.lane.b32.xlu0 %v817, 3
        %v1020 = vpop.permute.xlu0 %1019
        %1021 = vrot.lane.b32.xlu0 %v818, 3
        %v1022 = vpop.permute.xlu0 %1021
        %1023 = vrot.lane.b32.xlu0 %v819, 3
        %v1024 = vpop.permute.xlu0 %1023
        %1025 = vrot.lane.b32.xlu0 %v820, 3
        %v1026 = vpop.permute.xlu0 %1025
        %1027 = vrot.lane.b32.xlu0 %v821, 3
        %v1028 = vpop.permute.xlu0 %1027
        %1029 = vrot.lane.b32.xlu0 %v822, 3
        %v1030 = vpop.permute.xlu0 %1029
        %1031 = vrot.lane.b32.xlu0 %v823, 3
        %v1032 = vpop.permute.xlu0 %1031
        %1033 = vrot.lane.b32.xlu0 %v824, 3
        %v1034 = vpop.permute.xlu0 %1033
        %1035 = vrot.lane.b32.xlu0 %v825, 3
        %v1036 = vpop.permute.xlu0 %1035
        %1037 = vrot.lane.b32.xlu0 %v826, 3
        %v1038 = vpop.permute.xlu0 %1037
        %1039 = vrot.lane.b32.xlu0 %v827, 3
        %v1040 = vpop.permute.xlu0 %1039
        %1041 = vrot.lane.b32.xlu0 %v828, 3
        %v1042 = vpop.permute.xlu0 %1041
        %1043 = vrot.lane.b32.xlu0 %v829, 3
        %v1044 = vpop.permute.xlu0 %1043
        %1045 = vrot.lane.b32.xlu0 %v830, 3
        %v1046 = vpop.permute.xlu0 %1045
        %1047 = vrot.lane.b32.xlu0 %v831, 3
        %v1048 = vpop.permute.xlu0 %1047
        %1049 = vrot.lane.b32.xlu0 %v832, 3
        %v1050 = vpop.permute.xlu0 %1049
        %1051 = vrot.lane.b32.xlu0 %v833, 3
        %v1052 = vpop.permute.xlu0 %1051
        %1053 = vrot.lane.b32.xlu0 %v834, 3
        %v1054 = vpop.permute.xlu0 %1053
        %1055 = vrot.lane.b32.xlu0 %v835, 3
        %v1056 = vpop.permute.xlu0 %1055
        %1057 = vrot.lane.b32.xlu0 %v836, 3
        %v1058 = vpop.permute.xlu0 %1057
        %1059 = vrot.lane.b32.xlu0 %v837, 3
        %v1060 = vpop.permute.xlu0 %1059
        %1061 = vrot.lane.b32.xlu0 %v838, 3
        %v1062 = vpop.permute.xlu0 %1061
        %1063 = vrot.lane.b32.xlu0 %v839, 3
        %v1064 = vpop.permute.xlu0 %1063
        %1065 = vrot.lane.b32.xlu0 %v840, 3
        %v1066 = vpop.permute.xlu0 %1065
        %1067 = vrot.lane.b32.xlu0 %v841, 3
        %v1068 = vpop.permute.xlu0 %1067
        %1069 = vrot.lane.b32.xlu0 %v842, 3
        %v1070 = vpop.permute.xlu0 %1069
        %1071 = vrot.lane.b32.xlu0 %v843, 3
        %v1072 = vpop.permute.xlu0 %1071
        %1073 = vrot.lane.b32.xlu0 %v844, 3
        %v1074 = vpop.permute.xlu0 %1073
        %1075 = vrot.lane.b32.xlu0 %v845, 3
        %v1076 = vpop.permute.xlu0 %1075
        %1077 = vrot.lane.b32.xlu0 %v846, 3
        %v1078 = vpop.permute.xlu0 %1077
        %1079 = vrot.lane.b32.xlu0 %v847, 3
        %v1080 = vpop.permute.xlu0 %1079
        %1081 = vrot.lane.b32.xlu0 %v848, 3
        %v1082 = vpop.permute.xlu0 %1081
        %1083 = vrot.lane.b32.xlu0 %v849, 3
        %v1084 = vpop.permute.xlu0 %1083
        %1085 = vrot.lane.b32.xlu0 %v850, 3
        %v1086 = vpop.permute.xlu0 %1085
        %1087 = vrot.lane.b32.xlu0 %v851, 3
        %v1088 = vpop.permute.xlu0 %1087
        %1089 = vrot.lane.b32.xlu0 %v852, 3
        %v1090 = vpop.permute.xlu0 %1089
        %1091 = vrot.lane.b32.xlu0 %v853, 3
        %v1092 = vpop.permute.xlu0 %1091
        %1093 = vrot.lane.b32.xlu0 %v854, 3
        %v1094 = vpop.permute.xlu0 %1093
        %1095 = vrot.lane.b32.xlu0 %v855, 3
        %v1096 = vpop.permute.xlu0 %1095
        %1097 = vrot.lane.b32.xlu0 %v856, 3
        %v1098 = vpop.permute.xlu0 %1097
        %1099 = vrot.lane.b32.xlu0 %v857, 3
        %v1100 = vpop.permute.xlu0 %1099
        %1101 = vrot.lane.b32.xlu0 %v858, 3
        %v1102 = vpop.permute.xlu0 %1101
        %1103 = vrot.lane.b32.xlu0 %v859, 3
        %v1104 = vpop.permute.xlu0 %1103
        %1105 = vrot.lane.b32.xlu0 %v860, 3
        %v1106 = vpop.permute.xlu0 %1105
        %1107 = vrot.lane.b32.xlu0 %v861, 3
        %v1108 = vpop.permute.xlu0 %1107
        %1109 = vrot.lane.b32.xlu0 %v862, 3
        %v1110 = vpop.permute.xlu0 %1109
        %1111 = vrot.lane.b32.xlu0 %v863, 3
        %v1112 = vpop.permute.xlu0 %1111
        %1113 = vrot.lane.b32.xlu0 %v864, 3
        %v1114 = vpop.permute.xlu0 %1113
        %1115 = vrot.lane.b32.xlu0 %v865, 3
        %v1116 = vpop.permute.xlu0 %1115
        %1117 = vrot.lane.b32.xlu0 %v866, 3
        %v1118 = vpop.permute.xlu0 %1117
        %1119 = vrot.lane.b32.xlu0 %v867, 3
        %v1120 = vpop.permute.xlu0 %1119
        %1121 = vrot.lane.b32.xlu0 %v868, 3
        %v1122 = vpop.permute.xlu0 %1121
        %1123 = vrot.lane.b32.xlu0 %v869, 3
        %v1124 = vpop.permute.xlu0 %1123
        %1125 = vrot.lane.b32.xlu0 %v870, 3
        %v1126 = vpop.permute.xlu0 %1125
        %1127 = vrot.lane.b32.xlu0 %v871, 3
        %v1128 = vpop.permute.xlu0 %1127
        %1129 = vrot.lane.b32.xlu0 %v872, 3
        %v1130 = vpop.permute.xlu0 %1129
        %1131 = vrot.lane.b32.xlu0 %v873, 3
        %v1132 = vpop.permute.xlu0 %1131
        %1133 = vrot.lane.b32.xlu0 %v874, 3
        %v1134 = vpop.permute.xlu0 %1133
        %1135 = vrot.lane.b32.xlu0 %v875, 3
        %v1136 = vpop.permute.xlu0 %1135
        %1137 = vrot.lane.b32.xlu0 %v876, 3
        %v1138 = vpop.permute.xlu0 %1137
        %1139 = vrot.lane.b32.xlu0 %v877, 3
        %v1140 = vpop.permute.xlu0 %1139
        %1141 = vrot.lane.b32.xlu0 %v878, 3
        %v1142 = vpop.permute.xlu0 %1141
        %1143 = vrot.lane.b32.xlu0 %v879, 3
        %v1144 = vpop.permute.xlu0 %1143
        %1145 = vrot.lane.b32.xlu0 %v880, 3
        %v1146 = vpop.permute.xlu0 %1145
        %1147 = vrot.lane.b32.xlu0 %v881, 3
        %v1148 = vpop.permute.xlu0 %1147
        %1149 = vrot.lane.b32.xlu0 %v882, 3
        %v1150 = vpop.permute.xlu0 %1149
        %1151 = vrot.lane.b32.xlu0 %v883, 3
        %v1152 = vpop.permute.xlu0 %1151
        %1153 = vrot.lane.b32.xlu0 %v884, 3
        %v1154 = vpop.permute.xlu0 %1153
        %1155 = vrot.lane.b32.xlu0 %v885, 3
        %v1156 = vpop.permute.xlu0 %1155
        %1157 = vrot.lane.b32.xlu0 %v886, 3
        %v1158 = vpop.permute.xlu0 %1157
        %1159 = vrot.lane.b32.xlu0 %v887, 3
        %v1160 = vpop.permute.xlu0 %1159
        %1161 = vrot.lane.b32.xlu0 %v888, 3
        %v1162 = vpop.permute.xlu0 %1161
        %1163 = vrot.lane.b32.xlu0 %v889, 3
        %v1164 = vpop.permute.xlu0 %1163
        %1165 = vrot.lane.b32.xlu0 %v890, 3
        %v1166 = vpop.permute.xlu0 %1165
        %1167 = vrot.lane.b32.xlu0 %v891, 3
        %v1168 = vpop.permute.xlu0 %1167
        %1169 = vrot.lane.b32.xlu0 %v892, 3
        %v1170 = vpop.permute.xlu0 %1169
        %1171 = vrot.lane.b32.xlu0 %v893, 3
        %v1172 = vpop.permute.xlu0 %1171
        %1173 = vrot.lane.b32.xlu0 %v894, 3
        %v1174 = vpop.permute.xlu0 %1173
        %1175 = vrot.lane.b32.xlu0 %v895, 3
        %v1176 = vpop.permute.xlu0 %1175
        %1177 = vrot.lane.b32.xlu0 %v896, 3
        %v1178 = vpop.permute.xlu0 %1177
        %1179 = vrot.lane.b32.xlu0 %v897, 3
        %v1180 = vpop.permute.xlu0 %1179
        %1181 = vrot.lane.b32.xlu0 %v898, 3
        %v1182 = vpop.permute.xlu0 %1181
        %1183 = vrot.lane.b32.xlu0 %v899, 3
        %v1184 = vpop.permute.xlu0 %1183
        %1185 = vrot.lane.b32.xlu0 %v900, 3
        %v1186 = vpop.permute.xlu0 %1185
        %1187 = vrot.lane.b32.xlu0 %v901, 3
        %v1188 = vpop.permute.xlu0 %1187
        %1189 = vrot.lane.b32.xlu0 %v902, 3
        %v1190 = vpop.permute.xlu0 %1189
        %1191 = vrot.lane.b32.xlu0 %v903, 3
        %v1192 = vpop.permute.xlu0 %1191
        %1193 = vrot.lane.b32.xlu0 %v904, 3
        %v1194 = vpop.permute.xlu0 %1193
        %1195 = vrot.lane.b32.xlu0 %v905, 3
        %v1196 = vpop.permute.xlu0 %1195
        %1197 = vrot.lane.b32.xlu0 %v906, 3
        %v1198 = vpop.permute.xlu0 %1197
        %1199 = vrot.lane.b32.xlu0 %v907, 3
        %v1200 = vpop.permute.xlu0 %1199
        %1201 = vrot.lane.b32.xlu0 %v908, 3
        %v1202 = vpop.permute.xlu0 %1201
        %1203 = vrot.lane.b32.xlu0 %v909, 3
        %v1204 = vpop.permute.xlu0 %1203
        %1205 = vrot.lane.b32.xlu0 %v910, 3
        %v1206 = vpop.permute.xlu0 %1205
        %1207 = vrot.lane.b32.xlu0 %v911, 3
        %v1208 = vpop.permute.xlu0 %1207
        %1209 = vrot.lane.b32.xlu0 %v912, 3
        %v1210 = vpop.permute.xlu0 %1209
        %1211 = vrot.lane.b32.xlu0 %v913, 3
        %v1212 = vpop.permute.xlu0 %1211
        %1213 = vrot.lane.b32.xlu0 %v914, 3
        %v1214 = vpop.permute.xlu0 %1213
        %1215 = vrot.lane.b32.xlu0 %v915, 3
        %v1216 = vpop.permute.xlu0 %1215
        %1217 = vrot.lane.b32.xlu0 %v916, 3
        %v1218 = vpop.permute.xlu0 %1217
        %1219 = vrot.lane.b32.xlu0 %v917, 3
        %v1220 = vpop.permute.xlu0 %1219
        %1221 = vrot.lane.b32.xlu0 %v918, 3
        %v1222 = vpop.permute.xlu0 %1221
        %1223 = vrot.lane.b32.xlu0 %v919, 3
        %v1224 = vpop.permute.xlu0 %1223
        %1225 = vrot.lane.b32.xlu0 %v920, 3
        %v1226 = vpop.permute.xlu0 %1225
        %1227 = vrot.lane.b32.xlu0 %v921, 3
        %v1228 = vpop.permute.xlu0 %1227
        %1229 = vrot.lane.b32.xlu0 %v922, 3
        %v1230 = vpop.permute.xlu0 %1229
        %1231 = vrot.lane.b32.xlu0 %v923, 3
        %v1232 = vpop.permute.xlu0 %1231
        %1233 = vrot.lane.b32.xlu0 %v924, 3
        %v1234 = vpop.permute.xlu0 %1233
        %1235 = vrot.lane.b32.xlu0 %v925, 3
        %v1236 = vpop.permute.xlu0 %1235
        %1237 = vrot.lane.b32.xlu0 %v926, 3
        %v1238 = vpop.permute.xlu0 %1237
        %1239 = vrot.lane.b32.xlu0 %v927, 3
        %v1240 = vpop.permute.xlu0 %1239
        %1241 = vrot.lane.b32.xlu0 %v928, 3
        %v1242 = vpop.permute.xlu0 %1241
        %1243 = vrot.lane.b32.xlu0 %v929, 3
        %v1244 = vpop.permute.xlu0 %1243
        %1245 = vrot.lane.b32.xlu0 %v930, 3
        %v1246 = vpop.permute.xlu0 %1245
        %1247 = vrot.lane.b32.xlu0 %v931, 3
        %v1248 = vpop.permute.xlu0 %1247
        %1249 = vrot.lane.b32.xlu0 %v932, 3
        %v1250 = vpop.permute.xlu0 %1249
        %1251 = vrot.lane.b32.xlu0 %v933, 3
        %v1252 = vpop.permute.xlu0 %1251
        %1253 = vrot.lane.b32.xlu0 %v934, 3
        %v1254 = vpop.permute.xlu0 %1253
        %1255 = vrot.lane.b32.xlu0 %v935, 3
        %v1256 = vpop.permute.xlu0 %1255
        %1257 = vrot.lane.b32.xlu0 %v936, 3
        %v1258 = vpop.permute.xlu0 %1257
        %1259 = vrot.lane.b32.xlu0 %v937, 3
        %v1260 = vpop.permute.xlu0 %1259
        %1261 = vrot.lane.b32.xlu0 %v938, 3
        %v1262 = vpop.permute.xlu0 %1261
        %1263 = vrot.lane.b32.xlu0 %v939, 3
        %v1264 = vpop.permute.xlu0 %1263
        %1265 = vrot.lane.b32.xlu0 %v940, 3
        %v1266 = vpop.permute.xlu0 %1265
        %1267 = vrot.lane.b32.xlu0 %v941, 3
        %v1268 = vpop.permute.xlu0 %1267
        %1269 = vrot.lane.b32.xlu0 %v942, 3
        %v1270 = vpop.permute.xlu0 %1269
        %1271 = vrot.lane.b32.xlu0 %v943, 3
        %v1272 = vpop.permute.xlu0 %1271
        %1273 = vrot.lane.b32.xlu0 %v944, 3
        %v1274 = vpop.permute.xlu0 %1273
        %1275 = vrot.lane.b32.xlu0 %v945, 3
        %v1276 = vpop.permute.xlu0 %1275
        %1277 = vrot.lane.b32.xlu0 %v946, 3
        %v1278 = vpop.permute.xlu0 %1277
        %1279 = vrot.lane.b32.xlu0 %v947, 3
        %v1280 = vpop.permute.xlu0 %1279
        %1281 = vrot.lane.b32.xlu0 %v948, 3
        %v1282 = vpop.permute.xlu0 %1281
        %1283 = vrot.lane.b32.xlu0 %v949, 3
        %v1284 = vpop.permute.xlu0 %1283
        %1285 = vrot.lane.b32.xlu0 %v950, 3
        %v1286 = vpop.permute.xlu0 %1285
        %1287 = vrot.lane.b32.xlu0 %v951, 3
        %v1288 = vpop.permute.xlu0 %1287
        %1289 = vrot.lane.b32.xlu0 %v952, 3
        %v1290 = vpop.permute.xlu0 %1289
        %1291 = vrot.lane.b32.xlu0 %v953, 3
        %v1292 = vpop.permute.xlu0 %1291
        %1293 = vrot.lane.b32.xlu0 %v954, 3
        %v1294 = vpop.permute.xlu0 %1293
        %1295 = vrot.lane.b32.xlu0 %v955, 3
        %v1296 = vpop.permute.xlu0 %1295
        %1297 = vrot.lane.b32.xlu0 %v956, 3
        %v1298 = vpop.permute.xlu0 %1297
        %1299 = vrot.lane.b32.xlu0 %v957, 3
        %v1300 = vpop.permute.xlu0 %1299
        %1301 = vrot.lane.b32.xlu0 %v958, 3
        %v1302 = vpop.permute.xlu0 %1301
        %1303 = vrot.lane.b32.xlu0 %v959, 3
        %v1304 = vpop.permute.xlu0 %1303
        %1305 = vrot.lane.b32.xlu0 %v960, 3
        %v1306 = vpop.permute.xlu0 %1305
        %1307 = vrot.lane.b32.xlu0 %v961, 3
        %v1308 = vpop.permute.xlu0 %1307
        %1309 = vrot.lane.b32.xlu0 %v962, 3
        %v1310 = vpop.permute.xlu0 %1309
        %1311 = vrot.lane.b32.xlu0 %v963, 3
        %v1312 = vpop.permute.xlu0 %1311
        %1313 = vrot.lane.b32.xlu0 %v964, 3
        %v1314 = vpop.permute.xlu0 %1313
        %1315 = vrot.lane.b32.xlu0 %v965, 3
        %v1316 = vpop.permute.xlu0 %1315
        %1317 = vrot.lane.b32.xlu0 %v966, 3
        %v1318 = vpop.permute.xlu0 %1317
        %1319 = vrot.lane.b32.xlu0 %v967, 3
        %v1320 = vpop.permute.xlu0 %1319
        %1321 = vrot.lane.b32.xlu0 %v968, 3
        %v1322 = vpop.permute.xlu0 %1321
        %1323 = vrot.lane.b32.xlu0 %v969, 3
        %v1324 = vpop.permute.xlu0 %1323
        %1325 = vrot.lane.b32.xlu0 %v970, 3
        %v1326 = vpop.permute.xlu0 %1325
        %1327 = vrot.lane.b32.xlu0 %v971, 3
        %v1328 = vpop.permute.xlu0 %1327
        %1329 = vrot.lane.b32.xlu0 %v972, 3
        %v1330 = vpop.permute.xlu0 %1329
        %1331 = vrot.lane.b32.xlu0 %v973, 3
        %v1332 = vpop.permute.xlu0 %1331
        %1333 = vrot.lane.b32.xlu0 %v974, 3
        %v1334 = vpop.permute.xlu0 %1333
        %1335 = vrot.lane.b32.xlu0 %v975, 3
        %v1336 = vpop.permute.xlu0 %1335
        %1337 = vrot.lane.b32.xlu0 %v976, 3
        %v1338 = vpop.permute.xlu0 %1337
        %1339 = vrot.lane.b32.xlu0 %v977, 3
        %v1340 = vpop.permute.xlu0 %1339
        %1341 = vrot.lane.b32.xlu0 %v978, 3
        %v1342 = vpop.permute.xlu0 %1341
        %1343 = vrot.lane.b32.xlu0 %v979, 3
        %v1344 = vpop.permute.xlu0 %1343
        %1345 = vrot.lane.b32.xlu0 %v980, 3
        %v1346 = vpop.permute.xlu0 %1345
        %1347 = vrot.lane.b32.xlu0 %v981, 3
        %v1348 = vpop.permute.xlu0 %1347
        %1349 = vrot.lane.b32.xlu0 %v982, 3
        %v1350 = vpop.permute.xlu0 %1349
        %1351 = vrot.lane.b32.xlu0 %v983, 3
        %v1352 = vpop.permute.xlu0 %1351
        %1353 = vrot.lane.b32.xlu0 %v984, 3
        %v1354 = vpop.permute.xlu0 %1353
        %1355 = vrot.lane.b32.xlu0 %v985, 3
        %v1356 = vpop.permute.xlu0 %1355
        %1357 = vrot.lane.b32.xlu0 %v986, 3
        %v1358 = vpop.permute.xlu0 %1357
        %1359 = vrot.lane.b32.xlu0 %v987, 3
        %v1360 = vpop.permute.xlu0 %1359
        %1361 = vrot.lane.b32.xlu0 %v988, 3
        %v1362 = vpop.permute.xlu0 %1361
        %1363 = vrot.lane.b32.xlu0 %v989, 3
        %v1364 = vpop.permute.xlu0 %1363
        %1365 = vrot.lane.b32.xlu0 %v990, 3
        %v1366 = vpop.permute.xlu0 %1365
        %1367 = vrot.lane.b32.xlu0 %v991, 3
        %v1368 = vpop.permute.xlu0 %1367
        %1369 = vrot.lane.b32.xlu0 %v992, 3
        %v1370 = vpop.permute.xlu0 %1369
        %1371 = vrot.lane.b32.xlu0 %v993, 3
        %v1372 = vpop.permute.xlu0 %1371
        %1373 = vrot.lane.b32.xlu0 %v994, 3
        %v1374 = vpop.permute.xlu0 %1373
        %1375 = vrot.lane.b32.xlu0 %v995, 3
        %v1376 = vpop.permute.xlu0 %1375
        %1377 = vrot.lane.b32.xlu0 %v996, 3
        %v1378 = vpop.permute.xlu0 %1377
        %1379 = vrot.lane.b32.xlu0 %v997, 3
        %v1380 = vpop.permute.xlu0 %1379
        %1381 = vrot.lane.b32.xlu0 %v998, 3
        %v1382 = vpop.permute.xlu0 %1381
        %1607 = vrot.lane.b32.xlu0 %v392, 6
        %v1608 = vpop.permute.xlu0 %1607
        %1609 = vrot.lane.b32.xlu0 %v393, 6
        %v1610 = vpop.permute.xlu0 %1609
        %1611 = vrot.lane.b32.xlu0 %v394, 6
        %v1612 = vpop.permute.xlu0 %1611
        %1613 = vrot.lane.b32.xlu0 %v395, 6
        %v1614 = vpop.permute.xlu0 %1613
        %1615 = vrot.lane.b32.xlu0 %v396, 6
        %v1616 = vpop.permute.xlu0 %1615
        %1617 = vrot.lane.b32.xlu0 %v397, 6
        %v1618 = vpop.permute.xlu0 %1617
        %1619 = vrot.lane.b32.xlu0 %v399, 6
        %v1620 = vpop.permute.xlu0 %1619
        %1621 = vrot.lane.b32.xlu0 %v400, 6
        %v1622 = vpop.permute.xlu0 %1621
        %1623 = vrot.lane.b32.xlu0 %v401, 6
        %v1624 = vpop.permute.xlu0 %1623
        %1625 = vrot.lane.b32.xlu0 %v402, 6
        %v1626 = vpop.permute.xlu0 %1625
        %1627 = vrot.lane.b32.xlu0 %v403, 6
        %v1628 = vpop.permute.xlu0 %1627
        %1629 = vrot.lane.b32.xlu0 %v404, 6
        %v1630 = vpop.permute.xlu0 %1629
        %1631 = vrot.lane.b32.xlu0 %v406, 6
        %v1632 = vpop.permute.xlu0 %1631
        %1633 = vrot.lane.b32.xlu0 %v407, 6
        %v1634 = vpop.permute.xlu0 %1633
        %1635 = vrot.lane.b32.xlu0 %v408, 6
        %v1636 = vpop.permute.xlu0 %1635
        %1637 = vrot.lane.b32.xlu0 %v409, 6
        %v1638 = vpop.permute.xlu0 %1637
        %1639 = vrot.lane.b32.xlu0 %v410, 6
        %v1640 = vpop.permute.xlu0 %1639
        %1641 = vrot.lane.b32.xlu0 %v411, 6
        %v1642 = vpop.permute.xlu0 %1641
        %1643 = vrot.lane.b32.xlu0 %v413, 6
        %v1644 = vpop.permute.xlu0 %1643
        %1645 = vrot.lane.b32.xlu0 %v414, 6
        %v1646 = vpop.permute.xlu0 %1645
        %1647 = vrot.lane.b32.xlu0 %v415, 6
        %v1648 = vpop.permute.xlu0 %1647
        %1649 = vrot.lane.b32.xlu0 %v416, 6
        %v1650 = vpop.permute.xlu0 %1649
        %1651 = vrot.lane.b32.xlu0 %v417, 6
        %v1652 = vpop.permute.xlu0 %1651
        %1653 = vrot.lane.b32.xlu0 %v418, 6
        %v1654 = vpop.permute.xlu0 %1653
        %1655 = vrot.lane.b32.xlu0 %v420, 6
        %v1656 = vpop.permute.xlu0 %1655
        %1657 = vrot.lane.b32.xlu0 %v421, 6
        %v1658 = vpop.permute.xlu0 %1657
        %1659 = vrot.lane.b32.xlu0 %v422, 6
        %v1660 = vpop.permute.xlu0 %1659
        %1661 = vrot.lane.b32.xlu0 %v423, 6
        %v1662 = vpop.permute.xlu0 %1661
        %1663 = vrot.lane.b32.xlu0 %v424, 6
        %v1664 = vpop.permute.xlu0 %1663
        %1665 = vrot.lane.b32.xlu0 %v425, 6
        %v1666 = vpop.permute.xlu0 %1665
        %1667 = vrot.lane.b32.xlu0 %v427, 6
        %v1668 = vpop.permute.xlu0 %1667
        %1669 = vrot.lane.b32.xlu0 %v428, 6
        %v1670 = vpop.permute.xlu0 %1669
        %1671 = vrot.lane.b32.xlu0 %v429, 6
        %v1672 = vpop.permute.xlu0 %1671
        %1673 = vrot.lane.b32.xlu0 %v430, 6
        %v1674 = vpop.permute.xlu0 %1673
        %1675 = vrot.lane.b32.xlu0 %v431, 6
        %v1676 = vpop.permute.xlu0 %1675
        %1677 = vrot.lane.b32.xlu0 %v432, 6
        %v1678 = vpop.permute.xlu0 %1677
        %1679 = vrot.lane.b32.xlu0 %v434, 6
        %v1680 = vpop.permute.xlu0 %1679
        %1681 = vrot.lane.b32.xlu0 %v435, 6
        %v1682 = vpop.permute.xlu0 %1681
        %1683 = vrot.lane.b32.xlu0 %v436, 6
        %v1684 = vpop.permute.xlu0 %1683
        %1685 = vrot.lane.b32.xlu0 %v437, 6
        %v1686 = vpop.permute.xlu0 %1685
        %1687 = vrot.lane.b32.xlu0 %v438, 6
        %v1688 = vpop.permute.xlu0 %1687
        %1689 = vrot.lane.b32.xlu0 %v439, 6
        %v1690 = vpop.permute.xlu0 %1689
        %1691 = vrot.lane.b32.xlu0 %v441, 6
        %v1692 = vpop.permute.xlu0 %1691
        %1693 = vrot.lane.b32.xlu0 %v442, 6
        %v1694 = vpop.permute.xlu0 %1693
        %1695 = vrot.lane.b32.xlu0 %v443, 6
        %v1696 = vpop.permute.xlu0 %1695
        %1697 = vrot.lane.b32.xlu0 %v444, 6
        %v1698 = vpop.permute.xlu0 %1697
        %1699 = vrot.lane.b32.xlu0 %v445, 6
        %v1700 = vpop.permute.xlu0 %1699
        %1701 = vrot.lane.b32.xlu0 %v446, 6
        %v1702 = vpop.permute.xlu0 %1701
        %1703 = vrot.lane.b32.xlu0 %v448, 6
        %v1704 = vpop.permute.xlu0 %1703
        %1705 = vrot.lane.b32.xlu0 %v449, 6
        %v1706 = vpop.permute.xlu0 %1705
        %1707 = vrot.lane.b32.xlu0 %v450, 6
        %v1708 = vpop.permute.xlu0 %1707
        %1709 = vrot.lane.b32.xlu0 %v451, 6
        %v1710 = vpop.permute.xlu0 %1709
        %1711 = vrot.lane.b32.xlu0 %v452, 6
        %v1712 = vpop.permute.xlu0 %1711
        %1713 = vrot.lane.b32.xlu0 %v453, 6
        %v1714 = vpop.permute.xlu0 %1713
        %1715 = vrot.lane.b32.xlu0 %v455, 6
        %v1716 = vpop.permute.xlu0 %1715
        %1717 = vrot.lane.b32.xlu0 %v456, 6
        %v1718 = vpop.permute.xlu0 %1717
        %1719 = vrot.lane.b32.xlu0 %v457, 6
        %v1720 = vpop.permute.xlu0 %1719
        %1721 = vrot.lane.b32.xlu0 %v458, 6
        %v1722 = vpop.permute.xlu0 %1721
        %1723 = vrot.lane.b32.xlu0 %v459, 6
        %v1724 = vpop.permute.xlu0 %1723
        %1725 = vrot.lane.b32.xlu0 %v460, 6
        %v1726 = vpop.permute.xlu0 %1725
        %1727 = vrot.lane.b32.xlu0 %v462, 6
        %v1728 = vpop.permute.xlu0 %1727
        %1729 = vrot.lane.b32.xlu0 %v463, 6
        %v1730 = vpop.permute.xlu0 %1729
        %1731 = vrot.lane.b32.xlu0 %v464, 6
        %v1732 = vpop.permute.xlu0 %1731
        %1733 = vrot.lane.b32.xlu0 %v465, 6
        %v1734 = vpop.permute.xlu0 %1733
        %1735 = vrot.lane.b32.xlu0 %v466, 6
        %v1736 = vpop.permute.xlu0 %1735
        %1737 = vrot.lane.b32.xlu0 %v467, 6
        %v1738 = vpop.permute.xlu0 %1737
        %1739 = vrot.lane.b32.xlu0 %v469, 6
        %v1740 = vpop.permute.xlu0 %1739
        %1741 = vrot.lane.b32.xlu0 %v470, 6
        %v1742 = vpop.permute.xlu0 %1741
        %1743 = vrot.lane.b32.xlu0 %v471, 6
        %v1744 = vpop.permute.xlu0 %1743
        %1745 = vrot.lane.b32.xlu0 %v472, 6
        %v1746 = vpop.permute.xlu0 %1745
        %1747 = vrot.lane.b32.xlu0 %v473, 6
        %v1748 = vpop.permute.xlu0 %1747
        %1749 = vrot.lane.b32.xlu0 %v474, 6
        %v1750 = vpop.permute.xlu0 %1749
        %1751 = vrot.lane.b32.xlu0 %v476, 6
        %v1752 = vpop.permute.xlu0 %1751
        %1753 = vrot.lane.b32.xlu0 %v477, 6
        %v1754 = vpop.permute.xlu0 %1753
        %1755 = vrot.lane.b32.xlu0 %v478, 6
        %v1756 = vpop.permute.xlu0 %1755
        %1757 = vrot.lane.b32.xlu0 %v479, 6
        %v1758 = vpop.permute.xlu0 %1757
        %1759 = vrot.lane.b32.xlu0 %v480, 6
        %v1760 = vpop.permute.xlu0 %1759
        %1761 = vrot.lane.b32.xlu0 %v481, 6
        %v1762 = vpop.permute.xlu0 %1761
        %1763 = vrot.lane.b32.xlu0 %v483, 6
        %v1764 = vpop.permute.xlu0 %1763
        %1765 = vrot.lane.b32.xlu0 %v484, 6
        %v1766 = vpop.permute.xlu0 %1765
        %1767 = vrot.lane.b32.xlu0 %v485, 6
        %v1768 = vpop.permute.xlu0 %1767
        %1769 = vrot.lane.b32.xlu0 %v486, 6
        %v1770 = vpop.permute.xlu0 %1769
        %1771 = vrot.lane.b32.xlu0 %v487, 6
        %v1772 = vpop.permute.xlu0 %1771
        %1773 = vrot.lane.b32.xlu0 %v488, 6
        %v1774 = vpop.permute.xlu0 %1773
        %1775 = vrot.lane.b32.xlu0 %v490, 6
        %v1776 = vpop.permute.xlu0 %1775
        %1777 = vrot.lane.b32.xlu0 %v491, 6
        %v1778 = vpop.permute.xlu0 %1777
        %1779 = vrot.lane.b32.xlu0 %v492, 6
        %v1780 = vpop.permute.xlu0 %1779
        %1781 = vrot.lane.b32.xlu0 %v493, 6
        %v1782 = vpop.permute.xlu0 %1781
        %1783 = vrot.lane.b32.xlu0 %v494, 6
        %v1784 = vpop.permute.xlu0 %1783
        %1785 = vrot.lane.b32.xlu0 %v495, 6
        %v1786 = vpop.permute.xlu0 %1785
        %1787 = vrot.lane.b32.xlu0 %v497, 6
        %v1788 = vpop.permute.xlu0 %1787
        %1789 = vrot.lane.b32.xlu0 %v498, 6
        %v1790 = vpop.permute.xlu0 %1789
        %1791 = vrot.lane.b32.xlu0 %v499, 6
        %v1792 = vpop.permute.xlu0 %1791
        %1793 = vrot.lane.b32.xlu0 %v500, 6
        %v1794 = vpop.permute.xlu0 %1793
        %1795 = vrot.lane.b32.xlu0 %v501, 6
        %v1796 = vpop.permute.xlu0 %1795
        %1797 = vrot.lane.b32.xlu0 %v502, 6
        %v1798 = vpop.permute.xlu0 %1797
        %1799 = vrot.lane.b32.xlu0 %v504, 6
        %v1800 = vpop.permute.xlu0 %1799
        %1801 = vrot.lane.b32.xlu0 %v505, 6
        %v1802 = vpop.permute.xlu0 %1801
        %1803 = vrot.lane.b32.xlu0 %v506, 6
        %v1804 = vpop.permute.xlu0 %1803
        %1805 = vrot.lane.b32.xlu0 %v507, 6
        %v1806 = vpop.permute.xlu0 %1805
        %1807 = vrot.lane.b32.xlu0 %v508, 6
        %v1808 = vpop.permute.xlu0 %1807
        %1809 = vrot.lane.b32.xlu0 %v509, 6
        %v1810 = vpop.permute.xlu0 %1809
        %1811 = vrot.lane.b32.xlu0 %v511, 6
        %v1812 = vpop.permute.xlu0 %1811
        %1813 = vrot.lane.b32.xlu0 %v512, 6
        %v1814 = vpop.permute.xlu0 %1813
        %1815 = vrot.lane.b32.xlu0 %v513, 6
        %v1816 = vpop.permute.xlu0 %1815
        %1817 = vrot.lane.b32.xlu0 %v514, 6
        %v1818 = vpop.permute.xlu0 %1817
        %1819 = vrot.lane.b32.xlu0 %v515, 6
        %v1820 = vpop.permute.xlu0 %1819
        %1821 = vrot.lane.b32.xlu0 %v516, 6
        %v1822 = vpop.permute.xlu0 %1821
        %1823 = vrot.lane.b32.xlu0 %v518, 6
        %v1824 = vpop.permute.xlu0 %1823
        %1825 = vrot.lane.b32.xlu0 %v519, 6
        %v1826 = vpop.permute.xlu0 %1825
        %1827 = vrot.lane.b32.xlu0 %v520, 6
        %v1828 = vpop.permute.xlu0 %1827
        %1829 = vrot.lane.b32.xlu0 %v521, 6
        %v1830 = vpop.permute.xlu0 %1829
        %1831 = vrot.lane.b32.xlu0 %v522, 6
        %v1832 = vpop.permute.xlu0 %1831
        %1833 = vrot.lane.b32.xlu0 %v523, 6
        %v1834 = vpop.permute.xlu0 %1833
        %1835 = vrot.lane.b32.xlu0 %v525, 6
        %v1836 = vpop.permute.xlu0 %1835
        %1837 = vrot.lane.b32.xlu0 %v526, 6
        %v1838 = vpop.permute.xlu0 %1837
        %1839 = vrot.lane.b32.xlu0 %v527, 6
        %v1840 = vpop.permute.xlu0 %1839
        %1841 = vrot.lane.b32.xlu0 %v528, 6
        %v1842 = vpop.permute.xlu0 %1841
        %1843 = vrot.lane.b32.xlu0 %v529, 6
        %v1844 = vpop.permute.xlu0 %1843
        %1845 = vrot.lane.b32.xlu0 %v530, 6
        %v1846 = vpop.permute.xlu0 %1845
        %1847 = vrot.lane.b32.xlu0 %v532, 6
        %v1848 = vpop.permute.xlu0 %1847
        %1849 = vrot.lane.b32.xlu0 %v533, 6
        %v1850 = vpop.permute.xlu0 %1849
        %1851 = vrot.lane.b32.xlu0 %v534, 6
        %v1852 = vpop.permute.xlu0 %1851
        %1853 = vrot.lane.b32.xlu0 %v535, 6
        %v1854 = vpop.permute.xlu0 %1853
        %1855 = vrot.lane.b32.xlu0 %v536, 6
        %v1856 = vpop.permute.xlu0 %1855
        %1857 = vrot.lane.b32.xlu0 %v537, 6
        %v1858 = vpop.permute.xlu0 %1857
        %1859 = vrot.lane.b32.xlu0 %v539, 6
        %v1860 = vpop.permute.xlu0 %1859
        %1861 = vrot.lane.b32.xlu0 %v540, 6
        %v1862 = vpop.permute.xlu0 %1861
        %1863 = vrot.lane.b32.xlu0 %v541, 6
        %v1864 = vpop.permute.xlu0 %1863
        %1865 = vrot.lane.b32.xlu0 %v542, 6
        %v1866 = vpop.permute.xlu0 %1865
        %1867 = vrot.lane.b32.xlu0 %v543, 6
        %v1868 = vpop.permute.xlu0 %1867
        %1869 = vrot.lane.b32.xlu0 %v544, 6
        %v1870 = vpop.permute.xlu0 %1869
        %1871 = vrot.lane.b32.xlu0 %v546, 6
        %v1872 = vpop.permute.xlu0 %1871
        %1873 = vrot.lane.b32.xlu0 %v547, 6
        %v1874 = vpop.permute.xlu0 %1873
        %1875 = vrot.lane.b32.xlu0 %v548, 6
        %v1876 = vpop.permute.xlu0 %1875
        %1877 = vrot.lane.b32.xlu0 %v549, 6
        %v1878 = vpop.permute.xlu0 %1877
        %1879 = vrot.lane.b32.xlu0 %v550, 6
        %v1880 = vpop.permute.xlu0 %1879
        %1881 = vrot.lane.b32.xlu0 %v551, 6
        %v1882 = vpop.permute.xlu0 %1881
        %1883 = vrot.lane.b32.xlu0 %v553, 6
        %v1884 = vpop.permute.xlu0 %1883
        %1885 = vrot.lane.b32.xlu0 %v554, 6
        %v1886 = vpop.permute.xlu0 %1885
        %1887 = vrot.lane.b32.xlu0 %v555, 6
        %v1888 = vpop.permute.xlu0 %1887
        %1889 = vrot.lane.b32.xlu0 %v556, 6
        %v1890 = vpop.permute.xlu0 %1889
        %1891 = vrot.lane.b32.xlu0 %v557, 6
        %v1892 = vpop.permute.xlu0 %1891
        %1893 = vrot.lane.b32.xlu0 %v558, 6
        %v1894 = vpop.permute.xlu0 %1893
        %1895 = vrot.lane.b32.xlu0 %v560, 6
        %v1896 = vpop.permute.xlu0 %1895
        %1897 = vrot.lane.b32.xlu0 %v561, 6
        %v1898 = vpop.permute.xlu0 %1897
        %1899 = vrot.lane.b32.xlu0 %v562, 6
        %v1900 = vpop.permute.xlu0 %1899
        %1901 = vrot.lane.b32.xlu0 %v563, 6
        %v1902 = vpop.permute.xlu0 %1901
        %1903 = vrot.lane.b32.xlu0 %v564, 6
        %v1904 = vpop.permute.xlu0 %1903
        %1905 = vrot.lane.b32.xlu0 %v565, 6
        %v1906 = vpop.permute.xlu0 %1905
        %1907 = vrot.lane.b32.xlu0 %v567, 6
        %v1908 = vpop.permute.xlu0 %1907
        %1909 = vrot.lane.b32.xlu0 %v568, 6
        %v1910 = vpop.permute.xlu0 %1909
        %1911 = vrot.lane.b32.xlu0 %v569, 6
        %v1912 = vpop.permute.xlu0 %1911
        %1913 = vrot.lane.b32.xlu0 %v570, 6
        %v1914 = vpop.permute.xlu0 %1913
        %1915 = vrot.lane.b32.xlu0 %v571, 6
        %v1916 = vpop.permute.xlu0 %1915
        %1917 = vrot.lane.b32.xlu0 %v572, 6
        %v1918 = vpop.permute.xlu0 %1917
        %1919 = vrot.lane.b32.xlu0 %v574, 6
        %v1920 = vpop.permute.xlu0 %1919
        %1921 = vrot.lane.b32.xlu0 %v575, 6
        %v1922 = vpop.permute.xlu0 %1921
        %1923 = vrot.lane.b32.xlu0 %v576, 6
        %v1924 = vpop.permute.xlu0 %1923
        %1925 = vrot.lane.b32.xlu0 %v577, 6
        %v1926 = vpop.permute.xlu0 %1925
        %1927 = vrot.lane.b32.xlu0 %v578, 6
        %v1928 = vpop.permute.xlu0 %1927
        %1929 = vrot.lane.b32.xlu0 %v579, 6
        %v1930 = vpop.permute.xlu0 %1929
        %1931 = vrot.lane.b32.xlu0 %v581, 6
        %v1932 = vpop.permute.xlu0 %1931
        %1933 = vrot.lane.b32.xlu0 %v582, 6
        %v1934 = vpop.permute.xlu0 %1933
        %1935 = vrot.lane.b32.xlu0 %v583, 6
        %v1936 = vpop.permute.xlu0 %1935
        %1937 = vrot.lane.b32.xlu0 %v584, 6
        %v1938 = vpop.permute.xlu0 %1937
        %1939 = vrot.lane.b32.xlu0 %v585, 6
        %v1940 = vpop.permute.xlu0 %1939
        %1941 = vrot.lane.b32.xlu0 %v586, 6
        %v1942 = vpop.permute.xlu0 %1941
        %1943 = vrot.lane.b32.xlu0 %v588, 6
        %v1944 = vpop.permute.xlu0 %1943
        %1945 = vrot.lane.b32.xlu0 %v589, 6
        %v1946 = vpop.permute.xlu0 %1945
        %1947 = vrot.lane.b32.xlu0 %v590, 6
        %v1948 = vpop.permute.xlu0 %1947
        %1949 = vrot.lane.b32.xlu0 %v591, 6
        %v1950 = vpop.permute.xlu0 %1949
        %1951 = vrot.lane.b32.xlu0 %v592, 6
        %v1952 = vpop.permute.xlu0 %1951
        %1953 = vrot.lane.b32.xlu0 %v593, 6
        %v1954 = vpop.permute.xlu0 %1953
        %1955 = vrot.lane.b32.xlu0 %v595, 6
        %v1956 = vpop.permute.xlu0 %1955
        %1957 = vrot.lane.b32.xlu0 %v596, 6
        %v1958 = vpop.permute.xlu0 %1957
        %1959 = vrot.lane.b32.xlu0 %v597, 6
        %v1960 = vpop.permute.xlu0 %1959
        %1961 = vrot.lane.b32.xlu0 %v598, 6
        %v1962 = vpop.permute.xlu0 %1961
        %1963 = vrot.lane.b32.xlu0 %v599, 6
        %v1964 = vpop.permute.xlu0 %1963
        %1965 = vrot.lane.b32.xlu0 %v600, 6
        %v1966 = vpop.permute.xlu0 %1965
        %1967 = vrot.lane.b32.xlu0 %v602, 6
        %v1968 = vpop.permute.xlu0 %1967
        %1969 = vrot.lane.b32.xlu0 %v603, 6
        %v1970 = vpop.permute.xlu0 %1969
        %1971 = vrot.lane.b32.xlu0 %v604, 6
        %v1972 = vpop.permute.xlu0 %1971
        %1973 = vrot.lane.b32.xlu0 %v605, 6
        %v1974 = vpop.permute.xlu0 %1973
        %1975 = vrot.lane.b32.xlu0 %v606, 6
        %v1976 = vpop.permute.xlu0 %1975
        %1977 = vrot.lane.b32.xlu0 %v607, 6
        %v1978 = vpop.permute.xlu0 %1977
        %1979 = vrot.lane.b32.xlu0 %v609, 6
        %v1980 = vpop.permute.xlu0 %1979
        %1981 = vrot.lane.b32.xlu0 %v610, 6
        %v1982 = vpop.permute.xlu0 %1981
        %1983 = vrot.lane.b32.xlu0 %v611, 6
        %v1984 = vpop.permute.xlu0 %1983
        %1985 = vrot.lane.b32.xlu0 %v612, 6
        %v1986 = vpop.permute.xlu0 %1985
        %1987 = vrot.lane.b32.xlu0 %v613, 6
        %v1988 = vpop.permute.xlu0 %1987
        %1989 = vrot.lane.b32.xlu0 %v614, 6
        %v1990 = vpop.permute.xlu0 %1989
        %v2183 = vrot.slane %v397, 1
        %v2184 = vrot.slane %v404, 1
        %v2185 = vrot.slane %v411, 1
        %v2186 = vrot.slane %v418, 1
        %v2187 = vrot.slane %v425, 1
        %v2188 = vrot.slane %v432, 1
        %v2189 = vrot.slane %v439, 1
        %v2190 = vrot.slane %v446, 1
        %v2191 = vrot.slane %v453, 1
        %v2192 = vrot.slane %v460, 1
        %v2193 = vrot.slane %v467, 1
        %v2194 = vrot.slane %v474, 1
        %v2195 = vrot.slane %v481, 1
        %v2196 = vrot.slane %v488, 1
        %v2197 = vrot.slane %v495, 1
        %v2198 = vrot.slane %v502, 1
        %v2199 = vrot.slane %v509, 1
        %v2200 = vrot.slane %v516, 1
        %v2201 = vrot.slane %v523, 1
        %v2202 = vrot.slane %v530, 1
        %v2203 = vrot.slane %v537, 1
        %v2204 = vrot.slane %v544, 1
        %v2205 = vrot.slane %v551, 1
        %v2206 = vrot.slane %v558, 1
        %v2207 = vrot.slane %v565, 1
        %v2208 = vrot.slane %v572, 1
        %v2209 = vrot.slane %v579, 1
        %v2210 = vrot.slane %v586, 1
        %v2211 = vrot.slane %v593, 1
        %v2212 = vrot.slane %v600, 1
        %v2213 = vrot.slane %v607, 1
        %v2214 = vrot.slane %v614, 1
        %2215 = vrot.lane.b32.xlu0 %v808, 9
        %v2216 = vpop.permute.xlu0 %2215
        %2217 = vrot.lane.b32.xlu0 %v809, 9
        %v2218 = vpop.permute.xlu0 %2217
        %2219 = vrot.lane.b32.xlu0 %v810, 9
        %v2220 = vpop.permute.xlu0 %2219
        %2221 = vrot.lane.b32.xlu0 %v811, 9
        %v2222 = vpop.permute.xlu0 %2221
        %2223 = vrot.lane.b32.xlu0 %v812, 9
        %v2224 = vpop.permute.xlu0 %2223
        %2225 = vrot.lane.b32.xlu0 %v2183, 9
        %v2226 = vpop.permute.xlu0 %2225
        %2227 = vrot.lane.b32.xlu0 %v814, 9
        %v2228 = vpop.permute.xlu0 %2227
        %2229 = vrot.lane.b32.xlu0 %v815, 9
        %v2230 = vpop.permute.xlu0 %2229
        %2231 = vrot.lane.b32.xlu0 %v816, 9
        %v2232 = vpop.permute.xlu0 %2231
        %2233 = vrot.lane.b32.xlu0 %v817, 9
        %v2234 = vpop.permute.xlu0 %2233
        %2235 = vrot.lane.b32.xlu0 %v818, 9
        %v2236 = vpop.permute.xlu0 %2235
        %2237 = vrot.lane.b32.xlu0 %v2184, 9
        %v2238 = vpop.permute.xlu0 %2237
        %2239 = vrot.lane.b32.xlu0 %v820, 9
        %v2240 = vpop.permute.xlu0 %2239
        %2241 = vrot.lane.b32.xlu0 %v821, 9
        %v2242 = vpop.permute.xlu0 %2241
        %2243 = vrot.lane.b32.xlu0 %v822, 9
        %v2244 = vpop.permute.xlu0 %2243
        %2245 = vrot.lane.b32.xlu0 %v823, 9
        %v2246 = vpop.permute.xlu0 %2245
        %2247 = vrot.lane.b32.xlu0 %v824, 9
        %v2248 = vpop.permute.xlu0 %2247
        %2249 = vrot.lane.b32.xlu0 %v2185, 9
        %v2250 = vpop.permute.xlu0 %2249
        %2251 = vrot.lane.b32.xlu0 %v826, 9
        %v2252 = vpop.permute.xlu0 %2251
        %2253 = vrot.lane.b32.xlu0 %v827, 9
        %v2254 = vpop.permute.xlu0 %2253
        %2255 = vrot.lane.b32.xlu0 %v828, 9
        %v2256 = vpop.permute.xlu0 %2255
        %2257 = vrot.lane.b32.xlu0 %v829, 9
        %v2258 = vpop.permute.xlu0 %2257
        %2259 = vrot.lane.b32.xlu0 %v830, 9
        %v2260 = vpop.permute.xlu0 %2259
        %2261 = vrot.lane.b32.xlu0 %v2186, 9
        %v2262 = vpop.permute.xlu0 %2261
        %2263 = vrot.lane.b32.xlu0 %v832, 9
        %v2264 = vpop.permute.xlu0 %2263
        %2265 = vrot.lane.b32.xlu0 %v833, 9
        %v2266 = vpop.permute.xlu0 %2265
        %2267 = vrot.lane.b32.xlu0 %v834, 9
        %v2268 = vpop.permute.xlu0 %2267
        %2269 = vrot.lane.b32.xlu0 %v835, 9
        %v2270 = vpop.permute.xlu0 %2269
        %2271 = vrot.lane.b32.xlu0 %v836, 9
        %v2272 = vpop.permute.xlu0 %2271
        %2273 = vrot.lane.b32.xlu0 %v2187, 9
        %v2274 = vpop.permute.xlu0 %2273
        %2275 = vrot.lane.b32.xlu0 %v838, 9
        %v2276 = vpop.permute.xlu0 %2275
        %2277 = vrot.lane.b32.xlu0 %v839, 9
        %v2278 = vpop.permute.xlu0 %2277
        %2279 = vrot.lane.b32.xlu0 %v840, 9
        %v2280 = vpop.permute.xlu0 %2279
        %2281 = vrot.lane.b32.xlu0 %v841, 9
        %v2282 = vpop.permute.xlu0 %2281
        %2283 = vrot.lane.b32.xlu0 %v842, 9
        %v2284 = vpop.permute.xlu0 %2283
        %2285 = vrot.lane.b32.xlu0 %v2188, 9
        %v2286 = vpop.permute.xlu0 %2285
        %2287 = vrot.lane.b32.xlu0 %v844, 9
        %v2288 = vpop.permute.xlu0 %2287
        %2289 = vrot.lane.b32.xlu0 %v845, 9
        %v2290 = vpop.permute.xlu0 %2289
        %2291 = vrot.lane.b32.xlu0 %v846, 9
        %v2292 = vpop.permute.xlu0 %2291
        %2293 = vrot.lane.b32.xlu0 %v847, 9
        %v2294 = vpop.permute.xlu0 %2293
        %2295 = vrot.lane.b32.xlu0 %v848, 9
        %v2296 = vpop.permute.xlu0 %2295
        %2297 = vrot.lane.b32.xlu0 %v2189, 9
        %v2298 = vpop.permute.xlu0 %2297
        %2299 = vrot.lane.b32.xlu0 %v850, 9
        %v2300 = vpop.permute.xlu0 %2299
        %2301 = vrot.lane.b32.xlu0 %v851, 9
        %v2302 = vpop.permute.xlu0 %2301
        %2303 = vrot.lane.b32.xlu0 %v852, 9
        %v2304 = vpop.permute.xlu0 %2303
        %2305 = vrot.lane.b32.xlu0 %v853, 9
        %v2306 = vpop.permute.xlu0 %2305
        %2307 = vrot.lane.b32.xlu0 %v854, 9
        %v2308 = vpop.permute.xlu0 %2307
        %2309 = vrot.lane.b32.xlu0 %v2190, 9
        %v2310 = vpop.permute.xlu0 %2309
        %2311 = vrot.lane.b32.xlu0 %v856, 9
        %v2312 = vpop.permute.xlu0 %2311
        %2313 = vrot.lane.b32.xlu0 %v857, 9
        %v2314 = vpop.permute.xlu0 %2313
        %2315 = vrot.lane.b32.xlu0 %v858, 9
        %v2316 = vpop.permute.xlu0 %2315
        %2317 = vrot.lane.b32.xlu0 %v859, 9
        %v2318 = vpop.permute.xlu0 %2317
        %2319 = vrot.lane.b32.xlu0 %v860, 9
        %v2320 = vpop.permute.xlu0 %2319
        %2321 = vrot.lane.b32.xlu0 %v2191, 9
        %v2322 = vpop.permute.xlu0 %2321
        %2323 = vrot.lane.b32.xlu0 %v862, 9
        %v2324 = vpop.permute.xlu0 %2323
        %2325 = vrot.lane.b32.xlu0 %v863, 9
        %v2326 = vpop.permute.xlu0 %2325
        %2327 = vrot.lane.b32.xlu0 %v864, 9
        %v2328 = vpop.permute.xlu0 %2327
        %2329 = vrot.lane.b32.xlu0 %v865, 9
        %v2330 = vpop.permute.xlu0 %2329
        %2331 = vrot.lane.b32.xlu0 %v866, 9
        %v2332 = vpop.permute.xlu0 %2331
        %2333 = vrot.lane.b32.xlu0 %v2192, 9
        %v2334 = vpop.permute.xlu0 %2333
        %2335 = vrot.lane.b32.xlu0 %v868, 9
        %v2336 = vpop.permute.xlu0 %2335
        %2337 = vrot.lane.b32.xlu0 %v869, 9
        %v2338 = vpop.permute.xlu0 %2337
        %2339 = vrot.lane.b32.xlu0 %v870, 9
        %v2340 = vpop.permute.xlu0 %2339
        %2341 = vrot.lane.b32.xlu0 %v871, 9
        %v2342 = vpop.permute.xlu0 %2341
        %2343 = vrot.lane.b32.xlu0 %v872, 9
        %v2344 = vpop.permute.xlu0 %2343
        %2345 = vrot.lane.b32.xlu0 %v2193, 9
        %v2346 = vpop.permute.xlu0 %2345
        %2347 = vrot.lane.b32.xlu0 %v874, 9
        %v2348 = vpop.permute.xlu0 %2347
        %2349 = vrot.lane.b32.xlu0 %v875, 9
        %v2350 = vpop.permute.xlu0 %2349
        %2351 = vrot.lane.b32.xlu0 %v876, 9
        %v2352 = vpop.permute.xlu0 %2351
        %2353 = vrot.lane.b32.xlu0 %v877, 9
        %v2354 = vpop.permute.xlu0 %2353
        %2355 = vrot.lane.b32.xlu0 %v878, 9
        %v2356 = vpop.permute.xlu0 %2355
        %2357 = vrot.lane.b32.xlu0 %v2194, 9
        %v2358 = vpop.permute.xlu0 %2357
        %2359 = vrot.lane.b32.xlu0 %v880, 9
        %v2360 = vpop.permute.xlu0 %2359
        %2361 = vrot.lane.b32.xlu0 %v881, 9
        %v2362 = vpop.permute.xlu0 %2361
        %2363 = vrot.lane.b32.xlu0 %v882, 9
        %v2364 = vpop.permute.xlu0 %2363
        %2365 = vrot.lane.b32.xlu0 %v883, 9
        %v2366 = vpop.permute.xlu0 %2365
        %2367 = vrot.lane.b32.xlu0 %v884, 9
        %v2368 = vpop.permute.xlu0 %2367
        %2369 = vrot.lane.b32.xlu0 %v2195, 9
        %v2370 = vpop.permute.xlu0 %2369
        %2371 = vrot.lane.b32.xlu0 %v886, 9
        %v2372 = vpop.permute.xlu0 %2371
        %2373 = vrot.lane.b32.xlu0 %v887, 9
        %v2374 = vpop.permute.xlu0 %2373
        %2375 = vrot.lane.b32.xlu0 %v888, 9
        %v2376 = vpop.permute.xlu0 %2375
        %2377 = vrot.lane.b32.xlu0 %v889, 9
        %v2378 = vpop.permute.xlu0 %2377
        %2379 = vrot.lane.b32.xlu0 %v890, 9
        %v2380 = vpop.permute.xlu0 %2379
        %2381 = vrot.lane.b32.xlu0 %v2196, 9
        %v2382 = vpop.permute.xlu0 %2381
        %2383 = vrot.lane.b32.xlu0 %v892, 9
        %v2384 = vpop.permute.xlu0 %2383
        %2385 = vrot.lane.b32.xlu0 %v893, 9
        %v2386 = vpop.permute.xlu0 %2385
        %2387 = vrot.lane.b32.xlu0 %v894, 9
        %v2388 = vpop.permute.xlu0 %2387
        %2389 = vrot.lane.b32.xlu0 %v895, 9
        %v2390 = vpop.permute.xlu0 %2389
        %2391 = vrot.lane.b32.xlu0 %v896, 9
        %v2392 = vpop.permute.xlu0 %2391
        %2393 = vrot.lane.b32.xlu0 %v2197, 9
        %v2394 = vpop.permute.xlu0 %2393
        %2395 = vrot.lane.b32.xlu0 %v898, 9
        %v2396 = vpop.permute.xlu0 %2395
        %2397 = vrot.lane.b32.xlu0 %v899, 9
        %v2398 = vpop.permute.xlu0 %2397
        %2399 = vrot.lane.b32.xlu0 %v900, 9
        %v2400 = vpop.permute.xlu0 %2399
        %2401 = vrot.lane.b32.xlu0 %v901, 9
        %v2402 = vpop.permute.xlu0 %2401
        %2403 = vrot.lane.b32.xlu0 %v902, 9
        %v2404 = vpop.permute.xlu0 %2403
        %2405 = vrot.lane.b32.xlu0 %v2198, 9
        %v2406 = vpop.permute.xlu0 %2405
        %2407 = vrot.lane.b32.xlu0 %v904, 9
        %v2408 = vpop.permute.xlu0 %2407
        %2409 = vrot.lane.b32.xlu0 %v905, 9
        %v2410 = vpop.permute.xlu0 %2409
        %2411 = vrot.lane.b32.xlu0 %v906, 9
        %v2412 = vpop.permute.xlu0 %2411
        %2413 = vrot.lane.b32.xlu0 %v907, 9
        %v2414 = vpop.permute.xlu0 %2413
        %2415 = vrot.lane.b32.xlu0 %v908, 9
        %v2416 = vpop.permute.xlu0 %2415
        %2417 = vrot.lane.b32.xlu0 %v2199, 9
        %v2418 = vpop.permute.xlu0 %2417
        %2419 = vrot.lane.b32.xlu0 %v910, 9
        %v2420 = vpop.permute.xlu0 %2419
        %2421 = vrot.lane.b32.xlu0 %v911, 9
        %v2422 = vpop.permute.xlu0 %2421
        %2423 = vrot.lane.b32.xlu0 %v912, 9
        %v2424 = vpop.permute.xlu0 %2423
        %2425 = vrot.lane.b32.xlu0 %v913, 9
        %v2426 = vpop.permute.xlu0 %2425
        %2427 = vrot.lane.b32.xlu0 %v914, 9
        %v2428 = vpop.permute.xlu0 %2427
        %2429 = vrot.lane.b32.xlu0 %v2200, 9
        %v2430 = vpop.permute.xlu0 %2429
        %2431 = vrot.lane.b32.xlu0 %v916, 9
        %v2432 = vpop.permute.xlu0 %2431
        %2433 = vrot.lane.b32.xlu0 %v917, 9
        %v2434 = vpop.permute.xlu0 %2433
        %2435 = vrot.lane.b32.xlu0 %v918, 9
        %v2436 = vpop.permute.xlu0 %2435
        %2437 = vrot.lane.b32.xlu0 %v919, 9
        %v2438 = vpop.permute.xlu0 %2437
        %2439 = vrot.lane.b32.xlu0 %v920, 9
        %v2440 = vpop.permute.xlu0 %2439
        %2441 = vrot.lane.b32.xlu0 %v2201, 9
        %v2442 = vpop.permute.xlu0 %2441
        %2443 = vrot.lane.b32.xlu0 %v922, 9
        %v2444 = vpop.permute.xlu0 %2443
        %2445 = vrot.lane.b32.xlu0 %v923, 9
        %v2446 = vpop.permute.xlu0 %2445
        %2447 = vrot.lane.b32.xlu0 %v924, 9
        %v2448 = vpop.permute.xlu0 %2447
        %2449 = vrot.lane.b32.xlu0 %v925, 9
        %v2450 = vpop.permute.xlu0 %2449
        %2451 = vrot.lane.b32.xlu0 %v926, 9
        %v2452 = vpop.permute.xlu0 %2451
        %2453 = vrot.lane.b32.xlu0 %v2202, 9
        %v2454 = vpop.permute.xlu0 %2453
        %2455 = vrot.lane.b32.xlu0 %v928, 9
        %v2456 = vpop.permute.xlu0 %2455
        %2457 = vrot.lane.b32.xlu0 %v929, 9
        %v2458 = vpop.permute.xlu0 %2457
        %2459 = vrot.lane.b32.xlu0 %v930, 9
        %v2460 = vpop.permute.xlu0 %2459
        %2461 = vrot.lane.b32.xlu0 %v931, 9
        %v2462 = vpop.permute.xlu0 %2461
        %2463 = vrot.lane.b32.xlu0 %v932, 9
        %v2464 = vpop.permute.xlu0 %2463
        %2465 = vrot.lane.b32.xlu0 %v2203, 9
        %v2466 = vpop.permute.xlu0 %2465
        %2467 = vrot.lane.b32.xlu0 %v934, 9
        %v2468 = vpop.permute.xlu0 %2467
        %2469 = vrot.lane.b32.xlu0 %v935, 9
        %v2470 = vpop.permute.xlu0 %2469
        %2471 = vrot.lane.b32.xlu0 %v936, 9
        %v2472 = vpop.permute.xlu0 %2471
        %2473 = vrot.lane.b32.xlu0 %v937, 9
        %v2474 = vpop.permute.xlu0 %2473
        %2475 = vrot.lane.b32.xlu0 %v938, 9
        %v2476 = vpop.permute.xlu0 %2475
        %2477 = vrot.lane.b32.xlu0 %v2204, 9
        %v2478 = vpop.permute.xlu0 %2477
        %2479 = vrot.lane.b32.xlu0 %v940, 9
        %v2480 = vpop.permute.xlu0 %2479
        %2481 = vrot.lane.b32.xlu0 %v941, 9
        %v2482 = vpop.permute.xlu0 %2481
        %2483 = vrot.lane.b32.xlu0 %v942, 9
        %v2484 = vpop.permute.xlu0 %2483
        %2485 = vrot.lane.b32.xlu0 %v943, 9
        %v2486 = vpop.permute.xlu0 %2485
        %2487 = vrot.lane.b32.xlu0 %v944, 9
        %v2488 = vpop.permute.xlu0 %2487
        %2489 = vrot.lane.b32.xlu0 %v2205, 9
        %v2490 = vpop.permute.xlu0 %2489
        %2491 = vrot.lane.b32.xlu0 %v946, 9
        %v2492 = vpop.permute.xlu0 %2491
        %2493 = vrot.lane.b32.xlu0 %v947, 9
        %v2494 = vpop.permute.xlu0 %2493
        %2495 = vrot.lane.b32.xlu0 %v948, 9
        %v2496 = vpop.permute.xlu0 %2495
        %2497 = vrot.lane.b32.xlu0 %v949, 9
        %v2498 = vpop.permute.xlu0 %2497
        %2499 = vrot.lane.b32.xlu0 %v950, 9
        %v2500 = vpop.permute.xlu0 %2499
        %2501 = vrot.lane.b32.xlu0 %v2206, 9
        %v2502 = vpop.permute.xlu0 %2501
        %2503 = vrot.lane.b32.xlu0 %v952, 9
        %v2504 = vpop.permute.xlu0 %2503
        %2505 = vrot.lane.b32.xlu0 %v953, 9
        %v2506 = vpop.permute.xlu0 %2505
        %2507 = vrot.lane.b32.xlu0 %v954, 9
        %v2508 = vpop.permute.xlu0 %2507
        %2509 = vrot.lane.b32.xlu0 %v955, 9
        %v2510 = vpop.permute.xlu0 %2509
        %2511 = vrot.lane.b32.xlu0 %v956, 9
        %v2512 = vpop.permute.xlu0 %2511
        %2513 = vrot.lane.b32.xlu0 %v2207, 9
        %v2514 = vpop.permute.xlu0 %2513
        %2515 = vrot.lane.b32.xlu0 %v958, 9
        %v2516 = vpop.permute.xlu0 %2515
        %2517 = vrot.lane.b32.xlu0 %v959, 9
        %v2518 = vpop.permute.xlu0 %2517
        %2519 = vrot.lane.b32.xlu0 %v960, 9
        %v2520 = vpop.permute.xlu0 %2519
        %2521 = vrot.lane.b32.xlu0 %v961, 9
        %v2522 = vpop.permute.xlu0 %2521
        %2523 = vrot.lane.b32.xlu0 %v962, 9
        %v2524 = vpop.permute.xlu0 %2523
        %2525 = vrot.lane.b32.xlu0 %v2208, 9
        %v2526 = vpop.permute.xlu0 %2525
        %2527 = vrot.lane.b32.xlu0 %v964, 9
        %v2528 = vpop.permute.xlu0 %2527
        %2529 = vrot.lane.b32.xlu0 %v965, 9
        %v2530 = vpop.permute.xlu0 %2529
        %2531 = vrot.lane.b32.xlu0 %v966, 9
        %v2532 = vpop.permute.xlu0 %2531
        %2533 = vrot.lane.b32.xlu0 %v967, 9
        %v2534 = vpop.permute.xlu0 %2533
        %2535 = vrot.lane.b32.xlu0 %v968, 9
        %v2536 = vpop.permute.xlu0 %2535
        %2537 = vrot.lane.b32.xlu0 %v2209, 9
        %v2538 = vpop.permute.xlu0 %2537
        %2539 = vrot.lane.b32.xlu0 %v970, 9
        %v2540 = vpop.permute.xlu0 %2539
        %2541 = vrot.lane.b32.xlu0 %v971, 9
        %v2542 = vpop.permute.xlu0 %2541
        %2543 = vrot.lane.b32.xlu0 %v972, 9
        %v2544 = vpop.permute.xlu0 %2543
        %2545 = vrot.lane.b32.xlu0 %v973, 9
        %v2546 = vpop.permute.xlu0 %2545
        %2547 = vrot.lane.b32.xlu0 %v974, 9
        %v2548 = vpop.permute.xlu0 %2547
        %2549 = vrot.lane.b32.xlu0 %v2210, 9
        %v2550 = vpop.permute.xlu0 %2549
        %2551 = vrot.lane.b32.xlu0 %v976, 9
        %v2552 = vpop.permute.xlu0 %2551
        %2553 = vrot.lane.b32.xlu0 %v977, 9
        %v2554 = vpop.permute.xlu0 %2553
        %2555 = vrot.lane.b32.xlu0 %v978, 9
        %v2556 = vpop.permute.xlu0 %2555
        %2557 = vrot.lane.b32.xlu0 %v979, 9
        %v2558 = vpop.permute.xlu0 %2557
        %2559 = vrot.lane.b32.xlu0 %v980, 9
        %v2560 = vpop.permute.xlu0 %2559
        %2561 = vrot.lane.b32.xlu0 %v2211, 9
        %v2562 = vpop.permute.xlu0 %2561
        %2563 = vrot.lane.b32.xlu0 %v982, 9
        %v2564 = vpop.permute.xlu0 %2563
        %2565 = vrot.lane.b32.xlu0 %v983, 9
        %v2566 = vpop.permute.xlu0 %2565
        %2567 = vrot.lane.b32.xlu0 %v984, 9
        %v2568 = vpop.permute.xlu0 %2567
        %2569 = vrot.lane.b32.xlu0 %v985, 9
        %v2570 = vpop.permute.xlu0 %2569
        %2571 = vrot.lane.b32.xlu0 %v986, 9
        %v2572 = vpop.permute.xlu0 %2571
        %2573 = vrot.lane.b32.xlu0 %v2212, 9
        %v2574 = vpop.permute.xlu0 %2573
        %2575 = vrot.lane.b32.xlu0 %v988, 9
        %v2576 = vpop.permute.xlu0 %2575
        %2577 = vrot.lane.b32.xlu0 %v989, 9
        %v2578 = vpop.permute.xlu0 %2577
        %2579 = vrot.lane.b32.xlu0 %v990, 9
        %v2580 = vpop.permute.xlu0 %2579
        %2581 = vrot.lane.b32.xlu0 %v991, 9
        %v2582 = vpop.permute.xlu0 %2581
        %2583 = vrot.lane.b32.xlu0 %v992, 9
        %v2584 = vpop.permute.xlu0 %2583
        %2585 = vrot.lane.b32.xlu0 %v2213, 9
        %v2586 = vpop.permute.xlu0 %2585
        %2587 = vrot.lane.b32.xlu0 %v994, 9
        %v2588 = vpop.permute.xlu0 %2587
        %2589 = vrot.lane.b32.xlu0 %v995, 9
        %v2590 = vpop.permute.xlu0 %2589
        %2591 = vrot.lane.b32.xlu0 %v996, 9
        %v2592 = vpop.permute.xlu0 %2591
        %2593 = vrot.lane.b32.xlu0 %v997, 9
        %v2594 = vpop.permute.xlu0 %2593
        %2595 = vrot.lane.b32.xlu0 %v998, 9
        %v2596 = vpop.permute.xlu0 %2595
        %2597 = vrot.lane.b32.xlu0 %v2214, 9
        %v2598 = vpop.permute.xlu0 %2597
        %vm2791 = vcmask 23552
        %v2792 = vsel %vm2791, %v391, %v1000
        %v2793 = vsel %vm2791, %v392, %v1002
        %v2794 = vsel %vm2791, %v393, %v1004
        %v2795 = vsel %vm2791, %v394, %v1006
        %v2796 = vsel %vm2791, %v395, %v1008
        %v2797 = vsel %vm2791, %v396, %v1010
        %v2798 = vsel %vm2791, %v398, %v1012
        %v2799 = vsel %vm2791, %v399, %v1014
        %v2800 = vsel %vm2791, %v400, %v1016
        %v2801 = vsel %vm2791, %v401, %v1018
        %v2802 = vsel %vm2791, %v402, %v1020
        %v2803 = vsel %vm2791, %v403, %v1022
        %v2804 = vsel %vm2791, %v405, %v1024
        %v2805 = vsel %vm2791, %v406, %v1026
        %v2806 = vsel %vm2791, %v407, %v1028
        %v2807 = vsel %vm2791, %v408, %v1030
        %v2808 = vsel %vm2791, %v409, %v1032
        %v2809 = vsel %vm2791, %v410, %v1034
        %v2810 = vsel %vm2791, %v412, %v1036
        %v2811 = vsel %vm2791, %v413, %v1038
        %v2812 = vsel %vm2791, %v414, %v1040
        %v2813 = vsel %vm2791, %v415, %v1042
        %v2814 = vsel %vm2791, %v416, %v1044
        %v2815 = vsel %vm2791, %v417, %v1046
        %v2816 = vsel %vm2791, %v419, %v1048
        %v2817 = vsel %vm2791, %v420, %v1050
        %v2818 = vsel %vm2791, %v421, %v1052
        %v2819 = vsel %vm2791, %v422, %v1054
        %v2820 = vsel %vm2791, %v423, %v1056
        %v2821 = vsel %vm2791, %v424, %v1058
        %v2822 = vsel %vm2791, %v426, %v1060
        %v2823 = vsel %vm2791, %v427, %v1062
        %v2824 = vsel %vm2791, %v428, %v1064
        %v2825 = vsel %vm2791, %v429, %v1066
        %v2826 = vsel %vm2791, %v430, %v1068
        %v2827 = vsel %vm2791, %v431, %v1070
        %v2828 = vsel %vm2791, %v433, %v1072
        %v2829 = vsel %vm2791, %v434, %v1074
        %v2830 = vsel %vm2791, %v435, %v1076
        %v2831 = vsel %vm2791, %v436, %v1078
        %v2832 = vsel %vm2791, %v437, %v1080
        %v2833 = vsel %vm2791, %v438, %v1082
        %v2834 = vsel %vm2791, %v440, %v1084
        %v2835 = vsel %vm2791, %v441, %v1086
        %v2836 = vsel %vm2791, %v442, %v1088
        %v2837 = vsel %vm2791, %v443, %v1090
        %v2838 = vsel %vm2791, %v444, %v1092
        %v2839 = vsel %vm2791, %v445, %v1094
        %v2840 = vsel %vm2791, %v447, %v1096
        %v2841 = vsel %vm2791, %v448, %v1098
        %v2842 = vsel %vm2791, %v449, %v1100
        %v2843 = vsel %vm2791, %v450, %v1102
        %v2844 = vsel %vm2791, %v451, %v1104
        %v2845 = vsel %vm2791, %v452, %v1106
        %v2846 = vsel %vm2791, %v454, %v1108
        %v2847 = vsel %vm2791, %v455, %v1110
        %v2848 = vsel %vm2791, %v456, %v1112
        %v2849 = vsel %vm2791, %v457, %v1114
        %v2850 = vsel %vm2791, %v458, %v1116
        %v2851 = vsel %vm2791, %v459, %v1118
        %v2852 = vsel %vm2791, %v461, %v1120
        %v2853 = vsel %vm2791, %v462, %v1122
        %v2854 = vsel %vm2791, %v463, %v1124
        %v2855 = vsel %vm2791, %v464, %v1126
        %v2856 = vsel %vm2791, %v465, %v1128
        %v2857 = vsel %vm2791, %v466, %v1130
        %v2858 = vsel %vm2791, %v468, %v1132
        %v2859 = vsel %vm2791, %v469, %v1134
        %v2860 = vsel %vm2791, %v470, %v1136
        %v2861 = vsel %vm2791, %v471, %v1138
        %v2862 = vsel %vm2791, %v472, %v1140
        %v2863 = vsel %vm2791, %v473, %v1142
        %v2864 = vsel %vm2791, %v475, %v1144
        %v2865 = vsel %vm2791, %v476, %v1146
        %v2866 = vsel %vm2791, %v477, %v1148
        %v2867 = vsel %vm2791, %v478, %v1150
        %v2868 = vsel %vm2791, %v479, %v1152
        %v2869 = vsel %vm2791, %v480, %v1154
        %v2870 = vsel %vm2791, %v482, %v1156
        %v2871 = vsel %vm2791, %v483, %v1158
        %v2872 = vsel %vm2791, %v484, %v1160
        %v2873 = vsel %vm2791, %v485, %v1162
        %v2874 = vsel %vm2791, %v486, %v1164
        %v2875 = vsel %vm2791, %v487, %v1166
        %v2876 = vsel %vm2791, %v489, %v1168
        %v2877 = vsel %vm2791, %v490, %v1170
        %v2878 = vsel %vm2791, %v491, %v1172
        %v2879 = vsel %vm2791, %v492, %v1174
        %v2880 = vsel %vm2791, %v493, %v1176
        %v2881 = vsel %vm2791, %v494, %v1178
        %v2882 = vsel %vm2791, %v496, %v1180
        %v2883 = vsel %vm2791, %v497, %v1182
        %v2884 = vsel %vm2791, %v498, %v1184
        %v2885 = vsel %vm2791, %v499, %v1186
        %v2886 = vsel %vm2791, %v500, %v1188
        %v2887 = vsel %vm2791, %v501, %v1190
        %v2888 = vsel %vm2791, %v503, %v1192
        %v2889 = vsel %vm2791, %v504, %v1194
        %v2890 = vsel %vm2791, %v505, %v1196
        %v2891 = vsel %vm2791, %v506, %v1198
        %v2892 = vsel %vm2791, %v507, %v1200
        %v2893 = vsel %vm2791, %v508, %v1202
        %v2894 = vsel %vm2791, %v510, %v1204
        %v2895 = vsel %vm2791, %v511, %v1206
        %v2896 = vsel %vm2791, %v512, %v1208
        %v2897 = vsel %vm2791, %v513, %v1210
        %v2898 = vsel %vm2791, %v514, %v1212
        %v2899 = vsel %vm2791, %v515, %v1214
        %v2900 = vsel %vm2791, %v517, %v1216
        %v2901 = vsel %vm2791, %v518, %v1218
        %v2902 = vsel %vm2791, %v519, %v1220
        %v2903 = vsel %vm2791, %v520, %v1222
        %v2904 = vsel %vm2791, %v521, %v1224
        %v2905 = vsel %vm2791, %v522, %v1226
        %v2906 = vsel %vm2791, %v524, %v1228
        %v2907 = vsel %vm2791, %v525, %v1230
        %v2908 = vsel %vm2791, %v526, %v1232
        %v2909 = vsel %vm2791, %v527, %v1234
        %v2910 = vsel %vm2791, %v528, %v1236
        %v2911 = vsel %vm2791, %v529, %v1238
        %v2912 = vsel %vm2791, %v531, %v1240
        %v2913 = vsel %vm2791, %v532, %v1242
        %v2914 = vsel %vm2791, %v533, %v1244
        %v2915 = vsel %vm2791, %v534, %v1246
        %v2916 = vsel %vm2791, %v535, %v1248
        %v2917 = vsel %vm2791, %v536, %v1250
        %v2918 = vsel %vm2791, %v538, %v1252
        %v2919 = vsel %vm2791, %v539, %v1254
        %v2920 = vsel %vm2791, %v540, %v1256
        %v2921 = vsel %vm2791, %v541, %v1258
        %v2922 = vsel %vm2791, %v542, %v1260
        %v2923 = vsel %vm2791, %v543, %v1262
        %v2924 = vsel %vm2791, %v545, %v1264
        %v2925 = vsel %vm2791, %v546, %v1266
        %v2926 = vsel %vm2791, %v547, %v1268
        %v2927 = vsel %vm2791, %v548, %v1270
        %v2928 = vsel %vm2791, %v549, %v1272
        %v2929 = vsel %vm2791, %v550, %v1274
        %v2930 = vsel %vm2791, %v552, %v1276
        %v2931 = vsel %vm2791, %v553, %v1278
        %v2932 = vsel %vm2791, %v554, %v1280
        %v2933 = vsel %vm2791, %v555, %v1282
        %v2934 = vsel %vm2791, %v556, %v1284
        %v2935 = vsel %vm2791, %v557, %v1286
        %v2936 = vsel %vm2791, %v559, %v1288
        %v2937 = vsel %vm2791, %v560, %v1290
        %v2938 = vsel %vm2791, %v561, %v1292
        %v2939 = vsel %vm2791, %v562, %v1294
        %v2940 = vsel %vm2791, %v563, %v1296
        %v2941 = vsel %vm2791, %v564, %v1298
        %v2942 = vsel %vm2791, %v566, %v1300
        %v2943 = vsel %vm2791, %v567, %v1302
        %v2944 = vsel %vm2791, %v568, %v1304
        %v2945 = vsel %vm2791, %v569, %v1306
        %v2946 = vsel %vm2791, %v570, %v1308
        %v2947 = vsel %vm2791, %v571, %v1310
        %v2948 = vsel %vm2791, %v573, %v1312
        %v2949 = vsel %vm2791, %v574, %v1314
        %v2950 = vsel %vm2791, %v575, %v1316
        %v2951 = vsel %vm2791, %v576, %v1318
        %v2952 = vsel %vm2791, %v577, %v1320
        %v2953 = vsel %vm2791, %v578, %v1322
        %v2954 = vsel %vm2791, %v580, %v1324
        %v2955 = vsel %vm2791, %v581, %v1326
        %v2956 = vsel %vm2791, %v582, %v1328
        %v2957 = vsel %vm2791, %v583, %v1330
        %v2958 = vsel %vm2791, %v584, %v1332
        %v2959 = vsel %vm2791, %v585, %v1334
        %v2960 = vsel %vm2791, %v587, %v1336
        %v2961 = vsel %vm2791, %v588, %v1338
        %v2962 = vsel %vm2791, %v589, %v1340
        %v2963 = vsel %vm2791, %v590, %v1342
        %v2964 = vsel %vm2791, %v591, %v1344
        %v2965 = vsel %vm2791, %v592, %v1346
        %v2966 = vsel %vm2791, %v594, %v1348
        %v2967 = vsel %vm2791, %v595, %v1350
        %v2968 = vsel %vm2791, %v596, %v1352
        %v2969 = vsel %vm2791, %v597, %v1354
        %v2970 = vsel %vm2791, %v598, %v1356
        %v2971 = vsel %vm2791, %v599, %v1358
        %v2972 = vsel %vm2791, %v601, %v1360
        %v2973 = vsel %vm2791, %v602, %v1362
        %v2974 = vsel %vm2791, %v603, %v1364
        %v2975 = vsel %vm2791, %v604, %v1366
        %v2976 = vsel %vm2791, %v605, %v1368
        %v2977 = vsel %vm2791, %v606, %v1370
        %v2978 = vsel %vm2791, %v608, %v1372
        %v2979 = vsel %vm2791, %v609, %v1374
        %v2980 = vsel %vm2791, %v610, %v1376
        %v2981 = vsel %vm2791, %v611, %v1378
        %v2982 = vsel %vm2791, %v612, %v1380
        %v2983 = vsel %vm2791, %v613, %v1382
        %vm2984 = vcmask 48128
        %v2985 = vsel %vm2984, %v2792, %v1608
        %v2986 = vsel %vm2984, %v2793, %v1610
        %v2987 = vsel %vm2984, %v2794, %v1612
        %v2988 = vsel %vm2984, %v2795, %v1614
        %v2989 = vsel %vm2984, %v2796, %v1616
        %v2990 = vsel %vm2984, %v2797, %v1618
        %v2991 = vsel %vm2984, %v2798, %v1620
        %v2992 = vsel %vm2984, %v2799, %v1622
        %v2993 = vsel %vm2984, %v2800, %v1624
        %v2994 = vsel %vm2984, %v2801, %v1626
        %v2995 = vsel %vm2984, %v2802, %v1628
        %v2996 = vsel %vm2984, %v2803, %v1630
        %v2997 = vsel %vm2984, %v2804, %v1632
        %v2998 = vsel %vm2984, %v2805, %v1634
        %v2999 = vsel %vm2984, %v2806, %v1636
        %v3000 = vsel %vm2984, %v2807, %v1638
        %v3001 = vsel %vm2984, %v2808, %v1640
        %v3002 = vsel %vm2984, %v2809, %v1642
        %v3003 = vsel %vm2984, %v2810, %v1644
        %v3004 = vsel %vm2984, %v2811, %v1646
        %v3005 = vsel %vm2984, %v2812, %v1648
        %v3006 = vsel %vm2984, %v2813, %v1650
        %v3007 = vsel %vm2984, %v2814, %v1652
        %v3008 = vsel %vm2984, %v2815, %v1654
        %v3009 = vsel %vm2984, %v2816, %v1656
        %v3010 = vsel %vm2984, %v2817, %v1658
        %v3011 = vsel %vm2984, %v2818, %v1660
        %v3012 = vsel %vm2984, %v2819, %v1662
        %v3013 = vsel %vm2984, %v2820, %v1664
        %v3014 = vsel %vm2984, %v2821, %v1666
        %v3015 = vsel %vm2984, %v2822, %v1668
        %v3016 = vsel %vm2984, %v2823, %v1670
        %v3017 = vsel %vm2984, %v2824, %v1672
        %v3018 = vsel %vm2984, %v2825, %v1674
        %v3019 = vsel %vm2984, %v2826, %v1676
        %v3020 = vsel %vm2984, %v2827, %v1678
        %v3021 = vsel %vm2984, %v2828, %v1680
        %v3022 = vsel %vm2984, %v2829, %v1682
        %v3023 = vsel %vm2984, %v2830, %v1684
        %v3024 = vsel %vm2984, %v2831, %v1686
        %v3025 = vsel %vm2984, %v2832, %v1688
        %v3026 = vsel %vm2984, %v2833, %v1690
        %v3027 = vsel %vm2984, %v2834, %v1692
        %v3028 = vsel %vm2984, %v2835, %v1694
        %v3029 = vsel %vm2984, %v2836, %v1696
        %v3030 = vsel %vm2984, %v2837, %v1698
        %v3031 = vsel %vm2984, %v2838, %v1700
        %v3032 = vsel %vm2984, %v2839, %v1702
        %v3033 = vsel %vm2984, %v2840, %v1704
        %v3034 = vsel %vm2984, %v2841, %v1706
        %v3035 = vsel %vm2984, %v2842, %v1708
        %v3036 = vsel %vm2984, %v2843, %v1710
        %v3037 = vsel %vm2984, %v2844, %v1712
        %v3038 = vsel %vm2984, %v2845, %v1714
        %v3039 = vsel %vm2984, %v2846, %v1716
        %v3040 = vsel %vm2984, %v2847, %v1718
        %v3041 = vsel %vm2984, %v2848, %v1720
        %v3042 = vsel %vm2984, %v2849, %v1722
        %v3043 = vsel %vm2984, %v2850, %v1724
        %v3044 = vsel %vm2984, %v2851, %v1726
        %v3045 = vsel %vm2984, %v2852, %v1728
        %v3046 = vsel %vm2984, %v2853, %v1730
        %v3047 = vsel %vm2984, %v2854, %v1732
        %v3048 = vsel %vm2984, %v2855, %v1734
        %v3049 = vsel %vm2984, %v2856, %v1736
        %v3050 = vsel %vm2984, %v2857, %v1738
        %v3051 = vsel %vm2984, %v2858, %v1740
        %v3052 = vsel %vm2984, %v2859, %v1742
        %v3053 = vsel %vm2984, %v2860, %v1744
        %v3054 = vsel %vm2984, %v2861, %v1746
        %v3055 = vsel %vm2984, %v2862, %v1748
        %v3056 = vsel %vm2984, %v2863, %v1750
        %v3057 = vsel %vm2984, %v2864, %v1752
        %v3058 = vsel %vm2984, %v2865, %v1754
        %v3059 = vsel %vm2984, %v2866, %v1756
        %v3060 = vsel %vm2984, %v2867, %v1758
        %v3061 = vsel %vm2984, %v2868, %v1760
        %v3062 = vsel %vm2984, %v2869, %v1762
        %v3063 = vsel %vm2984, %v2870, %v1764
        %v3064 = vsel %vm2984, %v2871, %v1766
        %v3065 = vsel %vm2984, %v2872, %v1768
        %v3066 = vsel %vm2984, %v2873, %v1770
        %v3067 = vsel %vm2984, %v2874, %v1772
        %v3068 = vsel %vm2984, %v2875, %v1774
        %v3069 = vsel %vm2984, %v2876, %v1776
        %v3070 = vsel %vm2984, %v2877, %v1778
        %v3071 = vsel %vm2984, %v2878, %v1780
        %v3072 = vsel %vm2984, %v2879, %v1782
        %v3073 = vsel %vm2984, %v2880, %v1784
        %v3074 = vsel %vm2984, %v2881, %v1786
        %v3075 = vsel %vm2984, %v2882, %v1788
        %v3076 = vsel %vm2984, %v2883, %v1790
        %v3077 = vsel %vm2984, %v2884, %v1792
        %v3078 = vsel %vm2984, %v2885, %v1794
        %v3079 = vsel %vm2984, %v2886, %v1796
        %v3080 = vsel %vm2984, %v2887, %v1798
        %v3081 = vsel %vm2984, %v2888, %v1800
        %v3082 = vsel %vm2984, %v2889, %v1802
        %v3083 = vsel %vm2984, %v2890, %v1804
        %v3084 = vsel %vm2984, %v2891, %v1806
        %v3085 = vsel %vm2984, %v2892, %v1808
        %v3086 = vsel %vm2984, %v2893, %v1810
        %v3087 = vsel %vm2984, %v2894, %v1812
        %v3088 = vsel %vm2984, %v2895, %v1814
        %v3089 = vsel %vm2984, %v2896, %v1816
        %v3090 = vsel %vm2984, %v2897, %v1818
        %v3091 = vsel %vm2984, %v2898, %v1820
        %v3092 = vsel %vm2984, %v2899, %v1822
        %v3093 = vsel %vm2984, %v2900, %v1824
        %v3094 = vsel %vm2984, %v2901, %v1826
        %v3095 = vsel %vm2984, %v2902, %v1828
        %v3096 = vsel %vm2984, %v2903, %v1830
        %v3097 = vsel %vm2984, %v2904, %v1832
        %v3098 = vsel %vm2984, %v2905, %v1834
        %v3099 = vsel %vm2984, %v2906, %v1836
        %v3100 = vsel %vm2984, %v2907, %v1838
        %v3101 = vsel %vm2984, %v2908, %v1840
        %v3102 = vsel %vm2984, %v2909, %v1842
        %v3103 = vsel %vm2984, %v2910, %v1844
        %v3104 = vsel %vm2984, %v2911, %v1846
        %v3105 = vsel %vm2984, %v2912, %v1848
        %v3106 = vsel %vm2984, %v2913, %v1850
        %v3107 = vsel %vm2984, %v2914, %v1852
        %v3108 = vsel %vm2984, %v2915, %v1854
        %v3109 = vsel %vm2984, %v2916, %v1856
        %v3110 = vsel %vm2984, %v2917, %v1858
        %v3111 = vsel %vm2984, %v2918, %v1860
        %v3112 = vsel %vm2984, %v2919, %v1862
        %v3113 = vsel %vm2984, %v2920, %v1864
        %v3114 = vsel %vm2984, %v2921, %v1866
        %v3115 = vsel %vm2984, %v2922, %v1868
        %v3116 = vsel %vm2984, %v2923, %v1870
        %v3117 = vsel %vm2984, %v2924, %v1872
        %v3118 = vsel %vm2984, %v2925, %v1874
        %v3119 = vsel %vm2984, %v2926, %v1876
        %v3120 = vsel %vm2984, %v2927, %v1878
        %v3121 = vsel %vm2984, %v2928, %v1880
        %v3122 = vsel %vm2984, %v2929, %v1882
        %v3123 = vsel %vm2984, %v2930, %v1884
        %v3124 = vsel %vm2984, %v2931, %v1886
        %v3125 = vsel %vm2984, %v2932, %v1888
        %v3126 = vsel %vm2984, %v2933, %v1890
        %v3127 = vsel %vm2984, %v2934, %v1892
        %v3128 = vsel %vm2984, %v2935, %v1894
        %v3129 = vsel %vm2984, %v2936, %v1896
        %v3130 = vsel %vm2984, %v2937, %v1898
        %v3131 = vsel %vm2984, %v2938, %v1900
        %v3132 = vsel %vm2984, %v2939, %v1902
        %v3133 = vsel %vm2984, %v2940, %v1904
        %v3134 = vsel %vm2984, %v2941, %v1906
        %v3135 = vsel %vm2984, %v2942, %v1908
        %v3136 = vsel %vm2984, %v2943, %v1910
        %v3137 = vsel %vm2984, %v2944, %v1912
        %v3138 = vsel %vm2984, %v2945, %v1914
        %v3139 = vsel %vm2984, %v2946, %v1916
        %v3140 = vsel %vm2984, %v2947, %v1918
        %v3141 = vsel %vm2984, %v2948, %v1920
        %v3142 = vsel %vm2984, %v2949, %v1922
        %v3143 = vsel %vm2984, %v2950, %v1924
        %v3144 = vsel %vm2984, %v2951, %v1926
        %v3145 = vsel %vm2984, %v2952, %v1928
        %v3146 = vsel %vm2984, %v2953, %v1930
        %v3147 = vsel %vm2984, %v2954, %v1932
        %v3148 = vsel %vm2984, %v2955, %v1934
        %v3149 = vsel %vm2984, %v2956, %v1936
        %v3150 = vsel %vm2984, %v2957, %v1938
        %v3151 = vsel %vm2984, %v2958, %v1940
        %v3152 = vsel %vm2984, %v2959, %v1942
        %v3153 = vsel %vm2984, %v2960, %v1944
        %v3154 = vsel %vm2984, %v2961, %v1946
        %v3155 = vsel %vm2984, %v2962, %v1948
        %v3156 = vsel %vm2984, %v2963, %v1950
        %v3157 = vsel %vm2984, %v2964, %v1952
        %v3158 = vsel %vm2984, %v2965, %v1954
        %v3159 = vsel %vm2984, %v2966, %v1956
        %v3160 = vsel %vm2984, %v2967, %v1958
        %v3161 = vsel %vm2984, %v2968, %v1960
        %v3162 = vsel %vm2984, %v2969, %v1962
        %v3163 = vsel %vm2984, %v2970, %v1964
        %v3164 = vsel %vm2984, %v2971, %v1966
        %v3165 = vsel %vm2984, %v2972, %v1968
        %v3166 = vsel %vm2984, %v2973, %v1970
        %v3167 = vsel %vm2984, %v2974, %v1972
        %v3168 = vsel %vm2984, %v2975, %v1974
        %v3169 = vsel %vm2984, %v2976, %v1976
        %v3170 = vsel %vm2984, %v2977, %v1978
        %v3171 = vsel %vm2984, %v2978, %v1980
        %v3172 = vsel %vm2984, %v2979, %v1982
        %v3173 = vsel %vm2984, %v2980, %v1984
        %v3174 = vsel %vm2984, %v2981, %v1986
        %v3175 = vsel %vm2984, %v2982, %v1988
        %v3176 = vsel %vm2984, %v2983, %v1990
        %vm3177 = vcmask 72704
        %v3178 = vsel %vm3177, %v2985, %v2216
        %v3179 = vsel %vm3177, %v2986, %v2218
        %v3180 = vsel %vm3177, %v2987, %v2220
        %v3181 = vsel %vm3177, %v2988, %v2222
        %v3182 = vsel %vm3177, %v2989, %v2224
        %v3183 = vsel %vm3177, %v2990, %v2226
        %v3184 = vsel %vm3177, %v2991, %v2228
        %v3185 = vsel %vm3177, %v2992, %v2230
        %v3186 = vsel %vm3177, %v2993, %v2232
        %v3187 = vsel %vm3177, %v2994, %v2234
        %v3188 = vsel %vm3177, %v2995, %v2236
        %v3189 = vsel %vm3177, %v2996, %v2238
        %v3190 = vsel %vm3177, %v2997, %v2240
        %v3191 = vsel %vm3177, %v2998, %v2242
        %v3192 = vsel %vm3177, %v2999, %v2244
        %v3193 = vsel %vm3177, %v3000, %v2246
        %v3194 = vsel %vm3177, %v3001, %v2248
        %v3195 = vsel %vm3177, %v3002, %v2250
        %v3196 = vsel %vm3177, %v3003, %v2252
        %v3197 = vsel %vm3177, %v3004, %v2254
        %v3198 = vsel %vm3177, %v3005, %v2256
        %v3199 = vsel %vm3177, %v3006, %v2258
        %v3200 = vsel %vm3177, %v3007, %v2260
        %v3201 = vsel %vm3177, %v3008, %v2262
        %v3202 = vsel %vm3177, %v3009, %v2264
        %v3203 = vsel %vm3177, %v3010, %v2266
        %v3204 = vsel %vm3177, %v3011, %v2268
        %v3205 = vsel %vm3177, %v3012, %v2270
        %v3206 = vsel %vm3177, %v3013, %v2272
        %v3207 = vsel %vm3177, %v3014, %v2274
        %v3208 = vsel %vm3177, %v3015, %v2276
        %v3209 = vsel %vm3177, %v3016, %v2278
        %v3210 = vsel %vm3177, %v3017, %v2280
        %v3211 = vsel %vm3177, %v3018, %v2282
        %v3212 = vsel %vm3177, %v3019, %v2284
        %v3213 = vsel %vm3177, %v3020, %v2286
        %v3214 = vsel %vm3177, %v3021, %v2288
        %v3215 = vsel %vm3177, %v3022, %v2290
        %v3216 = vsel %vm3177, %v3023, %v2292
        %v3217 = vsel %vm3177, %v3024, %v2294
        %v3218 = vsel %vm3177, %v3025, %v2296
        %v3219 = vsel %vm3177, %v3026, %v2298
        %v3220 = vsel %vm3177, %v3027, %v2300
        %v3221 = vsel %vm3177, %v3028, %v2302
        %v3222 = vsel %vm3177, %v3029, %v2304
        %v3223 = vsel %vm3177, %v3030, %v2306
        %v3224 = vsel %vm3177, %v3031, %v2308
        %v3225 = vsel %vm3177, %v3032, %v2310
        %v3226 = vsel %vm3177, %v3033, %v2312
        %v3227 = vsel %vm3177, %v3034, %v2314
        %v3228 = vsel %vm3177, %v3035, %v2316
        %v3229 = vsel %vm3177, %v3036, %v2318
        %v3230 = vsel %vm3177, %v3037, %v2320
        %v3231 = vsel %vm3177, %v3038, %v2322
        %v3232 = vsel %vm3177, %v3039, %v2324
        %v3233 = vsel %vm3177, %v3040, %v2326
        %v3234 = vsel %vm3177, %v3041, %v2328
        %v3235 = vsel %vm3177, %v3042, %v2330
        %v3236 = vsel %vm3177, %v3043, %v2332
        %v3237 = vsel %vm3177, %v3044, %v2334
        %v3238 = vsel %vm3177, %v3045, %v2336
        %v3239 = vsel %vm3177, %v3046, %v2338
        %v3240 = vsel %vm3177, %v3047, %v2340
        %v3241 = vsel %vm3177, %v3048, %v2342
        %v3242 = vsel %vm3177, %v3049, %v2344
        %v3243 = vsel %vm3177, %v3050, %v2346
        %v3244 = vsel %vm3177, %v3051, %v2348
        %v3245 = vsel %vm3177, %v3052, %v2350
        %v3246 = vsel %vm3177, %v3053, %v2352
        %v3247 = vsel %vm3177, %v3054, %v2354
        %v3248 = vsel %vm3177, %v3055, %v2356
        %v3249 = vsel %vm3177, %v3056, %v2358
        %v3250 = vsel %vm3177, %v3057, %v2360
        %v3251 = vsel %vm3177, %v3058, %v2362
        %v3252 = vsel %vm3177, %v3059, %v2364
        %v3253 = vsel %vm3177, %v3060, %v2366
        %v3254 = vsel %vm3177, %v3061, %v2368
        %v3255 = vsel %vm3177, %v3062, %v2370
        %v3256 = vsel %vm3177, %v3063, %v2372
        %v3257 = vsel %vm3177, %v3064, %v2374
        %v3258 = vsel %vm3177, %v3065, %v2376
        %v3259 = vsel %vm3177, %v3066, %v2378
        %v3260 = vsel %vm3177, %v3067, %v2380
        %v3261 = vsel %vm3177, %v3068, %v2382
        %v3262 = vsel %vm3177, %v3069, %v2384
        %v3263 = vsel %vm3177, %v3070, %v2386
        %v3264 = vsel %vm3177, %v3071, %v2388
        %v3265 = vsel %vm3177, %v3072, %v2390
        %v3266 = vsel %vm3177, %v3073, %v2392
        %v3267 = vsel %vm3177, %v3074, %v2394
        %v3268 = vsel %vm3177, %v3075, %v2396
        %v3269 = vsel %vm3177, %v3076, %v2398
        %v3270 = vsel %vm3177, %v3077, %v2400
        %v3271 = vsel %vm3177, %v3078, %v2402
        %v3272 = vsel %vm3177, %v3079, %v2404
        %v3273 = vsel %vm3177, %v3080, %v2406
        %v3274 = vsel %vm3177, %v3081, %v2408
        %v3275 = vsel %vm3177, %v3082, %v2410
        %v3276 = vsel %vm3177, %v3083, %v2412
        %v3277 = vsel %vm3177, %v3084, %v2414
        %v3278 = vsel %vm3177, %v3085, %v2416
        %v3279 = vsel %vm3177, %v3086, %v2418
        %v3280 = vsel %vm3177, %v3087, %v2420
        %v3281 = vsel %vm3177, %v3088, %v2422
        %v3282 = vsel %vm3177, %v3089, %v2424
        %v3283 = vsel %vm3177, %v3090, %v2426
        %v3284 = vsel %vm3177, %v3091, %v2428
        %v3285 = vsel %vm3177, %v3092, %v2430
        %v3286 = vsel %vm3177, %v3093, %v2432
        %v3287 = vsel %vm3177, %v3094, %v2434
        %v3288 = vsel %vm3177, %v3095, %v2436
        %v3289 = vsel %vm3177, %v3096, %v2438
        %v3290 = vsel %vm3177, %v3097, %v2440
        %v3291 = vsel %vm3177, %v3098, %v2442
        %v3292 = vsel %vm3177, %v3099, %v2444
        %v3293 = vsel %vm3177, %v3100, %v2446
        %v3294 = vsel %vm3177, %v3101, %v2448
        %v3295 = vsel %vm3177, %v3102, %v2450
        %v3296 = vsel %vm3177, %v3103, %v2452
        %v3297 = vsel %vm3177, %v3104, %v2454
        %v3298 = vsel %vm3177, %v3105, %v2456
        %v3299 = vsel %vm3177, %v3106, %v2458
        %v3300 = vsel %vm3177, %v3107, %v2460
        %v3301 = vsel %vm3177, %v3108, %v2462
        %v3302 = vsel %vm3177, %v3109, %v2464
        %v3303 = vsel %vm3177, %v3110, %v2466
        %v3304 = vsel %vm3177, %v3111, %v2468
        %v3305 = vsel %vm3177, %v3112, %v2470
        %v3306 = vsel %vm3177, %v3113, %v2472
        %v3307 = vsel %vm3177, %v3114, %v2474
        %v3308 = vsel %vm3177, %v3115, %v2476
        %v3309 = vsel %vm3177, %v3116, %v2478
        %v3310 = vsel %vm3177, %v3117, %v2480
        %v3311 = vsel %vm3177, %v3118, %v2482
        %v3312 = vsel %vm3177, %v3119, %v2484
        %v3313 = vsel %vm3177, %v3120, %v2486
        %v3314 = vsel %vm3177, %v3121, %v2488
        %v3315 = vsel %vm3177, %v3122, %v2490
        %v3316 = vsel %vm3177, %v3123, %v2492
        %v3317 = vsel %vm3177, %v3124, %v2494
        %v3318 = vsel %vm3177, %v3125, %v2496
        %v3319 = vsel %vm3177, %v3126, %v2498
        %v3320 = vsel %vm3177, %v3127, %v2500
        %v3321 = vsel %vm3177, %v3128, %v2502
        %v3322 = vsel %vm3177, %v3129, %v2504
        %v3323 = vsel %vm3177, %v3130, %v2506
        %v3324 = vsel %vm3177, %v3131, %v2508
        %v3325 = vsel %vm3177, %v3132, %v2510
        %v3326 = vsel %vm3177, %v3133, %v2512
        %v3327 = vsel %vm3177, %v3134, %v2514
        %v3328 = vsel %vm3177, %v3135, %v2516
        %v3329 = vsel %vm3177, %v3136, %v2518
        %v3330 = vsel %vm3177, %v3137, %v2520
        %v3331 = vsel %vm3177, %v3138, %v2522
        %v3332 = vsel %vm3177, %v3139, %v2524
        %v3333 = vsel %vm3177, %v3140, %v2526
        %v3334 = vsel %vm3177, %v3141, %v2528
        %v3335 = vsel %vm3177, %v3142, %v2530
        %v3336 = vsel %vm3177, %v3143, %v2532
        %v3337 = vsel %vm3177, %v3144, %v2534
        %v3338 = vsel %vm3177, %v3145, %v2536
        %v3339 = vsel %vm3177, %v3146, %v2538
        %v3340 = vsel %vm3177, %v3147, %v2540
        %v3341 = vsel %vm3177, %v3148, %v2542
        %v3342 = vsel %vm3177, %v3149, %v2544
        %v3343 = vsel %vm3177, %v3150, %v2546
        %v3344 = vsel %vm3177, %v3151, %v2548
        %v3345 = vsel %vm3177, %v3152, %v2550
        %v3346 = vsel %vm3177, %v3153, %v2552
        %v3347 = vsel %vm3177, %v3154, %v2554
        %v3348 = vsel %vm3177, %v3155, %v2556
        %v3349 = vsel %vm3177, %v3156, %v2558
        %v3350 = vsel %vm3177, %v3157, %v2560
        %v3351 = vsel %vm3177, %v3158, %v2562
        %v3352 = vsel %vm3177, %v3159, %v2564
        %v3353 = vsel %vm3177, %v3160, %v2566
        %v3354 = vsel %vm3177, %v3161, %v2568
        %v3355 = vsel %vm3177, %v3162, %v2570
        %v3356 = vsel %vm3177, %v3163, %v2572
        %v3357 = vsel %vm3177, %v3164, %v2574
        %v3358 = vsel %vm3177, %v3165, %v2576
        %v3359 = vsel %vm3177, %v3166, %v2578
        %v3360 = vsel %vm3177, %v3167, %v2580
        %v3361 = vsel %vm3177, %v3168, %v2582
        %v3362 = vsel %vm3177, %v3169, %v2584
        %v3363 = vsel %vm3177, %v3170, %v2586
        %v3364 = vsel %vm3177, %v3171, %v2588
        %v3365 = vsel %vm3177, %v3172, %v2590
        %v3366 = vsel %vm3177, %v3173, %v2592
        %v3367 = vsel %vm3177, %v3174, %v2594
        %v3368 = vsel %vm3177, %v3175, %v2596
        %v3369 = vsel %vm3177, %v3176, %v2598
        %v3562 = vrot.slane %v3178, 2
        %v3563 = vrot.slane %v3178, 4
        %v3564 = vrot.slane %v3179, 2
        %v3565 = vrot.slane %v3179, 4
        %v3566 = vrot.slane %v3180, 2
        %v3567 = vrot.slane %v3180, 4
        %v3568 = vrot.slane %v3181, 2
        %v3569 = vrot.slane %v3181, 4
        %v3570 = vrot.slane %v3182, 2
        %v3571 = vrot.slane %v3182, 4
        %v3572 = vrot.slane %v3183, 2
        %v3573 = vrot.slane %v3183, 4
        %v3574 = vrot.slane %v3184, 2
        %v3575 = vrot.slane %v3184, 4
        %v3576 = vrot.slane %v3185, 2
        %v3577 = vrot.slane %v3185, 4
        %v3578 = vrot.slane %v3186, 2
        %v3579 = vrot.slane %v3186, 4
        %v3580 = vrot.slane %v3187, 2
        %v3581 = vrot.slane %v3187, 4
        %v3582 = vrot.slane %v3188, 2
        %v3583 = vrot.slane %v3188, 4
        %v3584 = vrot.slane %v3189, 2
        %v3585 = vrot.slane %v3189, 4
        %v3586 = vrot.slane %v3190, 2
        %v3587 = vrot.slane %v3190, 4
        %v3588 = vrot.slane %v3191, 2
        %v3589 = vrot.slane %v3191, 4
        %v3590 = vrot.slane %v3192, 2
        %v3591 = vrot.slane %v3192, 4
        %v3592 = vrot.slane %v3193, 2
        %v3593 = vrot.slane %v3193, 4
        %v3594 = vrot.slane %v3194, 2
        %v3595 = vrot.slane %v3194, 4
        %v3596 = vrot.slane %v3195, 2
        %v3597 = vrot.slane %v3195, 4
        %v3598 = vrot.slane %v3196, 2
        %v3599 = vrot.slane %v3196, 4
        %v3600 = vrot.slane %v3197, 2
        %v3601 = vrot.slane %v3197, 4
        %v3602 = vrot.slane %v3198, 2
        %v3603 = vrot.slane %v3198, 4
        %v3604 = vrot.slane %v3199, 2
        %v3605 = vrot.slane %v3199, 4
        %v3606 = vrot.slane %v3200, 2
        %v3607 = vrot.slane %v3200, 4
        %v3608 = vrot.slane %v3201, 2
        %v3609 = vrot.slane %v3201, 4
        %v3610 = vrot.slane %v3202, 2
        %v3611 = vrot.slane %v3202, 4
        %v3612 = vrot.slane %v3203, 2
        %v3613 = vrot.slane %v3203, 4
        %v3614 = vrot.slane %v3204, 2
        %v3615 = vrot.slane %v3204, 4
        %v3616 = vrot.slane %v3205, 2
        %v3617 = vrot.slane %v3205, 4
        %v3618 = vrot.slane %v3206, 2
        %v3619 = vrot.slane %v3206, 4
        %v3620 = vrot.slane %v3207, 2
        %v3621 = vrot.slane %v3207, 4
        %v3622 = vrot.slane %v3208, 2
        %v3623 = vrot.slane %v3208, 4
        %v3624 = vrot.slane %v3209, 2
        %v3625 = vrot.slane %v3209, 4
        %v3626 = vrot.slane %v3210, 2
        %v3627 = vrot.slane %v3210, 4
        %v3628 = vrot.slane %v3211, 2
        %v3629 = vrot.slane %v3211, 4
        %v3630 = vrot.slane %v3212, 2
        %v3631 = vrot.slane %v3212, 4
        %v3632 = vrot.slane %v3213, 2
        %v3633 = vrot.slane %v3213, 4
        %v3634 = vrot.slane %v3214, 2
        %v3635 = vrot.slane %v3214, 4
        %v3636 = vrot.slane %v3215, 2
        %v3637 = vrot.slane %v3215, 4
        %v3638 = vrot.slane %v3216, 2
        %v3639 = vrot.slane %v3216, 4
        %v3640 = vrot.slane %v3217, 2
        %v3641 = vrot.slane %v3217, 4
        %v3642 = vrot.slane %v3218, 2
        %v3643 = vrot.slane %v3218, 4
        %v3644 = vrot.slane %v3219, 2
        %v3645 = vrot.slane %v3219, 4
        %v3646 = vrot.slane %v3220, 2
        %v3647 = vrot.slane %v3220, 4
        %v3648 = vrot.slane %v3221, 2
        %v3649 = vrot.slane %v3221, 4
        %v3650 = vrot.slane %v3222, 2
        %v3651 = vrot.slane %v3222, 4
        %v3652 = vrot.slane %v3223, 2
        %v3653 = vrot.slane %v3223, 4
        %v3654 = vrot.slane %v3224, 2
        %v3655 = vrot.slane %v3224, 4
        %v3656 = vrot.slane %v3225, 2
        %v3657 = vrot.slane %v3225, 4
        %v3658 = vrot.slane %v3226, 2
        %v3659 = vrot.slane %v3226, 4
        %v3660 = vrot.slane %v3227, 2
        %v3661 = vrot.slane %v3227, 4
        %v3662 = vrot.slane %v3228, 2
        %v3663 = vrot.slane %v3228, 4
        %v3664 = vrot.slane %v3229, 2
        %v3665 = vrot.slane %v3229, 4
        %v3666 = vrot.slane %v3230, 2
        %v3667 = vrot.slane %v3230, 4
        %v3668 = vrot.slane %v3231, 2
        %v3669 = vrot.slane %v3231, 4
        %v3670 = vrot.slane %v3232, 2
        %v3671 = vrot.slane %v3232, 4
        %v3672 = vrot.slane %v3233, 2
        %v3673 = vrot.slane %v3233, 4
        %v3674 = vrot.slane %v3234, 2
        %v3675 = vrot.slane %v3234, 4
        %v3676 = vrot.slane %v3235, 2
        %v3677 = vrot.slane %v3235, 4
        %v3678 = vrot.slane %v3236, 2
        %v3679 = vrot.slane %v3236, 4
        %v3680 = vrot.slane %v3237, 2
        %v3681 = vrot.slane %v3237, 4
        %v3682 = vrot.slane %v3238, 2
        %v3683 = vrot.slane %v3238, 4
        %v3684 = vrot.slane %v3239, 2
        %v3685 = vrot.slane %v3239, 4
        %v3686 = vrot.slane %v3240, 2
        %v3687 = vrot.slane %v3240, 4
        %v3688 = vrot.slane %v3241, 2
        %v3689 = vrot.slane %v3241, 4
        %v3690 = vrot.slane %v3242, 2
        %v3691 = vrot.slane %v3242, 4
        %v3692 = vrot.slane %v3243, 2
        %v3693 = vrot.slane %v3243, 4
        %v3694 = vrot.slane %v3244, 2
        %v3695 = vrot.slane %v3244, 4
        %v3696 = vrot.slane %v3245, 2
        %v3697 = vrot.slane %v3245, 4
        %v3698 = vrot.slane %v3246, 2
        %v3699 = vrot.slane %v3246, 4
        %v3700 = vrot.slane %v3247, 2
        %v3701 = vrot.slane %v3247, 4
        %v3702 = vrot.slane %v3248, 2
        %v3703 = vrot.slane %v3248, 4
        %v3704 = vrot.slane %v3249, 2
        %v3705 = vrot.slane %v3249, 4
        %v3706 = vrot.slane %v3250, 2
        %v3707 = vrot.slane %v3250, 4
        %v3708 = vrot.slane %v3251, 2
        %v3709 = vrot.slane %v3251, 4
        %v3710 = vrot.slane %v3252, 2
        %v3711 = vrot.slane %v3252, 4
        %v3712 = vrot.slane %v3253, 2
        %v3713 = vrot.slane %v3253, 4
        %v3714 = vrot.slane %v3254, 2
        %v3715 = vrot.slane %v3254, 4
        %v3716 = vrot.slane %v3255, 2
        %v3717 = vrot.slane %v3255, 4
        %v3718 = vrot.slane %v3256, 2
        %v3719 = vrot.slane %v3256, 4
        %v3720 = vrot.slane %v3257, 2
        %v3721 = vrot.slane %v3257, 4
        %v3722 = vrot.slane %v3258, 2
        %v3723 = vrot.slane %v3258, 4
        %v3724 = vrot.slane %v3259, 2
        %v3725 = vrot.slane %v3259, 4
        %v3726 = vrot.slane %v3260, 2
        %v3727 = vrot.slane %v3260, 4
        %v3728 = vrot.slane %v3261, 2
        %v3729 = vrot.slane %v3261, 4
        %v3730 = vrot.slane %v3262, 2
        %v3731 = vrot.slane %v3262, 4
        %v3732 = vrot.slane %v3263, 2
        %v3733 = vrot.slane %v3263, 4
        %v3734 = vrot.slane %v3264, 2
        %v3735 = vrot.slane %v3264, 4
        %v3736 = vrot.slane %v3265, 2
        %v3737 = vrot.slane %v3265, 4
        %v3738 = vrot.slane %v3266, 2
        %v3739 = vrot.slane %v3266, 4
        %v3740 = vrot.slane %v3267, 2
        %v3741 = vrot.slane %v3267, 4
        %v3742 = vrot.slane %v3268, 2
        %v3743 = vrot.slane %v3268, 4
        %v3744 = vrot.slane %v3269, 2
        %v3745 = vrot.slane %v3269, 4
        %v3746 = vrot.slane %v3270, 2
        %v3747 = vrot.slane %v3270, 4
        %v3748 = vrot.slane %v3271, 2
        %v3749 = vrot.slane %v3271, 4
        %v3750 = vrot.slane %v3272, 2
        %v3751 = vrot.slane %v3272, 4
        %v3752 = vrot.slane %v3273, 2
        %v3753 = vrot.slane %v3273, 4
        %v3754 = vrot.slane %v3274, 2
        %v3755 = vrot.slane %v3274, 4
        %v3756 = vrot.slane %v3275, 2
        %v3757 = vrot.slane %v3275, 4
        %v3758 = vrot.slane %v3276, 2
        %v3759 = vrot.slane %v3276, 4
        %v3760 = vrot.slane %v3277, 2
        %v3761 = vrot.slane %v3277, 4
        %v3762 = vrot.slane %v3278, 2
        %v3763 = vrot.slane %v3278, 4
        %v3764 = vrot.slane %v3279, 2
        %v3765 = vrot.slane %v3279, 4
        %v3766 = vrot.slane %v3280, 2
        %v3767 = vrot.slane %v3280, 4
        %v3768 = vrot.slane %v3281, 2
        %v3769 = vrot.slane %v3281, 4
        %v3770 = vrot.slane %v3282, 2
        %v3771 = vrot.slane %v3282, 4
        %v3772 = vrot.slane %v3283, 2
        %v3773 = vrot.slane %v3283, 4
        %v3774 = vrot.slane %v3284, 2
        %v3775 = vrot.slane %v3284, 4
        %v3776 = vrot.slane %v3285, 2
        %v3777 = vrot.slane %v3285, 4
        %v3778 = vrot.slane %v3286, 2
        %v3779 = vrot.slane %v3286, 4
        %v3780 = vrot.slane %v3287, 2
        %v3781 = vrot.slane %v3287, 4
        %v3782 = vrot.slane %v3288, 2
        %v3783 = vrot.slane %v3288, 4
        %v3784 = vrot.slane %v3289, 2
        %v3785 = vrot.slane %v3289, 4
        %v3786 = vrot.slane %v3290, 2
        %v3787 = vrot.slane %v3290, 4
        %v3788 = vrot.slane %v3291, 2
        %v3789 = vrot.slane %v3291, 4
        %v3790 = vrot.slane %v3292, 2
        %v3791 = vrot.slane %v3292, 4
        %v3792 = vrot.slane %v3293, 2
        %v3793 = vrot.slane %v3293, 4
        %v3794 = vrot.slane %v3294, 2
        %v3795 = vrot.slane %v3294, 4
        %v3796 = vrot.slane %v3295, 2
        %v3797 = vrot.slane %v3295, 4
        %v3798 = vrot.slane %v3296, 2
        %v3799 = vrot.slane %v3296, 4
        %v3800 = vrot.slane %v3297, 2
        %v3801 = vrot.slane %v3297, 4
        %v3802 = vrot.slane %v3298, 2
        %v3803 = vrot.slane %v3298, 4
        %v3804 = vrot.slane %v3299, 2
        %v3805 = vrot.slane %v3299, 4
        %v3806 = vrot.slane %v3300, 2
        %v3807 = vrot.slane %v3300, 4
        %v3808 = vrot.slane %v3301, 2
        %v3809 = vrot.slane %v3301, 4
        %v3810 = vrot.slane %v3302, 2
        %v3811 = vrot.slane %v3302, 4
        %v3812 = vrot.slane %v3303, 2
        %v3813 = vrot.slane %v3303, 4
        %v3814 = vrot.slane %v3304, 2
        %v3815 = vrot.slane %v3304, 4
        %v3816 = vrot.slane %v3305, 2
        %v3817 = vrot.slane %v3305, 4
        %v3818 = vrot.slane %v3306, 2
        %v3819 = vrot.slane %v3306, 4
        %v3820 = vrot.slane %v3307, 2
        %v3821 = vrot.slane %v3307, 4
        %v3822 = vrot.slane %v3308, 2
        %v3823 = vrot.slane %v3308, 4
        %v3824 = vrot.slane %v3309, 2
        %v3825 = vrot.slane %v3309, 4
        %v3826 = vrot.slane %v3310, 2
        %v3827 = vrot.slane %v3310, 4
        %v3828 = vrot.slane %v3311, 2
        %v3829 = vrot.slane %v3311, 4
        %v3830 = vrot.slane %v3312, 2
        %v3831 = vrot.slane %v3312, 4
        %v3832 = vrot.slane %v3313, 2
        %v3833 = vrot.slane %v3313, 4
        %v3834 = vrot.slane %v3314, 2
        %v3835 = vrot.slane %v3314, 4
        %v3836 = vrot.slane %v3315, 2
        %v3837 = vrot.slane %v3315, 4
        %v3838 = vrot.slane %v3316, 2
        %v3839 = vrot.slane %v3316, 4
        %v3840 = vrot.slane %v3317, 2
        %v3841 = vrot.slane %v3317, 4
        %v3842 = vrot.slane %v3318, 2
        %v3843 = vrot.slane %v3318, 4
        %v3844 = vrot.slane %v3319, 2
        %v3845 = vrot.slane %v3319, 4
        %v3846 = vrot.slane %v3320, 2
        %v3847 = vrot.slane %v3320, 4
        %v3848 = vrot.slane %v3321, 2
        %v3849 = vrot.slane %v3321, 4
        %v3850 = vrot.slane %v3322, 2
        %v3851 = vrot.slane %v3322, 4
        %v3852 = vrot.slane %v3323, 2
        %v3853 = vrot.slane %v3323, 4
        %v3854 = vrot.slane %v3324, 2
        %v3855 = vrot.slane %v3324, 4
        %v3856 = vrot.slane %v3325, 2
        %v3857 = vrot.slane %v3325, 4
        %v3858 = vrot.slane %v3326, 2
        %v3859 = vrot.slane %v3326, 4
        %v3860 = vrot.slane %v3327, 2
        %v3861 = vrot.slane %v3327, 4
        %v3862 = vrot.slane %v3328, 2
        %v3863 = vrot.slane %v3328, 4
        %v3864 = vrot.slane %v3329, 2
        %v3865 = vrot.slane %v3329, 4
        %v3866 = vrot.slane %v3330, 2
        %v3867 = vrot.slane %v3330, 4
        %v3868 = vrot.slane %v3331, 2
        %v3869 = vrot.slane %v3331, 4
        %v3870 = vrot.slane %v3332, 2
        %v3871 = vrot.slane %v3332, 4
        %v3872 = vrot.slane %v3333, 2
        %v3873 = vrot.slane %v3333, 4
        %v3874 = vrot.slane %v3334, 2
        %v3875 = vrot.slane %v3334, 4
        %v3876 = vrot.slane %v3335, 2
        %v3877 = vrot.slane %v3335, 4
        %v3878 = vrot.slane %v3336, 2
        %v3879 = vrot.slane %v3336, 4
        %v3880 = vrot.slane %v3337, 2
        %v3881 = vrot.slane %v3337, 4
        %v3882 = vrot.slane %v3338, 2
        %v3883 = vrot.slane %v3338, 4
        %v3884 = vrot.slane %v3339, 2
        %v3885 = vrot.slane %v3339, 4
        %v3886 = vrot.slane %v3340, 2
        %v3887 = vrot.slane %v3340, 4
        %v3888 = vrot.slane %v3341, 2
        %v3889 = vrot.slane %v3341, 4
        %v3890 = vrot.slane %v3342, 2
        %v3891 = vrot.slane %v3342, 4
        %v3892 = vrot.slane %v3343, 2
        %v3893 = vrot.slane %v3343, 4
        %v3894 = vrot.slane %v3344, 2
        %v3895 = vrot.slane %v3344, 4
        %v3896 = vrot.slane %v3345, 2
        %v3897 = vrot.slane %v3345, 4
        %v3898 = vrot.slane %v3346, 2
        %v3899 = vrot.slane %v3346, 4
        %v3900 = vrot.slane %v3347, 2
        %v3901 = vrot.slane %v3347, 4
        %v3902 = vrot.slane %v3348, 2
        %v3903 = vrot.slane %v3348, 4
        %v3904 = vrot.slane %v3349, 2
        %v3905 = vrot.slane %v3349, 4
        %v3906 = vrot.slane %v3350, 2
        %v3907 = vrot.slane %v3350, 4
        %v3908 = vrot.slane %v3351, 2
        %v3909 = vrot.slane %v3351, 4
        %v3910 = vrot.slane %v3352, 2
        %v3911 = vrot.slane %v3352, 4
        %v3912 = vrot.slane %v3353, 2
        %v3913 = vrot.slane %v3353, 4
        %v3914 = vrot.slane %v3354, 2
        %v3915 = vrot.slane %v3354, 4
        %v3916 = vrot.slane %v3355, 2
        %v3917 = vrot.slane %v3355, 4
        %v3918 = vrot.slane %v3356, 2
        %v3919 = vrot.slane %v3356, 4
        %v3920 = vrot.slane %v3357, 2
        %v3921 = vrot.slane %v3357, 4
        %v3922 = vrot.slane %v3358, 2
        %v3923 = vrot.slane %v3358, 4
        %v3924 = vrot.slane %v3359, 2
        %v3925 = vrot.slane %v3359, 4
        %v3926 = vrot.slane %v3360, 2
        %v3927 = vrot.slane %v3360, 4
        %v3928 = vrot.slane %v3361, 2
        %v3929 = vrot.slane %v3361, 4
        %v3930 = vrot.slane %v3362, 2
        %v3931 = vrot.slane %v3362, 4
        %v3932 = vrot.slane %v3363, 2
        %v3933 = vrot.slane %v3363, 4
        %v3934 = vrot.slane %v3364, 2
        %v3935 = vrot.slane %v3364, 4
        %v3936 = vrot.slane %v3365, 2
        %v3937 = vrot.slane %v3365, 4
        %v3938 = vrot.slane %v3366, 2
        %v3939 = vrot.slane %v3366, 4
        %v3940 = vrot.slane %v3367, 2
        %v3941 = vrot.slane %v3367, 4
        %v3942 = vrot.slane %v3368, 2
        %v3943 = vrot.slane %v3368, 4
        %v3944 = vrot.slane %v3369, 2
        %v3945 = vrot.slane %v3369, 4
        %v3946 = vld [vmem:[%s1] sm:$0xff]
        %v3947 = vld [vmem:[%s1 + $0x8] sm:$0xf]
        %v3948 = vld [vmem:[%s2] sm:$0x1]
        %v3950 = vperm.slane %v3948, 0
        %3952 = vst [vmem:[#allocation1] ss:$4 sm:$0xff] %v3178
        %s3953 = scalar_lea.vmem [#allocation1], 1
        %3954 = vst [vmem:[%s3953] ss:$4 sm:$0xff] %v3562
        %s3955 = scalar_lea.vmem [#allocation1], 2
        %3956 = vst [vmem:[%s3955] ss:$4 sm:$0xff] %v3563
        %s3957 = scalar_lea.vmem [#allocation1], 3
        %3958 = vst [vmem:[%s3957] ss:$4 sm:$0xff] %v3179
        %s3959 = scalar_lea.vmem [#allocation1], 32
        %3960 = vst [vmem:[%s3959] ss:$4 sm:$0xff] %v3564
        %s3961 = scalar_lea.vmem [#allocation1], 33
        %3962 = vst [vmem:[%s3961] ss:$4 sm:$0xff] %v3565
        %s3963 = scalar_lea.vmem [#allocation1], 34
        %3964 = vst [vmem:[%s3963] ss:$4 sm:$0xff] %v3180
        %s3965 = scalar_lea.vmem [#allocation1], 35
        %3966 = vst [vmem:[%s3965] ss:$4 sm:$0xff] %v3566
        %v3967 = vld.sshfl [vmem:[#allocation1] sm:$0xff pattern:$0x73625140]
        %v3968 = vld.sshfl [vmem:[#allocation1 + $0x20] sm:$0xff pattern:$0x73625140]
        %3969 = vst [vmem:[#allocation1] ss:$4 sm:$0xff] %v3567
        %3970 = vst [vmem:[%s3953] ss:$4 sm:$0xff] %v3181
        %3971 = vst [vmem:[%s3955] ss:$4 sm:$0xff] %v3568
        %3972 = vst [vmem:[%s3957] ss:$4 sm:$0xff] %v3569
        %3973 = vst [vmem:[%s3959] ss:$4 sm:$0xff] %v3182
        %3974 = vst [vmem:[%s3961] ss:$4 sm:$0xff] %v3570
        %3975 = vst [vmem:[%s3963] ss:$4 sm:$0xff] %v3571
        %3976 = vst [vmem:[%s3965] ss:$4 sm:$0xff] %v3183
        %v3977 = vld.sshfl [vmem:[#allocation1] sm:$0xff pattern:$0x73625140]
        %v3978 = vld.sshfl [vmem:[#allocation1 + $0x20] sm:$0xff pattern:$0x73625140]
        %3979 = vst [vmem:[#allocation1] ss:$4 sm:$0xff] %v3572
        %3980 = vst [vmem:[%s3953] ss:$4 sm:$0xff] %v3573
        %3981 = vst [vmem:[%s3955] ss:$4 sm:$0xff] %v3184
        %3982 = vst [vmem:[%s3957] ss:$4 sm:$0xff] %v3574
        %3983 = vst [vmem:[%s3959] ss:$4 sm:$0xff] %v3575
        %3984 = vst [vmem:[%s3961] ss:$4 sm:$0xff] %v3185
        %3985 = vst [vmem:[%s3963] ss:$4 sm:$0xff] %v3576
        %3986 = vst [vmem:[%s3965] ss:$4 sm:$0xff] %v3577
        %v3987 = vld.sshfl [vmem:[#allocation1] sm:$0xff pattern:$0x73625140]
        %v3988 = vld.sshfl [vmem:[#allocation1 + $0x20] sm:$0xff pattern:$0x73625140]
        %3989 = vst [vmem:[#allocation1] ss:$4 sm:$0xff] %v3186
        %3990 = vst [vmem:[%s3953] ss:$4 sm:$0xff] %v3578
        %3991 = vst [vmem:[%s3955] ss:$4 sm:$0xff] %v3579
        %3992 = vst [vmem:[%s3957] ss:$4 sm:$0xff] %v3187
        %3993 = vst [vmem:[%s3959] ss:$4 sm:$0xff] %v3580
        %3994 = vst [vmem:[%s3961] ss:$4 sm:$0xff] %v3581
        %3995 = vst [vmem:[%s3963] ss:$4 sm:$0xff] %v3188
        %3996 = vst [vmem:[%s3965] ss:$4 sm:$0xff] %v3582
        %v3997 = vld.sshfl [vmem:[#allocation1] sm:$0xff pattern:$0x73625140]
        %v3998 = vld.sshfl [vmem:[#allocation1 + $0x20] sm:$0xff pattern:$0x73625140]
        %3999 = vst [vmem:[#allocation1] ss:$4 sm:$0xff] %v3583
        %4000 = vst [vmem:[%s3953] ss:$4 sm:$0xff] %v3189
        %4001 = vst [vmem:[%s3955] ss:$4 sm:$0xff] %v3584
        %4002 = vst [vmem:[%s3957] ss:$4 sm:$0xff] %v3585
        %4003 = vst [vmem:[%s3959] ss:$4 sm:$0xff] %v3190
        %4004 = vst [vmem:[%s3961] ss:$4 sm:$0xff] %v3586
        %4005 = vst [vmem:[%s3963] ss:$4 sm:$0xff] %v3587
        %4006 = vst [vmem:[%s3965] ss:$4 sm:$0xff] %v3191
        %v4007 = vld.sshfl [vmem:[#allocation1] sm:$0xff pattern:$0x73625140]
        %v4008 = vld.sshfl [vmem:[#allocation1 + $0x20] sm:$0xff pattern:$0x73625140]
        %4009 = vst [vmem:[#allocation1] ss:$4 sm:$0xff] %v3588
        %4010 = vst [vmem:[%s3953] ss:$4 sm:$0xff] %v3589
        %4011 = vst [vmem:[%s3955] ss:$4 sm:$0xff] %v3192
        %4012 = vst [vmem:[%s3957] ss:$4 sm:$0xff] %v3590
        %4013 = vst [vmem:[%s3959] ss:$4 sm:$0xff] %v3591
        %4014 = vst [vmem:[%s3961] ss:$4 sm:$0xff] %v3193
        %4015 = vst [vmem:[%s3963] ss:$4 sm:$0xff] %v3592
        %4016 = vst [vmem:[%s3965] ss:$4 sm:$0xff] %v3593
        %v4017 = vld.sshfl [vmem:[#allocation1] sm:$0xff pattern:$0x73625140]
        %v4018 = vld.sshfl [vmem:[#allocation1 + $0x20] sm:$0xff pattern:$0x73625140]
        %4019 = vst [vmem:[#allocation1] ss:$4 sm:$0xff] %v3194
        %4020 = vst [vmem:[%s3953] ss:$4 sm:$0xff] %v3594
        %4021 = vst [vmem:[%s3955] ss:$4 sm:$0xff] %v3595
        %4022 = vst [vmem:[%s3957] ss:$4 sm:$0xff] %v3195
        %4023 = vst [vmem:[%s3959] ss:$4 sm:$0xff] %v3596
        %4024 = vst [vmem:[%s3961] ss:$4 sm:$0xff] %v3597
        %4025 = vst [vmem:[%s3963] ss:$4 sm:$0xff] %v3196
        %4026 = vst [vmem:[%s3965] ss:$4 sm:$0xff] %v3598
        %v4027 = vld.sshfl [vmem:[#allocation1] sm:$0xff pattern:$0x73625140]
        %v4028 = vld.sshfl [vmem:[#allocation1 + $0x20] sm:$0xff pattern:$0x73625140]
        %4029 = vst [vmem:[#allocation1] ss:$4 sm:$0xff] %v3599
        %4030 = vst [vmem:[%s3953] ss:$4 sm:$0xff] %v3197
        %4031 = vst [vmem:[%s3955] ss:$4 sm:$0xff] %v3600
        %4032 = vst [vmem:[%s3957] ss:$4 sm:$0xff] %v3601
        %4033 = vst [vmem:[%s3959] ss:$4 sm:$0xff] %v3198
        %4034 = vst [vmem:[%s3961] ss:$4 sm:$0xff] %v3602
        %4035 = vst [vmem:[%s3963] ss:$4 sm:$0xff] %v3603
        %4036 = vst [vmem:[%s3965] ss:$4 sm:$0xff] %v3199
        %v4037 = vld.sshfl [vmem:[#allocation1] sm:$0xff pattern:$0x73625140]
        %v4038 = vld.sshfl [vmem:[#allocation1 + $0x20] sm:$0xff pattern:$0x73625140]
        %4039 = vst [vmem:[#allocation1] ss:$4 sm:$0xff] %v3604
        %4040 = vst [vmem:[%s3953] ss:$4 sm:$0xff] %v3605
        %4041 = vst [vmem:[%s3955] ss:$4 sm:$0xff] %v3200
        %4042 = vst [vmem:[%s3957] ss:$4 sm:$0xff] %v3606
        %4043 = vst [vmem:[%s3959] ss:$4 sm:$0xff] %v3607
        %4044 = vst [vmem:[%s3961] ss:$4 sm:$0xff] %v3201
        %4045 = vst [vmem:[%s3963] ss:$4 sm:$0xff] %v3608
        %4046 = vst [vmem:[%s3965] ss:$4 sm:$0xff] %v3609
        %v4047 = vld.sshfl [vmem:[#allocation1] sm:$0xff pattern:$0x73625140]
        %v4048 = vld.sshfl [vmem:[#allocation1 + $0x20] sm:$0xff pattern:$0x73625140]
        %4049 = vst [vmem:[#allocation1] ss:$4 sm:$0xff] %v3202
        %4050 = vst [vmem:[%s3953] ss:$4 sm:$0xff] %v3610
        %4051 = vst [vmem:[%s3955] ss:$4 sm:$0xff] %v3611
        %4052 = vst [vmem:[%s3957] ss:$4 sm:$0xff] %v3203
        %4053 = vst [vmem:[%s3959] ss:$4 sm:$0xff] %v3612
        %4054 = vst [vmem:[%s3961] ss:$4 sm:$0xff] %v3613
        %4055 = vst [vmem:[%s3963] ss:$4 sm:$0xff] %v3204
        %4056 = vst [vmem:[%s3965] ss:$4 sm:$0xff] %v3614
        %v4057 = vld.sshfl [vmem:[#allocation1] sm:$0xff pattern:$0x73625140]
        %v4058 = vld.sshfl [vmem:[#allocation1 + $0x20] sm:$0xff pattern:$0x73625140]
        %4059 = vst [vmem:[#allocation1] ss:$4 sm:$0xff] %v3615
        %4060 = vst [vmem:[%s3953] ss:$4 sm:$0xff] %v3205
        %4061 = vst [vmem:[%s3955] ss:$4 sm:$0xff] %v3616
        %4062 = vst [vmem:[%s3957] ss:$4 sm:$0xff] %v3617
        %4063 = vst [vmem:[%s3959] ss:$4 sm:$0xff] %v3206
        %4064 = vst [vmem:[%s3961] ss:$4 sm:$0xff] %v3618
        %4065 = vst [vmem:[%s3963] ss:$4 sm:$0xff] %v3619
        %4066 = vst [vmem:[%s3965] ss:$4 sm:$0xff] %v3207
        %v4067 = vld.sshfl [vmem:[#allocation1] sm:$0xff pattern:$0x73625140]
        %v4068 = vld.sshfl [vmem:[#allocation1 + $0x20] sm:$0xff pattern:$0x73625140]
        %4069 = vst [vmem:[#allocation1] ss:$4 sm:$0xff] %v3620
        %4070 = vst [vmem:[%s3953] ss:$4 sm:$0xff] %v3621
        %4071 = vst [vmem:[%s3955] ss:$4 sm:$0xff] %v3208
        %4072 = vst [vmem:[%s3957] ss:$4 sm:$0xff] %v3622
        %4073 = vst [vmem:[%s3959] ss:$4 sm:$0xff] %v3623
        %4074 = vst [vmem:[%s3961] ss:$4 sm:$0xff] %v3209
        %4075 = vst [vmem:[%s3963] ss:$4 sm:$0xff] %v3624
        %4076 = vst [vmem:[%s3965] ss:$4 sm:$0xff] %v3625
        %v4077 = vld.sshfl [vmem:[#allocation1] sm:$0xff pattern:$0x73625140]
        %v4078 = vld.sshfl [vmem:[#allocation1 + $0x20] sm:$0xff pattern:$0x73625140]
        %4079 = vst [vmem:[#allocation1] ss:$4 sm:$0xff] %v3210
        %4080 = vst [vmem:[%s3953] ss:$4 sm:$0xff] %v3626
        %4081 = vst [vmem:[%s3955] ss:$4 sm:$0xff] %v3627
        %4082 = vst [vmem:[%s3957] ss:$4 sm:$0xff] %v3211
        %4083 = vst [vmem:[%s3959] ss:$4 sm:$0xff] %v3628
        %4084 = vst [vmem:[%s3961] ss:$4 sm:$0xff] %v3629
        %4085 = vst [vmem:[%s3963] ss:$4 sm:$0xff] %v3212
        %4086 = vst [vmem:[%s3965] ss:$4 sm:$0xff] %v3630
        %v4087 = vld.sshfl [vmem:[#allocation1] sm:$0xff pattern:$0x73625140]
        %v4088 = vld.sshfl [vmem:[#allocation1 + $0x20] sm:$0xff pattern:$0x73625140]
        %4089 = vst [vmem:[#allocation1] ss:$4 sm:$0xff] %v3631
        %4090 = vst [vmem:[%s3953] ss:$4 sm:$0xff] %v3213
        %4091 = vst [vmem:[%s3955] ss:$4 sm:$0xff] %v3632
        %4092 = vst [vmem:[%s3957] ss:$4 sm:$0xff] %v3633
        %4093 = vst [vmem:[%s3959] ss:$4 sm:$0xff] %v3214
        %4094 = vst [vmem:[%s3961] ss:$4 sm:$0xff] %v3634
        %4095 = vst [vmem:[%s3963] ss:$4 sm:$0xff] %v3635
        %4096 = vst [vmem:[%s3965] ss:$4 sm:$0xff] %v3215
        %v4097 = vld.sshfl [vmem:[#allocation1] sm:$0xff pattern:$0x73625140]
        %v4098 = vld.sshfl [vmem:[#allocation1 + $0x20] sm:$0xff pattern:$0x73625140]
        %4099 = vst [vmem:[#allocation1] ss:$4 sm:$0xff] %v3636
        %4100 = vst [vmem:[%s3953] ss:$4 sm:$0xff] %v3637
        %4101 = vst [vmem:[%s3955] ss:$4 sm:$0xff] %v3216
        %4102 = vst [vmem:[%s3957] ss:$4 sm:$0xff] %v3638
        %4103 = vst [vmem:[%s3959] ss:$4 sm:$0xff] %v3639
        %4104 = vst [vmem:[%s3961] ss:$4 sm:$0xff] %v3217
        %4105 = vst [vmem:[%s3963] ss:$4 sm:$0xff] %v3640
        %4106 = vst [vmem:[%s3965] ss:$4 sm:$0xff] %v3641
        %v4107 = vld.sshfl [vmem:[#allocation1] sm:$0xff pattern:$0x73625140]
        %v4108 = vld.sshfl [vmem:[#allocation1 + $0x20] sm:$0xff pattern:$0x73625140]
        %4109 = vst [vmem:[#allocation1] ss:$4 sm:$0xff] %v3218
        %4110 = vst [vmem:[%s3953] ss:$4 sm:$0xff] %v3642
        %4111 = vst [vmem:[%s3955] ss:$4 sm:$0xff] %v3643
        %4112 = vst [vmem:[%s3957] ss:$4 sm:$0xff] %v3219
        %4113 = vst [vmem:[%s3959] ss:$4 sm:$0xff] %v3644
        %4114 = vst [vmem:[%s3961] ss:$4 sm:$0xff] %v3645
        %4115 = vst [vmem:[%s3963] ss:$4 sm:$0xff] %v3220
        %4116 = vst [vmem:[%s3965] ss:$4 sm:$0xff] %v3646
        %v4117 = vld.sshfl [vmem:[#allocation1] sm:$0xff pattern:$0x73625140]
        %v4118 = vld.sshfl [vmem:[#allocation1 + $0x20] sm:$0xff pattern:$0x73625140]
        %4119 = vst [vmem:[#allocation1] ss:$4 sm:$0xff] %v3647
        %4120 = vst [vmem:[%s3953] ss:$4 sm:$0xff] %v3221
        %4121 = vst [vmem:[%s3955] ss:$4 sm:$0xff] %v3648
        %4122 = vst [vmem:[%s3957] ss:$4 sm:$0xff] %v3649
        %4123 = vst [vmem:[%s3959] ss:$4 sm:$0xff] %v3222
        %4124 = vst [vmem:[%s3961] ss:$4 sm:$0xff] %v3650
        %4125 = vst [vmem:[%s3963] ss:$4 sm:$0xff] %v3651
        %4126 = vst [vmem:[%s3965] ss:$4 sm:$0xff] %v3223
        %v4127 = vld.sshfl [vmem:[#allocation1] sm:$0xff pattern:$0x73625140]
        %v4128 = vld.sshfl [vmem:[#allocation1 + $0x20] sm:$0xff pattern:$0x73625140]
        %4129 = vst [vmem:[#allocation1] ss:$4 sm:$0xff] %v3652
        %4130 = vst [vmem:[%s3953] ss:$4 sm:$0xff] %v3653
        %4131 = vst [vmem:[%s3955] ss:$4 sm:$0xff] %v3224
        %4132 = vst [vmem:[%s3957] ss:$4 sm:$0xff] %v3654
        %4133 = vst [vmem:[%s3959] ss:$4 sm:$0xff] %v3655
        %4134 = vst [vmem:[%s3961] ss:$4 sm:$0xff] %v3225
        %4135 = vst [vmem:[%s3963] ss:$4 sm:$0xff] %v3656
        %4136 = vst [vmem:[%s3965] ss:$4 sm:$0xff] %v3657
        %v4137 = vld.sshfl [vmem:[#allocation1] sm:$0xff pattern:$0x73625140]
        %v4138 = vld.sshfl [vmem:[#allocation1 + $0x20] sm:$0xff pattern:$0x73625140]
        %4139 = vst [vmem:[#allocation1] ss:$4 sm:$0xff] %v3226
        %4140 = vst [vmem:[%s3953] ss:$4 sm:$0xff] %v3658
        %4141 = vst [vmem:[%s3955] ss:$4 sm:$0xff] %v3659
        %4142 = vst [vmem:[%s3957] ss:$4 sm:$0xff] %v3227
        %4143 = vst [vmem:[%s3959] ss:$4 sm:$0xff] %v3660
        %4144 = vst [vmem:[%s3961] ss:$4 sm:$0xff] %v3661
        %4145 = vst [vmem:[%s3963] ss:$4 sm:$0xff] %v3228
        %4146 = vst [vmem:[%s3965] ss:$4 sm:$0xff] %v3662
        %v4147 = vld.sshfl [vmem:[#allocation1] sm:$0xff pattern:$0x73625140]
        %v4148 = vld.sshfl [vmem:[#allocation1 + $0x20] sm:$0xff pattern:$0x73625140]
        %4149 = vst [vmem:[#allocation1] ss:$4 sm:$0xff] %v3663
        %4150 = vst [vmem:[%s3953] ss:$4 sm:$0xff] %v3229
        %4151 = vst [vmem:[%s3955] ss:$4 sm:$0xff] %v3664
        %4152 = vst [vmem:[%s3957] ss:$4 sm:$0xff] %v3665
        %4153 = vst [vmem:[%s3959] ss:$4 sm:$0xff] %v3230
        %4154 = vst [vmem:[%s3961] ss:$4 sm:$0xff] %v3666
        %4155 = vst [vmem:[%s3963] ss:$4 sm:$0xff] %v3667
        %4156 = vst [vmem:[%s3965] ss:$4 sm:$0xff] %v3231
        %v4157 = vld.sshfl [vmem:[#allocation1] sm:$0xff pattern:$0x73625140]
        %v4158 = vld.sshfl [vmem:[#allocation1 + $0x20] sm:$0xff pattern:$0x73625140]
        %4159 = vst [vmem:[#allocation1] ss:$4 sm:$0xff] %v3668
        %4160 = vst [vmem:[%s3953] ss:$4 sm:$0xff] %v3669
        %4161 = vst [vmem:[%s3955] ss:$4 sm:$0xff] %v3232
        %4162 = vst [vmem:[%s3957] ss:$4 sm:$0xff] %v3670
        %4163 = vst [vmem:[%s3959] ss:$4 sm:$0xff] %v3671
        %4164 = vst [vmem:[%s3961] ss:$4 sm:$0xff] %v3233
        %4165 = vst [vmem:[%s3963] ss:$4 sm:$0xff] %v3672
        %4166 = vst [vmem:[%s3965] ss:$4 sm:$0xff] %v3673
        %v4167 = vld.sshfl [vmem:[#allocation1] sm:$0xff pattern:$0x73625140]
        %v4168 = vld.sshfl [vmem:[#allocation1 + $0x20] sm:$0xff pattern:$0x73625140]
        %4169 = vst [vmem:[#allocation1] ss:$4 sm:$0xff] %v3234
        %4170 = vst [vmem:[%s3953] ss:$4 sm:$0xff] %v3674
        %4171 = vst [vmem:[%s3955] ss:$4 sm:$0xff] %v3675
        %4172 = vst [vmem:[%s3957] ss:$4 sm:$0xff] %v3235
        %4173 = vst [vmem:[%s3959] ss:$4 sm:$0xff] %v3676
        %4174 = vst [vmem:[%s3961] ss:$4 sm:$0xff] %v3677
        %4175 = vst [vmem:[%s3963] ss:$4 sm:$0xff] %v3236
        %4176 = vst [vmem:[%s3965] ss:$4 sm:$0xff] %v3678
        %v4177 = vld.sshfl [vmem:[#allocation1] sm:$0xff pattern:$0x73625140]
        %v4178 = vld.sshfl [vmem:[#allocation1 + $0x20] sm:$0xff pattern:$0x73625140]
        %4179 = vst [vmem:[#allocation1] ss:$4 sm:$0xff] %v3679
        %4180 = vst [vmem:[%s3953] ss:$4 sm:$0xff] %v3237
        %4181 = vst [vmem:[%s3955] ss:$4 sm:$0xff] %v3680
        %4182 = vst [vmem:[%s3957] ss:$4 sm:$0xff] %v3681
        %4183 = vst [vmem:[%s3959] ss:$4 sm:$0xff] %v3238
        %4184 = vst [vmem:[%s3961] ss:$4 sm:$0xff] %v3682
        %4185 = vst [vmem:[%s3963] ss:$4 sm:$0xff] %v3683
        %4186 = vst [vmem:[%s3965] ss:$4 sm:$0xff] %v3239
        %v4187 = vld.sshfl [vmem:[#allocation1] sm:$0xff pattern:$0x73625140]
        %v4188 = vld.sshfl [vmem:[#allocation1 + $0x20] sm:$0xff pattern:$0x73625140]
        %4189 = vst [vmem:[#allocation1] ss:$4 sm:$0xff] %v3684
        %4190 = vst [vmem:[%s3953] ss:$4 sm:$0xff] %v3685
        %4191 = vst [vmem:[%s3955] ss:$4 sm:$0xff] %v3240
        %4192 = vst [vmem:[%s3957] ss:$4 sm:$0xff] %v3686
        %4193 = vst [vmem:[%s3959] ss:$4 sm:$0xff] %v3687
        %4194 = vst [vmem:[%s3961] ss:$4 sm:$0xff] %v3241
        %4195 = vst [vmem:[%s3963] ss:$4 sm:$0xff] %v3688
        %4196 = vst [vmem:[%s3965] ss:$4 sm:$0xff] %v3689
        %v4197 = vld.sshfl [vmem:[#allocation1] sm:$0xff pattern:$0x73625140]
        %v4198 = vld.sshfl [vmem:[#allocation1 + $0x20] sm:$0xff pattern:$0x73625140]
        %4199 = vst [vmem:[#allocation1] ss:$4 sm:$0xff] %v3242
        %4200 = vst [vmem:[%s3953] ss:$4 sm:$0xff] %v3690
        %4201 = vst [vmem:[%s3955] ss:$4 sm:$0xff] %v3691
        %4202 = vst [vmem:[%s3957] ss:$4 sm:$0xff] %v3243
        %4203 = vst [vmem:[%s3959] ss:$4 sm:$0xff] %v3692
        %4204 = vst [vmem:[%s3961] ss:$4 sm:$0xff] %v3693
        %4205 = vst [vmem:[%s3963] ss:$4 sm:$0xff] %v3244
        %4206 = vst [vmem:[%s3965] ss:$4 sm:$0xff] %v3694
        %v4207 = vld.sshfl [vmem:[#allocation1] sm:$0xff pattern:$0x73625140]
        %v4208 = vld.sshfl [vmem:[#allocation1 + $0x20] sm:$0xff pattern:$0x73625140]
        %4209 = vst [vmem:[#allocation1] ss:$4 sm:$0xff] %v3695
        %4210 = vst [vmem:[%s3953] ss:$4 sm:$0xff] %v3245
        %4211 = vst [vmem:[%s3955] ss:$4 sm:$0xff] %v3696
        %4212 = vst [vmem:[%s3957] ss:$4 sm:$0xff] %v3697
        %4213 = vst [vmem:[%s3959] ss:$4 sm:$0xff] %v3246
        %4214 = vst [vmem:[%s3961] ss:$4 sm:$0xff] %v3698
        %4215 = vst [vmem:[%s3963] ss:$4 sm:$0xff] %v3699
        %4216 = vst [vmem:[%s3965] ss:$4 sm:$0xff] %v3247
        %v4217 = vld.sshfl [vmem:[#allocation1] sm:$0xff pattern:$0x73625140]
        %v4218 = vld.sshfl [vmem:[#allocation1 + $0x20] sm:$0xff pattern:$0x73625140]
        %4219 = vst [vmem:[#allocation1] ss:$4 sm:$0xff] %v3700
        %4220 = vst [vmem:[%s3953] ss:$4 sm:$0xff] %v3701
        %4221 = vst [vmem:[%s3955] ss:$4 sm:$0xff] %v3248
        %4222 = vst [vmem:[%s3957] ss:$4 sm:$0xff] %v3702
        %4223 = vst [vmem:[%s3959] ss:$4 sm:$0xff] %v3703
        %4224 = vst [vmem:[%s3961] ss:$4 sm:$0xff] %v3249
        %4225 = vst [vmem:[%s3963] ss:$4 sm:$0xff] %v3704
        %4226 = vst [vmem:[%s3965] ss:$4 sm:$0xff] %v3705
        %v4227 = vld.sshfl [vmem:[#allocation1] sm:$0xff pattern:$0x73625140]
        %v4228 = vld.sshfl [vmem:[#allocation1 + $0x20] sm:$0xff pattern:$0x73625140]
        %4229 = vst [vmem:[#allocation1] ss:$4 sm:$0xff] %v3250
        %4230 = vst [vmem:[%s3953] ss:$4 sm:$0xff] %v3706
        %4231 = vst [vmem:[%s3955] ss:$4 sm:$0xff] %v3707
        %4232 = vst [vmem:[%s3957] ss:$4 sm:$0xff] %v3251
        %4233 = vst [vmem:[%s3959] ss:$4 sm:$0xff] %v3708
        %4234 = vst [vmem:[%s3961] ss:$4 sm:$0xff] %v3709
        %4235 = vst [vmem:[%s3963] ss:$4 sm:$0xff] %v3252
        %4236 = vst [vmem:[%s3965] ss:$4 sm:$0xff] %v3710
        %v4237 = vld.sshfl [vmem:[#allocation1] sm:$0xff pattern:$0x73625140]
        %v4238 = vld.sshfl [vmem:[#allocation1 + $0x20] sm:$0xff pattern:$0x73625140]
        %4239 = vst [vmem:[#allocation1] ss:$4 sm:$0xff] %v3711
        %4240 = vst [vmem:[%s3953] ss:$4 sm:$0xff] %v3253
        %4241 = vst [vmem:[%s3955] ss:$4 sm:$0xff] %v3712
        %4242 = vst [vmem:[%s3957] ss:$4 sm:$0xff] %v3713
        %4243 = vst [vmem:[%s3959] ss:$4 sm:$0xff] %v3254
        %4244 = vst [vmem:[%s3961] ss:$4 sm:$0xff] %v3714
        %4245 = vst [vmem:[%s3963] ss:$4 sm:$0xff] %v3715
        %4246 = vst [vmem:[%s3965] ss:$4 sm:$0xff] %v3255
        %v4247 = vld.sshfl [vmem:[#allocation1] sm:$0xff pattern:$0x73625140]
        %v4248 = vld.sshfl [vmem:[#allocation1 + $0x20] sm:$0xff pattern:$0x73625140]
        %4249 = vst [vmem:[#allocation1] ss:$4 sm:$0xff] %v3716
        %4250 = vst [vmem:[%s3953] ss:$4 sm:$0xff] %v3717
        %4251 = vst [vmem:[%s3955] ss:$4 sm:$0xff] %v3256
        %4252 = vst [vmem:[%s3957] ss:$4 sm:$0xff] %v3718
        %4253 = vst [vmem:[%s3959] ss:$4 sm:$0xff] %v3719
        %4254 = vst [vmem:[%s3961] ss:$4 sm:$0xff] %v3257
        %4255 = vst [vmem:[%s3963] ss:$4 sm:$0xff] %v3720
        %4256 = vst [vmem:[%s3965] ss:$4 sm:$0xff] %v3721
        %v4257 = vld.sshfl [vmem:[#allocation1] sm:$0xff pattern:$0x73625140]
        %v4258 = vld.sshfl [vmem:[#allocation1 + $0x20] sm:$0xff pattern:$0x73625140]
        %4259 = vst [vmem:[#allocation1] ss:$4 sm:$0xff] %v3258
        %4260 = vst [vmem:[%s3953] ss:$4 sm:$0xff] %v3722
        %4261 = vst [vmem:[%s3955] ss:$4 sm:$0xff] %v3723
        %4262 = vst [vmem:[%s3957] ss:$4 sm:$0xff] %v3259
        %4263 = vst [vmem:[%s3959] ss:$4 sm:$0xff] %v3724
        %4264 = vst [vmem:[%s3961] ss:$4 sm:$0xff] %v3725
        %4265 = vst [vmem:[%s3963] ss:$4 sm:$0xff] %v3260
        %4266 = vst [vmem:[%s3965] ss:$4 sm:$0xff] %v3726
        %v4267 = vld.sshfl [vmem:[#allocation1] sm:$0xff pattern:$0x73625140]
        %v4268 = vld.sshfl [vmem:[#allocation1 + $0x20] sm:$0xff pattern:$0x73625140]
        %4269 = vst [vmem:[#allocation1] ss:$4 sm:$0xff] %v3727
        %4270 = vst [vmem:[%s3953] ss:$4 sm:$0xff] %v3261
        %4271 = vst [vmem:[%s3955] ss:$4 sm:$0xff] %v3728
        %4272 = vst [vmem:[%s3957] ss:$4 sm:$0xff] %v3729
        %4273 = vst [vmem:[%s3959] ss:$4 sm:$0xff] %v3262
        %4274 = vst [vmem:[%s3961] ss:$4 sm:$0xff] %v3730
        %4275 = vst [vmem:[%s3963] ss:$4 sm:$0xff] %v3731
        %4276 = vst [vmem:[%s3965] ss:$4 sm:$0xff] %v3263
        %v4277 = vld.sshfl [vmem:[#allocation1] sm:$0xff pattern:$0x73625140]
        %v4278 = vld.sshfl [vmem:[#allocation1 + $0x20] sm:$0xff pattern:$0x73625140]
        %4279 = vst [vmem:[#allocation1] ss:$4 sm:$0xff] %v3732
        %4280 = vst [vmem:[%s3953] ss:$4 sm:$0xff] %v3733
        %4281 = vst [vmem:[%s3955] ss:$4 sm:$0xff] %v3264
        %4282 = vst [vmem:[%s3957] ss:$4 sm:$0xff] %v3734
        %4283 = vst [vmem:[%s3959] ss:$4 sm:$0xff] %v3735
        %4284 = vst [vmem:[%s3961] ss:$4 sm:$0xff] %v3265
        %4285 = vst [vmem:[%s3963] ss:$4 sm:$0xff] %v3736
        %4286 = vst [vmem:[%s3965] ss:$4 sm:$0xff] %v3737
        %v4287 = vld.sshfl [vmem:[#allocation1] sm:$0xff pattern:$0x73625140]
        %v4288 = vld.sshfl [vmem:[#allocation1 + $0x20] sm:$0xff pattern:$0x73625140]
        %4289 = vst [vmem:[#allocation1] ss:$4 sm:$0xff] %v3266
        %4290 = vst [vmem:[%s3953] ss:$4 sm:$0xff] %v3738
        %4291 = vst [vmem:[%s3955] ss:$4 sm:$0xff] %v3739
        %4292 = vst [vmem:[%s3957] ss:$4 sm:$0xff] %v3267
        %4293 = vst [vmem:[%s3959] ss:$4 sm:$0xff] %v3740
        %4294 = vst [vmem:[%s3961] ss:$4 sm:$0xff] %v3741
        %4295 = vst [vmem:[%s3963] ss:$4 sm:$0xff] %v3268
        %4296 = vst [vmem:[%s3965] ss:$4 sm:$0xff] %v3742
        %v4297 = vld.sshfl [vmem:[#allocation1] sm:$0xff pattern:$0x73625140]
        %v4298 = vld.sshfl [vmem:[#allocation1 + $0x20] sm:$0xff pattern:$0x73625140]
        %4299 = vst [vmem:[#allocation1] ss:$4 sm:$0xff] %v3743
        %4300 = vst [vmem:[%s3953] ss:$4 sm:$0xff] %v3269
        %4301 = vst [vmem:[%s3955] ss:$4 sm:$0xff] %v3744
        %4302 = vst [vmem:[%s3957] ss:$4 sm:$0xff] %v3745
        %4303 = vst [vmem:[%s3959] ss:$4 sm:$0xff] %v3270
        %4304 = vst [vmem:[%s3961] ss:$4 sm:$0xff] %v3746
        %4305 = vst [vmem:[%s3963] ss:$4 sm:$0xff] %v3747
        %4306 = vst [vmem:[%s3965] ss:$4 sm:$0xff] %v3271
        %v4307 = vld.sshfl [vmem:[#allocation1] sm:$0xff pattern:$0x73625140]
        %v4308 = vld.sshfl [vmem:[#allocation1 + $0x20] sm:$0xff pattern:$0x73625140]
        %4309 = vst [vmem:[#allocation1] ss:$4 sm:$0xff] %v3748
        %4310 = vst [vmem:[%s3953] ss:$4 sm:$0xff] %v3749
        %4311 = vst [vmem:[%s3955] ss:$4 sm:$0xff] %v3272
        %4312 = vst [vmem:[%s3957] ss:$4 sm:$0xff] %v3750
        %4313 = vst [vmem:[%s3959] ss:$4 sm:$0xff] %v3751
        %4314 = vst [vmem:[%s3961] ss:$4 sm:$0xff] %v3273
        %4315 = vst [vmem:[%s3963] ss:$4 sm:$0xff] %v3752
        %4316 = vst [vmem:[%s3965] ss:$4 sm:$0xff] %v3753
        %v4317 = vld.sshfl [vmem:[#allocation1] sm:$0xff pattern:$0x73625140]
        %v4318 = vld.sshfl [vmem:[#allocation1 + $0x20] sm:$0xff pattern:$0x73625140]
        %4319 = vst [vmem:[#allocation1] ss:$4 sm:$0xff] %v3274
        %4320 = vst [vmem:[%s3953] ss:$4 sm:$0xff] %v3754
        %4321 = vst [vmem:[%s3955] ss:$4 sm:$0xff] %v3755
        %4322 = vst [vmem:[%s3957] ss:$4 sm:$0xff] %v3275
        %4323 = vst [vmem:[%s3959] ss:$4 sm:$0xff] %v3756
        %4324 = vst [vmem:[%s3961] ss:$4 sm:$0xff] %v3757
        %4325 = vst [vmem:[%s3963] ss:$4 sm:$0xff] %v3276
        %4326 = vst [vmem:[%s3965] ss:$4 sm:$0xff] %v3758
        %v4327 = vld.sshfl [vmem:[#allocation1] sm:$0xff pattern:$0x73625140]
        %v4328 = vld.sshfl [vmem:[#allocation1 + $0x20] sm:$0xff pattern:$0x73625140]
        %4329 = vst [vmem:[#allocation1] ss:$4 sm:$0xff] %v3759
        %4330 = vst [vmem:[%s3953] ss:$4 sm:$0xff] %v3277
        %4331 = vst [vmem:[%s3955] ss:$4 sm:$0xff] %v3760
        %4332 = vst [vmem:[%s3957] ss:$4 sm:$0xff] %v3761
        %4333 = vst [vmem:[%s3959] ss:$4 sm:$0xff] %v3278
        %4334 = vst [vmem:[%s3961] ss:$4 sm:$0xff] %v3762
        %4335 = vst [vmem:[%s3963] ss:$4 sm:$0xff] %v3763
        %4336 = vst [vmem:[%s3965] ss:$4 sm:$0xff] %v3279
        %v4337 = vld.sshfl [vmem:[#allocation1] sm:$0xff pattern:$0x73625140]
        %v4338 = vld.sshfl [vmem:[#allocation1 + $0x20] sm:$0xff pattern:$0x73625140]
        %4339 = vst [vmem:[#allocation1] ss:$4 sm:$0xff] %v3764
        %4340 = vst [vmem:[%s3953] ss:$4 sm:$0xff] %v3765
        %4341 = vst [vmem:[%s3955] ss:$4 sm:$0xff] %v3280
        %4342 = vst [vmem:[%s3957] ss:$4 sm:$0xff] %v3766
        %4343 = vst [vmem:[%s3959] ss:$4 sm:$0xff] %v3767
        %4344 = vst [vmem:[%s3961] ss:$4 sm:$0xff] %v3281
        %4345 = vst [vmem:[%s3963] ss:$4 sm:$0xff] %v3768
        %4346 = vst [vmem:[%s3965] ss:$4 sm:$0xff] %v3769
        %v4347 = vld.sshfl [vmem:[#allocation1] sm:$0xff pattern:$0x73625140]
        %v4348 = vld.sshfl [vmem:[#allocation1 + $0x20] sm:$0xff pattern:$0x73625140]
        %4349 = vst [vmem:[#allocation1] ss:$4 sm:$0xff] %v3282
        %4350 = vst [vmem:[%s3953] ss:$4 sm:$0xff] %v3770
        %4351 = vst [vmem:[%s3955] ss:$4 sm:$0xff] %v3771
        %4352 = vst [vmem:[%s3957] ss:$4 sm:$0xff] %v3283
        %4353 = vst [vmem:[%s3959] ss:$4 sm:$0xff] %v3772
        %4354 = vst [vmem:[%s3961] ss:$4 sm:$0xff] %v3773
        %4355 = vst [vmem:[%s3963] ss:$4 sm:$0xff] %v3284
        %4356 = vst [vmem:[%s3965] ss:$4 sm:$0xff] %v3774
        %v4357 = vld.sshfl [vmem:[#allocation1] sm:$0xff pattern:$0x73625140]
        %v4358 = vld.sshfl [vmem:[#allocation1 + $0x20] sm:$0xff pattern:$0x73625140]
        %4359 = vst [vmem:[#allocation1] ss:$4 sm:$0xff] %v3775
        %4360 = vst [vmem:[%s3953] ss:$4 sm:$0xff] %v3285
        %4361 = vst [vmem:[%s3955] ss:$4 sm:$0xff] %v3776
        %4362 = vst [vmem:[%s3957] ss:$4 sm:$0xff] %v3777
        %4363 = vst [vmem:[%s3959] ss:$4 sm:$0xff] %v3286
        %4364 = vst [vmem:[%s3961] ss:$4 sm:$0xff] %v3778
        %4365 = vst [vmem:[%s3963] ss:$4 sm:$0xff] %v3779
        %4366 = vst [vmem:[%s3965] ss:$4 sm:$0xff] %v3287
        %v4367 = vld.sshfl [vmem:[#allocation1] sm:$0xff pattern:$0x73625140]
        %v4368 = vld.sshfl [vmem:[#allocation1 + $0x20] sm:$0xff pattern:$0x73625140]
        %4369 = vst [vmem:[#allocation1] ss:$4 sm:$0xff] %v3780
        %4370 = vst [vmem:[%s3953] ss:$4 sm:$0xff] %v3781
        %4371 = vst [vmem:[%s3955] ss:$4 sm:$0xff] %v3288
        %4372 = vst [vmem:[%s3957] ss:$4 sm:$0xff] %v3782
        %4373 = vst [vmem:[%s3959] ss:$4 sm:$0xff] %v3783
        %4374 = vst [vmem:[%s3961] ss:$4 sm:$0xff] %v3289
        %4375 = vst [vmem:[%s3963] ss:$4 sm:$0xff] %v3784
        %4376 = vst [vmem:[%s3965] ss:$4 sm:$0xff] %v3785
        %v4377 = vld.sshfl [vmem:[#allocation1] sm:$0xff pattern:$0x73625140]
        %v4378 = vld.sshfl [vmem:[#allocation1 + $0x20] sm:$0xff pattern:$0x73625140]
        %4379 = vst [vmem:[#allocation1] ss:$4 sm:$0xff] %v3290
        %4380 = vst [vmem:[%s3953] ss:$4 sm:$0xff] %v3786
        %4381 = vst [vmem:[%s3955] ss:$4 sm:$0xff] %v3787
        %4382 = vst [vmem:[%s3957] ss:$4 sm:$0xff] %v3291
        %4383 = vst [vmem:[%s3959] ss:$4 sm:$0xff] %v3788
        %4384 = vst [vmem:[%s3961] ss:$4 sm:$0xff] %v3789
        %4385 = vst [vmem:[%s3963] ss:$4 sm:$0xff] %v3292
        %4386 = vst [vmem:[%s3965] ss:$4 sm:$0xff] %v3790
        %v4387 = vld.sshfl [vmem:[#allocation1] sm:$0xff pattern:$0x73625140]
        %v4388 = vld.sshfl [vmem:[#allocation1 + $0x20] sm:$0xff pattern:$0x73625140]
        %4389 = vst [vmem:[#allocation1] ss:$4 sm:$0xff] %v3791
        %4390 = vst [vmem:[%s3953] ss:$4 sm:$0xff] %v3293
        %4391 = vst [vmem:[%s3955] ss:$4 sm:$0xff] %v3792
        %4392 = vst [vmem:[%s3957] ss:$4 sm:$0xff] %v3793
        %4393 = vst [vmem:[%s3959] ss:$4 sm:$0xff] %v3294
        %4394 = vst [vmem:[%s3961] ss:$4 sm:$0xff] %v3794
        %4395 = vst [vmem:[%s3963] ss:$4 sm:$0xff] %v3795
        %4396 = vst [vmem:[%s3965] ss:$4 sm:$0xff] %v3295
        %v4397 = vld.sshfl [vmem:[#allocation1] sm:$0xff pattern:$0x73625140]
        %v4398 = vld.sshfl [vmem:[#allocation1 + $0x20] sm:$0xff pattern:$0x73625140]
        %4399 = vst [vmem:[#allocation1] ss:$4 sm:$0xff] %v3796
        %4400 = vst [vmem:[%s3953] ss:$4 sm:$0xff] %v3797
        %4401 = vst [vmem:[%s3955] ss:$4 sm:$0xff] %v3296
        %4402 = vst [vmem:[%s3957] ss:$4 sm:$0xff] %v3798
        %4403 = vst [vmem:[%s3959] ss:$4 sm:$0xff] %v3799
        %4404 = vst [vmem:[%s3961] ss:$4 sm:$0xff] %v3297
        %4405 = vst [vmem:[%s3963] ss:$4 sm:$0xff] %v3800
        %4406 = vst [vmem:[%s3965] ss:$4 sm:$0xff] %v3801
        %v4407 = vld.sshfl [vmem:[#allocation1] sm:$0xff pattern:$0x73625140]
        %v4408 = vld.sshfl [vmem:[#allocation1 + $0x20] sm:$0xff pattern:$0x73625140]
        %4409 = vst [vmem:[#allocation1] ss:$4 sm:$0xff] %v3298
        %4410 = vst [vmem:[%s3953] ss:$4 sm:$0xff] %v3802
        %4411 = vst [vmem:[%s3955] ss:$4 sm:$0xff] %v3803
        %4412 = vst [vmem:[%s3957] ss:$4 sm:$0xff] %v3299
        %4413 = vst [vmem:[%s3959] ss:$4 sm:$0xff] %v3804
        %4414 = vst [vmem:[%s3961] ss:$4 sm:$0xff] %v3805
        %4415 = vst [vmem:[%s3963] ss:$4 sm:$0xff] %v3300
        %4416 = vst [vmem:[%s3965] ss:$4 sm:$0xff] %v3806
        %v4417 = vld.sshfl [vmem:[#allocation1] sm:$0xff pattern:$0x73625140]
        %v4418 = vld.sshfl [vmem:[#allocation1 + $0x20] sm:$0xff pattern:$0x73625140]
        %4419 = vst [vmem:[#allocation1] ss:$4 sm:$0xff] %v3807
        %4420 = vst [vmem:[%s3953] ss:$4 sm:$0xff] %v3301
        %4421 = vst [vmem:[%s3955] ss:$4 sm:$0xff] %v3808
        %4422 = vst [vmem:[%s3957] ss:$4 sm:$0xff] %v3809
        %4423 = vst [vmem:[%s3959] ss:$4 sm:$0xff] %v3302
        %4424 = vst [vmem:[%s3961] ss:$4 sm:$0xff] %v3810
        %4425 = vst [vmem:[%s3963] ss:$4 sm:$0xff] %v3811
        %4426 = vst [vmem:[%s3965] ss:$4 sm:$0xff] %v3303
        %v4427 = vld.sshfl [vmem:[#allocation1] sm:$0xff pattern:$0x73625140]
        %v4428 = vld.sshfl [vmem:[#allocation1 + $0x20] sm:$0xff pattern:$0x73625140]
        %4429 = vst [vmem:[#allocation1] ss:$4 sm:$0xff] %v3812
        %4430 = vst [vmem:[%s3953] ss:$4 sm:$0xff] %v3813
        %4431 = vst [vmem:[%s3955] ss:$4 sm:$0xff] %v3304
        %4432 = vst [vmem:[%s3957] ss:$4 sm:$0xff] %v3814
        %4433 = vst [vmem:[%s3959] ss:$4 sm:$0xff] %v3815
        %4434 = vst [vmem:[%s3961] ss:$4 sm:$0xff] %v3305
        %4435 = vst [vmem:[%s3963] ss:$4 sm:$0xff] %v3816
        %4436 = vst [vmem:[%s3965] ss:$4 sm:$0xff] %v3817
        %v4437 = vld.sshfl [vmem:[#allocation1] sm:$0xff pattern:$0x73625140]
        %v4438 = vld.sshfl [vmem:[#allocation1 + $0x20] sm:$0xff pattern:$0x73625140]
        %4439 = vst [vmem:[#allocation1] ss:$4 sm:$0xff] %v3306
        %4440 = vst [vmem:[%s3953] ss:$4 sm:$0xff] %v3818
        %4441 = vst [vmem:[%s3955] ss:$4 sm:$0xff] %v3819
        %4442 = vst [vmem:[%s3957] ss:$4 sm:$0xff] %v3307
        %4443 = vst [vmem:[%s3959] ss:$4 sm:$0xff] %v3820
        %4444 = vst [vmem:[%s3961] ss:$4 sm:$0xff] %v3821
        %4445 = vst [vmem:[%s3963] ss:$4 sm:$0xff] %v3308
        %4446 = vst [vmem:[%s3965] ss:$4 sm:$0xff] %v3822
        %v4447 = vld.sshfl [vmem:[#allocation1] sm:$0xff pattern:$0x73625140]
        %v4448 = vld.sshfl [vmem:[#allocation1 + $0x20] sm:$0xff pattern:$0x73625140]
        %4449 = vst [vmem:[#allocation1] ss:$4 sm:$0xff] %v3823
        %4450 = vst [vmem:[%s3953] ss:$4 sm:$0xff] %v3309
        %4451 = vst [vmem:[%s3955] ss:$4 sm:$0xff] %v3824
        %4452 = vst [vmem:[%s3957] ss:$4 sm:$0xff] %v3825
        %4453 = vst [vmem:[%s3959] ss:$4 sm:$0xff] %v3310
        %4454 = vst [vmem:[%s3961] ss:$4 sm:$0xff] %v3826
        %4455 = vst [vmem:[%s3963] ss:$4 sm:$0xff] %v3827
        %4456 = vst [vmem:[%s3965] ss:$4 sm:$0xff] %v3311
        %v4457 = vld.sshfl [vmem:[#allocation1] sm:$0xff pattern:$0x73625140]
        %v4458 = vld.sshfl [vmem:[#allocation1 + $0x20] sm:$0xff pattern:$0x73625140]
        %4459 = vst [vmem:[#allocation1] ss:$4 sm:$0xff] %v3828
        %4460 = vst [vmem:[%s3953] ss:$4 sm:$0xff] %v3829
        %4461 = vst [vmem:[%s3955] ss:$4 sm:$0xff] %v3312
        %4462 = vst [vmem:[%s3957] ss:$4 sm:$0xff] %v3830
        %4463 = vst [vmem:[%s3959] ss:$4 sm:$0xff] %v3831
        %4464 = vst [vmem:[%s3961] ss:$4 sm:$0xff] %v3313
        %4465 = vst [vmem:[%s3963] ss:$4 sm:$0xff] %v3832
        %4466 = vst [vmem:[%s3965] ss:$4 sm:$0xff] %v3833
        %v4467 = vld.sshfl [vmem:[#allocation1] sm:$0xff pattern:$0x73625140]
        %v4468 = vld.sshfl [vmem:[#allocation1 + $0x20] sm:$0xff pattern:$0x73625140]
        %4469 = vst [vmem:[#allocation1] ss:$4 sm:$0xff] %v3314
        %4470 = vst [vmem:[%s3953] ss:$4 sm:$0xff] %v3834
        %4471 = vst [vmem:[%s3955] ss:$4 sm:$0xff] %v3835
        %4472 = vst [vmem:[%s3957] ss:$4 sm:$0xff] %v3315
        %4473 = vst [vmem:[%s3959] ss:$4 sm:$0xff] %v3836
        %4474 = vst [vmem:[%s3961] ss:$4 sm:$0xff] %v3837
        %4475 = vst [vmem:[%s3963] ss:$4 sm:$0xff] %v3316
        %4476 = vst [vmem:[%s3965] ss:$4 sm:$0xff] %v3838
        %v4477 = vld.sshfl [vmem:[#allocation1] sm:$0xff pattern:$0x73625140]
        %v4478 = vld.sshfl [vmem:[#allocation1 + $0x20] sm:$0xff pattern:$0x73625140]
        %4479 = vst [vmem:[#allocation1] ss:$4 sm:$0xff] %v3839
        %4480 = vst [vmem:[%s3953] ss:$4 sm:$0xff] %v3317
        %4481 = vst [vmem:[%s3955] ss:$4 sm:$0xff] %v3840
        %4482 = vst [vmem:[%s3957] ss:$4 sm:$0xff] %v3841
        %4483 = vst [vmem:[%s3959] ss:$4 sm:$0xff] %v3318
        %4484 = vst [vmem:[%s3961] ss:$4 sm:$0xff] %v3842
        %4485 = vst [vmem:[%s3963] ss:$4 sm:$0xff] %v3843
        %4486 = vst [vmem:[%s3965] ss:$4 sm:$0xff] %v3319
        %v4487 = vld.sshfl [vmem:[#allocation1] sm:$0xff pattern:$0x73625140]
        %v4488 = vld.sshfl [vmem:[#allocation1 + $0x20] sm:$0xff pattern:$0x73625140]
        %4489 = vst [vmem:[#allocation1] ss:$4 sm:$0xff] %v3844
        %4490 = vst [vmem:[%s3953] ss:$4 sm:$0xff] %v3845
        %4491 = vst [vmem:[%s3955] ss:$4 sm:$0xff] %v3320
        %4492 = vst [vmem:[%s3957] ss:$4 sm:$0xff] %v3846
        %4493 = vst [vmem:[%s3959] ss:$4 sm:$0xff] %v3847
        %4494 = vst [vmem:[%s3961] ss:$4 sm:$0xff] %v3321
        %4495 = vst [vmem:[%s3963] ss:$4 sm:$0xff] %v3848
        %4496 = vst [vmem:[%s3965] ss:$4 sm:$0xff] %v3849
        %v4497 = vld.sshfl [vmem:[#allocation1] sm:$0xff pattern:$0x73625140]
        %v4498 = vld.sshfl [vmem:[#allocation1 + $0x20] sm:$0xff pattern:$0x73625140]
        %4499 = vst [vmem:[#allocation1] ss:$4 sm:$0xff] %v3322
        %4500 = vst [vmem:[%s3953] ss:$4 sm:$0xff] %v3850
        %4501 = vst [vmem:[%s3955] ss:$4 sm:$0xff] %v3851
        %4502 = vst [vmem:[%s3957] ss:$4 sm:$0xff] %v3323
        %4503 = vst [vmem:[%s3959] ss:$4 sm:$0xff] %v3852
        %4504 = vst [vmem:[%s3961] ss:$4 sm:$0xff] %v3853
        %4505 = vst [vmem:[%s3963] ss:$4 sm:$0xff] %v3324
        %4506 = vst [vmem:[%s3965] ss:$4 sm:$0xff] %v3854
        %v4507 = vld.sshfl [vmem:[#allocation1] sm:$0xff pattern:$0x73625140]
        %v4508 = vld.sshfl [vmem:[#allocation1 + $0x20] sm:$0xff pattern:$0x73625140]
        %4509 = vst [vmem:[#allocation1] ss:$4 sm:$0xff] %v3855
        %4510 = vst [vmem:[%s3953] ss:$4 sm:$0xff] %v3325
        %4511 = vst [vmem:[%s3955] ss:$4 sm:$0xff] %v3856
        %4512 = vst [vmem:[%s3957] ss:$4 sm:$0xff] %v3857
        %4513 = vst [vmem:[%s3959] ss:$4 sm:$0xff] %v3326
        %4514 = vst [vmem:[%s3961] ss:$4 sm:$0xff] %v3858
        %4515 = vst [vmem:[%s3963] ss:$4 sm:$0xff] %v3859
        %4516 = vst [vmem:[%s3965] ss:$4 sm:$0xff] %v3327
        %v4517 = vld.sshfl [vmem:[#allocation1] sm:$0xff pattern:$0x73625140]
        %v4518 = vld.sshfl [vmem:[#allocation1 + $0x20] sm:$0xff pattern:$0x73625140]
        %4519 = vst [vmem:[#allocation1] ss:$4 sm:$0xff] %v3860
        %4520 = vst [vmem:[%s3953] ss:$4 sm:$0xff] %v3861
        %4521 = vst [vmem:[%s3955] ss:$4 sm:$0xff] %v3328
        %4522 = vst [vmem:[%s3957] ss:$4 sm:$0xff] %v3862
        %4523 = vst [vmem:[%s3959] ss:$4 sm:$0xff] %v3863
        %4524 = vst [vmem:[%s3961] ss:$4 sm:$0xff] %v3329
        %4525 = vst [vmem:[%s3963] ss:$4 sm:$0xff] %v3864
        %4526 = vst [vmem:[%s3965] ss:$4 sm:$0xff] %v3865
        %v4527 = vld.sshfl [vmem:[#allocation1] sm:$0xff pattern:$0x73625140]
        %v4528 = vld.sshfl [vmem:[#allocation1 + $0x20] sm:$0xff pattern:$0x73625140]
        %4529 = vst [vmem:[#allocation1] ss:$4 sm:$0xff] %v3330
        %4530 = vst [vmem:[%s3953] ss:$4 sm:$0xff] %v3866
        %4531 = vst [vmem:[%s3955] ss:$4 sm:$0xff] %v3867
        %4532 = vst [vmem:[%s3957] ss:$4 sm:$0xff] %v3331
        %4533 = vst [vmem:[%s3959] ss:$4 sm:$0xff] %v3868
        %4534 = vst [vmem:[%s3961] ss:$4 sm:$0xff] %v3869
        %4535 = vst [vmem:[%s3963] ss:$4 sm:$0xff] %v3332
        %4536 = vst [vmem:[%s3965] ss:$4 sm:$0xff] %v3870
        %v4537 = vld.sshfl [vmem:[#allocation1] sm:$0xff pattern:$0x73625140]
        %v4538 = vld.sshfl [vmem:[#allocation1 + $0x20] sm:$0xff pattern:$0x73625140]
        %4539 = vst [vmem:[#allocation1] ss:$4 sm:$0xff] %v3871
        %4540 = vst [vmem:[%s3953] ss:$4 sm:$0xff] %v3333
        %4541 = vst [vmem:[%s3955] ss:$4 sm:$0xff] %v3872
        %4542 = vst [vmem:[%s3957] ss:$4 sm:$0xff] %v3873
        %4543 = vst [vmem:[%s3959] ss:$4 sm:$0xff] %v3334
        %4544 = vst [vmem:[%s3961] ss:$4 sm:$0xff] %v3874
        %4545 = vst [vmem:[%s3963] ss:$4 sm:$0xff] %v3875
        %4546 = vst [vmem:[%s3965] ss:$4 sm:$0xff] %v3335
        %v4547 = vld.sshfl [vmem:[#allocation1] sm:$0xff pattern:$0x73625140]
        %v4548 = vld.sshfl [vmem:[#allocation1 + $0x20] sm:$0xff pattern:$0x73625140]
        %4549 = vst [vmem:[#allocation1] ss:$4 sm:$0xff] %v3876
        %4550 = vst [vmem:[%s3953] ss:$4 sm:$0xff] %v3877
        %4551 = vst [vmem:[%s3955] ss:$4 sm:$0xff] %v3336
        %4552 = vst [vmem:[%s3957] ss:$4 sm:$0xff] %v3878
        %4553 = vst [vmem:[%s3959] ss:$4 sm:$0xff] %v3879
        %4554 = vst [vmem:[%s3961] ss:$4 sm:$0xff] %v3337
        %4555 = vst [vmem:[%s3963] ss:$4 sm:$0xff] %v3880
        %4556 = vst [vmem:[%s3965] ss:$4 sm:$0xff] %v3881
        %v4557 = vld.sshfl [vmem:[#allocation1] sm:$0xff pattern:$0x73625140]
        %v4558 = vld.sshfl [vmem:[#allocation1 + $0x20] sm:$0xff pattern:$0x73625140]
        %4559 = vst [vmem:[#allocation1] ss:$4 sm:$0xff] %v3338
        %4560 = vst [vmem:[%s3953] ss:$4 sm:$0xff] %v3882
        %4561 = vst [vmem:[%s3955] ss:$4 sm:$0xff] %v3883
        %4562 = vst [vmem:[%s3957] ss:$4 sm:$0xff] %v3339
        %4563 = vst [vmem:[%s3959] ss:$4 sm:$0xff] %v3884
        %4564 = vst [vmem:[%s3961] ss:$4 sm:$0xff] %v3885
        %4565 = vst [vmem:[%s3963] ss:$4 sm:$0xff] %v3340
        %4566 = vst [vmem:[%s3965] ss:$4 sm:$0xff] %v3886
        %v4567 = vld.sshfl [vmem:[#allocation1] sm:$0xff pattern:$0x73625140]
        %v4568 = vld.sshfl [vmem:[#allocation1 + $0x20] sm:$0xff pattern:$0x73625140]
        %4569 = vst [vmem:[#allocation1] ss:$4 sm:$0xff] %v3887
        %4570 = vst [vmem:[%s3953] ss:$4 sm:$0xff] %v3341
        %4571 = vst [vmem:[%s3955] ss:$4 sm:$0xff] %v3888
        %4572 = vst [vmem:[%s3957] ss:$4 sm:$0xff] %v3889
        %4573 = vst [vmem:[%s3959] ss:$4 sm:$0xff] %v3342
        %4574 = vst [vmem:[%s3961] ss:$4 sm:$0xff] %v3890
        %4575 = vst [vmem:[%s3963] ss:$4 sm:$0xff] %v3891
        %4576 = vst [vmem:[%s3965] ss:$4 sm:$0xff] %v3343
        %v4577 = vld.sshfl [vmem:[#allocation1] sm:$0xff pattern:$0x73625140]
        %v4578 = vld.sshfl [vmem:[#allocation1 + $0x20] sm:$0xff pattern:$0x73625140]
        %4579 = vst [vmem:[#allocation1] ss:$4 sm:$0xff] %v3892
        %4580 = vst [vmem:[%s3953] ss:$4 sm:$0xff] %v3893
        %4581 = vst [vmem:[%s3955] ss:$4 sm:$0xff] %v3344
        %4582 = vst [vmem:[%s3957] ss:$4 sm:$0xff] %v3894
        %4583 = vst [vmem:[%s3959] ss:$4 sm:$0xff] %v3895
        %4584 = vst [vmem:[%s3961] ss:$4 sm:$0xff] %v3345
        %4585 = vst [vmem:[%s3963] ss:$4 sm:$0xff] %v3896
        %4586 = vst [vmem:[%s3965] ss:$4 sm:$0xff] %v3897
        %v4587 = vld.sshfl [vmem:[#allocation1] sm:$0xff pattern:$0x73625140]
        %v4588 = vld.sshfl [vmem:[#allocation1 + $0x20] sm:$0xff pattern:$0x73625140]
        %4589 = vst [vmem:[#allocation1] ss:$4 sm:$0xff] %v3346
        %4590 = vst [vmem:[%s3953] ss:$4 sm:$0xff] %v3898
        %4591 = vst [vmem:[%s3955] ss:$4 sm:$0xff] %v3899
        %4592 = vst [vmem:[%s3957] ss:$4 sm:$0xff] %v3347
        %4593 = vst [vmem:[%s3959] ss:$4 sm:$0xff] %v3900
        %4594 = vst [vmem:[%s3961] ss:$4 sm:$0xff] %v3901
        %4595 = vst [vmem:[%s3963] ss:$4 sm:$0xff] %v3348
        %4596 = vst [vmem:[%s3965] ss:$4 sm:$0xff] %v3902
        %v4597 = vld.sshfl [vmem:[#allocation1] sm:$0xff pattern:$0x73625140]
        %v4598 = vld.sshfl [vmem:[#allocation1 + $0x20] sm:$0xff pattern:$0x73625140]
        %4599 = vst [vmem:[#allocation1] ss:$4 sm:$0xff] %v3903
        %4600 = vst [vmem:[%s3953] ss:$4 sm:$0xff] %v3349
        %4601 = vst [vmem:[%s3955] ss:$4 sm:$0xff] %v3904
        %4602 = vst [vmem:[%s3957] ss:$4 sm:$0xff] %v3905
        %4603 = vst [vmem:[%s3959] ss:$4 sm:$0xff] %v3350
        %4604 = vst [vmem:[%s3961] ss:$4 sm:$0xff] %v3906
        %4605 = vst [vmem:[%s3963] ss:$4 sm:$0xff] %v3907
        %4606 = vst [vmem:[%s3965] ss:$4 sm:$0xff] %v3351
        %v4607 = vld.sshfl [vmem:[#allocation1] sm:$0xff pattern:$0x73625140]
        %v4608 = vld.sshfl [vmem:[#allocation1 + $0x20] sm:$0xff pattern:$0x73625140]
        %4609 = vst [vmem:[#allocation1] ss:$4 sm:$0xff] %v3908
        %4610 = vst [vmem:[%s3953] ss:$4 sm:$0xff] %v3909
        %4611 = vst [vmem:[%s3955] ss:$4 sm:$0xff] %v3352
        %4612 = vst [vmem:[%s3957] ss:$4 sm:$0xff] %v3910
        %4613 = vst [vmem:[%s3959] ss:$4 sm:$0xff] %v3911
        %4614 = vst [vmem:[%s3961] ss:$4 sm:$0xff] %v3353
        %4615 = vst [vmem:[%s3963] ss:$4 sm:$0xff] %v3912
        %4616 = vst [vmem:[%s3965] ss:$4 sm:$0xff] %v3913
        %v4617 = vld.sshfl [vmem:[#allocation1] sm:$0xff pattern:$0x73625140]
        %v4618 = vld.sshfl [vmem:[#allocation1 + $0x20] sm:$0xff pattern:$0x73625140]
        %4619 = vst [vmem:[#allocation1] ss:$4 sm:$0xff] %v3354
        %4620 = vst [vmem:[%s3953] ss:$4 sm:$0xff] %v3914
        %4621 = vst [vmem:[%s3955] ss:$4 sm:$0xff] %v3915
        %4622 = vst [vmem:[%s3957] ss:$4 sm:$0xff] %v3355
        %4623 = vst [vmem:[%s3959] ss:$4 sm:$0xff] %v3916
        %4624 = vst [vmem:[%s3961] ss:$4 sm:$0xff] %v3917
        %4625 = vst [vmem:[%s3963] ss:$4 sm:$0xff] %v3356
        %4626 = vst [vmem:[%s3965] ss:$4 sm:$0xff] %v3918
        %v4627 = vld.sshfl [vmem:[#allocation1] sm:$0xff pattern:$0x73625140]
        %v4628 = vld.sshfl [vmem:[#allocation1 + $0x20] sm:$0xff pattern:$0x73625140]
        %4629 = vst [vmem:[#allocation1] ss:$4 sm:$0xff] %v3919
        %4630 = vst [vmem:[%s3953] ss:$4 sm:$0xff] %v3357
        %4631 = vst [vmem:[%s3955] ss:$4 sm:$0xff] %v3920
        %4632 = vst [vmem:[%s3957] ss:$4 sm:$0xff] %v3921
        %4633 = vst [vmem:[%s3959] ss:$4 sm:$0xff] %v3358
        %4634 = vst [vmem:[%s3961] ss:$4 sm:$0xff] %v3922
        %4635 = vst [vmem:[%s3963] ss:$4 sm:$0xff] %v3923
        %4636 = vst [vmem:[%s3965] ss:$4 sm:$0xff] %v3359
        %v4637 = vld.sshfl [vmem:[#allocation1] sm:$0xff pattern:$0x73625140]
        %v4638 = vld.sshfl [vmem:[#allocation1 + $0x20] sm:$0xff pattern:$0x73625140]
        %4639 = vst [vmem:[#allocation1] ss:$4 sm:$0xff] %v3924
        %4640 = vst [vmem:[%s3953] ss:$4 sm:$0xff] %v3925
        %4641 = vst [vmem:[%s3955] ss:$4 sm:$0xff] %v3360
        %4642 = vst [vmem:[%s3957] ss:$4 sm:$0xff] %v3926
        %4643 = vst [vmem:[%s3959] ss:$4 sm:$0xff] %v3927
        %4644 = vst [vmem:[%s3961] ss:$4 sm:$0xff] %v3361
        %4645 = vst [vmem:[%s3963] ss:$4 sm:$0xff] %v3928
        %4646 = vst [vmem:[%s3965] ss:$4 sm:$0xff] %v3929
        %v4647 = vld.sshfl [vmem:[#allocation1] sm:$0xff pattern:$0x73625140]
        %v4648 = vld.sshfl [vmem:[#allocation1 + $0x20] sm:$0xff pattern:$0x73625140]
        %4649 = vst [vmem:[#allocation1] ss:$4 sm:$0xff] %v3362
        %4650 = vst [vmem:[%s3953] ss:$4 sm:$0xff] %v3930
        %4651 = vst [vmem:[%s3955] ss:$4 sm:$0xff] %v3931
        %4652 = vst [vmem:[%s3957] ss:$4 sm:$0xff] %v3363
        %4653 = vst [vmem:[%s3959] ss:$4 sm:$0xff] %v3932
        %4654 = vst [vmem:[%s3961] ss:$4 sm:$0xff] %v3933
        %4655 = vst [vmem:[%s3963] ss:$4 sm:$0xff] %v3364
        %4656 = vst [vmem:[%s3965] ss:$4 sm:$0xff] %v3934
        %v4657 = vld.sshfl [vmem:[#allocation1] sm:$0xff pattern:$0x73625140]
        %v4658 = vld.sshfl [vmem:[#allocation1 + $0x20] sm:$0xff pattern:$0x73625140]
        %4659 = vst [vmem:[#allocation1] ss:$4 sm:$0xff] %v3935
        %4660 = vst [vmem:[%s3953] ss:$4 sm:$0xff] %v3365
        %4661 = vst [vmem:[%s3955] ss:$4 sm:$0xff] %v3936
        %4662 = vst [vmem:[%s3957] ss:$4 sm:$0xff] %v3937
        %4663 = vst [vmem:[%s3959] ss:$4 sm:$0xff] %v3366
        %4664 = vst [vmem:[%s3961] ss:$4 sm:$0xff] %v3938
        %4665 = vst [vmem:[%s3963] ss:$4 sm:$0xff] %v3939
        %4666 = vst [vmem:[%s3965] ss:$4 sm:$0xff] %v3367
        %v4667 = vld.sshfl [vmem:[#allocation1] sm:$0xff pattern:$0x73625140]
        %v4668 = vld.sshfl [vmem:[#allocation1 + $0x20] sm:$0xff pattern:$0x73625140]
        %4669 = vst [vmem:[#allocation1] ss:$4 sm:$0xff] %v3940
        %4670 = vst [vmem:[%s3953] ss:$4 sm:$0xff] %v3941
        %4671 = vst [vmem:[%s3955] ss:$4 sm:$0xff] %v3368
        %4672 = vst [vmem:[%s3957] ss:$4 sm:$0xff] %v3942
        %4673 = vst [vmem:[%s3959] ss:$4 sm:$0xff] %v3943
        %4674 = vst [vmem:[%s3961] ss:$4 sm:$0xff] %v3369
        %4675 = vst [vmem:[%s3963] ss:$4 sm:$0xff] %v3944
        %4676 = vst [vmem:[%s3965] ss:$4 sm:$0xff] %v3945
        %v4677 = vld.sshfl [vmem:[#allocation1] sm:$0xff pattern:$0x73625140]
        %v4678 = vld.sshfl [vmem:[#allocation1 + $0x20] sm:$0xff pattern:$0x73625140]
        %vm4679 = vcmask 97280
        %v4680 = vsel %vm4679, %v3967, 0
        %v4682 = vsel %vm4679, %v3968, 0
        %v4684 = vsel %vm4679, %v3977, 0
        %v4686 = vsel %vm4679, %v3978, 0
        %v4688 = vsel %vm4679, %v3987, 0
        %v4690 = vsel %vm4679, %v3988, 0
        %v4692 = vsel %vm4679, %v3997, 0
        %v4694 = vsel %vm4679, %v3998, 0
        %v4696 = vsel %vm4679, %v4007, 0
        %v4698 = vsel %vm4679, %v4008, 0
        %v4700 = vsel %vm4679, %v4017, 0
        %v4702 = vsel %vm4679, %v4018, 0
        %v4704 = vsel %vm4679, %v4027, 0
        %v4706 = vsel %vm4679, %v4028, 0
        %v4708 = vsel %vm4679, %v4037, 0
        %v4710 = vsel %vm4679, %v4038, 0
        %v4712 = vsel %vm4679, %v4047, 0
        %v4714 = vsel %vm4679, %v4048, 0
        %v4716 = vsel %vm4679, %v4057, 0
        %v4718 = vsel %vm4679, %v4058, 0
        %v4720 = vsel %vm4679, %v4067, 0
        %v4722 = vsel %vm4679, %v4068, 0
        %v4724 = vsel %vm4679, %v4077, 0
        %v4726 = vsel %vm4679, %v4078, 0
        %v4728 = vsel %vm4679, %v4087, 0
        %v4730 = vsel %vm4679, %v4088, 0
        %v4732 = vsel %vm4679, %v4097, 0
        %v4734 = vsel %vm4679, %v4098, 0
        %v4736 = vsel %vm4679, %v4107, 0
        %v4738 = vsel %vm4679, %v4108, 0
        %v4740 = vsel %vm4679, %v4117, 0
        %v4742 = vsel %vm4679, %v4118, 0
        %v4744 = vsel %vm4679, %v4127, 0
        %v4746 = vsel %vm4679, %v4128, 0
        %v4748 = vsel %vm4679, %v4137, 0
        %v4750 = vsel %vm4679, %v4138, 0
        %v4752 = vsel %vm4679, %v4147, 0
        %v4754 = vsel %vm4679, %v4148, 0
        %v4756 = vsel %vm4679, %v4157, 0
        %v4758 = vsel %vm4679, %v4158, 0
        %v4760 = vsel %vm4679, %v4167, 0
        %v4762 = vsel %vm4679, %v4168, 0
        %v4764 = vsel %vm4679, %v4177, 0
        %v4766 = vsel %vm4679, %v4178, 0
        %v4768 = vsel %vm4679, %v4187, 0
        %v4770 = vsel %vm4679, %v4188, 0
        %v4772 = vsel %vm4679, %v4197, 0
        %v4774 = vsel %vm4679, %v4198, 0
        %v4776 = vsel %vm4679, %v4207, 0
        %v4778 = vsel %vm4679, %v4208, 0
        %v4780 = vsel %vm4679, %v4217, 0
        %v4782 = vsel %vm4679, %v4218, 0
        %v4784 = vsel %vm4679, %v4227, 0
        %v4786 = vsel %vm4679, %v4228, 0
        %v4788 = vsel %vm4679, %v4237, 0
        %v4790 = vsel %vm4679, %v4238, 0
        %v4792 = vsel %vm4679, %v4247, 0
        %v4794 = vsel %vm4679, %v4248, 0
        %v4796 = vsel %vm4679, %v4257, 0
        %v4798 = vsel %vm4679, %v4258, 0
        %v4800 = vsel %vm4679, %v4267, 0
        %v4802 = vsel %vm4679, %v4268, 0
        %v4804 = vsel %vm4679, %v4277, 0
        %v4806 = vsel %vm4679, %v4278, 0
        %v4808 = vsel %vm4679, %v4287, 0
        %v4810 = vsel %vm4679, %v4288, 0
        %v4812 = vsel %vm4679, %v4297, 0
        %v4814 = vsel %vm4679, %v4298, 0
        %v4816 = vsel %vm4679, %v4307, 0
        %v4818 = vsel %vm4679, %v4308, 0
        %v4820 = vsel %vm4679, %v4317, 0
        %v4822 = vsel %vm4679, %v4318, 0
        %v4824 = vsel %vm4679, %v4327, 0
        %v4826 = vsel %vm4679, %v4328, 0
        %v4828 = vsel %vm4679, %v4337, 0
        %v4830 = vsel %vm4679, %v4338, 0
        %v4832 = vsel %vm4679, %v4347, 0
        %v4834 = vsel %vm4679, %v4348, 0
        %v4836 = vsel %vm4679, %v4357, 0
        %v4838 = vsel %vm4679, %v4358, 0
        %v4840 = vsel %vm4679, %v4367, 0
        %v4842 = vsel %vm4679, %v4368, 0
        %v4844 = vsel %vm4679, %v4377, 0
        %v4846 = vsel %vm4679, %v4378, 0
        %v4848 = vsel %vm4679, %v4387, 0
        %v4850 = vsel %vm4679, %v4388, 0
        %v4852 = vsel %vm4679, %v4397, 0
        %v4854 = vsel %vm4679, %v4398, 0
        %v4856 = vsel %vm4679, %v4407, 0
        %v4858 = vsel %vm4679, %v4408, 0
        %v4860 = vsel %vm4679, %v4417, 0
        %v4862 = vsel %vm4679, %v4418, 0
        %v4864 = vsel %vm4679, %v4427, 0
        %v4866 = vsel %vm4679, %v4428, 0
        %v4868 = vsel %vm4679, %v4437, 0
        %v4870 = vsel %vm4679, %v4438, 0
        %v4872 = vsel %vm4679, %v4447, 0
        %v4874 = vsel %vm4679, %v4448, 0
        %v4876 = vsel %vm4679, %v4457, 0
        %v4878 = vsel %vm4679, %v4458, 0
        %v4880 = vsel %vm4679, %v4467, 0
        %v4882 = vsel %vm4679, %v4468, 0
        %v4884 = vsel %vm4679, %v4477, 0
        %v4886 = vsel %vm4679, %v4478, 0
        %v4888 = vsel %vm4679, %v4487, 0
        %v4890 = vsel %vm4679, %v4488, 0
        %v4892 = vsel %vm4679, %v4497, 0
        %v4894 = vsel %vm4679, %v4498, 0
        %v4896 = vsel %vm4679, %v4507, 0
        %v4898 = vsel %vm4679, %v4508, 0
        %v4900 = vsel %vm4679, %v4517, 0
        %v4902 = vsel %vm4679, %v4518, 0
        %v4904 = vsel %vm4679, %v4527, 0
        %v4906 = vsel %vm4679, %v4528, 0
        %v4908 = vsel %vm4679, %v4537, 0
        %v4910 = vsel %vm4679, %v4538, 0
        %v4912 = vsel %vm4679, %v4547, 0
        %v4914 = vsel %vm4679, %v4548, 0
        %v4916 = vsel %vm4679, %v4557, 0
        %v4918 = vsel %vm4679, %v4558, 0
        %v4920 = vsel %vm4679, %v4567, 0
        %v4922 = vsel %vm4679, %v4568, 0
        %v4924 = vsel %vm4679, %v4577, 0
        %v4926 = vsel %vm4679, %v4578, 0
        %v4928 = vsel %vm4679, %v4587, 0
        %v4930 = vsel %vm4679, %v4588, 0
        %v4932 = vsel %vm4679, %v4597, 0
        %v4934 = vsel %vm4679, %v4598, 0
        %v4936 = vsel %vm4679, %v4607, 0
        %v4938 = vsel %vm4679, %v4608, 0
        %v4940 = vsel %vm4679, %v4617, 0
        %v4942 = vsel %vm4679, %v4618, 0
        %v4944 = vsel %vm4679, %v4627, 0
        %v4946 = vsel %vm4679, %v4628, 0
        %v4948 = vsel %vm4679, %v4637, 0
        %v4950 = vsel %vm4679, %v4638, 0
        %v4952 = vsel %vm4679, %v4647, 0
        %v4954 = vsel %vm4679, %v4648, 0
        %v4956 = vsel %vm4679, %v4657, 0
        %v4958 = vsel %vm4679, %v4658, 0
        %v4960 = vsel %vm4679, %v4667, 0
        %v4962 = vsel %vm4679, %v4668, 0
        %v4964 = vsel %vm4679, %v4677, 0
        %v4966 = vsel %vm4679, %v4678, 0
        %vm4968 = vcmask 1043456
        %v4970 = vsel %vm4968, %v3947, 0
        %4972 = vmatpush.msra.mxu0 0.0
        %4973 = vmatpush.msra.mxu0 0.0
        %4974 = vmatpush.msra.mxu0 0.0
        %4975 = vmatpush.msra.mxu0 0.0
        %4976 = vmatpush.msra.mxu0 0.0
        %4977 = vmatpush.msra.mxu0 0.0
        %4978 = vmatpush.msra.mxu0 0.0
        %4979 = vmatpush.msra.mxu0 0.0
        %4980 = vmatpush.msra.mxu0 0.0
        %4981 = vmatpush.msra.mxu0 0.0
        %4982 = vmatpush.msra.mxu0 0.0
        %4983 = vmatpush.msra.mxu0 0.0
        %4984 = vmatpush.msra.mxu0 0.0
        %4985 = vmatpush.msra.mxu0 0.0
        %4986 = vmatpush.msra.mxu0 %v4970
        %4987 = vmatpush.msra.mxu0 %v3946
        %4988 = vmatmul.f32.gmra.mxu0 %v4680
        %v4989 = vpop.f32.mrf.mxu0
        %v4990 = vadd.f32 %v3950, %v4989
        %4991 = vmatmul.f32.gmra.mxu0 %v4682
        %v4992 = vpop.f32.mrf.mxu0
        %v4993 = vadd.f32 %v3950, %v4992
        %4994 = vmatmul.f32.gmra.mxu0 %v4684
        %v4995 = vpop.f32.mrf.mxu0
        %v4996 = vadd.f32 %v3950, %v4995
        %4997 = vmatmul.f32.gmra.mxu0 %v4686
        %v4998 = vpop.f32.mrf.mxu0
        %v4999 = vadd.f32 %v3950, %v4998
        %5000 = vmatmul.f32.gmra.mxu0 %v4688
        %v5001 = vpop.f32.mrf.mxu0
        %v5002 = vadd.f32 %v3950, %v5001
        %5003 = vmatmul.f32.gmra.mxu0 %v4690
        %v5004 = vpop.f32.mrf.mxu0
        %v5005 = vadd.f32 %v3950, %v5004
        %5006 = vmatmul.f32.gmra.mxu0 %v4692
        %v5007 = vpop.f32.mrf.mxu0
        %v5008 = vadd.f32 %v3950, %v5007
        %5009 = vmatmul.f32.gmra.mxu0 %v4694
        %v5010 = vpop.f32.mrf.mxu0
        %v5011 = vadd.f32 %v3950, %v5010
        %5012 = vmatmul.f32.gmra.mxu0 %v4696
        %v5013 = vpop.f32.mrf.mxu0
        %v5014 = vadd.f32 %v3950, %v5013
        %5015 = vmatmul.f32.gmra.mxu0 %v4698
        %v5016 = vpop.f32.mrf.mxu0
        %v5017 = vadd.f32 %v3950, %v5016
        %5018 = vmatmul.f32.gmra.mxu0 %v4700
        %v5019 = vpop.f32.mrf.mxu0
        %v5020 = vadd.f32 %v3950, %v5019
        %5021 = vmatmul.f32.gmra.mxu0 %v4702
        %v5022 = vpop.f32.mrf.mxu0
        %v5023 = vadd.f32 %v3950, %v5022
        %5024 = vmatmul.f32.gmra.mxu0 %v4704
        %v5025 = vpop.f32.mrf.mxu0
        %v5026 = vadd.f32 %v3950, %v5025
        %5027 = vmatmul.f32.gmra.mxu0 %v4706
        %v5028 = vpop.f32.mrf.mxu0
        %v5029 = vadd.f32 %v3950, %v5028
        %5030 = vmatmul.f32.gmra.mxu0 %v4708
        %v5031 = vpop.f32.mrf.mxu0
        %v5032 = vadd.f32 %v3950, %v5031
        %5033 = vmatmul.f32.gmra.mxu0 %v4710
        %v5034 = vpop.f32.mrf.mxu0
        %v5035 = vadd.f32 %v3950, %v5034
        %5036 = vmatmul.f32.gmra.mxu0 %v4712
        %v5037 = vpop.f32.mrf.mxu0
        %v5038 = vadd.f32 %v3950, %v5037
        %5039 = vmatmul.f32.gmra.mxu0 %v4714
        %v5040 = vpop.f32.mrf.mxu0
        %v5041 = vadd.f32 %v3950, %v5040
        %5042 = vmatmul.f32.gmra.mxu0 %v4716
        %v5043 = vpop.f32.mrf.mxu0
        %v5044 = vadd.f32 %v3950, %v5043
        %5045 = vmatmul.f32.gmra.mxu0 %v4718
        %v5046 = vpop.f32.mrf.mxu0
        %v5047 = vadd.f32 %v3950, %v5046
        %5048 = vmatmul.f32.gmra.mxu0 %v4720
        %v5049 = vpop.f32.mrf.mxu0
        %v5050 = vadd.f32 %v3950, %v5049
        %5051 = vmatmul.f32.gmra.mxu0 %v4722
        %v5052 = vpop.f32.mrf.mxu0
        %v5053 = vadd.f32 %v3950, %v5052
        %5054 = vmatmul.f32.gmra.mxu0 %v4724
        %v5055 = vpop.f32.mrf.mxu0
        %v5056 = vadd.f32 %v3950, %v5055
        %5057 = vmatmul.f32.gmra.mxu0 %v4726
        %v5058 = vpop.f32.mrf.mxu0
        %v5059 = vadd.f32 %v3950, %v5058
        %5060 = vmatmul.f32.gmra.mxu0 %v4728
        %v5061 = vpop.f32.mrf.mxu0
        %v5062 = vadd.f32 %v3950, %v5061
        %5063 = vmatmul.f32.gmra.mxu0 %v4730
        %v5064 = vpop.f32.mrf.mxu0
        %v5065 = vadd.f32 %v3950, %v5064
        %5066 = vmatmul.f32.gmra.mxu0 %v4732
        %v5067 = vpop.f32.mrf.mxu0
        %v5068 = vadd.f32 %v3950, %v5067
        %5069 = vmatmul.f32.gmra.mxu0 %v4734
        %v5070 = vpop.f32.mrf.mxu0
        %v5071 = vadd.f32 %v3950, %v5070
        %5072 = vmatmul.f32.gmra.mxu0 %v4736
        %v5073 = vpop.f32.mrf.mxu0
        %v5074 = vadd.f32 %v3950, %v5073
        %5075 = vmatmul.f32.gmra.mxu0 %v4738
        %v5076 = vpop.f32.mrf.mxu0
        %v5077 = vadd.f32 %v3950, %v5076
        %5078 = vmatmul.f32.gmra.mxu0 %v4740
        %v5079 = vpop.f32.mrf.mxu0
        %v5080 = vadd.f32 %v3950, %v5079
        %5081 = vmatmul.f32.gmra.mxu0 %v4742
        %v5082 = vpop.f32.mrf.mxu0
        %v5083 = vadd.f32 %v3950, %v5082
        %5084 = vmatmul.f32.gmra.mxu0 %v4744
        %v5085 = vpop.f32.mrf.mxu0
        %v5086 = vadd.f32 %v3950, %v5085
        %5087 = vmatmul.f32.gmra.mxu0 %v4746
        %v5088 = vpop.f32.mrf.mxu0
        %v5089 = vadd.f32 %v3950, %v5088
        %5090 = vmatmul.f32.gmra.mxu0 %v4748
        %v5091 = vpop.f32.mrf.mxu0
        %v5092 = vadd.f32 %v3950, %v5091
        %5093 = vmatmul.f32.gmra.mxu0 %v4750
        %v5094 = vpop.f32.mrf.mxu0
        %v5095 = vadd.f32 %v3950, %v5094
        %5096 = vmatmul.f32.gmra.mxu0 %v4752
        %v5097 = vpop.f32.mrf.mxu0
        %v5098 = vadd.f32 %v3950, %v5097
        %5099 = vmatmul.f32.gmra.mxu0 %v4754
        %v5100 = vpop.f32.mrf.mxu0
        %v5101 = vadd.f32 %v3950, %v5100
        %5102 = vmatmul.f32.gmra.mxu0 %v4756
        %v5103 = vpop.f32.mrf.mxu0
        %v5104 = vadd.f32 %v3950, %v5103
        %5105 = vmatmul.f32.gmra.mxu0 %v4758
        %v5106 = vpop.f32.mrf.mxu0
        %v5107 = vadd.f32 %v3950, %v5106
        %5108 = vmatmul.f32.gmra.mxu0 %v4760
        %v5109 = vpop.f32.mrf.mxu0
        %v5110 = vadd.f32 %v3950, %v5109
        %5111 = vmatmul.f32.gmra.mxu0 %v4762
        %v5112 = vpop.f32.mrf.mxu0
        %v5113 = vadd.f32 %v3950, %v5112
        %5114 = vmatmul.f32.gmra.mxu0 %v4764
        %v5115 = vpop.f32.mrf.mxu0
        %v5116 = vadd.f32 %v3950, %v5115
        %5117 = vmatmul.f32.gmra.mxu0 %v4766
        %v5118 = vpop.f32.mrf.mxu0
        %v5119 = vadd.f32 %v3950, %v5118
        %5120 = vmatmul.f32.gmra.mxu0 %v4768
        %v5121 = vpop.f32.mrf.mxu0
        %v5122 = vadd.f32 %v3950, %v5121
        %5123 = vmatmul.f32.gmra.mxu0 %v4770
        %v5124 = vpop.f32.mrf.mxu0
        %v5125 = vadd.f32 %v3950, %v5124
        %5126 = vmatmul.f32.gmra.mxu0 %v4772
        %v5127 = vpop.f32.mrf.mxu0
        %v5128 = vadd.f32 %v3950, %v5127
        %5129 = vmatmul.f32.gmra.mxu0 %v4774
        %v5130 = vpop.f32.mrf.mxu0
        %v5131 = vadd.f32 %v3950, %v5130
        %5132 = vmatmul.f32.gmra.mxu0 %v4776
        %v5133 = vpop.f32.mrf.mxu0
        %v5134 = vadd.f32 %v3950, %v5133
        %5135 = vmatmul.f32.gmra.mxu0 %v4778
        %v5136 = vpop.f32.mrf.mxu0
        %v5137 = vadd.f32 %v3950, %v5136
        %5138 = vmatmul.f32.gmra.mxu0 %v4780
        %v5139 = vpop.f32.mrf.mxu0
        %v5140 = vadd.f32 %v3950, %v5139
        %5141 = vmatmul.f32.gmra.mxu0 %v4782
        %v5142 = vpop.f32.mrf.mxu0
        %v5143 = vadd.f32 %v3950, %v5142
        %5144 = vmatmul.f32.gmra.mxu0 %v4784
        %v5145 = vpop.f32.mrf.mxu0
        %v5146 = vadd.f32 %v3950, %v5145
        %5147 = vmatmul.f32.gmra.mxu0 %v4786
        %v5148 = vpop.f32.mrf.mxu0
        %v5149 = vadd.f32 %v3950, %v5148
        %5150 = vmatmul.f32.gmra.mxu0 %v4788
        %v5151 = vpop.f32.mrf.mxu0
        %v5152 = vadd.f32 %v3950, %v5151
        %5153 = vmatmul.f32.gmra.mxu0 %v4790
        %v5154 = vpop.f32.mrf.mxu0
        %v5155 = vadd.f32 %v3950, %v5154
        %5156 = vmatmul.f32.gmra.mxu0 %v4792
        %v5157 = vpop.f32.mrf.mxu0
        %v5158 = vadd.f32 %v3950, %v5157
        %5159 = vmatmul.f32.gmra.mxu0 %v4794
        %v5160 = vpop.f32.mrf.mxu0
        %v5161 = vadd.f32 %v3950, %v5160
        %5162 = vmatmul.f32.gmra.mxu0 %v4796
        %v5163 = vpop.f32.mrf.mxu0
        %v5164 = vadd.f32 %v3950, %v5163
        %5165 = vmatmul.f32.gmra.mxu0 %v4798
        %v5166 = vpop.f32.mrf.mxu0
        %v5167 = vadd.f32 %v3950, %v5166
        %5168 = vmatmul.f32.gmra.mxu0 %v4800
        %v5169 = vpop.f32.mrf.mxu0
        %v5170 = vadd.f32 %v3950, %v5169
        %5171 = vmatmul.f32.gmra.mxu0 %v4802
        %v5172 = vpop.f32.mrf.mxu0
        %v5173 = vadd.f32 %v3950, %v5172
        %5174 = vmatmul.f32.gmra.mxu0 %v4804
        %v5175 = vpop.f32.mrf.mxu0
        %v5176 = vadd.f32 %v3950, %v5175
        %5177 = vmatmul.f32.gmra.mxu0 %v4806
        %v5178 = vpop.f32.mrf.mxu0
        %v5179 = vadd.f32 %v3950, %v5178
        %5180 = vmatmul.f32.gmra.mxu0 %v4808
        %v5181 = vpop.f32.mrf.mxu0
        %v5182 = vadd.f32 %v3950, %v5181
        %5183 = vmatmul.f32.gmra.mxu0 %v4810
        %v5184 = vpop.f32.mrf.mxu0
        %v5185 = vadd.f32 %v3950, %v5184
        %5186 = vmatmul.f32.gmra.mxu0 %v4812
        %v5187 = vpop.f32.mrf.mxu0
        %v5188 = vadd.f32 %v3950, %v5187
        %5189 = vmatmul.f32.gmra.mxu0 %v4814
        %v5190 = vpop.f32.mrf.mxu0
        %v5191 = vadd.f32 %v3950, %v5190
        %5192 = vmatmul.f32.gmra.mxu0 %v4816
        %v5193 = vpop.f32.mrf.mxu0
        %v5194 = vadd.f32 %v3950, %v5193
        %5195 = vmatmul.f32.gmra.mxu0 %v4818
        %v5196 = vpop.f32.mrf.mxu0
        %v5197 = vadd.f32 %v3950, %v5196
        %5198 = vmatmul.f32.gmra.mxu0 %v4820
        %v5199 = vpop.f32.mrf.mxu0
        %v5200 = vadd.f32 %v3950, %v5199
        %5201 = vmatmul.f32.gmra.mxu0 %v4822
        %v5202 = vpop.f32.mrf.mxu0
        %v5203 = vadd.f32 %v3950, %v5202
        %5204 = vmatmul.f32.gmra.mxu0 %v4824
        %v5205 = vpop.f32.mrf.mxu0
        %v5206 = vadd.f32 %v3950, %v5205
        %5207 = vmatmul.f32.gmra.mxu0 %v4826
        %v5208 = vpop.f32.mrf.mxu0
        %v5209 = vadd.f32 %v3950, %v5208
        %5210 = vmatmul.f32.gmra.mxu0 %v4828
        %v5211 = vpop.f32.mrf.mxu0
        %v5212 = vadd.f32 %v3950, %v5211
        %5213 = vmatmul.f32.gmra.mxu0 %v4830
        %v5214 = vpop.f32.mrf.mxu0
        %v5215 = vadd.f32 %v3950, %v5214
        %5216 = vmatmul.f32.gmra.mxu0 %v4832
        %v5217 = vpop.f32.mrf.mxu0
        %v5218 = vadd.f32 %v3950, %v5217
        %5219 = vmatmul.f32.gmra.mxu0 %v4834
        %v5220 = vpop.f32.mrf.mxu0
        %v5221 = vadd.f32 %v3950, %v5220
        %5222 = vmatmul.f32.gmra.mxu0 %v4836
        %v5223 = vpop.f32.mrf.mxu0
        %v5224 = vadd.f32 %v3950, %v5223
        %5225 = vmatmul.f32.gmra.mxu0 %v4838
        %v5226 = vpop.f32.mrf.mxu0
        %v5227 = vadd.f32 %v3950, %v5226
        %5228 = vmatmul.f32.gmra.mxu0 %v4840
        %v5229 = vpop.f32.mrf.mxu0
        %v5230 = vadd.f32 %v3950, %v5229
        %5231 = vmatmul.f32.gmra.mxu0 %v4842
        %v5232 = vpop.f32.mrf.mxu0
        %v5233 = vadd.f32 %v3950, %v5232
        %5234 = vmatmul.f32.gmra.mxu0 %v4844
        %v5235 = vpop.f32.mrf.mxu0
        %v5236 = vadd.f32 %v3950, %v5235
        %5237 = vmatmul.f32.gmra.mxu0 %v4846
        %v5238 = vpop.f32.mrf.mxu0
        %v5239 = vadd.f32 %v3950, %v5238
        %5240 = vmatmul.f32.gmra.mxu0 %v4848
        %v5241 = vpop.f32.mrf.mxu0
        %v5242 = vadd.f32 %v3950, %v5241
        %5243 = vmatmul.f32.gmra.mxu0 %v4850
        %v5244 = vpop.f32.mrf.mxu0
        %v5245 = vadd.f32 %v3950, %v5244
        %5246 = vmatmul.f32.gmra.mxu0 %v4852
        %v5247 = vpop.f32.mrf.mxu0
        %v5248 = vadd.f32 %v3950, %v5247
        %5249 = vmatmul.f32.gmra.mxu0 %v4854
        %v5250 = vpop.f32.mrf.mxu0
        %v5251 = vadd.f32 %v3950, %v5250
        %5252 = vmatmul.f32.gmra.mxu0 %v4856
        %v5253 = vpop.f32.mrf.mxu0
        %v5254 = vadd.f32 %v3950, %v5253
        %5255 = vmatmul.f32.gmra.mxu0 %v4858
        %v5256 = vpop.f32.mrf.mxu0
        %v5257 = vadd.f32 %v3950, %v5256
        %5258 = vmatmul.f32.gmra.mxu0 %v4860
        %v5259 = vpop.f32.mrf.mxu0
        %v5260 = vadd.f32 %v3950, %v5259
        %5261 = vmatmul.f32.gmra.mxu0 %v4862
        %v5262 = vpop.f32.mrf.mxu0
        %v5263 = vadd.f32 %v3950, %v5262
        %5264 = vmatmul.f32.gmra.mxu0 %v4864
        %v5265 = vpop.f32.mrf.mxu0
        %v5266 = vadd.f32 %v3950, %v5265
        %5267 = vmatmul.f32.gmra.mxu0 %v4866
        %v5268 = vpop.f32.mrf.mxu0
        %v5269 = vadd.f32 %v3950, %v5268
        %5270 = vmatmul.f32.gmra.mxu0 %v4868
        %v5271 = vpop.f32.mrf.mxu0
        %v5272 = vadd.f32 %v3950, %v5271
        %5273 = vmatmul.f32.gmra.mxu0 %v4870
        %v5274 = vpop.f32.mrf.mxu0
        %v5275 = vadd.f32 %v3950, %v5274
        %5276 = vmatmul.f32.gmra.mxu0 %v4872
        %v5277 = vpop.f32.mrf.mxu0
        %v5278 = vadd.f32 %v3950, %v5277
        %5279 = vmatmul.f32.gmra.mxu0 %v4874
        %v5280 = vpop.f32.mrf.mxu0
        %v5281 = vadd.f32 %v3950, %v5280
        %5282 = vmatmul.f32.gmra.mxu0 %v4876
        %v5283 = vpop.f32.mrf.mxu0
        %v5284 = vadd.f32 %v3950, %v5283
        %5285 = vmatmul.f32.gmra.mxu0 %v4878
        %v5286 = vpop.f32.mrf.mxu0
        %v5287 = vadd.f32 %v3950, %v5286
        %5288 = vmatmul.f32.gmra.mxu0 %v4880
        %v5289 = vpop.f32.mrf.mxu0
        %v5290 = vadd.f32 %v3950, %v5289
        %5291 = vmatmul.f32.gmra.mxu0 %v4882
        %v5292 = vpop.f32.mrf.mxu0
        %v5293 = vadd.f32 %v3950, %v5292
        %5294 = vmatmul.f32.gmra.mxu0 %v4884
        %v5295 = vpop.f32.mrf.mxu0
        %v5296 = vadd.f32 %v3950, %v5295
        %5297 = vmatmul.f32.gmra.mxu0 %v4886
        %v5298 = vpop.f32.mrf.mxu0
        %v5299 = vadd.f32 %v3950, %v5298
        %5300 = vmatmul.f32.gmra.mxu0 %v4888
        %v5301 = vpop.f32.mrf.mxu0
        %v5302 = vadd.f32 %v3950, %v5301
        %5303 = vmatmul.f32.gmra.mxu0 %v4890
        %v5304 = vpop.f32.mrf.mxu0
        %v5305 = vadd.f32 %v3950, %v5304
        %5306 = vmatmul.f32.gmra.mxu0 %v4892
        %v5307 = vpop.f32.mrf.mxu0
        %v5308 = vadd.f32 %v3950, %v5307
        %5309 = vmatmul.f32.gmra.mxu0 %v4894
        %v5310 = vpop.f32.mrf.mxu0
        %v5311 = vadd.f32 %v3950, %v5310
        %5312 = vmatmul.f32.gmra.mxu0 %v4896
        %v5313 = vpop.f32.mrf.mxu0
        %v5314 = vadd.f32 %v3950, %v5313
        %5315 = vmatmul.f32.gmra.mxu0 %v4898
        %v5316 = vpop.f32.mrf.mxu0
        %v5317 = vadd.f32 %v3950, %v5316
        %5318 = vmatmul.f32.gmra.mxu0 %v4900
        %v5319 = vpop.f32.mrf.mxu0
        %v5320 = vadd.f32 %v3950, %v5319
        %5321 = vmatmul.f32.gmra.mxu0 %v4902
        %v5322 = vpop.f32.mrf.mxu0
        %v5323 = vadd.f32 %v3950, %v5322
        %5324 = vmatmul.f32.gmra.mxu0 %v4904
        %v5325 = vpop.f32.mrf.mxu0
        %v5326 = vadd.f32 %v3950, %v5325
        %5327 = vmatmul.f32.gmra.mxu0 %v4906
        %v5328 = vpop.f32.mrf.mxu0
        %v5329 = vadd.f32 %v3950, %v5328
        %5330 = vmatmul.f32.gmra.mxu0 %v4908
        %v5331 = vpop.f32.mrf.mxu0
        %v5332 = vadd.f32 %v3950, %v5331
        %5333 = vmatmul.f32.gmra.mxu0 %v4910
        %v5334 = vpop.f32.mrf.mxu0
        %v5335 = vadd.f32 %v3950, %v5334
        %5336 = vmatmul.f32.gmra.mxu0 %v4912
        %v5337 = vpop.f32.mrf.mxu0
        %v5338 = vadd.f32 %v3950, %v5337
        %5339 = vmatmul.f32.gmra.mxu0 %v4914
        %v5340 = vpop.f32.mrf.mxu0
        %v5341 = vadd.f32 %v3950, %v5340
        %5342 = vmatmul.f32.gmra.mxu0 %v4916
        %v5343 = vpop.f32.mrf.mxu0
        %v5344 = vadd.f32 %v3950, %v5343
        %5345 = vmatmul.f32.gmra.mxu0 %v4918
        %v5346 = vpop.f32.mrf.mxu0
        %v5347 = vadd.f32 %v3950, %v5346
        %5348 = vmatmul.f32.gmra.mxu0 %v4920
        %v5349 = vpop.f32.mrf.mxu0
        %v5350 = vadd.f32 %v3950, %v5349
        %5351 = vmatmul.f32.gmra.mxu0 %v4922
        %v5352 = vpop.f32.mrf.mxu0
        %v5353 = vadd.f32 %v3950, %v5352
        %5354 = vmatmul.f32.gmra.mxu0 %v4924
        %v5355 = vpop.f32.mrf.mxu0
        %v5356 = vadd.f32 %v3950, %v5355
        %5357 = vmatmul.f32.gmra.mxu0 %v4926
        %v5358 = vpop.f32.mrf.mxu0
        %v5359 = vadd.f32 %v3950, %v5358
        %5360 = vmatmul.f32.gmra.mxu0 %v4928
        %v5361 = vpop.f32.mrf.mxu0
        %v5362 = vadd.f32 %v3950, %v5361
        %5363 = vmatmul.f32.gmra.mxu0 %v4930
        %v5364 = vpop.f32.mrf.mxu0
        %v5365 = vadd.f32 %v3950, %v5364
        %5366 = vmatmul.f32.gmra.mxu0 %v4932
        %v5367 = vpop.f32.mrf.mxu0
        %v5368 = vadd.f32 %v3950, %v5367
        %5369 = vmatmul.f32.gmra.mxu0 %v4934
        %v5370 = vpop.f32.mrf.mxu0
        %v5371 = vadd.f32 %v3950, %v5370
        %5372 = vmatmul.f32.gmra.mxu0 %v4936
        %v5373 = vpop.f32.mrf.mxu0
        %v5374 = vadd.f32 %v3950, %v5373
        %5375 = vmatmul.f32.gmra.mxu0 %v4938
        %v5376 = vpop.f32.mrf.mxu0
        %v5377 = vadd.f32 %v3950, %v5376
        %5378 = vmatmul.f32.gmra.mxu0 %v4940
        %v5379 = vpop.f32.mrf.mxu0
        %v5380 = vadd.f32 %v3950, %v5379
        %5381 = vmatmul.f32.gmra.mxu0 %v4942
        %v5382 = vpop.f32.mrf.mxu0
        %v5383 = vadd.f32 %v3950, %v5382
        %5384 = vmatmul.f32.gmra.mxu0 %v4944
        %v5385 = vpop.f32.mrf.mxu0
        %v5386 = vadd.f32 %v3950, %v5385
        %5387 = vmatmul.f32.gmra.mxu0 %v4946
        %v5388 = vpop.f32.mrf.mxu0
        %v5389 = vadd.f32 %v3950, %v5388
        %5390 = vmatmul.f32.gmra.mxu0 %v4948
        %v5391 = vpop.f32.mrf.mxu0
        %v5392 = vadd.f32 %v3950, %v5391
        %5393 = vmatmul.f32.gmra.mxu0 %v4950
        %v5394 = vpop.f32.mrf.mxu0
        %v5395 = vadd.f32 %v3950, %v5394
        %5396 = vmatmul.f32.gmra.mxu0 %v4952
        %v5397 = vpop.f32.mrf.mxu0
        %v5398 = vadd.f32 %v3950, %v5397
        %5399 = vmatmul.f32.gmra.mxu0 %v4954
        %v5400 = vpop.f32.mrf.mxu0
        %v5401 = vadd.f32 %v3950, %v5400
        %5402 = vmatmul.f32.gmra.mxu0 %v4956
        %v5403 = vpop.f32.mrf.mxu0
        %v5404 = vadd.f32 %v3950, %v5403
        %5405 = vmatmul.f32.gmra.mxu0 %v4958
        %v5406 = vpop.f32.mrf.mxu0
        %v5407 = vadd.f32 %v3950, %v5406
        %5408 = vmatmul.f32.gmra.mxu0 %v4960
        %v5409 = vpop.f32.mrf.mxu0
        %v5410 = vadd.f32 %v3950, %v5409
        %5411 = vmatmul.f32.gmra.mxu0 %v4962
        %v5412 = vpop.f32.mrf.mxu0
        %v5413 = vadd.f32 %v3950, %v5412
        %5414 = vmatmul.f32.gmra.mxu0 %v4964
        %v5415 = vpop.f32.mrf.mxu0
        %v5416 = vadd.f32 %v3950, %v5415
        %5417 = vmatmul.f32.gmra.mxu0 %v4966
        %v5418 = vpop.f32.mrf.mxu0
        %v5419 = vadd.f32 %v3950, %v5418
        %5420 = vdwg.mxu0
        %v5421 = vmax.f32 %v4990, 0.0
        %v5422 = vmax.f32 %v4993, 0.0
        %v5423 = vmax.f32 %v4996, 0.0
        %v5424 = vmax.f32 %v4999, 0.0
        %v5425 = vmax.f32 %v5002, 0.0
        %v5426 = vmax.f32 %v5005, 0.0
        %v5427 = vmax.f32 %v5008, 0.0
        %v5428 = vmax.f32 %v5011, 0.0
        %v5429 = vmax.f32 %v5014, 0.0
        %v5430 = vmax.f32 %v5017, 0.0
        %v5431 = vmax.f32 %v5020, 0.0
        %v5432 = vmax.f32 %v5023, 0.0
        %v5433 = vmax.f32 %v5026, 0.0
        %v5434 = vmax.f32 %v5029, 0.0
        %v5435 = vmax.f32 %v5032, 0.0
        %v5436 = vmax.f32 %v5035, 0.0
        %v5437 = vmax.f32 %v5038, 0.0
        %v5438 = vmax.f32 %v5041, 0.0
        %v5439 = vmax.f32 %v5044, 0.0
        %v5440 = vmax.f32 %v5047, 0.0
        %v5441 = vmax.f32 %v5050, 0.0
        %v5442 = vmax.f32 %v5053, 0.0
        %v5443 = vmax.f32 %v5056, 0.0
        %v5444 = vmax.f32 %v5059, 0.0
        %v5445 = vmax.f32 %v5062, 0.0
        %v5446 = vmax.f32 %v5065, 0.0
        %v5447 = vmax.f32 %v5068, 0.0
        %v5448 = vmax.f32 %v5071, 0.0
        %v5449 = vmax.f32 %v5074, 0.0
        %v5450 = vmax.f32 %v5077, 0.0
        %v5451 = vmax.f32 %v5080, 0.0
        %v5452 = vmax.f32 %v5083, 0.0
        %v5453 = vmax.f32 %v5086, 0.0
        %v5454 = vmax.f32 %v5089, 0.0
        %v5455 = vmax.f32 %v5092, 0.0
        %v5456 = vmax.f32 %v5095, 0.0
        %v5457 = vmax.f32 %v5098, 0.0
        %v5458 = vmax.f32 %v5101, 0.0
        %v5459 = vmax.f32 %v5104, 0.0
        %v5460 = vmax.f32 %v5107, 0.0
        %v5461 = vmax.f32 %v5110, 0.0
        %v5462 = vmax.f32 %v5113, 0.0
        %v5463 = vmax.f32 %v5116, 0.0
        %v5464 = vmax.f32 %v5119, 0.0
        %v5465 = vmax.f32 %v5122, 0.0
        %v5466 = vmax.f32 %v5125, 0.0
        %v5467 = vmax.f32 %v5128, 0.0
        %v5468 = vmax.f32 %v5131, 0.0
        %v5469 = vmax.f32 %v5134, 0.0
        %v5470 = vmax.f32 %v5137, 0.0
        %v5471 = vmax.f32 %v5140, 0.0
        %v5472 = vmax.f32 %v5143, 0.0
        %v5473 = vmax.f32 %v5146, 0.0
        %v5474 = vmax.f32 %v5149, 0.0
        %v5475 = vmax.f32 %v5152, 0.0
        %v5476 = vmax.f32 %v5155, 0.0
        %v5477 = vmax.f32 %v5158, 0.0
        %v5478 = vmax.f32 %v5161, 0.0
        %v5479 = vmax.f32 %v5164, 0.0
        %v5480 = vmax.f32 %v5167, 0.0
        %v5481 = vmax.f32 %v5170, 0.0
        %v5482 = vmax.f32 %v5173, 0.0
        %v5483 = vmax.f32 %v5176, 0.0
        %v5484 = vmax.f32 %v5179, 0.0
        %v5485 = vmax.f32 %v5182, 0.0
        %v5486 = vmax.f32 %v5185, 0.0
        %v5487 = vmax.f32 %v5188, 0.0
        %v5488 = vmax.f32 %v5191, 0.0
        %v5489 = vmax.f32 %v5194, 0.0
        %v5490 = vmax.f32 %v5197, 0.0
        %v5491 = vmax.f32 %v5200, 0.0
        %v5492 = vmax.f32 %v5203, 0.0
        %v5493 = vmax.f32 %v5206, 0.0
        %v5494 = vmax.f32 %v5209, 0.0
        %v5495 = vmax.f32 %v5212, 0.0
        %v5496 = vmax.f32 %v5215, 0.0
        %v5497 = vmax.f32 %v5218, 0.0
        %v5498 = vmax.f32 %v5221, 0.0
        %v5499 = vmax.f32 %v5224, 0.0
        %v5500 = vmax.f32 %v5227, 0.0
        %v5501 = vmax.f32 %v5230, 0.0
        %v5502 = vmax.f32 %v5233, 0.0
        %v5503 = vmax.f32 %v5236, 0.0
        %v5504 = vmax.f32 %v5239, 0.0
        %v5505 = vmax.f32 %v5242, 0.0
        %v5506 = vmax.f32 %v5245, 0.0
        %v5507 = vmax.f32 %v5248, 0.0
        %v5508 = vmax.f32 %v5251, 0.0
        %v5509 = vmax.f32 %v5254, 0.0
        %v5510 = vmax.f32 %v5257, 0.0
        %v5511 = vmax.f32 %v5260, 0.0
        %v5512 = vmax.f32 %v5263, 0.0
        %v5513 = vmax.f32 %v5266, 0.0
        %v5514 = vmax.f32 %v5269, 0.0
        %v5515 = vmax.f32 %v5272, 0.0
        %v5516 = vmax.f32 %v5275, 0.0
        %v5517 = vmax.f32 %v5278, 0.0
        %v5518 = vmax.f32 %v5281, 0.0
        %v5519 = vmax.f32 %v5284, 0.0
        %v5520 = vmax.f32 %v5287, 0.0
        %v5521 = vmax.f32 %v5290, 0.0
        %v5522 = vmax.f32 %v5293, 0.0
        %v5523 = vmax.f32 %v5296, 0.0
        %v5524 = vmax.f32 %v5299, 0.0
        %v5525 = vmax.f32 %v5302, 0.0
        %v5526 = vmax.f32 %v5305, 0.0
        %v5527 = vmax.f32 %v5308, 0.0
        %v5528 = vmax.f32 %v5311, 0.0
        %v5529 = vmax.f32 %v5314, 0.0
        %v5530 = vmax.f32 %v5317, 0.0
        %v5531 = vmax.f32 %v5320, 0.0
        %v5532 = vmax.f32 %v5323, 0.0
        %v5533 = vmax.f32 %v5326, 0.0
        %v5534 = vmax.f32 %v5329, 0.0
        %v5535 = vmax.f32 %v5332, 0.0
        %v5536 = vmax.f32 %v5335, 0.0
        %v5537 = vmax.f32 %v5338, 0.0
        %v5538 = vmax.f32 %v5341, 0.0
        %v5539 = vmax.f32 %v5344, 0.0
        %v5540 = vmax.f32 %v5347, 0.0
        %v5541 = vmax.f32 %v5350, 0.0
        %v5542 = vmax.f32 %v5353, 0.0
        %v5543 = vmax.f32 %v5356, 0.0
        %v5544 = vmax.f32 %v5359, 0.0
        %v5545 = vmax.f32 %v5362, 0.0
        %v5546 = vmax.f32 %v5365, 0.0
        %v5547 = vmax.f32 %v5368, 0.0
        %v5548 = vmax.f32 %v5371, 0.0
        %v5549 = vmax.f32 %v5374, 0.0
        %v5550 = vmax.f32 %v5377, 0.0
        %v5551 = vmax.f32 %v5380, 0.0
        %v5552 = vmax.f32 %v5383, 0.0
        %v5553 = vmax.f32 %v5386, 0.0
        %v5554 = vmax.f32 %v5389, 0.0
        %v5555 = vmax.f32 %v5392, 0.0
        %v5556 = vmax.f32 %v5395, 0.0
        %v5557 = vmax.f32 %v5398, 0.0
        %v5558 = vmax.f32 %v5401, 0.0
        %v5559 = vmax.f32 %v5404, 0.0
        %v5560 = vmax.f32 %v5407, 0.0
        %v5561 = vmax.f32 %v5410, 0.0
        %v5562 = vmax.f32 %v5413, 0.0
        %v5563 = vmax.f32 %v5416, 0.0
        %v5564 = vmax.f32 %v5419, 0.0
        %v5709 = vrot.slane %v5421, 2
        %v5710 = vrot.slane %v5421, 4
        %v5711 = vrot.slane %v5421, 6
        %v5712 = vrot.slane %v5422, 2
        %v5713 = vrot.slane %v5422, 4
        %v5714 = vrot.slane %v5422, 6
        %v5715 = vrot.slane %v5423, 2
        %v5716 = vrot.slane %v5423, 4
        %v5717 = vrot.slane %v5423, 6
        %v5718 = vrot.slane %v5424, 2
        %v5719 = vrot.slane %v5424, 4
        %v5720 = vrot.slane %v5424, 6
        %v5721 = vrot.slane %v5425, 2
        %v5722 = vrot.slane %v5425, 4
        %v5723 = vrot.slane %v5425, 6
        %v5724 = vrot.slane %v5426, 2
        %v5725 = vrot.slane %v5426, 4
        %v5726 = vrot.slane %v5426, 6
        %v5727 = vrot.slane %v5427, 2
        %v5728 = vrot.slane %v5427, 4
        %v5729 = vrot.slane %v5427, 6
        %v5730 = vrot.slane %v5428, 2
        %v5731 = vrot.slane %v5428, 4
        %v5732 = vrot.slane %v5428, 6
        %v5733 = vrot.slane %v5429, 2
        %v5734 = vrot.slane %v5429, 4
        %v5735 = vrot.slane %v5429, 6
        %v5736 = vrot.slane %v5430, 2
        %v5737 = vrot.slane %v5430, 4
        %v5738 = vrot.slane %v5430, 6
        %v5739 = vrot.slane %v5431, 2
        %v5740 = vrot.slane %v5431, 4
        %v5741 = vrot.slane %v5431, 6
        %v5742 = vrot.slane %v5432, 2
        %v5743 = vrot.slane %v5432, 4
        %v5744 = vrot.slane %v5432, 6
        %v5745 = vrot.slane %v5433, 2
        %v5746 = vrot.slane %v5433, 4
        %v5747 = vrot.slane %v5433, 6
        %v5748 = vrot.slane %v5434, 2
        %v5749 = vrot.slane %v5434, 4
        %v5750 = vrot.slane %v5434, 6
        %v5751 = vrot.slane %v5435, 2
        %v5752 = vrot.slane %v5435, 4
        %v5753 = vrot.slane %v5435, 6
        %v5754 = vrot.slane %v5436, 2
        %v5755 = vrot.slane %v5436, 4
        %v5756 = vrot.slane %v5436, 6
        %v5757 = vrot.slane %v5437, 2
        %v5758 = vrot.slane %v5437, 4
        %v5759 = vrot.slane %v5437, 6
        %v5760 = vrot.slane %v5438, 2
        %v5761 = vrot.slane %v5438, 4
        %v5762 = vrot.slane %v5438, 6
        %v5763 = vrot.slane %v5439, 2
        %v5764 = vrot.slane %v5439, 4
        %v5765 = vrot.slane %v5439, 6
        %v5766 = vrot.slane %v5440, 2
        %v5767 = vrot.slane %v5440, 4
        %v5768 = vrot.slane %v5440, 6
        %v5769 = vrot.slane %v5441, 2
        %v5770 = vrot.slane %v5441, 4
        %v5771 = vrot.slane %v5441, 6
        %v5772 = vrot.slane %v5442, 2
        %v5773 = vrot.slane %v5442, 4
        %v5774 = vrot.slane %v5442, 6
        %v5775 = vrot.slane %v5443, 2
        %v5776 = vrot.slane %v5443, 4
        %v5777 = vrot.slane %v5443, 6
        %v5778 = vrot.slane %v5444, 2
        %v5779 = vrot.slane %v5444, 4
        %v5780 = vrot.slane %v5444, 6
        %v5781 = vrot.slane %v5445, 2
        %v5782 = vrot.slane %v5445, 4
        %v5783 = vrot.slane %v5445, 6
        %v5784 = vrot.slane %v5446, 2
        %v5785 = vrot.slane %v5446, 4
        %v5786 = vrot.slane %v5446, 6
        %v5787 = vrot.slane %v5447, 2
        %v5788 = vrot.slane %v5447, 4
        %v5789 = vrot.slane %v5447, 6
        %v5790 = vrot.slane %v5448, 2
        %v5791 = vrot.slane %v5448, 4
        %v5792 = vrot.slane %v5448, 6
        %v5793 = vrot.slane %v5449, 2
        %v5794 = vrot.slane %v5449, 4
        %v5795 = vrot.slane %v5449, 6
        %v5796 = vrot.slane %v5450, 2
        %v5797 = vrot.slane %v5450, 4
        %v5798 = vrot.slane %v5450, 6
        %v5799 = vrot.slane %v5451, 2
        %v5800 = vrot.slane %v5451, 4
        %v5801 = vrot.slane %v5451, 6
        %v5802 = vrot.slane %v5452, 2
        %v5803 = vrot.slane %v5452, 4
        %v5804 = vrot.slane %v5452, 6
        %v5805 = vrot.slane %v5453, 2
        %v5806 = vrot.slane %v5453, 4
        %v5807 = vrot.slane %v5453, 6
        %v5808 = vrot.slane %v5454, 2
        %v5809 = vrot.slane %v5454, 4
        %v5810 = vrot.slane %v5454, 6
        %v5811 = vrot.slane %v5455, 2
        %v5812 = vrot.slane %v5455, 4
        %v5813 = vrot.slane %v5455, 6
        %v5814 = vrot.slane %v5456, 2
        %v5815 = vrot.slane %v5456, 4
        %v5816 = vrot.slane %v5456, 6
        %v5817 = vrot.slane %v5457, 2
        %v5818 = vrot.slane %v5457, 4
        %v5819 = vrot.slane %v5457, 6
        %v5820 = vrot.slane %v5458, 2
        %v5821 = vrot.slane %v5458, 4
        %v5822 = vrot.slane %v5458, 6
        %v5823 = vrot.slane %v5459, 2
        %v5824 = vrot.slane %v5459, 4
        %v5825 = vrot.slane %v5459, 6
        %v5826 = vrot.slane %v5460, 2
        %v5827 = vrot.slane %v5460, 4
        %v5828 = vrot.slane %v5460, 6
        %v5829 = vrot.slane %v5461, 2
        %v5830 = vrot.slane %v5461, 4
        %v5831 = vrot.slane %v5461, 6
        %v5832 = vrot.slane %v5462, 2
        %v5833 = vrot.slane %v5462, 4
        %v5834 = vrot.slane %v5462, 6
        %v5835 = vrot.slane %v5463, 2
        %v5836 = vrot.slane %v5463, 4
        %v5837 = vrot.slane %v5463, 6
        %v5838 = vrot.slane %v5464, 2
        %v5839 = vrot.slane %v5464, 4
        %v5840 = vrot.slane %v5464, 6
        %v5841 = vrot.slane %v5465, 2
        %v5842 = vrot.slane %v5465, 4
        %v5843 = vrot.slane %v5465, 6
        %v5844 = vrot.slane %v5466, 2
        %v5845 = vrot.slane %v5466, 4
        %v5846 = vrot.slane %v5466, 6
        %v5847 = vrot.slane %v5467, 2
        %v5848 = vrot.slane %v5467, 4
        %v5849 = vrot.slane %v5467, 6
        %v5850 = vrot.slane %v5468, 2
        %v5851 = vrot.slane %v5468, 4
        %v5852 = vrot.slane %v5468, 6
        %v5853 = vrot.slane %v5469, 2
        %v5854 = vrot.slane %v5469, 4
        %v5855 = vrot.slane %v5469, 6
        %v5856 = vrot.slane %v5470, 2
        %v5857 = vrot.slane %v5470, 4
        %v5858 = vrot.slane %v5470, 6
        %v5859 = vrot.slane %v5471, 2
        %v5860 = vrot.slane %v5471, 4
        %v5861 = vrot.slane %v5471, 6
        %v5862 = vrot.slane %v5472, 2
        %v5863 = vrot.slane %v5472, 4
        %v5864 = vrot.slane %v5472, 6
        %v5865 = vrot.slane %v5473, 2
        %v5866 = vrot.slane %v5473, 4
        %v5867 = vrot.slane %v5473, 6
        %v5868 = vrot.slane %v5474, 2
        %v5869 = vrot.slane %v5474, 4
        %v5870 = vrot.slane %v5474, 6
        %v5871 = vrot.slane %v5475, 2
        %v5872 = vrot.slane %v5475, 4
        %v5873 = vrot.slane %v5475, 6
        %v5874 = vrot.slane %v5476, 2
        %v5875 = vrot.slane %v5476, 4
        %v5876 = vrot.slane %v5476, 6
        %v5877 = vrot.slane %v5477, 2
        %v5878 = vrot.slane %v5477, 4
        %v5879 = vrot.slane %v5477, 6
        %v5880 = vrot.slane %v5478, 2
        %v5881 = vrot.slane %v5478, 4
        %v5882 = vrot.slane %v5478, 6
        %v5883 = vrot.slane %v5479, 2
        %v5884 = vrot.slane %v5479, 4
        %v5885 = vrot.slane %v5479, 6
        %v5886 = vrot.slane %v5480, 2
        %v5887 = vrot.slane %v5480, 4
        %v5888 = vrot.slane %v5480, 6
        %v5889 = vrot.slane %v5481, 2
        %v5890 = vrot.slane %v5481, 4
        %v5891 = vrot.slane %v5481, 6
        %v5892 = vrot.slane %v5482, 2
        %v5893 = vrot.slane %v5482, 4
        %v5894 = vrot.slane %v5482, 6
        %v5895 = vrot.slane %v5483, 2
        %v5896 = vrot.slane %v5483, 4
        %v5897 = vrot.slane %v5483, 6
        %v5898 = vrot.slane %v5484, 2
        %v5899 = vrot.slane %v5484, 4
        %v5900 = vrot.slane %v5484, 6
        %v5901 = vrot.slane %v5485, 2
        %v5902 = vrot.slane %v5485, 4
        %v5903 = vrot.slane %v5485, 6
        %v5904 = vrot.slane %v5486, 2
        %v5905 = vrot.slane %v5486, 4
        %v5906 = vrot.slane %v5486, 6
        %v5907 = vrot.slane %v5487, 2
        %v5908 = vrot.slane %v5487, 4
        %v5909 = vrot.slane %v5487, 6
        %v5910 = vrot.slane %v5488, 2
        %v5911 = vrot.slane %v5488, 4
        %v5912 = vrot.slane %v5488, 6
        %v5913 = vrot.slane %v5489, 2
        %v5914 = vrot.slane %v5489, 4
        %v5915 = vrot.slane %v5489, 6
        %v5916 = vrot.slane %v5490, 2
        %v5917 = vrot.slane %v5490, 4
        %v5918 = vrot.slane %v5490, 6
        %v5919 = vrot.slane %v5491, 2
        %v5920 = vrot.slane %v5491, 4
        %v5921 = vrot.slane %v5491, 6
        %v5922 = vrot.slane %v5492, 2
        %v5923 = vrot.slane %v5492, 4
        %v5924 = vrot.slane %v5492, 6
        %v5925 = vrot.slane %v5493, 2
        %v5926 = vrot.slane %v5493, 4
        %v5927 = vrot.slane %v5493, 6
        %v5928 = vrot.slane %v5494, 2
        %v5929 = vrot.slane %v5494, 4
        %v5930 = vrot.slane %v5494, 6
        %v5931 = vrot.slane %v5495, 2
        %v5932 = vrot.slane %v5495, 4
        %v5933 = vrot.slane %v5495, 6
        %v5934 = vrot.slane %v5496, 2
        %v5935 = vrot.slane %v5496, 4
        %v5936 = vrot.slane %v5496, 6
        %v5937 = vrot.slane %v5497, 2
        %v5938 = vrot.slane %v5497, 4
        %v5939 = vrot.slane %v5497, 6
        %v5940 = vrot.slane %v5498, 2
        %v5941 = vrot.slane %v5498, 4
        %v5942 = vrot.slane %v5498, 6
        %v5943 = vrot.slane %v5499, 2
        %v5944 = vrot.slane %v5499, 4
        %v5945 = vrot.slane %v5499, 6
        %v5946 = vrot.slane %v5500, 2
        %v5947 = vrot.slane %v5500, 4
        %v5948 = vrot.slane %v5500, 6
        %v5949 = vrot.slane %v5501, 2
        %v5950 = vrot.slane %v5501, 4
        %v5951 = vrot.slane %v5501, 6
        %v5952 = vrot.slane %v5502, 2
        %v5953 = vrot.slane %v5502, 4
        %v5954 = vrot.slane %v5502, 6
        %v5955 = vrot.slane %v5503, 2
        %v5956 = vrot.slane %v5503, 4
        %v5957 = vrot.slane %v5503, 6
        %v5958 = vrot.slane %v5504, 2
        %v5959 = vrot.slane %v5504, 4
        %v5960 = vrot.slane %v5504, 6
        %v5961 = vrot.slane %v5505, 2
        %v5962 = vrot.slane %v5505, 4
        %v5963 = vrot.slane %v5505, 6
        %v5964 = vrot.slane %v5506, 2
        %v5965 = vrot.slane %v5506, 4
        %v5966 = vrot.slane %v5506, 6
        %v5967 = vrot.slane %v5507, 2
        %v5968 = vrot.slane %v5507, 4
        %v5969 = vrot.slane %v5507, 6
        %v5970 = vrot.slane %v5508, 2
        %v5971 = vrot.slane %v5508, 4
        %v5972 = vrot.slane %v5508, 6
        %v5973 = vrot.slane %v5509, 2
        %v5974 = vrot.slane %v5509, 4
        %v5975 = vrot.slane %v5509, 6
        %v5976 = vrot.slane %v5510, 2
        %v5977 = vrot.slane %v5510, 4
        %v5978 = vrot.slane %v5510, 6
        %v5979 = vrot.slane %v5511, 2
        %v5980 = vrot.slane %v5511, 4
        %v5981 = vrot.slane %v5511, 6
        %v5982 = vrot.slane %v5512, 2
        %v5983 = vrot.slane %v5512, 4
        %v5984 = vrot.slane %v5512, 6
        %v5985 = vrot.slane %v5513, 2
        %v5986 = vrot.slane %v5513, 4
        %v5987 = vrot.slane %v5513, 6
        %v5988 = vrot.slane %v5514, 2
        %v5989 = vrot.slane %v5514, 4
        %v5990 = vrot.slane %v5514, 6
        %v5991 = vrot.slane %v5515, 2
        %v5992 = vrot.slane %v5515, 4
        %v5993 = vrot.slane %v5515, 6
        %v5994 = vrot.slane %v5516, 2
        %v5995 = vrot.slane %v5516, 4
        %v5996 = vrot.slane %v5516, 6
        %v5997 = vrot.slane %v5517, 2
        %v5998 = vrot.slane %v5517, 4
        %v5999 = vrot.slane %v5517, 6
        %v6000 = vrot.slane %v5518, 2
        %v6001 = vrot.slane %v5518, 4
        %v6002 = vrot.slane %v5518, 6
        %v6003 = vrot.slane %v5519, 2
        %v6004 = vrot.slane %v5519, 4
        %v6005 = vrot.slane %v5519, 6
        %v6006 = vrot.slane %v5520, 2
        %v6007 = vrot.slane %v5520, 4
        %v6008 = vrot.slane %v5520, 6
        %v6009 = vrot.slane %v5521, 2
        %v6010 = vrot.slane %v5521, 4
        %v6011 = vrot.slane %v5521, 6
        %v6012 = vrot.slane %v5522, 2
        %v6013 = vrot.slane %v5522, 4
        %v6014 = vrot.slane %v5522, 6
        %v6015 = vrot.slane %v5523, 2
        %v6016 = vrot.slane %v5523, 4
        %v6017 = vrot.slane %v5523, 6
        %v6018 = vrot.slane %v5524, 2
        %v6019 = vrot.slane %v5524, 4
        %v6020 = vrot.slane %v5524, 6
        %v6021 = vrot.slane %v5525, 2
        %v6022 = vrot.slane %v5525, 4
        %v6023 = vrot.slane %v5525, 6
        %v6024 = vrot.slane %v5526, 2
        %v6025 = vrot.slane %v5526, 4
        %v6026 = vrot.slane %v5526, 6
        %v6027 = vrot.slane %v5527, 2
        %v6028 = vrot.slane %v5527, 4
        %v6029 = vrot.slane %v5527, 6
        %v6030 = vrot.slane %v5528, 2
        %v6031 = vrot.slane %v5528, 4
        %v6032 = vrot.slane %v5528, 6
        %v6033 = vrot.slane %v5529, 2
        %v6034 = vrot.slane %v5529, 4
        %v6035 = vrot.slane %v5529, 6
        %v6036 = vrot.slane %v5530, 2
        %v6037 = vrot.slane %v5530, 4
        %v6038 = vrot.slane %v5530, 6
        %v6039 = vrot.slane %v5531, 2
        %v6040 = vrot.slane %v5531, 4
        %v6041 = vrot.slane %v5531, 6
        %v6042 = vrot.slane %v5532, 2
        %v6043 = vrot.slane %v5532, 4
        %v6044 = vrot.slane %v5532, 6
        %v6045 = vrot.slane %v5533, 2
        %v6046 = vrot.slane %v5533, 4
        %v6047 = vrot.slane %v5533, 6
        %v6048 = vrot.slane %v5534, 2
        %v6049 = vrot.slane %v5534, 4
        %v6050 = vrot.slane %v5534, 6
        %v6051 = vrot.slane %v5535, 2
        %v6052 = vrot.slane %v5535, 4
        %v6053 = vrot.slane %v5535, 6
        %v6054 = vrot.slane %v5536, 2
        %v6055 = vrot.slane %v5536, 4
        %v6056 = vrot.slane %v5536, 6
        %v6057 = vrot.slane %v5537, 2
        %v6058 = vrot.slane %v5537, 4
        %v6059 = vrot.slane %v5537, 6
        %v6060 = vrot.slane %v5538, 2
        %v6061 = vrot.slane %v5538, 4
        %v6062 = vrot.slane %v5538, 6
        %v6063 = vrot.slane %v5539, 2
        %v6064 = vrot.slane %v5539, 4
        %v6065 = vrot.slane %v5539, 6
        %v6066 = vrot.slane %v5540, 2
        %v6067 = vrot.slane %v5540, 4
        %v6068 = vrot.slane %v5540, 6
        %v6069 = vrot.slane %v5541, 2
        %v6070 = vrot.slane %v5541, 4
        %v6071 = vrot.slane %v5541, 6
        %v6072 = vrot.slane %v5542, 2
        %v6073 = vrot.slane %v5542, 4
        %v6074 = vrot.slane %v5542, 6
        %v6075 = vrot.slane %v5543, 2
        %v6076 = vrot.slane %v5543, 4
        %v6077 = vrot.slane %v5543, 6
        %v6078 = vrot.slane %v5544, 2
        %v6079 = vrot.slane %v5544, 4
        %v6080 = vrot.slane %v5544, 6
        %v6081 = vrot.slane %v5545, 2
        %v6082 = vrot.slane %v5545, 4
        %v6083 = vrot.slane %v5545, 6
        %v6084 = vrot.slane %v5546, 2
        %v6085 = vrot.slane %v5546, 4
        %v6086 = vrot.slane %v5546, 6
        %v6087 = vrot.slane %v5547, 2
        %v6088 = vrot.slane %v5547, 4
        %v6089 = vrot.slane %v5547, 6
        %v6090 = vrot.slane %v5548, 2
        %v6091 = vrot.slane %v5548, 4
        %v6092 = vrot.slane %v5548, 6
        %v6093 = vrot.slane %v5549, 2
        %v6094 = vrot.slane %v5549, 4
        %v6095 = vrot.slane %v5549, 6
        %v6096 = vrot.slane %v5550, 2
        %v6097 = vrot.slane %v5550, 4
        %v6098 = vrot.slane %v5550, 6
        %v6099 = vrot.slane %v5551, 2
        %v6100 = vrot.slane %v5551, 4
        %v6101 = vrot.slane %v5551, 6
        %v6102 = vrot.slane %v5552, 2
        %v6103 = vrot.slane %v5552, 4
        %v6104 = vrot.slane %v5552, 6
        %v6105 = vrot.slane %v5553, 2
        %v6106 = vrot.slane %v5553, 4
        %v6107 = vrot.slane %v5553, 6
        %v6108 = vrot.slane %v5554, 2
        %v6109 = vrot.slane %v5554, 4
        %v6110 = vrot.slane %v5554, 6
        %v6111 = vrot.slane %v5555, 2
        %v6112 = vrot.slane %v5555, 4
        %v6113 = vrot.slane %v5555, 6
        %v6114 = vrot.slane %v5556, 2
        %v6115 = vrot.slane %v5556, 4
        %v6116 = vrot.slane %v5556, 6
        %v6117 = vrot.slane %v5557, 2
        %v6118 = vrot.slane %v5557, 4
        %v6119 = vrot.slane %v5557, 6
        %v6120 = vrot.slane %v5558, 2
        %v6121 = vrot.slane %v5558, 4
        %v6122 = vrot.slane %v5558, 6
        %v6123 = vrot.slane %v5559, 2
        %v6124 = vrot.slane %v5559, 4
        %v6125 = vrot.slane %v5559, 6
        %v6126 = vrot.slane %v5560, 2
        %v6127 = vrot.slane %v5560, 4
        %v6128 = vrot.slane %v5560, 6
        %v6129 = vrot.slane %v5561, 2
        %v6130 = vrot.slane %v5561, 4
        %v6131 = vrot.slane %v5561, 6
        %v6132 = vrot.slane %v5562, 2
        %v6133 = vrot.slane %v5562, 4
        %v6134 = vrot.slane %v5562, 6
        %v6135 = vrot.slane %v5563, 2
        %v6136 = vrot.slane %v5563, 4
        %v6137 = vrot.slane %v5563, 6
        %v6138 = vrot.slane %v5564, 2
        %v6139 = vrot.slane %v5564, 4
        %v6140 = vrot.slane %v5564, 6
        %v6573 = vmax.f32 %v5421, %v5711
        %v6574 = vmax.f32 %v5709, %v5422
        %v6575 = vmax.f32 %v5710, %v5712
        %v6576 = vmax.f32 %v5713, %v5715
        %v6577 = vmax.f32 %v5714, %v5716
        %v6578 = vmax.f32 %v5423, %v5717
        %v6579 = vmax.f32 %v5424, %v5720
        %v6580 = vmax.f32 %v5718, %v5425
        %v6581 = vmax.f32 %v5719, %v5721
        %v6582 = vmax.f32 %v5722, %v5724
        %v6583 = vmax.f32 %v5723, %v5725
        %v6584 = vmax.f32 %v5426, %v5726
        %v6585 = vmax.f32 %v5427, %v5729
        %v6586 = vmax.f32 %v5727, %v5428
        %v6587 = vmax.f32 %v5728, %v5730
        %v6588 = vmax.f32 %v5731, %v5733
        %v6589 = vmax.f32 %v5732, %v5734
        %v6590 = vmax.f32 %v5429, %v5735
        %v6591 = vmax.f32 %v5430, %v5738
        %v6592 = vmax.f32 %v5736, %v5431
        %v6593 = vmax.f32 %v5737, %v5739
        %v6594 = vmax.f32 %v5740, %v5742
        %v6595 = vmax.f32 %v5741, %v5743
        %v6596 = vmax.f32 %v5432, %v5744
        %v6597 = vmax.f32 %v5433, %v5747
        %v6598 = vmax.f32 %v5745, %v5434
        %v6599 = vmax.f32 %v5746, %v5748
        %v6600 = vmax.f32 %v5749, %v5751
        %v6601 = vmax.f32 %v5750, %v5752
        %v6602 = vmax.f32 %v5435, %v5753
        %v6603 = vmax.f32 %v5436, %v5756
        %v6604 = vmax.f32 %v5754, %v5437
        %v6605 = vmax.f32 %v5755, %v5757
        %v6606 = vmax.f32 %v5758, %v5760
        %v6607 = vmax.f32 %v5759, %v5761
        %v6608 = vmax.f32 %v5438, %v5762
        %v6609 = vmax.f32 %v5439, %v5765
        %v6610 = vmax.f32 %v5763, %v5440
        %v6611 = vmax.f32 %v5764, %v5766
        %v6612 = vmax.f32 %v5767, %v5769
        %v6613 = vmax.f32 %v5768, %v5770
        %v6614 = vmax.f32 %v5441, %v5771
        %v6615 = vmax.f32 %v5442, %v5774
        %v6616 = vmax.f32 %v5772, %v5443
        %v6617 = vmax.f32 %v5773, %v5775
        %v6618 = vmax.f32 %v5776, %v5778
        %v6619 = vmax.f32 %v5777, %v5779
        %v6620 = vmax.f32 %v5444, %v5780
        %v6621 = vmax.f32 %v5445, %v5783
        %v6622 = vmax.f32 %v5781, %v5446
        %v6623 = vmax.f32 %v5782, %v5784
        %v6624 = vmax.f32 %v5785, %v5787
        %v6625 = vmax.f32 %v5786, %v5788
        %v6626 = vmax.f32 %v5447, %v5789
        %v6627 = vmax.f32 %v5448, %v5792
        %v6628 = vmax.f32 %v5790, %v5449
        %v6629 = vmax.f32 %v5791, %v5793
        %v6630 = vmax.f32 %v5794, %v5796
        %v6631 = vmax.f32 %v5795, %v5797
        %v6632 = vmax.f32 %v5450, %v5798
        %v6633 = vmax.f32 %v5451, %v5801
        %v6634 = vmax.f32 %v5799, %v5452
        %v6635 = vmax.f32 %v5800, %v5802
        %v6636 = vmax.f32 %v5803, %v5805
        %v6637 = vmax.f32 %v5804, %v5806
        %v6638 = vmax.f32 %v5453, %v5807
        %v6639 = vmax.f32 %v5454, %v5810
        %v6640 = vmax.f32 %v5808, %v5455
        %v6641 = vmax.f32 %v5809, %v5811
        %v6642 = vmax.f32 %v5812, %v5814
        %v6643 = vmax.f32 %v5813, %v5815
        %v6644 = vmax.f32 %v5456, %v5816
        %v6645 = vmax.f32 %v5457, %v5819
        %v6646 = vmax.f32 %v5817, %v5458
        %v6647 = vmax.f32 %v5818, %v5820
        %v6648 = vmax.f32 %v5821, %v5823
        %v6649 = vmax.f32 %v5822, %v5824
        %v6650 = vmax.f32 %v5459, %v5825
        %v6651 = vmax.f32 %v5460, %v5828
        %v6652 = vmax.f32 %v5826, %v5461
        %v6653 = vmax.f32 %v5827, %v5829
        %v6654 = vmax.f32 %v5830, %v5832
        %v6655 = vmax.f32 %v5831, %v5833
        %v6656 = vmax.f32 %v5462, %v5834
        %v6657 = vmax.f32 %v5463, %v5837
        %v6658 = vmax.f32 %v5835, %v5464
        %v6659 = vmax.f32 %v5836, %v5838
        %v6660 = vmax.f32 %v5839, %v5841
        %v6661 = vmax.f32 %v5840, %v5842
        %v6662 = vmax.f32 %v5465, %v5843
        %v6663 = vmax.f32 %v5466, %v5846
        %v6664 = vmax.f32 %v5844, %v5467
        %v6665 = vmax.f32 %v5845, %v5847
        %v6666 = vmax.f32 %v5848, %v5850
        %v6667 = vmax.f32 %v5849, %v5851
        %v6668 = vmax.f32 %v5468, %v5852
        %v6669 = vmax.f32 %v5469, %v5855
        %v6670 = vmax.f32 %v5853, %v5470
        %v6671 = vmax.f32 %v5854, %v5856
        %v6672 = vmax.f32 %v5857, %v5859
        %v6673 = vmax.f32 %v5858, %v5860
        %v6674 = vmax.f32 %v5471, %v5861
        %v6675 = vmax.f32 %v5472, %v5864
        %v6676 = vmax.f32 %v5862, %v5473
        %v6677 = vmax.f32 %v5863, %v5865
        %v6678 = vmax.f32 %v5866, %v5868
        %v6679 = vmax.f32 %v5867, %v5869
        %v6680 = vmax.f32 %v5474, %v5870
        %v6681 = vmax.f32 %v5475, %v5873
        %v6682 = vmax.f32 %v5871, %v5476
        %v6683 = vmax.f32 %v5872, %v5874
        %v6684 = vmax.f32 %v5875, %v5877
        %v6685 = vmax.f32 %v5876, %v5878
        %v6686 = vmax.f32 %v5477, %v5879
        %v6687 = vmax.f32 %v5478, %v5882
        %v6688 = vmax.f32 %v5880, %v5479
        %v6689 = vmax.f32 %v5881, %v5883
        %v6690 = vmax.f32 %v5884, %v5886
        %v6691 = vmax.f32 %v5885, %v5887
        %v6692 = vmax.f32 %v5480, %v5888
        %v6693 = vmax.f32 %v5481, %v5891
        %v6694 = vmax.f32 %v5889, %v5482
        %v6695 = vmax.f32 %v5890, %v5892
        %v6696 = vmax.f32 %v5893, %v5895
        %v6697 = vmax.f32 %v5894, %v5896
        %v6698 = vmax.f32 %v5483, %v5897
        %v6699 = vmax.f32 %v5484, %v5900
        %v6700 = vmax.f32 %v5898, %v5485
        %v6701 = vmax.f32 %v5899, %v5901
        %v6702 = vmax.f32 %v5902, %v5904
        %v6703 = vmax.f32 %v5903, %v5905
        %v6704 = vmax.f32 %v5486, %v5906
        %v6705 = vmax.f32 %v5487, %v5909
        %v6706 = vmax.f32 %v5907, %v5488
        %v6707 = vmax.f32 %v5908, %v5910
        %v6708 = vmax.f32 %v5911, %v5913
        %v6709 = vmax.f32 %v5912, %v5914
        %v6710 = vmax.f32 %v5489, %v5915
        %v6711 = vmax.f32 %v5490, %v5918
        %v6712 = vmax.f32 %v5916, %v5491
        %v6713 = vmax.f32 %v5917, %v5919
        %v6714 = vmax.f32 %v5920, %v5922
        %v6715 = vmax.f32 %v5921, %v5923
        %v6716 = vmax.f32 %v5492, %v5924
        %v6717 = vmax.f32 %v5493, %v5927
        %v6718 = vmax.f32 %v5925, %v5494
        %v6719 = vmax.f32 %v5926, %v5928
        %v6720 = vmax.f32 %v5929, %v5931
        %v6721 = vmax.f32 %v5930, %v5932
        %v6722 = vmax.f32 %v5495, %v5933
        %v6723 = vmax.f32 %v5496, %v5936
        %v6724 = vmax.f32 %v5934, %v5497
        %v6725 = vmax.f32 %v5935, %v5937
        %v6726 = vmax.f32 %v5938, %v5940
        %v6727 = vmax.f32 %v5939, %v5941
        %v6728 = vmax.f32 %v5498, %v5942
        %v6729 = vmax.f32 %v5499, %v5945
        %v6730 = vmax.f32 %v5943, %v5500
        %v6731 = vmax.f32 %v5944, %v5946
        %v6732 = vmax.f32 %v5947, %v5949
        %v6733 = vmax.f32 %v5948, %v5950
        %v6734 = vmax.f32 %v5501, %v5951
        %v6735 = vmax.f32 %v5502, %v5954
        %v6736 = vmax.f32 %v5952, %v5503
        %v6737 = vmax.f32 %v5953, %v5955
        %v6738 = vmax.f32 %v5956, %v5958
        %v6739 = vmax.f32 %v5957, %v5959
        %v6740 = vmax.f32 %v5504, %v5960
        %v6741 = vmax.f32 %v5505, %v5963
        %v6742 = vmax.f32 %v5961, %v5506
        %v6743 = vmax.f32 %v5962, %v5964
        %v6744 = vmax.f32 %v5965, %v5967
        %v6745 = vmax.f32 %v5966, %v5968
        %v6746 = vmax.f32 %v5507, %v5969
        %v6747 = vmax.f32 %v5508, %v5972
        %v6748 = vmax.f32 %v5970, %v5509
        %v6749 = vmax.f32 %v5971, %v5973
        %v6750 = vmax.f32 %v5974, %v5976
        %v6751 = vmax.f32 %v5975, %v5977
        %v6752 = vmax.f32 %v5510, %v5978
        %v6753 = vmax.f32 %v5511, %v5981
        %v6754 = vmax.f32 %v5979, %v5512
        %v6755 = vmax.f32 %v5980, %v5982
        %v6756 = vmax.f32 %v5983, %v5985
        %v6757 = vmax.f32 %v5984, %v5986
        %v6758 = vmax.f32 %v5513, %v5987
        %v6759 = vmax.f32 %v5514, %v5990
        %v6760 = vmax.f32 %v5988, %v5515
        %v6761 = vmax.f32 %v5989, %v5991
        %v6762 = vmax.f32 %v5992, %v5994
        %v6763 = vmax.f32 %v5993, %v5995
        %v6764 = vmax.f32 %v5516, %v5996
        %v6765 = vmax.f32 %v5517, %v5999
        %v6766 = vmax.f32 %v5997, %v5518
        %v6767 = vmax.f32 %v5998, %v6000
        %v6768 = vmax.f32 %v6001, %v6003
        %v6769 = vmax.f32 %v6002, %v6004
        %v6770 = vmax.f32 %v5519, %v6005
        %v6771 = vmax.f32 %v5520, %v6008
        %v6772 = vmax.f32 %v6006, %v5521
        %v6773 = vmax.f32 %v6007, %v6009
        %v6774 = vmax.f32 %v6010, %v6012
        %v6775 = vmax.f32 %v6011, %v6013
        %v6776 = vmax.f32 %v5522, %v6014
        %v6777 = vmax.f32 %v5523, %v6017
        %v6778 = vmax.f32 %v6015, %v5524
        %v6779 = vmax.f32 %v6016, %v6018
        %v6780 = vmax.f32 %v6019, %v6021
        %v6781 = vmax.f32 %v6020, %v6022
        %v6782 = vmax.f32 %v5525, %v6023
        %v6783 = vmax.f32 %v5526, %v6026
        %v6784 = vmax.f32 %v6024, %v5527
        %v6785 = vmax.f32 %v6025, %v6027
        %v6786 = vmax.f32 %v6028, %v6030
        %v6787 = vmax.f32 %v6029, %v6031
        %v6788 = vmax.f32 %v5528, %v6032
        %v6789 = vmax.f32 %v5529, %v6035
        %v6790 = vmax.f32 %v6033, %v5530
        %v6791 = vmax.f32 %v6034, %v6036
        %v6792 = vmax.f32 %v6037, %v6039
        %v6793 = vmax.f32 %v6038, %v6040
        %v6794 = vmax.f32 %v5531, %v6041
        %v6795 = vmax.f32 %v5532, %v6044
        %v6796 = vmax.f32 %v6042, %v5533
        %v6797 = vmax.f32 %v6043, %v6045
        %v6798 = vmax.f32 %v6046, %v6048
        %v6799 = vmax.f32 %v6047, %v6049
        %v6800 = vmax.f32 %v5534, %v6050
        %v6801 = vmax.f32 %v5535, %v6053
        %v6802 = vmax.f32 %v6051, %v5536
        %v6803 = vmax.f32 %v6052, %v6054
        %v6804 = vmax.f32 %v6055, %v6057
        %v6805 = vmax.f32 %v6056, %v6058
        %v6806 = vmax.f32 %v5537, %v6059
        %v6807 = vmax.f32 %v5538, %v6062
        %v6808 = vmax.f32 %v6060, %v5539
        %v6809 = vmax.f32 %v6061, %v6063
        %v6810 = vmax.f32 %v6064, %v6066
        %v6811 = vmax.f32 %v6065, %v6067
        %v6812 = vmax.f32 %v5540, %v6068
        %v6813 = vmax.f32 %v5541, %v6071
        %v6814 = vmax.f32 %v6069, %v5542
        %v6815 = vmax.f32 %v6070, %v6072
        %v6816 = vmax.f32 %v6073, %v6075
        %v6817 = vmax.f32 %v6074, %v6076
        %v6818 = vmax.f32 %v5543, %v6077
        %v6819 = vmax.f32 %v5544, %v6080
        %v6820 = vmax.f32 %v6078, %v5545
        %v6821 = vmax.f32 %v6079, %v6081
        %v6822 = vmax.f32 %v6082, %v6084
        %v6823 = vmax.f32 %v6083, %v6085
        %v6824 = vmax.f32 %v5546, %v6086
        %v6825 = vmax.f32 %v5547, %v6089
        %v6826 = vmax.f32 %v6087, %v5548
        %v6827 = vmax.f32 %v6088, %v6090
        %v6828 = vmax.f32 %v6091, %v6093
        %v6829 = vmax.f32 %v6092, %v6094
        %v6830 = vmax.f32 %v5549, %v6095
        %v6831 = vmax.f32 %v5550, %v6098
        %v6832 = vmax.f32 %v6096, %v5551
        %v6833 = vmax.f32 %v6097, %v6099
        %v6834 = vmax.f32 %v6100, %v6102
        %v6835 = vmax.f32 %v6101, %v6103
        %v6836 = vmax.f32 %v5552, %v6104
        %v6837 = vmax.f32 %v5553, %v6107
        %v6838 = vmax.f32 %v6105, %v5554
        %v6839 = vmax.f32 %v6106, %v6108
        %v6840 = vmax.f32 %v6109, %v6111
        %v6841 = vmax.f32 %v6110, %v6112
        %v6842 = vmax.f32 %v5555, %v6113
        %v6843 = vmax.f32 %v5556, %v6116
        %v6844 = vmax.f32 %v6114, %v5557
        %v6845 = vmax.f32 %v6115, %v6117
        %v6846 = vmax.f32 %v6118, %v6120
        %v6847 = vmax.f32 %v6119, %v6121
        %v6848 = vmax.f32 %v5558, %v6122
        %v6849 = vmax.f32 %v5559, %v6125
        %v6850 = vmax.f32 %v6123, %v5560
        %v6851 = vmax.f32 %v6124, %v6126
        %v6852 = vmax.f32 %v6127, %v6129
        %v6853 = vmax.f32 %v6128, %v6130
        %v6854 = vmax.f32 %v5561, %v6131
        %v6855 = vmax.f32 %v5562, %v6134
        %v6856 = vmax.f32 %v6132, %v5563
        %v6857 = vmax.f32 %v6133, %v6135
        %v6858 = vmax.f32 %v6136, %v6138
        %v6859 = vmax.f32 %v6137, %v6139
        %v6860 = vmax.f32 %v5564, %v6140
        %v7149 = vrot.slane %v6573, 7
        %v7150 = vrot.slane %v7149, 2
        %v7151 = vrot.slane %v6574, 7
        %v7152 = vrot.slane %v7151, 2
        %v7153 = vrot.slane %v6575, 7
        %v7154 = vrot.slane %v7153, 2
        %v7155 = vrot.slane %v6576, 7
        %v7156 = vrot.slane %v7155, 2
        %v7157 = vrot.slane %v6577, 7
        %v7158 = vrot.slane %v7157, 2
        %v7159 = vrot.slane %v6578, 7
        %v7160 = vrot.slane %v7159, 2
        %v7161 = vrot.slane %v6579, 7
        %v7162 = vrot.slane %v7161, 2
        %v7163 = vrot.slane %v6580, 7
        %v7164 = vrot.slane %v7163, 2
        %v7165 = vrot.slane %v6581, 7
        %v7166 = vrot.slane %v7165, 2
        %v7167 = vrot.slane %v6582, 7
        %v7168 = vrot.slane %v7167, 2
        %v7169 = vrot.slane %v6583, 7
        %v7170 = vrot.slane %v7169, 2
        %v7171 = vrot.slane %v6584, 7
        %v7172 = vrot.slane %v7171, 2
        %v7173 = vrot.slane %v6585, 7
        %v7174 = vrot.slane %v7173, 2
        %v7175 = vrot.slane %v6586, 7
        %v7176 = vrot.slane %v7175, 2
        %v7177 = vrot.slane %v6587, 7
        %v7178 = vrot.slane %v7177, 2
        %v7179 = vrot.slane %v6588, 7
        %v7180 = vrot.slane %v7179, 2
        %v7181 = vrot.slane %v6589, 7
        %v7182 = vrot.slane %v7181, 2
        %v7183 = vrot.slane %v6590, 7
        %v7184 = vrot.slane %v7183, 2
        %v7185 = vrot.slane %v6591, 7
        %v7186 = vrot.slane %v7185, 2
        %v7187 = vrot.slane %v6592, 7
        %v7188 = vrot.slane %v7187, 2
        %v7189 = vrot.slane %v6593, 7
        %v7190 = vrot.slane %v7189, 2
        %v7191 = vrot.slane %v6594, 7
        %v7192 = vrot.slane %v7191, 2
        %v7193 = vrot.slane %v6595, 7
        %v7194 = vrot.slane %v7193, 2
        %v7195 = vrot.slane %v6596, 7
        %v7196 = vrot.slane %v7195, 2
        %v7197 = vrot.slane %v6597, 7
        %v7198 = vrot.slane %v7197, 2
        %v7199 = vrot.slane %v6598, 7
        %v7200 = vrot.slane %v7199, 2
        %v7201 = vrot.slane %v6599, 7
        %v7202 = vrot.slane %v7201, 2
        %v7203 = vrot.slane %v6600, 7
        %v7204 = vrot.slane %v7203, 2
        %v7205 = vrot.slane %v6601, 7
        %v7206 = vrot.slane %v7205, 2
        %v7207 = vrot.slane %v6602, 7
        %v7208 = vrot.slane %v7207, 2
        %v7209 = vrot.slane %v6603, 7
        %v7210 = vrot.slane %v7209, 2
        %v7211 = vrot.slane %v6604, 7
        %v7212 = vrot.slane %v7211, 2
        %v7213 = vrot.slane %v6605, 7
        %v7214 = vrot.slane %v7213, 2
        %v7215 = vrot.slane %v6606, 7
        %v7216 = vrot.slane %v7215, 2
        %v7217 = vrot.slane %v6607, 7
        %v7218 = vrot.slane %v7217, 2
        %v7219 = vrot.slane %v6608, 7
        %v7220 = vrot.slane %v7219, 2
        %v7221 = vrot.slane %v6609, 7
        %v7222 = vrot.slane %v7221, 2
        %v7223 = vrot.slane %v6610, 7
        %v7224 = vrot.slane %v7223, 2
        %v7225 = vrot.slane %v6611, 7
        %v7226 = vrot.slane %v7225, 2
        %v7227 = vrot.slane %v6612, 7
        %v7228 = vrot.slane %v7227, 2
        %v7229 = vrot.slane %v6613, 7
        %v7230 = vrot.slane %v7229, 2
        %v7231 = vrot.slane %v6614, 7
        %v7232 = vrot.slane %v7231, 2
        %v7233 = vrot.slane %v6615, 7
        %v7234 = vrot.slane %v7233, 2
        %v7235 = vrot.slane %v6616, 7
        %v7236 = vrot.slane %v7235, 2
        %v7237 = vrot.slane %v6617, 7
        %v7238 = vrot.slane %v7237, 2
        %v7239 = vrot.slane %v6618, 7
        %v7240 = vrot.slane %v7239, 2
        %v7241 = vrot.slane %v6619, 7
        %v7242 = vrot.slane %v7241, 2
        %v7243 = vrot.slane %v6620, 7
        %v7244 = vrot.slane %v7243, 2
        %v7245 = vrot.slane %v6621, 7
        %v7246 = vrot.slane %v7245, 2
        %v7247 = vrot.slane %v6622, 7
        %v7248 = vrot.slane %v7247, 2
        %v7249 = vrot.slane %v6623, 7
        %v7250 = vrot.slane %v7249, 2
        %v7251 = vrot.slane %v6624, 7
        %v7252 = vrot.slane %v7251, 2
        %v7253 = vrot.slane %v6625, 7
        %v7254 = vrot.slane %v7253, 2
        %v7255 = vrot.slane %v6626, 7
        %v7256 = vrot.slane %v7255, 2
        %v7257 = vrot.slane %v6627, 7
        %v7258 = vrot.slane %v7257, 2
        %v7259 = vrot.slane %v6628, 7
        %v7260 = vrot.slane %v7259, 2
        %v7261 = vrot.slane %v6629, 7
        %v7262 = vrot.slane %v7261, 2
        %v7263 = vrot.slane %v6630, 7
        %v7264 = vrot.slane %v7263, 2
        %v7265 = vrot.slane %v6631, 7
        %v7266 = vrot.slane %v7265, 2
        %v7267 = vrot.slane %v6632, 7
        %v7268 = vrot.slane %v7267, 2
        %v7269 = vrot.slane %v6633, 7
        %v7270 = vrot.slane %v7269, 2
        %v7271 = vrot.slane %v6634, 7
        %v7272 = vrot.slane %v7271, 2
        %v7273 = vrot.slane %v6635, 7
        %v7274 = vrot.slane %v7273, 2
        %v7275 = vrot.slane %v6636, 7
        %v7276 = vrot.slane %v7275, 2
        %v7277 = vrot.slane %v6637, 7
        %v7278 = vrot.slane %v7277, 2
        %v7279 = vrot.slane %v6638, 7
        %v7280 = vrot.slane %v7279, 2
        %v7281 = vrot.slane %v6639, 7
        %v7282 = vrot.slane %v7281, 2
        %v7283 = vrot.slane %v6640, 7
        %v7284 = vrot.slane %v7283, 2
        %v7285 = vrot.slane %v6641, 7
        %v7286 = vrot.slane %v7285, 2
        %v7287 = vrot.slane %v6642, 7
        %v7288 = vrot.slane %v7287, 2
        %v7289 = vrot.slane %v6643, 7
        %v7290 = vrot.slane %v7289, 2
        %v7291 = vrot.slane %v6644, 7
        %v7292 = vrot.slane %v7291, 2
        %v7293 = vrot.slane %v6645, 7
        %v7294 = vrot.slane %v7293, 2
        %v7295 = vrot.slane %v6646, 7
        %v7296 = vrot.slane %v7295, 2
        %v7297 = vrot.slane %v6647, 7
        %v7298 = vrot.slane %v7297, 2
        %v7299 = vrot.slane %v6648, 7
        %v7300 = vrot.slane %v7299, 2
        %v7301 = vrot.slane %v6649, 7
        %v7302 = vrot.slane %v7301, 2
        %v7303 = vrot.slane %v6650, 7
        %v7304 = vrot.slane %v7303, 2
        %v7305 = vrot.slane %v6651, 7
        %v7306 = vrot.slane %v7305, 2
        %v7307 = vrot.slane %v6652, 7
        %v7308 = vrot.slane %v7307, 2
        %v7309 = vrot.slane %v6653, 7
        %v7310 = vrot.slane %v7309, 2
        %v7311 = vrot.slane %v6654, 7
        %v7312 = vrot.slane %v7311, 2
        %v7313 = vrot.slane %v6655, 7
        %v7314 = vrot.slane %v7313, 2
        %v7315 = vrot.slane %v6656, 7
        %v7316 = vrot.slane %v7315, 2
        %v7317 = vrot.slane %v6657, 7
        %v7318 = vrot.slane %v7317, 2
        %v7319 = vrot.slane %v6658, 7
        %v7320 = vrot.slane %v7319, 2
        %v7321 = vrot.slane %v6659, 7
        %v7322 = vrot.slane %v7321, 2
        %v7323 = vrot.slane %v6660, 7
        %v7324 = vrot.slane %v7323, 2
        %v7325 = vrot.slane %v6661, 7
        %v7326 = vrot.slane %v7325, 2
        %v7327 = vrot.slane %v6662, 7
        %v7328 = vrot.slane %v7327, 2
        %v7329 = vrot.slane %v6663, 7
        %v7330 = vrot.slane %v7329, 2
        %v7331 = vrot.slane %v6664, 7
        %v7332 = vrot.slane %v7331, 2
        %v7333 = vrot.slane %v6665, 7
        %v7334 = vrot.slane %v7333, 2
        %v7335 = vrot.slane %v6666, 7
        %v7336 = vrot.slane %v7335, 2
        %v7337 = vrot.slane %v6667, 7
        %v7338 = vrot.slane %v7337, 2
        %v7339 = vrot.slane %v6668, 7
        %v7340 = vrot.slane %v7339, 2
        %v7341 = vrot.slane %v6669, 7
        %v7342 = vrot.slane %v7341, 2
        %v7343 = vrot.slane %v6670, 7
        %v7344 = vrot.slane %v7343, 2
        %v7345 = vrot.slane %v6671, 7
        %v7346 = vrot.slane %v7345, 2
        %v7347 = vrot.slane %v6672, 7
        %v7348 = vrot.slane %v7347, 2
        %v7349 = vrot.slane %v6673, 7
        %v7350 = vrot.slane %v7349, 2
        %v7351 = vrot.slane %v6674, 7
        %v7352 = vrot.slane %v7351, 2
        %v7353 = vrot.slane %v6675, 7
        %v7354 = vrot.slane %v7353, 2
        %v7355 = vrot.slane %v6676, 7
        %v7356 = vrot.slane %v7355, 2
        %v7357 = vrot.slane %v6677, 7
        %v7358 = vrot.slane %v7357, 2
        %v7359 = vrot.slane %v6678, 7
        %v7360 = vrot.slane %v7359, 2
        %v7361 = vrot.slane %v6679, 7
        %v7362 = vrot.slane %v7361, 2
        %v7363 = vrot.slane %v6680, 7
        %v7364 = vrot.slane %v7363, 2
        %v7365 = vrot.slane %v6681, 7
        %v7366 = vrot.slane %v7365, 2
        %v7367 = vrot.slane %v6682, 7
        %v7368 = vrot.slane %v7367, 2
        %v7369 = vrot.slane %v6683, 7
        %v7370 = vrot.slane %v7369, 2
        %v7371 = vrot.slane %v6684, 7
        %v7372 = vrot.slane %v7371, 2
        %v7373 = vrot.slane %v6685, 7
        %v7374 = vrot.slane %v7373, 2
        %v7375 = vrot.slane %v6686, 7
        %v7376 = vrot.slane %v7375, 2
        %v7377 = vrot.slane %v6687, 7
        %v7378 = vrot.slane %v7377, 2
        %v7379 = vrot.slane %v6688, 7
        %v7380 = vrot.slane %v7379, 2
        %v7381 = vrot.slane %v6689, 7
        %v7382 = vrot.slane %v7381, 2
        %v7383 = vrot.slane %v6690, 7
        %v7384 = vrot.slane %v7383, 2
        %v7385 = vrot.slane %v6691, 7
        %v7386 = vrot.slane %v7385, 2
        %v7387 = vrot.slane %v6692, 7
        %v7388 = vrot.slane %v7387, 2
        %v7389 = vrot.slane %v6693, 7
        %v7390 = vrot.slane %v7389, 2
        %v7391 = vrot.slane %v6694, 7
        %v7392 = vrot.slane %v7391, 2
        %v7393 = vrot.slane %v6695, 7
        %v7394 = vrot.slane %v7393, 2
        %v7395 = vrot.slane %v6696, 7
        %v7396 = vrot.slane %v7395, 2
        %v7397 = vrot.slane %v6697, 7
        %v7398 = vrot.slane %v7397, 2
        %v7399 = vrot.slane %v6698, 7
        %v7400 = vrot.slane %v7399, 2
        %v7401 = vrot.slane %v6699, 7
        %v7402 = vrot.slane %v7401, 2
        %v7403 = vrot.slane %v6700, 7
        %v7404 = vrot.slane %v7403, 2
        %v7405 = vrot.slane %v6701, 7
        %v7406 = vrot.slane %v7405, 2
        %v7407 = vrot.slane %v6702, 7
        %v7408 = vrot.slane %v7407, 2
        %v7409 = vrot.slane %v6703, 7
        %v7410 = vrot.slane %v7409, 2
        %v7411 = vrot.slane %v6704, 7
        %v7412 = vrot.slane %v7411, 2
        %v7413 = vrot.slane %v6705, 7
        %v7414 = vrot.slane %v7413, 2
        %v7415 = vrot.slane %v6706, 7
        %v7416 = vrot.slane %v7415, 2
        %v7417 = vrot.slane %v6707, 7
        %v7418 = vrot.slane %v7417, 2
        %v7419 = vrot.slane %v6708, 7
        %v7420 = vrot.slane %v7419, 2
        %v7421 = vrot.slane %v6709, 7
        %v7422 = vrot.slane %v7421, 2
        %v7423 = vrot.slane %v6710, 7
        %v7424 = vrot.slane %v7423, 2
        %v7425 = vrot.slane %v6711, 7
        %v7426 = vrot.slane %v7425, 2
        %v7427 = vrot.slane %v6712, 7
        %v7428 = vrot.slane %v7427, 2
        %v7429 = vrot.slane %v6713, 7
        %v7430 = vrot.slane %v7429, 2
        %v7431 = vrot.slane %v6714, 7
        %v7432 = vrot.slane %v7431, 2
        %v7433 = vrot.slane %v6715, 7
        %v7434 = vrot.slane %v7433, 2
        %v7435 = vrot.slane %v6716, 7
        %v7436 = vrot.slane %v7435, 2
        %v7437 = vrot.slane %v6717, 7
        %v7438 = vrot.slane %v7437, 2
        %v7439 = vrot.slane %v6718, 7
        %v7440 = vrot.slane %v7439, 2
        %v7441 = vrot.slane %v6719, 7
        %v7442 = vrot.slane %v7441, 2
        %v7443 = vrot.slane %v6720, 7
        %v7444 = vrot.slane %v7443, 2
        %v7445 = vrot.slane %v6721, 7
        %v7446 = vrot.slane %v7445, 2
        %v7447 = vrot.slane %v6722, 7
        %v7448 = vrot.slane %v7447, 2
        %v7449 = vrot.slane %v6723, 7
        %v7450 = vrot.slane %v7449, 2
        %v7451 = vrot.slane %v6724, 7
        %v7452 = vrot.slane %v7451, 2
        %v7453 = vrot.slane %v6725, 7
        %v7454 = vrot.slane %v7453, 2
        %v7455 = vrot.slane %v6726, 7
        %v7456 = vrot.slane %v7455, 2
        %v7457 = vrot.slane %v6727, 7
        %v7458 = vrot.slane %v7457, 2
        %v7459 = vrot.slane %v6728, 7
        %v7460 = vrot.slane %v7459, 2
        %v7461 = vrot.slane %v6729, 7
        %v7462 = vrot.slane %v7461, 2
        %v7463 = vrot.slane %v6730, 7
        %v7464 = vrot.slane %v7463, 2
        %v7465 = vrot.slane %v6731, 7
        %v7466 = vrot.slane %v7465, 2
        %v7467 = vrot.slane %v6732, 7
        %v7468 = vrot.slane %v7467, 2
        %v7469 = vrot.slane %v6733, 7
        %v7470 = vrot.slane %v7469, 2
        %v7471 = vrot.slane %v6734, 7
        %v7472 = vrot.slane %v7471, 2
        %v7473 = vrot.slane %v6735, 7
        %v7474 = vrot.slane %v7473, 2
        %v7475 = vrot.slane %v6736, 7
        %v7476 = vrot.slane %v7475, 2
        %v7477 = vrot.slane %v6737, 7
        %v7478 = vrot.slane %v7477, 2
        %v7479 = vrot.slane %v6738, 7
        %v7480 = vrot.slane %v7479, 2
        %v7481 = vrot.slane %v6739, 7
        %v7482 = vrot.slane %v7481, 2
        %v7483 = vrot.slane %v6740, 7
        %v7484 = vrot.slane %v7483, 2
        %v7485 = vrot.slane %v6741, 7
        %v7486 = vrot.slane %v7485, 2
        %v7487 = vrot.slane %v6742, 7
        %v7488 = vrot.slane %v7487, 2
        %v7489 = vrot.slane %v6743, 7
        %v7490 = vrot.slane %v7489, 2
        %v7491 = vrot.slane %v6744, 7
        %v7492 = vrot.slane %v7491, 2
        %v7493 = vrot.slane %v6745, 7
        %v7494 = vrot.slane %v7493, 2
        %v7495 = vrot.slane %v6746, 7
        %v7496 = vrot.slane %v7495, 2
        %v7497 = vrot.slane %v6747, 7
        %v7498 = vrot.slane %v7497, 2
        %v7499 = vrot.slane %v6748, 7
        %v7500 = vrot.slane %v7499, 2
        %v7501 = vrot.slane %v6749, 7
        %v7502 = vrot.slane %v7501, 2
        %v7503 = vrot.slane %v6750, 7
        %v7504 = vrot.slane %v7503, 2
        %v7505 = vrot.slane %v6751, 7
        %v7506 = vrot.slane %v7505, 2
        %v7507 = vrot.slane %v6752, 7
        %v7508 = vrot.slane %v7507, 2
        %v7509 = vrot.slane %v6753, 7
        %v7510 = vrot.slane %v7509, 2
        %v7511 = vrot.slane %v6754, 7
        %v7512 = vrot.slane %v7511, 2
        %v7513 = vrot.slane %v6755, 7
        %v7514 = vrot.slane %v7513, 2
        %v7515 = vrot.slane %v6756, 7
        %v7516 = vrot.slane %v7515, 2
        %v7517 = vrot.slane %v6757, 7
        %v7518 = vrot.slane %v7517, 2
        %v7519 = vrot.slane %v6758, 7
        %v7520 = vrot.slane %v7519, 2
        %v7521 = vrot.slane %v6759, 7
        %v7522 = vrot.slane %v7521, 2
        %v7523 = vrot.slane %v6760, 7
        %v7524 = vrot.slane %v7523, 2
        %v7525 = vrot.slane %v6761, 7
        %v7526 = vrot.slane %v7525, 2
        %v7527 = vrot.slane %v6762, 7
        %v7528 = vrot.slane %v7527, 2
        %v7529 = vrot.slane %v6763, 7
        %v7530 = vrot.slane %v7529, 2
        %v7531 = vrot.slane %v6764, 7
        %v7532 = vrot.slane %v7531, 2
        %v7533 = vrot.slane %v6765, 7
        %v7534 = vrot.slane %v7533, 2
        %v7535 = vrot.slane %v6766, 7
        %v7536 = vrot.slane %v7535, 2
        %v7537 = vrot.slane %v6767, 7
        %v7538 = vrot.slane %v7537, 2
        %v7539 = vrot.slane %v6768, 7
        %v7540 = vrot.slane %v7539, 2
        %v7541 = vrot.slane %v6769, 7
        %v7542 = vrot.slane %v7541, 2
        %v7543 = vrot.slane %v6770, 7
        %v7544 = vrot.slane %v7543, 2
        %v7545 = vrot.slane %v6771, 7
        %v7546 = vrot.slane %v7545, 2
        %v7547 = vrot.slane %v6772, 7
        %v7548 = vrot.slane %v7547, 2
        %v7549 = vrot.slane %v6773, 7
        %v7550 = vrot.slane %v7549, 2
        %v7551 = vrot.slane %v6774, 7
        %v7552 = vrot.slane %v7551, 2
        %v7553 = vrot.slane %v6775, 7
        %v7554 = vrot.slane %v7553, 2
        %v7555 = vrot.slane %v6776, 7
        %v7556 = vrot.slane %v7555, 2
        %v7557 = vrot.slane %v6777, 7
        %v7558 = vrot.slane %v7557, 2
        %v7559 = vrot.slane %v6778, 7
        %v7560 = vrot.slane %v7559, 2
        %v7561 = vrot.slane %v6779, 7
        %v7562 = vrot.slane %v7561, 2
        %v7563 = vrot.slane %v6780, 7
        %v7564 = vrot.slane %v7563, 2
        %v7565 = vrot.slane %v6781, 7
        %v7566 = vrot.slane %v7565, 2
        %v7567 = vrot.slane %v6782, 7
        %v7568 = vrot.slane %v7567, 2
        %v7569 = vrot.slane %v6783, 7
        %v7570 = vrot.slane %v7569, 2
        %v7571 = vrot.slane %v6784, 7
        %v7572 = vrot.slane %v7571, 2
        %v7573 = vrot.slane %v6785, 7
        %v7574 = vrot.slane %v7573, 2
        %v7575 = vrot.slane %v6786, 7
        %v7576 = vrot.slane %v7575, 2
        %v7577 = vrot.slane %v6787, 7
        %v7578 = vrot.slane %v7577, 2
        %v7579 = vrot.slane %v6788, 7
        %v7580 = vrot.slane %v7579, 2
        %v7581 = vrot.slane %v6789, 7
        %v7582 = vrot.slane %v7581, 2
        %v7583 = vrot.slane %v6790, 7
        %v7584 = vrot.slane %v7583, 2
        %v7585 = vrot.slane %v6791, 7
        %v7586 = vrot.slane %v7585, 2
        %v7587 = vrot.slane %v6792, 7
        %v7588 = vrot.slane %v7587, 2
        %v7589 = vrot.slane %v6793, 7
        %v7590 = vrot.slane %v7589, 2
        %v7591 = vrot.slane %v6794, 7
        %v7592 = vrot.slane %v7591, 2
        %v7593 = vrot.slane %v6795, 7
        %v7594 = vrot.slane %v7593, 2
        %v7595 = vrot.slane %v6796, 7
        %v7596 = vrot.slane %v7595, 2
        %v7597 = vrot.slane %v6797, 7
        %v7598 = vrot.slane %v7597, 2
        %v7599 = vrot.slane %v6798, 7
        %v7600 = vrot.slane %v7599, 2
        %v7601 = vrot.slane %v6799, 7
        %v7602 = vrot.slane %v7601, 2
        %v7603 = vrot.slane %v6800, 7
        %v7604 = vrot.slane %v7603, 2
        %v7605 = vrot.slane %v6801, 7
        %v7606 = vrot.slane %v7605, 2
        %v7607 = vrot.slane %v6802, 7
        %v7608 = vrot.slane %v7607, 2
        %v7609 = vrot.slane %v6803, 7
        %v7610 = vrot.slane %v7609, 2
        %v7611 = vrot.slane %v6804, 7
        %v7612 = vrot.slane %v7611, 2
        %v7613 = vrot.slane %v6805, 7
        %v7614 = vrot.slane %v7613, 2
        %v7615 = vrot.slane %v6806, 7
        %v7616 = vrot.slane %v7615, 2
        %v7617 = vrot.slane %v6807, 7
        %v7618 = vrot.slane %v7617, 2
        %v7619 = vrot.slane %v6808, 7
        %v7620 = vrot.slane %v7619, 2
        %v7621 = vrot.slane %v6809, 7
        %v7622 = vrot.slane %v7621, 2
        %v7623 = vrot.slane %v6810, 7
        %v7624 = vrot.slane %v7623, 2
        %v7625 = vrot.slane %v6811, 7
        %v7626 = vrot.slane %v7625, 2
        %v7627 = vrot.slane %v6812, 7
        %v7628 = vrot.slane %v7627, 2
        %v7629 = vrot.slane %v6813, 7
        %v7630 = vrot.slane %v7629, 2
        %v7631 = vrot.slane %v6814, 7
        %v7632 = vrot.slane %v7631, 2
        %v7633 = vrot.slane %v6815, 7
        %v7634 = vrot.slane %v7633, 2
        %v7635 = vrot.slane %v6816, 7
        %v7636 = vrot.slane %v7635, 2
        %v7637 = vrot.slane %v6817, 7
        %v7638 = vrot.slane %v7637, 2
        %v7639 = vrot.slane %v6818, 7
        %v7640 = vrot.slane %v7639, 2
        %v7641 = vrot.slane %v6819, 7
        %v7642 = vrot.slane %v7641, 2
        %v7643 = vrot.slane %v6820, 7
        %v7644 = vrot.slane %v7643, 2
        %v7645 = vrot.slane %v6821, 7
        %v7646 = vrot.slane %v7645, 2
        %v7647 = vrot.slane %v6822, 7
        %v7648 = vrot.slane %v7647, 2
        %v7649 = vrot.slane %v6823, 7
        %v7650 = vrot.slane %v7649, 2
        %v7651 = vrot.slane %v6824, 7
        %v7652 = vrot.slane %v7651, 2
        %v7653 = vrot.slane %v6825, 7
        %v7654 = vrot.slane %v7653, 2
        %v7655 = vrot.slane %v6826, 7
        %v7656 = vrot.slane %v7655, 2
        %v7657 = vrot.slane %v6827, 7
        %v7658 = vrot.slane %v7657, 2
        %v7659 = vrot.slane %v6828, 7
        %v7660 = vrot.slane %v7659, 2
        %v7661 = vrot.slane %v6829, 7
        %v7662 = vrot.slane %v7661, 2
        %v7663 = vrot.slane %v6830, 7
        %v7664 = vrot.slane %v7663, 2
        %v7665 = vrot.slane %v6831, 7
        %v7666 = vrot.slane %v7665, 2
        %v7667 = vrot.slane %v6832, 7
        %v7668 = vrot.slane %v7667, 2
        %v7669 = vrot.slane %v6833, 7
        %v7670 = vrot.slane %v7669, 2
        %v7671 = vrot.slane %v6834, 7
        %v7672 = vrot.slane %v7671, 2
        %v7673 = vrot.slane %v6835, 7
        %v7674 = vrot.slane %v7673, 2
        %v7675 = vrot.slane %v6836, 7
        %v7676 = vrot.slane %v7675, 2
        %v7677 = vrot.slane %v6837, 7
        %v7678 = vrot.slane %v7677, 2
        %v7679 = vrot.slane %v6838, 7
        %v7680 = vrot.slane %v7679, 2
        %v7681 = vrot.slane %v6839, 7
        %v7682 = vrot.slane %v7681, 2
        %v7683 = vrot.slane %v6840, 7
        %v7684 = vrot.slane %v7683, 2
        %v7685 = vrot.slane %v6841, 7
        %v7686 = vrot.slane %v7685, 2
        %v7687 = vrot.slane %v6842, 7
        %v7688 = vrot.slane %v7687, 2
        %v7689 = vrot.slane %v6843, 7
        %v7690 = vrot.slane %v7689, 2
        %v7691 = vrot.slane %v6844, 7
        %v7692 = vrot.slane %v7691, 2
        %v7693 = vrot.slane %v6845, 7
        %v7694 = vrot.slane %v7693, 2
        %v7695 = vrot.slane %v6846, 7
        %v7696 = vrot.slane %v7695, 2
        %v7697 = vrot.slane %v6847, 7
        %v7698 = vrot.slane %v7697, 2
        %v7699 = vrot.slane %v6848, 7
        %v7700 = vrot.slane %v7699, 2
        %v7701 = vrot.slane %v6849, 7
        %v7702 = vrot.slane %v7701, 2
        %v7703 = vrot.slane %v6850, 7
        %v7704 = vrot.slane %v7703, 2
        %v7705 = vrot.slane %v6851, 7
        %v7706 = vrot.slane %v7705, 2
        %v7707 = vrot.slane %v6852, 7
        %v7708 = vrot.slane %v7707, 2
        %v7709 = vrot.slane %v6853, 7
        %v7710 = vrot.slane %v7709, 2
        %v7711 = vrot.slane %v6854, 7
        %v7712 = vrot.slane %v7711, 2
        %v7713 = vrot.slane %v6855, 7
        %v7714 = vrot.slane %v7713, 2
        %v7715 = vrot.slane %v6856, 7
        %v7716 = vrot.slane %v7715, 2
        %v7717 = vrot.slane %v6857, 7
        %v7718 = vrot.slane %v7717, 2
        %v7719 = vrot.slane %v6858, 7
        %v7720 = vrot.slane %v7719, 2
        %v7721 = vrot.slane %v6859, 7
        %v7722 = vrot.slane %v7721, 2
        %v7723 = vrot.slane %v6860, 7
        %v7724 = vrot.slane %v7723, 2
        %v8013 = vmax.f32 %v6573, %v7150
        %v8014 = vmax.f32 %v6574, %v7152
        %v8015 = vmax.f32 %v6575, %v7154
        %v8016 = vmax.f32 %v6576, %v7156
        %v8017 = vmax.f32 %v6577, %v7158
        %v8018 = vmax.f32 %v6578, %v7160
        %v8019 = vmax.f32 %v6579, %v7162
        %v8020 = vmax.f32 %v6580, %v7164
        %v8021 = vmax.f32 %v6581, %v7166
        %v8022 = vmax.f32 %v6582, %v7168
        %v8023 = vmax.f32 %v6583, %v7170
        %v8024 = vmax.f32 %v6584, %v7172
        %v8025 = vmax.f32 %v6585, %v7174
        %v8026 = vmax.f32 %v6586, %v7176
        %v8027 = vmax.f32 %v6587, %v7178
        %v8028 = vmax.f32 %v6588, %v7180
        %v8029 = vmax.f32 %v6589, %v7182
        %v8030 = vmax.f32 %v6590, %v7184
        %v8031 = vmax.f32 %v6591, %v7186
        %v8032 = vmax.f32 %v6592, %v7188
        %v8033 = vmax.f32 %v6593, %v7190
        %v8034 = vmax.f32 %v6594, %v7192
        %v8035 = vmax.f32 %v6595, %v7194
        %v8036 = vmax.f32 %v6596, %v7196
        %v8037 = vmax.f32 %v6597, %v7198
        %v8038 = vmax.f32 %v6598, %v7200
        %v8039 = vmax.f32 %v6599, %v7202
        %v8040 = vmax.f32 %v6600, %v7204
        %v8041 = vmax.f32 %v6601, %v7206
        %v8042 = vmax.f32 %v6602, %v7208
        %v8043 = vmax.f32 %v6603, %v7210
        %v8044 = vmax.f32 %v6604, %v7212
        %v8045 = vmax.f32 %v6605, %v7214
        %v8046 = vmax.f32 %v6606, %v7216
        %v8047 = vmax.f32 %v6607, %v7218
        %v8048 = vmax.f32 %v6608, %v7220
        %v8049 = vmax.f32 %v6609, %v7222
        %v8050 = vmax.f32 %v6610, %v7224
        %v8051 = vmax.f32 %v6611, %v7226
        %v8052 = vmax.f32 %v6612, %v7228
        %v8053 = vmax.f32 %v6613, %v7230
        %v8054 = vmax.f32 %v6614, %v7232
        %v8055 = vmax.f32 %v6615, %v7234
        %v8056 = vmax.f32 %v6616, %v7236
        %v8057 = vmax.f32 %v6617, %v7238
        %v8058 = vmax.f32 %v6618, %v7240
        %v8059 = vmax.f32 %v6619, %v7242
        %v8060 = vmax.f32 %v6620, %v7244
        %v8061 = vmax.f32 %v6621, %v7246
        %v8062 = vmax.f32 %v6622, %v7248
        %v8063 = vmax.f32 %v6623, %v7250
        %v8064 = vmax.f32 %v6624, %v7252
        %v8065 = vmax.f32 %v6625, %v7254
        %v8066 = vmax.f32 %v6626, %v7256
        %v8067 = vmax.f32 %v6627, %v7258
        %v8068 = vmax.f32 %v6628, %v7260
        %v8069 = vmax.f32 %v6629, %v7262
        %v8070 = vmax.f32 %v6630, %v7264
        %v8071 = vmax.f32 %v6631, %v7266
        %v8072 = vmax.f32 %v6632, %v7268
        %v8073 = vmax.f32 %v6633, %v7270
        %v8074 = vmax.f32 %v6634, %v7272
        %v8075 = vmax.f32 %v6635, %v7274
        %v8076 = vmax.f32 %v6636, %v7276
        %v8077 = vmax.f32 %v6637, %v7278
        %v8078 = vmax.f32 %v6638, %v7280
        %v8079 = vmax.f32 %v6639, %v7282
        %v8080 = vmax.f32 %v6640, %v7284
        %v8081 = vmax.f32 %v6641, %v7286
        %v8082 = vmax.f32 %v6642, %v7288
        %v8083 = vmax.f32 %v6643, %v7290
        %v8084 = vmax.f32 %v6644, %v7292
        %v8085 = vmax.f32 %v6645, %v7294
        %v8086 = vmax.f32 %v6646, %v7296
        %v8087 = vmax.f32 %v6647, %v7298
        %v8088 = vmax.f32 %v6648, %v7300
        %v8089 = vmax.f32 %v6649, %v7302
        %v8090 = vmax.f32 %v6650, %v7304
        %v8091 = vmax.f32 %v6651, %v7306
        %v8092 = vmax.f32 %v6652, %v7308
        %v8093 = vmax.f32 %v6653, %v7310
        %v8094 = vmax.f32 %v6654, %v7312
        %v8095 = vmax.f32 %v6655, %v7314
        %v8096 = vmax.f32 %v6656, %v7316
        %v8097 = vmax.f32 %v6657, %v7318
        %v8098 = vmax.f32 %v6658, %v7320
        %v8099 = vmax.f32 %v6659, %v7322
        %v8100 = vmax.f32 %v6660, %v7324
        %v8101 = vmax.f32 %v6661, %v7326
        %v8102 = vmax.f32 %v6662, %v7328
        %v8103 = vmax.f32 %v6663, %v7330
        %v8104 = vmax.f32 %v6664, %v7332
        %v8105 = vmax.f32 %v6665, %v7334
        %v8106 = vmax.f32 %v6666, %v7336
        %v8107 = vmax.f32 %v6667, %v7338
        %v8108 = vmax.f32 %v6668, %v7340
        %v8109 = vmax.f32 %v6669, %v7342
        %v8110 = vmax.f32 %v6670, %v7344
        %v8111 = vmax.f32 %v6671, %v7346
        %v8112 = vmax.f32 %v6672, %v7348
        %v8113 = vmax.f32 %v6673, %v7350
        %v8114 = vmax.f32 %v6674, %v7352
        %v8115 = vmax.f32 %v6675, %v7354
        %v8116 = vmax.f32 %v6676, %v7356
        %v8117 = vmax.f32 %v6677, %v7358
        %v8118 = vmax.f32 %v6678, %v7360
        %v8119 = vmax.f32 %v6679, %v7362
        %v8120 = vmax.f32 %v6680, %v7364
        %v8121 = vmax.f32 %v6681, %v7366
        %v8122 = vmax.f32 %v6682, %v7368
        %v8123 = vmax.f32 %v6683, %v7370
        %v8124 = vmax.f32 %v6684, %v7372
        %v8125 = vmax.f32 %v6685, %v7374
        %v8126 = vmax.f32 %v6686, %v7376
        %v8127 = vmax.f32 %v6687, %v7378
        %v8128 = vmax.f32 %v6688, %v7380
        %v8129 = vmax.f32 %v6689, %v7382
        %v8130 = vmax.f32 %v6690, %v7384
        %v8131 = vmax.f32 %v6691, %v7386
        %v8132 = vmax.f32 %v6692, %v7388
        %v8133 = vmax.f32 %v6693, %v7390
        %v8134 = vmax.f32 %v6694, %v7392
        %v8135 = vmax.f32 %v6695, %v7394
        %v8136 = vmax.f32 %v6696, %v7396
        %v8137 = vmax.f32 %v6697, %v7398
        %v8138 = vmax.f32 %v6698, %v7400
        %v8139 = vmax.f32 %v6699, %v7402
        %v8140 = vmax.f32 %v6700, %v7404
        %v8141 = vmax.f32 %v6701, %v7406
        %v8142 = vmax.f32 %v6702, %v7408
        %v8143 = vmax.f32 %v6703, %v7410
        %v8144 = vmax.f32 %v6704, %v7412
        %v8145 = vmax.f32 %v6705, %v7414
        %v8146 = vmax.f32 %v6706, %v7416
        %v8147 = vmax.f32 %v6707, %v7418
        %v8148 = vmax.f32 %v6708, %v7420
        %v8149 = vmax.f32 %v6709, %v7422
        %v8150 = vmax.f32 %v6710, %v7424
        %v8151 = vmax.f32 %v6711, %v7426
        %v8152 = vmax.f32 %v6712, %v7428
        %v8153 = vmax.f32 %v6713, %v7430
        %v8154 = vmax.f32 %v6714, %v7432
        %v8155 = vmax.f32 %v6715, %v7434
        %v8156 = vmax.f32 %v6716, %v7436
        %v8157 = vmax.f32 %v6717, %v7438
        %v8158 = vmax.f32 %v6718, %v7440
        %v8159 = vmax.f32 %v6719, %v7442
        %v8160 = vmax.f32 %v6720, %v7444
        %v8161 = vmax.f32 %v6721, %v7446
        %v8162 = vmax.f32 %v6722, %v7448
        %v8163 = vmax.f32 %v6723, %v7450
        %v8164 = vmax.f32 %v6724, %v7452
        %v8165 = vmax.f32 %v6725, %v7454
        %v8166 = vmax.f32 %v6726, %v7456
        %v8167 = vmax.f32 %v6727, %v7458
        %v8168 = vmax.f32 %v6728, %v7460
        %v8169 = vmax.f32 %v6729, %v7462
        %v8170 = vmax.f32 %v6730, %v7464
        %v8171 = vmax.f32 %v6731, %v7466
        %v8172 = vmax.f32 %v6732, %v7468
        %v8173 = vmax.f32 %v6733, %v7470
        %v8174 = vmax.f32 %v6734, %v7472
        %v8175 = vmax.f32 %v6735, %v7474
        %v8176 = vmax.f32 %v6736, %v7476
        %v8177 = vmax.f32 %v6737, %v7478
        %v8178 = vmax.f32 %v6738, %v7480
        %v8179 = vmax.f32 %v6739, %v7482
        %v8180 = vmax.f32 %v6740, %v7484
        %v8181 = vmax.f32 %v6741, %v7486
        %v8182 = vmax.f32 %v6742, %v7488
        %v8183 = vmax.f32 %v6743, %v7490
        %v8184 = vmax.f32 %v6744, %v7492
        %v8185 = vmax.f32 %v6745, %v7494
        %v8186 = vmax.f32 %v6746, %v7496
        %v8187 = vmax.f32 %v6747, %v7498
        %v8188 = vmax.f32 %v6748, %v7500
        %v8189 = vmax.f32 %v6749, %v7502
        %v8190 = vmax.f32 %v6750, %v7504
        %v8191 = vmax.f32 %v6751, %v7506
        %v8192 = vmax.f32 %v6752, %v7508
        %v8193 = vmax.f32 %v6753, %v7510
        %v8194 = vmax.f32 %v6754, %v7512
        %v8195 = vmax.f32 %v6755, %v7514
        %v8196 = vmax.f32 %v6756, %v7516
        %v8197 = vmax.f32 %v6757, %v7518
        %v8198 = vmax.f32 %v6758, %v7520
        %v8199 = vmax.f32 %v6759, %v7522
        %v8200 = vmax.f32 %v6760, %v7524
        %v8201 = vmax.f32 %v6761, %v7526
        %v8202 = vmax.f32 %v6762, %v7528
        %v8203 = vmax.f32 %v6763, %v7530
        %v8204 = vmax.f32 %v6764, %v7532
        %v8205 = vmax.f32 %v6765, %v7534
        %v8206 = vmax.f32 %v6766, %v7536
        %v8207 = vmax.f32 %v6767, %v7538
        %v8208 = vmax.f32 %v6768, %v7540
        %v8209 = vmax.f32 %v6769, %v7542
        %v8210 = vmax.f32 %v6770, %v7544
        %v8211 = vmax.f32 %v6771, %v7546
        %v8212 = vmax.f32 %v6772, %v7548
        %v8213 = vmax.f32 %v6773, %v7550
        %v8214 = vmax.f32 %v6774, %v7552
        %v8215 = vmax.f32 %v6775, %v7554
        %v8216 = vmax.f32 %v6776, %v7556
        %v8217 = vmax.f32 %v6777, %v7558
        %v8218 = vmax.f32 %v6778, %v7560
        %v8219 = vmax.f32 %v6779, %v7562
        %v8220 = vmax.f32 %v6780, %v7564
        %v8221 = vmax.f32 %v6781, %v7566
        %v8222 = vmax.f32 %v6782, %v7568
        %v8223 = vmax.f32 %v6783, %v7570
        %v8224 = vmax.f32 %v6784, %v7572
        %v8225 = vmax.f32 %v6785, %v7574
        %v8226 = vmax.f32 %v6786, %v7576
        %v8227 = vmax.f32 %v6787, %v7578
        %v8228 = vmax.f32 %v6788, %v7580
        %v8229 = vmax.f32 %v6789, %v7582
        %v8230 = vmax.f32 %v6790, %v7584
        %v8231 = vmax.f32 %v6791, %v7586
        %v8232 = vmax.f32 %v6792, %v7588
        %v8233 = vmax.f32 %v6793, %v7590
        %v8234 = vmax.f32 %v6794, %v7592
        %v8235 = vmax.f32 %v6795, %v7594
        %v8236 = vmax.f32 %v6796, %v7596
        %v8237 = vmax.f32 %v6797, %v7598
        %v8238 = vmax.f32 %v6798, %v7600
        %v8239 = vmax.f32 %v6799, %v7602
        %v8240 = vmax.f32 %v6800, %v7604
        %v8241 = vmax.f32 %v6801, %v7606
        %v8242 = vmax.f32 %v6802, %v7608
        %v8243 = vmax.f32 %v6803, %v7610
        %v8244 = vmax.f32 %v6804, %v7612
        %v8245 = vmax.f32 %v6805, %v7614
        %v8246 = vmax.f32 %v6806, %v7616
        %v8247 = vmax.f32 %v6807, %v7618
        %v8248 = vmax.f32 %v6808, %v7620
        %v8249 = vmax.f32 %v6809, %v7622
        %v8250 = vmax.f32 %v6810, %v7624
        %v8251 = vmax.f32 %v6811, %v7626
        %v8252 = vmax.f32 %v6812, %v7628
        %v8253 = vmax.f32 %v6813, %v7630
        %v8254 = vmax.f32 %v6814, %v7632
        %v8255 = vmax.f32 %v6815, %v7634
        %v8256 = vmax.f32 %v6816, %v7636
        %v8257 = vmax.f32 %v6817, %v7638
        %v8258 = vmax.f32 %v6818, %v7640
        %v8259 = vmax.f32 %v6819, %v7642
        %v8260 = vmax.f32 %v6820, %v7644
        %v8261 = vmax.f32 %v6821, %v7646
        %v8262 = vmax.f32 %v6822, %v7648
        %v8263 = vmax.f32 %v6823, %v7650
        %v8264 = vmax.f32 %v6824, %v7652
        %v8265 = vmax.f32 %v6825, %v7654
        %v8266 = vmax.f32 %v6826, %v7656
        %v8267 = vmax.f32 %v6827, %v7658
        %v8268 = vmax.f32 %v6828, %v7660
        %v8269 = vmax.f32 %v6829, %v7662
        %v8270 = vmax.f32 %v6830, %v7664
        %v8271 = vmax.f32 %v6831, %v7666
        %v8272 = vmax.f32 %v6832, %v7668
        %v8273 = vmax.f32 %v6833, %v7670
        %v8274 = vmax.f32 %v6834, %v7672
        %v8275 = vmax.f32 %v6835, %v7674
        %v8276 = vmax.f32 %v6836, %v7676
        %v8277 = vmax.f32 %v6837, %v7678
        %v8278 = vmax.f32 %v6838, %v7680
        %v8279 = vmax.f32 %v6839, %v7682
        %v8280 = vmax.f32 %v6840, %v7684
        %v8281 = vmax.f32 %v6841, %v7686
        %v8282 = vmax.f32 %v6842, %v7688
        %v8283 = vmax.f32 %v6843, %v7690
        %v8284 = vmax.f32 %v6844, %v7692
        %v8285 = vmax.f32 %v6845, %v7694
        %v8286 = vmax.f32 %v6846, %v7696
        %v8287 = vmax.f32 %v6847, %v7698
        %v8288 = vmax.f32 %v6848, %v7700
        %v8289 = vmax.f32 %v6849, %v7702
        %v8290 = vmax.f32 %v6850, %v7704
        %v8291 = vmax.f32 %v6851, %v7706
        %v8292 = vmax.f32 %v6852, %v7708
        %v8293 = vmax.f32 %v6853, %v7710
        %v8294 = vmax.f32 %v6854, %v7712
        %v8295 = vmax.f32 %v6855, %v7714
        %v8296 = vmax.f32 %v6856, %v7716
        %v8297 = vmax.f32 %v6857, %v7718
        %v8298 = vmax.f32 %v6858, %v7720
        %v8299 = vmax.f32 %v6859, %v7722
        %v8300 = vmax.f32 %v6860, %v7724
        %v8429 = vperm.slane %v8013, 0
        %v8430 = vperm.slane %v8014, 0
        %v8431 = vperm.slane %v8016, 0
        %v8432 = vperm.slane %v8017, 0
        %v8433 = vperm.slane %v8022, 0
        %v8434 = vperm.slane %v8023, 0
        %v8435 = vperm.slane %v8025, 0
        %v8436 = vperm.slane %v8026, 0
        %v8437 = vperm.slane %v8031, 0
        %v8438 = vperm.slane %v8032, 0
        %v8439 = vperm.slane %v8034, 0
        %v8440 = vperm.slane %v8035, 0
        %v8441 = vperm.slane %v8040, 0
        %v8442 = vperm.slane %v8041, 0
        %v8443 = vperm.slane %v8043, 0
        %v8444 = vperm.slane %v8044, 0
        %v8445 = vperm.slane %v8049, 0
        %v8446 = vperm.slane %v8050, 0
        %v8447 = vperm.slane %v8052, 0
        %v8448 = vperm.slane %v8053, 0
        %v8449 = vperm.slane %v8058, 0
        %v8450 = vperm.slane %v8059, 0
        %v8451 = vperm.slane %v8061, 0
        %v8452 = vperm.slane %v8062, 0
        %v8453 = vperm.slane %v8067, 0
        %v8454 = vperm.slane %v8068, 0
        %v8455 = vperm.slane %v8070, 0
        %v8456 = vperm.slane %v8071, 0
        %v8457 = vperm.slane %v8076, 0
        %v8458 = vperm.slane %v8077, 0
        %v8459 = vperm.slane %v8079, 0
        %v8460 = vperm.slane %v8080, 0
        %v8461 = vperm.slane %v8085, 0
        %v8462 = vperm.slane %v8086, 0
        %v8463 = vperm.slane %v8088, 0
        %v8464 = vperm.slane %v8089, 0
        %v8465 = vperm.slane %v8094, 0
        %v8466 = vperm.slane %v8095, 0
        %v8467 = vperm.slane %v8097, 0
        %v8468 = vperm.slane %v8098, 0
        %v8469 = vperm.slane %v8103, 0
        %v8470 = vperm.slane %v8104, 0
        %v8471 = vperm.slane %v8106, 0
        %v8472 = vperm.slane %v8107, 0
        %v8473 = vperm.slane %v8112, 0
        %v8474 = vperm.slane %v8113, 0
        %v8475 = vperm.slane %v8115, 0
        %v8476 = vperm.slane %v8116, 0
        %v8477 = vperm.slane %v8121, 0
        %v8478 = vperm.slane %v8122, 0
        %v8479 = vperm.slane %v8124, 0
        %v8480 = vperm.slane %v8125, 0
        %v8481 = vperm.slane %v8130, 0
        %v8482 = vperm.slane %v8131, 0
        %v8483 = vperm.slane %v8133, 0
        %v8484 = vperm.slane %v8134, 0
        %v8485 = vperm.slane %v8139, 0
        %v8486 = vperm.slane %v8140, 0
        %v8487 = vperm.slane %v8142, 0
        %v8488 = vperm.slane %v8143, 0
        %v8489 = vperm.slane %v8148, 0
        %v8490 = vperm.slane %v8149, 0
        %v8491 = vperm.slane %v8151, 0
        %v8492 = vperm.slane %v8152, 0
        %v8493 = vperm.slane %v8157, 0
        %v8494 = vperm.slane %v8158, 0
        %v8495 = vperm.slane %v8160, 0
        %v8496 = vperm.slane %v8161, 0
        %v8497 = vperm.slane %v8166, 0
        %v8498 = vperm.slane %v8167, 0
        %v8499 = vperm.slane %v8169, 0
        %v8500 = vperm.slane %v8170, 0
        %v8501 = vperm.slane %v8175, 0
        %v8502 = vperm.slane %v8176, 0
        %v8503 = vperm.slane %v8178, 0
        %v8504 = vperm.slane %v8179, 0
        %v8505 = vperm.slane %v8184, 0
        %v8506 = vperm.slane %v8185, 0
        %v8507 = vperm.slane %v8187, 0
        %v8508 = vperm.slane %v8188, 0
        %v8509 = vperm.slane %v8193, 0
        %v8510 = vperm.slane %v8194, 0
        %v8511 = vperm.slane %v8196, 0
        %v8512 = vperm.slane %v8197, 0
        %v8513 = vperm.slane %v8202, 0
        %v8514 = vperm.slane %v8203, 0
        %v8515 = vperm.slane %v8205, 0
        %v8516 = vperm.slane %v8206, 0
        %v8517 = vperm.slane %v8211, 0
        %v8518 = vperm.slane %v8212, 0
        %v8519 = vperm.slane %v8214, 0
        %v8520 = vperm.slane %v8215, 0
        %v8521 = vperm.slane %v8220, 0
        %v8522 = vperm.slane %v8221, 0
        %v8523 = vperm.slane %v8223, 0
        %v8524 = vperm.slane %v8224, 0
        %v8525 = vperm.slane %v8229, 0
        %v8526 = vperm.slane %v8230, 0
        %v8527 = vperm.slane %v8232, 0
        %v8528 = vperm.slane %v8233, 0
        %v8529 = vperm.slane %v8238, 0
        %v8530 = vperm.slane %v8239, 0
        %v8531 = vperm.slane %v8241, 0
        %v8532 = vperm.slane %v8242, 0
        %v8533 = vperm.slane %v8247, 0
        %v8534 = vperm.slane %v8248, 0
        %v8535 = vperm.slane %v8250, 0
        %v8536 = vperm.slane %v8251, 0
        %v8537 = vperm.slane %v8256, 0
        %v8538 = vperm.slane %v8257, 0
        %v8539 = vperm.slane %v8259, 0
        %v8540 = vperm.slane %v8260, 0
        %v8541 = vperm.slane %v8265, 0
        %v8542 = vperm.slane %v8266, 0
        %v8543 = vperm.slane %v8268, 0
        %v8544 = vperm.slane %v8269, 0
        %v8545 = vperm.slane %v8274, 0
        %v8546 = vperm.slane %v8275, 0
        %v8547 = vperm.slane %v8277, 0
        %v8548 = vperm.slane %v8278, 0
        %v8549 = vperm.slane %v8283, 0
        %v8550 = vperm.slane %v8284, 0
        %v8551 = vperm.slane %v8286, 0
        %v8552 = vperm.slane %v8287, 0
        %v8553 = vperm.slane %v8292, 0
        %v8554 = vperm.slane %v8293, 0
        %v8555 = vperm.slane %v8295, 0
        %v8556 = vperm.slane %v8296, 0
        %vm8557 = vcmask 1041409
        %v8558 = vsel %vm8557, %v8430, %v8429
        %v8559 = vsel %vm8557, %v8432, %v8431
        %v8560 = vsel %vm8557, %v8434, %v8433
        %v8561 = vsel %vm8557, %v8436, %v8435
        %v8562 = vsel %vm8557, %v8438, %v8437
        %v8563 = vsel %vm8557, %v8440, %v8439
        %v8564 = vsel %vm8557, %v8442, %v8441
        %v8565 = vsel %vm8557, %v8444, %v8443
        %v8566 = vsel %vm8557, %v8446, %v8445
        %v8567 = vsel %vm8557, %v8448, %v8447
        %v8568 = vsel %vm8557, %v8450, %v8449
        %v8569 = vsel %vm8557, %v8452, %v8451
        %v8570 = vsel %vm8557, %v8454, %v8453
        %v8571 = vsel %vm8557, %v8456, %v8455
        %v8572 = vsel %vm8557, %v8458, %v8457
        %v8573 = vsel %vm8557, %v8460, %v8459
        %v8574 = vsel %vm8557, %v8462, %v8461
        %v8575 = vsel %vm8557, %v8464, %v8463
        %v8576 = vsel %vm8557, %v8466, %v8465
        %v8577 = vsel %vm8557, %v8468, %v8467
        %v8578 = vsel %vm8557, %v8470, %v8469
        %v8579 = vsel %vm8557, %v8472, %v8471
        %v8580 = vsel %vm8557, %v8474, %v8473
        %v8581 = vsel %vm8557, %v8476, %v8475
        %v8582 = vsel %vm8557, %v8478, %v8477
        %v8583 = vsel %vm8557, %v8480, %v8479
        %v8584 = vsel %vm8557, %v8482, %v8481
        %v8585 = vsel %vm8557, %v8484, %v8483
        %v8586 = vsel %vm8557, %v8486, %v8485
        %v8587 = vsel %vm8557, %v8488, %v8487
        %v8588 = vsel %vm8557, %v8490, %v8489
        %v8589 = vsel %vm8557, %v8492, %v8491
        %v8590 = vsel %vm8557, %v8494, %v8493
        %v8591 = vsel %vm8557, %v8496, %v8495
        %v8592 = vsel %vm8557, %v8498, %v8497
        %v8593 = vsel %vm8557, %v8500, %v8499
        %v8594 = vsel %vm8557, %v8502, %v8501
        %v8595 = vsel %vm8557, %v8504, %v8503
        %v8596 = vsel %vm8557, %v8506, %v8505
        %v8597 = vsel %vm8557, %v8508, %v8507
        %v8598 = vsel %vm8557, %v8510, %v8509
        %v8599 = vsel %vm8557, %v8512, %v8511
        %v8600 = vsel %vm8557, %v8514, %v8513
        %v8601 = vsel %vm8557, %v8516, %v8515
        %v8602 = vsel %vm8557, %v8518, %v8517
        %v8603 = vsel %vm8557, %v8520, %v8519
        %v8604 = vsel %vm8557, %v8522, %v8521
        %v8605 = vsel %vm8557, %v8524, %v8523
        %v8606 = vsel %vm8557, %v8526, %v8525
        %v8607 = vsel %vm8557, %v8528, %v8527
        %v8608 = vsel %vm8557, %v8530, %v8529
        %v8609 = vsel %vm8557, %v8532, %v8531
        %v8610 = vsel %vm8557, %v8534, %v8533
        %v8611 = vsel %vm8557, %v8536, %v8535
        %v8612 = vsel %vm8557, %v8538, %v8537
        %v8613 = vsel %vm8557, %v8540, %v8539
        %v8614 = vsel %vm8557, %v8542, %v8541
        %v8615 = vsel %vm8557, %v8544, %v8543
        %v8616 = vsel %vm8557, %v8546, %v8545
        %v8617 = vsel %vm8557, %v8548, %v8547
        %v8618 = vsel %vm8557, %v8550, %v8549
        %v8619 = vsel %vm8557, %v8552, %v8551
        %v8620 = vsel %vm8557, %v8554, %v8553
        %v8621 = vsel %vm8557, %v8556, %v8555
        %v8750 = vperm.slane %v8015, 0
        %v8751 = vperm.slane %v8018, 0
        %v8752 = vperm.slane %v8024, 0
        %v8753 = vperm.slane %v8027, 0
        %v8754 = vperm.slane %v8033, 0
        %v8755 = vperm.slane %v8036, 0
        %v8756 = vperm.slane %v8042, 0
        %v8757 = vperm.slane %v8045, 0
        %v8758 = vperm.slane %v8051, 0
        %v8759 = vperm.slane %v8054, 0
        %v8760 = vperm.slane %v8060, 0
        %v8761 = vperm.slane %v8063, 0
        %v8762 = vperm.slane %v8069, 0
        %v8763 = vperm.slane %v8072, 0
        %v8764 = vperm.slane %v8078, 0
        %v8765 = vperm.slane %v8081, 0
        %v8766 = vperm.slane %v8087, 0
        %v8767 = vperm.slane %v8090, 0
        %v8768 = vperm.slane %v8096, 0
        %v8769 = vperm.slane %v8099, 0
        %v8770 = vperm.slane %v8105, 0
        %v8771 = vperm.slane %v8108, 0
        %v8772 = vperm.slane %v8114, 0
        %v8773 = vperm.slane %v8117, 0
        %v8774 = vperm.slane %v8123, 0
        %v8775 = vperm.slane %v8126, 0
        %v8776 = vperm.slane %v8132, 0
        %v8777 = vperm.slane %v8135, 0
        %v8778 = vperm.slane %v8141, 0
        %v8779 = vperm.slane %v8144, 0
        %v8780 = vperm.slane %v8150, 0
        %v8781 = vperm.slane %v8153, 0
        %v8782 = vperm.slane %v8159, 0
        %v8783 = vperm.slane %v8162, 0
        %v8784 = vperm.slane %v8168, 0
        %v8785 = vperm.slane %v8171, 0
        %v8786 = vperm.slane %v8177, 0
        %v8787 = vperm.slane %v8180, 0
        %v8788 = vperm.slane %v8186, 0
        %v8789 = vperm.slane %v8189, 0
        %v8790 = vperm.slane %v8195, 0
        %v8791 = vperm.slane %v8198, 0
        %v8792 = vperm.slane %v8204, 0
        %v8793 = vperm.slane %v8207, 0
        %v8794 = vperm.slane %v8213, 0
        %v8795 = vperm.slane %v8216, 0
        %v8796 = vperm.slane %v8222, 0
        %v8797 = vperm.slane %v8225, 0
        %v8798 = vperm.slane %v8231, 0
        %v8799 = vperm.slane %v8234, 0
        %v8800 = vperm.slane %v8240, 0
        %v8801 = vperm.slane %v8243, 0
        %v8802 = vperm.slane %v8249, 0
        %v8803 = vperm.slane %v8252, 0
        %v8804 = vperm.slane %v8258, 0
        %v8805 = vperm.slane %v8261, 0
        %v8806 = vperm.slane %v8267, 0
        %v8807 = vperm.slane %v8270, 0
        %v8808 = vperm.slane %v8276, 0
        %v8809 = vperm.slane %v8279, 0
        %v8810 = vperm.slane %v8285, 0
        %v8811 = vperm.slane %v8288, 0
        %v8812 = vperm.slane %v8294, 0
        %v8813 = vperm.slane %v8297, 0
        %v8814 = vsel %vm8557, %v8750, %v8430
        %v8815 = vsel %vm8557, %v8751, %v8432
        %v8816 = vsel %vm8557, %v8752, %v8434
        %v8817 = vsel %vm8557, %v8753, %v8436
        %v8818 = vsel %vm8557, %v8754, %v8438
        %v8819 = vsel %vm8557, %v8755, %v8440
        %v8820 = vsel %vm8557, %v8756, %v8442
        %v8821 = vsel %vm8557, %v8757, %v8444
        %v8822 = vsel %vm8557, %v8758, %v8446
        %v8823 = vsel %vm8557, %v8759, %v8448
        %v8824 = vsel %vm8557, %v8760, %v8450
        %v8825 = vsel %vm8557, %v8761, %v8452
        %v8826 = vsel %vm8557, %v8762, %v8454
        %v8827 = vsel %vm8557, %v8763, %v8456
        %v8828 = vsel %vm8557, %v8764, %v8458
        %v8829 = vsel %vm8557, %v8765, %v8460
        %v8830 = vsel %vm8557, %v8766, %v8462
        %v8831 = vsel %vm8557, %v8767, %v8464
        %v8832 = vsel %vm8557, %v8768, %v8466
        %v8833 = vsel %vm8557, %v8769, %v8468
        %v8834 = vsel %vm8557, %v8770, %v8470
        %v8835 = vsel %vm8557, %v8771, %v8472
        %v8836 = vsel %vm8557, %v8772, %v8474
        %v8837 = vsel %vm8557, %v8773, %v8476
        %v8838 = vsel %vm8557, %v8774, %v8478
        %v8839 = vsel %vm8557, %v8775, %v8480
        %v8840 = vsel %vm8557, %v8776, %v8482
        %v8841 = vsel %vm8557, %v8777, %v8484
        %v8842 = vsel %vm8557, %v8778, %v8486
        %v8843 = vsel %vm8557, %v8779, %v8488
        %v8844 = vsel %vm8557, %v8780, %v8490
        %v8845 = vsel %vm8557, %v8781, %v8492
        %v8846 = vsel %vm8557, %v8782, %v8494
        %v8847 = vsel %vm8557, %v8783, %v8496
        %v8848 = vsel %vm8557, %v8784, %v8498
        %v8849 = vsel %vm8557, %v8785, %v8500
        %v8850 = vsel %vm8557, %v8786, %v8502
        %v8851 = vsel %vm8557, %v8787, %v8504
        %v8852 = vsel %vm8557, %v8788, %v8506
        %v8853 = vsel %vm8557, %v8789, %v8508
        %v8854 = vsel %vm8557, %v8790, %v8510
        %v8855 = vsel %vm8557, %v8791, %v8512
        %v8856 = vsel %vm8557, %v8792, %v8514
        %v8857 = vsel %vm8557, %v8793, %v8516
        %v8858 = vsel %vm8557, %v8794, %v8518
        %v8859 = vsel %vm8557, %v8795, %v8520
        %v8860 = vsel %vm8557, %v8796, %v8522
        %v8861 = vsel %vm8557, %v8797, %v8524
        %v8862 = vsel %vm8557, %v8798, %v8526
        %v8863 = vsel %vm8557, %v8799, %v8528
        %v8864 = vsel %vm8557, %v8800, %v8530
        %v8865 = vsel %vm8557, %v8801, %v8532
        %v8866 = vsel %vm8557, %v8802, %v8534
        %v8867 = vsel %vm8557, %v8803, %v8536
        %v8868 = vsel %vm8557, %v8804, %v8538
        %v8869 = vsel %vm8557, %v8805, %v8540
        %v8870 = vsel %vm8557, %v8806, %v8542
        %v8871 = vsel %vm8557, %v8807, %v8544
        %v8872 = vsel %vm8557, %v8808, %v8546
        %v8873 = vsel %vm8557, %v8809, %v8548
        %v8874 = vsel %vm8557, %v8810, %v8550
        %v8875 = vsel %vm8557, %v8811, %v8552
        %v8876 = vsel %vm8557, %v8812, %v8554
        %v8877 = vsel %vm8557, %v8813, %v8556
        %8878 = vrot.lane.b32.xlu0 %v8814, 16
        %v8879 = vpop.permute.xlu0 %8878
        %8880 = vrot.lane.b32.xlu0 %v8815, 16
        %v8881 = vpop.permute.xlu0 %8880
        %8882 = vrot.lane.b32.xlu0 %v8816, 16
        %v8883 = vpop.permute.xlu0 %8882
        %8884 = vrot.lane.b32.xlu0 %v8817, 16
        %v8885 = vpop.permute.xlu0 %8884
        %8886 = vrot.lane.b32.xlu0 %v8818, 16
        %v8887 = vpop.permute.xlu0 %8886
        %8888 = vrot.lane.b32.xlu0 %v8819, 16
        %v8889 = vpop.permute.xlu0 %8888
        %8890 = vrot.lane.b32.xlu0 %v8820, 16
        %v8891 = vpop.permute.xlu0 %8890
        %8892 = vrot.lane.b32.xlu0 %v8821, 16
        %v8893 = vpop.permute.xlu0 %8892
        %8894 = vrot.lane.b32.xlu0 %v8822, 16
        %v8895 = vpop.permute.xlu0 %8894
        %8896 = vrot.lane.b32.xlu0 %v8823, 16
        %v8897 = vpop.permute.xlu0 %8896
        %8898 = vrot.lane.b32.xlu0 %v8824, 16
        %v8899 = vpop.permute.xlu0 %8898
        %8900 = vrot.lane.b32.xlu0 %v8825, 16
        %v8901 = vpop.permute.xlu0 %8900
        %8902 = vrot.lane.b32.xlu0 %v8826, 16
        %v8903 = vpop.permute.xlu0 %8902
        %8904 = vrot.lane.b32.xlu0 %v8827, 16
        %v8905 = vpop.permute.xlu0 %8904
        %8906 = vrot.lane.b32.xlu0 %v8828, 16
        %v8907 = vpop.permute.xlu0 %8906
        %8908 = vrot.lane.b32.xlu0 %v8829, 16
        %v8909 = vpop.permute.xlu0 %8908
        %8910 = vrot.lane.b32.xlu0 %v8830, 16
        %v8911 = vpop.permute.xlu0 %8910
        %8912 = vrot.lane.b32.xlu0 %v8831, 16
        %v8913 = vpop.permute.xlu0 %8912
        %8914 = vrot.lane.b32.xlu0 %v8832, 16
        %v8915 = vpop.permute.xlu0 %8914
        %8916 = vrot.lane.b32.xlu0 %v8833, 16
        %v8917 = vpop.permute.xlu0 %8916
        %8918 = vrot.lane.b32.xlu0 %v8834, 16
        %v8919 = vpop.permute.xlu0 %8918
        %8920 = vrot.lane.b32.xlu0 %v8835, 16
        %v8921 = vpop.permute.xlu0 %8920
        %8922 = vrot.lane.b32.xlu0 %v8836, 16
        %v8923 = vpop.permute.xlu0 %8922
        %8924 = vrot.lane.b32.xlu0 %v8837, 16
        %v8925 = vpop.permute.xlu0 %8924
        %8926 = vrot.lane.b32.xlu0 %v8838, 16
        %v8927 = vpop.permute.xlu0 %8926
        %8928 = vrot.lane.b32.xlu0 %v8839, 16
        %v8929 = vpop.permute.xlu0 %8928
        %8930 = vrot.lane.b32.xlu0 %v8840, 16
        %v8931 = vpop.permute.xlu0 %8930
        %8932 = vrot.lane.b32.xlu0 %v8841, 16
        %v8933 = vpop.permute.xlu0 %8932
        %8934 = vrot.lane.b32.xlu0 %v8842, 16
        %v8935 = vpop.permute.xlu0 %8934
        %8936 = vrot.lane.b32.xlu0 %v8843, 16
        %v8937 = vpop.permute.xlu0 %8936
        %8938 = vrot.lane.b32.xlu0 %v8844, 16
        %v8939 = vpop.permute.xlu0 %8938
        %8940 = vrot.lane.b32.xlu0 %v8845, 16
        %v8941 = vpop.permute.xlu0 %8940
        %8942 = vrot.lane.b32.xlu0 %v8846, 16
        %v8943 = vpop.permute.xlu0 %8942
        %8944 = vrot.lane.b32.xlu0 %v8847, 16
        %v8945 = vpop.permute.xlu0 %8944
        %8946 = vrot.lane.b32.xlu0 %v8848, 16
        %v8947 = vpop.permute.xlu0 %8946
        %8948 = vrot.lane.b32.xlu0 %v8849, 16
        %v8949 = vpop.permute.xlu0 %8948
        %8950 = vrot.lane.b32.xlu0 %v8850, 16
        %v8951 = vpop.permute.xlu0 %8950
        %8952 = vrot.lane.b32.xlu0 %v8851, 16
        %v8953 = vpop.permute.xlu0 %8952
        %8954 = vrot.lane.b32.xlu0 %v8852, 16
        %v8955 = vpop.permute.xlu0 %8954
        %8956 = vrot.lane.b32.xlu0 %v8853, 16
        %v8957 = vpop.permute.xlu0 %8956
        %8958 = vrot.lane.b32.xlu0 %v8854, 16
        %v8959 = vpop.permute.xlu0 %8958
        %8960 = vrot.lane.b32.xlu0 %v8855, 16
        %v8961 = vpop.permute.xlu0 %8960
        %8962 = vrot.lane.b32.xlu0 %v8856, 16
        %v8963 = vpop.permute.xlu0 %8962
        %8964 = vrot.lane.b32.xlu0 %v8857, 16
        %v8965 = vpop.permute.xlu0 %8964
        %8966 = vrot.lane.b32.xlu0 %v8858, 16
        %v8967 = vpop.permute.xlu0 %8966
        %8968 = vrot.lane.b32.xlu0 %v8859, 16
        %v8969 = vpop.permute.xlu0 %8968
        %8970 = vrot.lane.b32.xlu0 %v8860, 16
        %v8971 = vpop.permute.xlu0 %8970
        %8972 = vrot.lane.b32.xlu0 %v8861, 16
        %v8973 = vpop.permute.xlu0 %8972
        %8974 = vrot.lane.b32.xlu0 %v8862, 16
        %v8975 = vpop.permute.xlu0 %8974
        %8976 = vrot.lane.b32.xlu0 %v8863, 16
        %v8977 = vpop.permute.xlu0 %8976
        %8978 = vrot.lane.b32.xlu0 %v8864, 16
        %v8979 = vpop.permute.xlu0 %8978
        %8980 = vrot.lane.b32.xlu0 %v8865, 16
        %v8981 = vpop.permute.xlu0 %8980
        %8982 = vrot.lane.b32.xlu0 %v8866, 16
        %v8983 = vpop.permute.xlu0 %8982
        %8984 = vrot.lane.b32.xlu0 %v8867, 16
        %v8985 = vpop.permute.xlu0 %8984
        %8986 = vrot.lane.b32.xlu0 %v8868, 16
        %v8987 = vpop.permute.xlu0 %8986
        %8988 = vrot.lane.b32.xlu0 %v8869, 16
        %v8989 = vpop.permute.xlu0 %8988
        %8990 = vrot.lane.b32.xlu0 %v8870, 16
        %v8991 = vpop.permute.xlu0 %8990
        %8992 = vrot.lane.b32.xlu0 %v8871, 16
        %v8993 = vpop.permute.xlu0 %8992
        %8994 = vrot.lane.b32.xlu0 %v8872, 16
        %v8995 = vpop.permute.xlu0 %8994
        %8996 = vrot.lane.b32.xlu0 %v8873, 16
        %v8997 = vpop.permute.xlu0 %8996
        %8998 = vrot.lane.b32.xlu0 %v8874, 16
        %v8999 = vpop.permute.xlu0 %8998
        %9000 = vrot.lane.b32.xlu0 %v8875, 16
        %v9001 = vpop.permute.xlu0 %9000
        %9002 = vrot.lane.b32.xlu0 %v8876, 16
        %v9003 = vpop.permute.xlu0 %9002
        %9004 = vrot.lane.b32.xlu0 %v8877, 16
        %v9005 = vpop.permute.xlu0 %9004
        %v9134 = vperm.slane %v8019, 0
        %v9135 = vperm.slane %v8020, 0
        %v9136 = vperm.slane %v8028, 0
        %v9137 = vperm.slane %v8029, 0
        %v9138 = vperm.slane %v8037, 0
        %v9139 = vperm.slane %v8038, 0
        %v9140 = vperm.slane %v8046, 0
        %v9141 = vperm.slane %v8047, 0
        %v9142 = vperm.slane %v8055, 0
        %v9143 = vperm.slane %v8056, 0
        %v9144 = vperm.slane %v8064, 0
        %v9145 = vperm.slane %v8065, 0
        %v9146 = vperm.slane %v8073, 0
        %v9147 = vperm.slane %v8074, 0
        %v9148 = vperm.slane %v8082, 0
        %v9149 = vperm.slane %v8083, 0
        %v9150 = vperm.slane %v8091, 0
        %v9151 = vperm.slane %v8092, 0
        %v9152 = vperm.slane %v8100, 0
        %v9153 = vperm.slane %v8101, 0
        %v9154 = vperm.slane %v8109, 0
        %v9155 = vperm.slane %v8110, 0
        %v9156 = vperm.slane %v8118, 0
        %v9157 = vperm.slane %v8119, 0
        %v9158 = vperm.slane %v8127, 0
        %v9159 = vperm.slane %v8128, 0
        %v9160 = vperm.slane %v8136, 0
        %v9161 = vperm.slane %v8137, 0
        %v9162 = vperm.slane %v8145, 0
        %v9163 = vperm.slane %v8146, 0
        %v9164 = vperm.slane %v8154, 0
        %v9165 = vperm.slane %v8155, 0
        %v9166 = vperm.slane %v8163, 0
        %v9167 = vperm.slane %v8164, 0
        %v9168 = vperm.slane %v8172, 0
        %v9169 = vperm.slane %v8173, 0
        %v9170 = vperm.slane %v8181, 0
        %v9171 = vperm.slane %v8182, 0
        %v9172 = vperm.slane %v8190, 0
        %v9173 = vperm.slane %v8191, 0
        %v9174 = vperm.slane %v8199, 0
        %v9175 = vperm.slane %v8200, 0
        %v9176 = vperm.slane %v8208, 0
        %v9177 = vperm.slane %v8209, 0
        %v9178 = vperm.slane %v8217, 0
        %v9179 = vperm.slane %v8218, 0
        %v9180 = vperm.slane %v8226, 0
        %v9181 = vperm.slane %v8227, 0
        %v9182 = vperm.slane %v8235, 0
        %v9183 = vperm.slane %v8236, 0
        %v9184 = vperm.slane %v8244, 0
        %v9185 = vperm.slane %v8245, 0
        %v9186 = vperm.slane %v8253, 0
        %v9187 = vperm.slane %v8254, 0
        %v9188 = vperm.slane %v8262, 0
        %v9189 = vperm.slane %v8263, 0
        %v9190 = vperm.slane %v8271, 0
        %v9191 = vperm.slane %v8272, 0
        %v9192 = vperm.slane %v8280, 0
        %v9193 = vperm.slane %v8281, 0
        %v9194 = vperm.slane %v8289, 0
        %v9195 = vperm.slane %v8290, 0
        %v9196 = vperm.slane %v8298, 0
        %v9197 = vperm.slane %v8299, 0
        %v9198 = vsel %vm8557, %v9135, %v9134
        %v9199 = vsel %vm8557, %v9137, %v9136
        %v9200 = vsel %vm8557, %v9139, %v9138
        %v9201 = vsel %vm8557, %v9141, %v9140
        %v9202 = vsel %vm8557, %v9143, %v9142
        %v9203 = vsel %vm8557, %v9145, %v9144
        %v9204 = vsel %vm8557, %v9147, %v9146
        %v9205 = vsel %vm8557, %v9149, %v9148
        %v9206 = vsel %vm8557, %v9151, %v9150
        %v9207 = vsel %vm8557, %v9153, %v9152
        %v9208 = vsel %vm8557, %v9155, %v9154
        %v9209 = vsel %vm8557, %v9157, %v9156
        %v9210 = vsel %vm8557, %v9159, %v9158
        %v9211 = vsel %vm8557, %v9161, %v9160
        %v9212 = vsel %vm8557, %v9163, %v9162
        %v9213 = vsel %vm8557, %v9165, %v9164
        %v9214 = vsel %vm8557, %v9167, %v9166
        %v9215 = vsel %vm8557, %v9169, %v9168
        %v9216 = vsel %vm8557, %v9171, %v9170
        %v9217 = vsel %vm8557, %v9173, %v9172
        %v9218 = vsel %vm8557, %v9175, %v9174
        %v9219 = vsel %vm8557, %v9177, %v9176
        %v9220 = vsel %vm8557, %v9179, %v9178
        %v9221 = vsel %vm8557, %v9181, %v9180
        %v9222 = vsel %vm8557, %v9183, %v9182
        %v9223 = vsel %vm8557, %v9185, %v9184
        %v9224 = vsel %vm8557, %v9187, %v9186
        %v9225 = vsel %vm8557, %v9189, %v9188
        %v9226 = vsel %vm8557, %v9191, %v9190
        %v9227 = vsel %vm8557, %v9193, %v9192
        %v9228 = vsel %vm8557, %v9195, %v9194
        %v9229 = vsel %vm8557, %v9197, %v9196
        %9230 = vrot.lane.b32.xlu0 %v8559, 32
        %v9231 = vpop.permute.xlu0 %9230
        %9232 = vrot.lane.b32.xlu0 %v9198, 32
        %v9233 = vpop.permute.xlu0 %9232
        %9234 = vrot.lane.b32.xlu0 %v8561, 32
        %v9235 = vpop.permute.xlu0 %9234
        %9236 = vrot.lane.b32.xlu0 %v9199, 32
        %v9237 = vpop.permute.xlu0 %9236
        %9238 = vrot.lane.b32.xlu0 %v8563, 32
        %v9239 = vpop.permute.xlu0 %9238
        %9240 = vrot.lane.b32.xlu0 %v9200, 32
        %v9241 = vpop.permute.xlu0 %9240
        %9242 = vrot.lane.b32.xlu0 %v8565, 32
        %v9243 = vpop.permute.xlu0 %9242
        %9244 = vrot.lane.b32.xlu0 %v9201, 32
        %v9245 = vpop.permute.xlu0 %9244
        %9246 = vrot.lane.b32.xlu0 %v8567, 32
        %v9247 = vpop.permute.xlu0 %9246
        %9248 = vrot.lane.b32.xlu0 %v9202, 32
        %v9249 = vpop.permute.xlu0 %9248
        %9250 = vrot.lane.b32.xlu0 %v8569, 32
        %v9251 = vpop.permute.xlu0 %9250
        %9252 = vrot.lane.b32.xlu0 %v9203, 32
        %v9253 = vpop.permute.xlu0 %9252
        %9254 = vrot.lane.b32.xlu0 %v8571, 32
        %v9255 = vpop.permute.xlu0 %9254
        %9256 = vrot.lane.b32.xlu0 %v9204, 32
        %v9257 = vpop.permute.xlu0 %9256
        %9258 = vrot.lane.b32.xlu0 %v8573, 32
        %v9259 = vpop.permute.xlu0 %9258
        %9260 = vrot.lane.b32.xlu0 %v9205, 32
        %v9261 = vpop.permute.xlu0 %9260
        %9262 = vrot.lane.b32.xlu0 %v8575, 32
        %v9263 = vpop.permute.xlu0 %9262
        %9264 = vrot.lane.b32.xlu0 %v9206, 32
        %v9265 = vpop.permute.xlu0 %9264
        %9266 = vrot.lane.b32.xlu0 %v8577, 32
        %v9267 = vpop.permute.xlu0 %9266
        %9268 = vrot.lane.b32.xlu0 %v9207, 32
        %v9269 = vpop.permute.xlu0 %9268
        %9270 = vrot.lane.b32.xlu0 %v8579, 32
        %v9271 = vpop.permute.xlu0 %9270
        %9272 = vrot.lane.b32.xlu0 %v9208, 32
        %v9273 = vpop.permute.xlu0 %9272
        %9274 = vrot.lane.b32.xlu0 %v8581, 32
        %v9275 = vpop.permute.xlu0 %9274
        %9276 = vrot.lane.b32.xlu0 %v9209, 32
        %v9277 = vpop.permute.xlu0 %9276
        %9278 = vrot.lane.b32.xlu0 %v8583, 32
        %v9279 = vpop.permute.xlu0 %9278
        %9280 = vrot.lane.b32.xlu0 %v9210, 32
        %v9281 = vpop.permute.xlu0 %9280
        %9282 = vrot.lane.b32.xlu0 %v8585, 32
        %v9283 = vpop.permute.xlu0 %9282
        %9284 = vrot.lane.b32.xlu0 %v9211, 32
        %v9285 = vpop.permute.xlu0 %9284
        %9286 = vrot.lane.b32.xlu0 %v8587, 32
        %v9287 = vpop.permute.xlu0 %9286
        %9288 = vrot.lane.b32.xlu0 %v9212, 32
        %v9289 = vpop.permute.xlu0 %9288
        %9290 = vrot.lane.b32.xlu0 %v8589, 32
        %v9291 = vpop.permute.xlu0 %9290
        %9292 = vrot.lane.b32.xlu0 %v9213, 32
        %v9293 = vpop.permute.xlu0 %9292
        %9294 = vrot.lane.b32.xlu0 %v8591, 32
        %v9295 = vpop.permute.xlu0 %9294
        %9296 = vrot.lane.b32.xlu0 %v9214, 32
        %v9297 = vpop.permute.xlu0 %9296
        %9298 = vrot.lane.b32.xlu0 %v8593, 32
        %v9299 = vpop.permute.xlu0 %9298
        %9300 = vrot.lane.b32.xlu0 %v9215, 32
        %v9301 = vpop.permute.xlu0 %9300
        %9302 = vrot.lane.b32.xlu0 %v8595, 32
        %v9303 = vpop.permute.xlu0 %9302
        %9304 = vrot.lane.b32.xlu0 %v9216, 32
        %v9305 = vpop.permute.xlu0 %9304
        %9306 = vrot.lane.b32.xlu0 %v8597, 32
        %v9307 = vpop.permute.xlu0 %9306
        %9308 = vrot.lane.b32.xlu0 %v9217, 32
        %v9309 = vpop.permute.xlu0 %9308
        %9310 = vrot.lane.b32.xlu0 %v8599, 32
        %v9311 = vpop.permute.xlu0 %9310
        %9312 = vrot.lane.b32.xlu0 %v9218, 32
        %v9313 = vpop.permute.xlu0 %9312
        %9314 = vrot.lane.b32.xlu0 %v8601, 32
        %v9315 = vpop.permute.xlu0 %9314
        %9316 = vrot.lane.b32.xlu0 %v9219, 32
        %v9317 = vpop.permute.xlu0 %9316
        %9318 = vrot.lane.b32.xlu0 %v8603, 32
        %v9319 = vpop.permute.xlu0 %9318
        %9320 = vrot.lane.b32.xlu0 %v9220, 32
        %v9321 = vpop.permute.xlu0 %9320
        %9322 = vrot.lane.b32.xlu0 %v8605, 32
        %v9323 = vpop.permute.xlu0 %9322
        %9324 = vrot.lane.b32.xlu0 %v9221, 32
        %v9325 = vpop.permute.xlu0 %9324
        %9326 = vrot.lane.b32.xlu0 %v8607, 32
        %v9327 = vpop.permute.xlu0 %9326
        %9328 = vrot.lane.b32.xlu0 %v9222, 32
        %v9329 = vpop.permute.xlu0 %9328
        %9330 = vrot.lane.b32.xlu0 %v8609, 32
        %v9331 = vpop.permute.xlu0 %9330
        %9332 = vrot.lane.b32.xlu0 %v9223, 32
        %v9333 = vpop.permute.xlu0 %9332
        %9334 = vrot.lane.b32.xlu0 %v8611, 32
        %v9335 = vpop.permute.xlu0 %9334
        %9336 = vrot.lane.b32.xlu0 %v9224, 32
        %v9337 = vpop.permute.xlu0 %9336
        %9338 = vrot.lane.b32.xlu0 %v8613, 32
        %v9339 = vpop.permute.xlu0 %9338
        %9340 = vrot.lane.b32.xlu0 %v9225, 32
        %v9341 = vpop.permute.xlu0 %9340
        %9342 = vrot.lane.b32.xlu0 %v8615, 32
        %v9343 = vpop.permute.xlu0 %9342
        %9344 = vrot.lane.b32.xlu0 %v9226, 32
        %v9345 = vpop.permute.xlu0 %9344
        %9346 = vrot.lane.b32.xlu0 %v8617, 32
        %v9347 = vpop.permute.xlu0 %9346
        %9348 = vrot.lane.b32.xlu0 %v9227, 32
        %v9349 = vpop.permute.xlu0 %9348
        %9350 = vrot.lane.b32.xlu0 %v8619, 32
        %v9351 = vpop.permute.xlu0 %9350
        %9352 = vrot.lane.b32.xlu0 %v9228, 32
        %v9353 = vpop.permute.xlu0 %9352
        %9354 = vrot.lane.b32.xlu0 %v8621, 32
        %v9355 = vpop.permute.xlu0 %9354
        %9356 = vrot.lane.b32.xlu0 %v9229, 32
        %v9357 = vpop.permute.xlu0 %9356
        %v9454 = vperm.slane %v8021, 0
        %v9455 = vperm.slane %v8030, 0
        %v9456 = vperm.slane %v8039, 0
        %v9457 = vperm.slane %v8048, 0
        %v9458 = vperm.slane %v8057, 0
        %v9459 = vperm.slane %v8066, 0
        %v9460 = vperm.slane %v8075, 0
        %v9461 = vperm.slane %v8084, 0
        %v9462 = vperm.slane %v8093, 0
        %v9463 = vperm.slane %v8102, 0
        %v9464 = vperm.slane %v8111, 0
        %v9465 = vperm.slane %v8120, 0
        %v9466 = vperm.slane %v8129, 0
        %v9467 = vperm.slane %v8138, 0
        %v9468 = vperm.slane %v8147, 0
        %v9469 = vperm.slane %v8156, 0
        %v9470 = vperm.slane %v8165, 0
        %v9471 = vperm.slane %v8174, 0
        %v9472 = vperm.slane %v8183, 0
        %v9473 = vperm.slane %v8192, 0
        %v9474 = vperm.slane %v8201, 0
        %v9475 = vperm.slane %v8210, 0
        %v9476 = vperm.slane %v8219, 0
        %v9477 = vperm.slane %v8228, 0
        %v9478 = vperm.slane %v8237, 0
        %v9479 = vperm.slane %v8246, 0
        %v9480 = vperm.slane %v8255, 0
        %v9481 = vperm.slane %v8264, 0
        %v9482 = vperm.slane %v8273, 0
        %v9483 = vperm.slane %v8282, 0
        %v9484 = vperm.slane %v8291, 0
        %v9485 = vperm.slane %v8300, 0
        %v9486 = vsel %vm8557, %v9454, %v9135
        %v9487 = vsel %vm8557, %v9455, %v9137
        %v9488 = vsel %vm8557, %v9456, %v9139
        %v9489 = vsel %vm8557, %v9457, %v9141
        %v9490 = vsel %vm8557, %v9458, %v9143
        %v9491 = vsel %vm8557, %v9459, %v9145
        %v9492 = vsel %vm8557, %v9460, %v9147
        %v9493 = vsel %vm8557, %v9461, %v9149
        %v9494 = vsel %vm8557, %v9462, %v9151
        %v9495 = vsel %vm8557, %v9463, %v9153
        %v9496 = vsel %vm8557, %v9464, %v9155
        %v9497 = vsel %vm8557, %v9465, %v9157
        %v9498 = vsel %vm8557, %v9466, %v9159
        %v9499 = vsel %vm8557, %v9467, %v9161
        %v9500 = vsel %vm8557, %v9468, %v9163
        %v9501 = vsel %vm8557, %v9469, %v9165
        %v9502 = vsel %vm8557, %v9470, %v9167
        %v9503 = vsel %vm8557, %v9471, %v9169
        %v9504 = vsel %vm8557, %v9472, %v9171
        %v9505 = vsel %vm8557, %v9473, %v9173
        %v9506 = vsel %vm8557, %v9474, %v9175
        %v9507 = vsel %vm8557, %v9475, %v9177
        %v9508 = vsel %vm8557, %v9476, %v9179
        %v9509 = vsel %vm8557, %v9477, %v9181
        %v9510 = vsel %vm8557, %v9478, %v9183
        %v9511 = vsel %vm8557, %v9479, %v9185
        %v9512 = vsel %vm8557, %v9480, %v9187
        %v9513 = vsel %vm8557, %v9481, %v9189
        %v9514 = vsel %vm8557, %v9482, %v9191
        %v9515 = vsel %vm8557, %v9483, %v9193
        %v9516 = vsel %vm8557, %v9484, %v9195
        %v9517 = vsel %vm8557, %v9485, %v9197
        %9518 = vrot.lane.b32.xlu0 %v8815, 48
        %v9519 = vpop.permute.xlu0 %9518
        %9520 = vrot.lane.b32.xlu0 %v9486, 48
        %v9521 = vpop.permute.xlu0 %9520
        %9522 = vrot.lane.b32.xlu0 %v8817, 48
        %v9523 = vpop.permute.xlu0 %9522
        %9524 = vrot.lane.b32.xlu0 %v9487, 48
        %v9525 = vpop.permute.xlu0 %9524
        %9526 = vrot.lane.b32.xlu0 %v8819, 48
        %v9527 = vpop.permute.xlu0 %9526
        %9528 = vrot.lane.b32.xlu0 %v9488, 48
        %v9529 = vpop.permute.xlu0 %9528
        %9530 = vrot.lane.b32.xlu0 %v8821, 48
        %v9531 = vpop.permute.xlu0 %9530
        %9532 = vrot.lane.b32.xlu0 %v9489, 48
        %v9533 = vpop.permute.xlu0 %9532
        %9534 = vrot.lane.b32.xlu0 %v8823, 48
        %v9535 = vpop.permute.xlu0 %9534
        %9536 = vrot.lane.b32.xlu0 %v9490, 48
        %v9537 = vpop.permute.xlu0 %9536
        %9538 = vrot.lane.b32.xlu0 %v8825, 48
        %v9539 = vpop.permute.xlu0 %9538
        %9540 = vrot.lane.b32.xlu0 %v9491, 48
        %v9541 = vpop.permute.xlu0 %9540
        %9542 = vrot.lane.b32.xlu0 %v8827, 48
        %v9543 = vpop.permute.xlu0 %9542
        %9544 = vrot.lane.b32.xlu0 %v9492, 48
        %v9545 = vpop.permute.xlu0 %9544
        %9546 = vrot.lane.b32.xlu0 %v8829, 48
        %v9547 = vpop.permute.xlu0 %9546
        %9548 = vrot.lane.b32.xlu0 %v9493, 48
        %v9549 = vpop.permute.xlu0 %9548
        %9550 = vrot.lane.b32.xlu0 %v8831, 48
        %v9551 = vpop.permute.xlu0 %9550
        %9552 = vrot.lane.b32.xlu0 %v9494, 48
        %v9553 = vpop.permute.xlu0 %9552
        %9554 = vrot.lane.b32.xlu0 %v8833, 48
        %v9555 = vpop.permute.xlu0 %9554
        %9556 = vrot.lane.b32.xlu0 %v9495, 48
        %v9557 = vpop.permute.xlu0 %9556
        %9558 = vrot.lane.b32.xlu0 %v8835, 48
        %v9559 = vpop.permute.xlu0 %9558
        %9560 = vrot.lane.b32.xlu0 %v9496, 48
        %v9561 = vpop.permute.xlu0 %9560
        %9562 = vrot.lane.b32.xlu0 %v8837, 48
        %v9563 = vpop.permute.xlu0 %9562
        %9564 = vrot.lane.b32.xlu0 %v9497, 48
        %v9565 = vpop.permute.xlu0 %9564
        %9566 = vrot.lane.b32.xlu0 %v8839, 48
        %v9567 = vpop.permute.xlu0 %9566
        %9568 = vrot.lane.b32.xlu0 %v9498, 48
        %v9569 = vpop.permute.xlu0 %9568
        %9570 = vrot.lane.b32.xlu0 %v8841, 48
        %v9571 = vpop.permute.xlu0 %9570
        %9572 = vrot.lane.b32.xlu0 %v9499, 48
        %v9573 = vpop.permute.xlu0 %9572
        %9574 = vrot.lane.b32.xlu0 %v8843, 48
        %v9575 = vpop.permute.xlu0 %9574
        %9576 = vrot.lane.b32.xlu0 %v9500, 48
        %v9577 = vpop.permute.xlu0 %9576
        %9578 = vrot.lane.b32.xlu0 %v8845, 48
        %v9579 = vpop.permute.xlu0 %9578
        %9580 = vrot.lane.b32.xlu0 %v9501, 48
        %v9581 = vpop.permute.xlu0 %9580
        %9582 = vrot.lane.b32.xlu0 %v8847, 48
        %v9583 = vpop.permute.xlu0 %9582
        %9584 = vrot.lane.b32.xlu0 %v9502, 48
        %v9585 = vpop.permute.xlu0 %9584
        %9586 = vrot.lane.b32.xlu0 %v8849, 48
        %v9587 = vpop.permute.xlu0 %9586
        %9588 = vrot.lane.b32.xlu0 %v9503, 48
        %v9589 = vpop.permute.xlu0 %9588
        %9590 = vrot.lane.b32.xlu0 %v8851, 48
        %v9591 = vpop.permute.xlu0 %9590
        %9592 = vrot.lane.b32.xlu0 %v9504, 48
        %v9593 = vpop.permute.xlu0 %9592
        %9594 = vrot.lane.b32.xlu0 %v8853, 48
        %v9595 = vpop.permute.xlu0 %9594
        %9596 = vrot.lane.b32.xlu0 %v9505, 48
        %v9597 = vpop.permute.xlu0 %9596
        %9598 = vrot.lane.b32.xlu0 %v8855, 48
        %v9599 = vpop.permute.xlu0 %9598
        %9600 = vrot.lane.b32.xlu0 %v9506, 48
        %v9601 = vpop.permute.xlu0 %9600
        %9602 = vrot.lane.b32.xlu0 %v8857, 48
        %v9603 = vpop.permute.xlu0 %9602
        %9604 = vrot.lane.b32.xlu0 %v9507, 48
        %v9605 = vpop.permute.xlu0 %9604
        %9606 = vrot.lane.b32.xlu0 %v8859, 48
        %v9607 = vpop.permute.xlu0 %9606
        %9608 = vrot.lane.b32.xlu0 %v9508, 48
        %v9609 = vpop.permute.xlu0 %9608
        %9610 = vrot.lane.b32.xlu0 %v8861, 48
        %v9611 = vpop.permute.xlu0 %9610
        %9612 = vrot.lane.b32.xlu0 %v9509, 48
        %v9613 = vpop.permute.xlu0 %9612
        %9614 = vrot.lane.b32.xlu0 %v8863, 48
        %v9615 = vpop.permute.xlu0 %9614
        %9616 = vrot.lane.b32.xlu0 %v9510, 48
        %v9617 = vpop.permute.xlu0 %9616
        %9618 = vrot.lane.b32.xlu0 %v8865, 48
        %v9619 = vpop.permute.xlu0 %9618
        %9620 = vrot.lane.b32.xlu0 %v9511, 48
        %v9621 = vpop.permute.xlu0 %9620
        %9622 = vrot.lane.b32.xlu0 %v8867, 48
        %v9623 = vpop.permute.xlu0 %9622
        %9624 = vrot.lane.b32.xlu0 %v9512, 48
        %v9625 = vpop.permute.xlu0 %9624
        %9626 = vrot.lane.b32.xlu0 %v8869, 48
        %v9627 = vpop.permute.xlu0 %9626
        %9628 = vrot.lane.b32.xlu0 %v9513, 48
        %v9629 = vpop.permute.xlu0 %9628
        %9630 = vrot.lane.b32.xlu0 %v8871, 48
        %v9631 = vpop.permute.xlu0 %9630
        %9632 = vrot.lane.b32.xlu0 %v9514, 48
        %v9633 = vpop.permute.xlu0 %9632
        %9634 = vrot.lane.b32.xlu0 %v8873, 48
        %v9635 = vpop.permute.xlu0 %9634
        %9636 = vrot.lane.b32.xlu0 %v9515, 48
        %v9637 = vpop.permute.xlu0 %9636
        %9638 = vrot.lane.b32.xlu0 %v8875, 48
        %v9639 = vpop.permute.xlu0 %9638
        %9640 = vrot.lane.b32.xlu0 %v9516, 48
        %v9641 = vpop.permute.xlu0 %9640
        %9642 = vrot.lane.b32.xlu0 %v8877, 48
        %v9643 = vpop.permute.xlu0 %9642
        %9644 = vrot.lane.b32.xlu0 %v9517, 48
        %v9645 = vpop.permute.xlu0 %9644
        %vm9710 = vcmask 130048
        %v9711 = vsel %vm9710, %v8558, %v8879
        %v9712 = vsel %vm9710, %v8559, %v8881
        %v9713 = vsel %vm9710, %v8560, %v8883
        %v9714 = vsel %vm9710, %v8561, %v8885
        %v9715 = vsel %vm9710, %v8562, %v8887
        %v9716 = vsel %vm9710, %v8563, %v8889
        %v9717 = vsel %vm9710, %v8564, %v8891
        %v9718 = vsel %vm9710, %v8565, %v8893
        %v9719 = vsel %vm9710, %v8566, %v8895
        %v9720 = vsel %vm9710, %v8567, %v8897
        %v9721 = vsel %vm9710, %v8568, %v8899
        %v9722 = vsel %vm9710, %v8569, %v8901
        %v9723 = vsel %vm9710, %v8570, %v8903
        %v9724 = vsel %vm9710, %v8571, %v8905
        %v9725 = vsel %vm9710, %v8572, %v8907
        %v9726 = vsel %vm9710, %v8573, %v8909
        %v9727 = vsel %vm9710, %v8574, %v8911
        %v9728 = vsel %vm9710, %v8575, %v8913
        %v9729 = vsel %vm9710, %v8576, %v8915
        %v9730 = vsel %vm9710, %v8577, %v8917
        %v9731 = vsel %vm9710, %v8578, %v8919
        %v9732 = vsel %vm9710, %v8579, %v8921
        %v9733 = vsel %vm9710, %v8580, %v8923
        %v9734 = vsel %vm9710, %v8581, %v8925
        %v9735 = vsel %vm9710, %v8582, %v8927
        %v9736 = vsel %vm9710, %v8583, %v8929
        %v9737 = vsel %vm9710, %v8584, %v8931
        %v9738 = vsel %vm9710, %v8585, %v8933
        %v9739 = vsel %vm9710, %v8586, %v8935
        %v9740 = vsel %vm9710, %v8587, %v8937
        %v9741 = vsel %vm9710, %v8588, %v8939
        %v9742 = vsel %vm9710, %v8589, %v8941
        %v9743 = vsel %vm9710, %v8590, %v8943
        %v9744 = vsel %vm9710, %v8591, %v8945
        %v9745 = vsel %vm9710, %v8592, %v8947
        %v9746 = vsel %vm9710, %v8593, %v8949
        %v9747 = vsel %vm9710, %v8594, %v8951
        %v9748 = vsel %vm9710, %v8595, %v8953
        %v9749 = vsel %vm9710, %v8596, %v8955
        %v9750 = vsel %vm9710, %v8597, %v8957
        %v9751 = vsel %vm9710, %v8598, %v8959
        %v9752 = vsel %vm9710, %v8599, %v8961
        %v9753 = vsel %vm9710, %v8600, %v8963
        %v9754 = vsel %vm9710, %v8601, %v8965
        %v9755 = vsel %vm9710, %v8602, %v8967
        %v9756 = vsel %vm9710, %v8603, %v8969
        %v9757 = vsel %vm9710, %v8604, %v8971
        %v9758 = vsel %vm9710, %v8605, %v8973
        %v9759 = vsel %vm9710, %v8606, %v8975
        %v9760 = vsel %vm9710, %v8607, %v8977
        %v9761 = vsel %vm9710, %v8608, %v8979
        %v9762 = vsel %vm9710, %v8609, %v8981
        %v9763 = vsel %vm9710, %v8610, %v8983
        %v9764 = vsel %vm9710, %v8611, %v8985
        %v9765 = vsel %vm9710, %v8612, %v8987
        %v9766 = vsel %vm9710, %v8613, %v8989
        %v9767 = vsel %vm9710, %v8614, %v8991
        %v9768 = vsel %vm9710, %v8615, %v8993
        %v9769 = vsel %vm9710, %v8616, %v8995
        %v9770 = vsel %vm9710, %v8617, %v8997
        %v9771 = vsel %vm9710, %v8618, %v8999
        %v9772 = vsel %vm9710, %v8619, %v9001
        %v9773 = vsel %vm9710, %v8620, %v9003
        %v9774 = vsel %vm9710, %v8621, %v9005
        %vm9775 = vcmask 261120
        %v9776 = vsel %vm9775, %v9711, %v9231
        %v9777 = vsel %vm9775, %v9712, %v9233
        %v9778 = vsel %vm9775, %v9713, %v9235
        %v9779 = vsel %vm9775, %v9714, %v9237
        %v9780 = vsel %vm9775, %v9715, %v9239
        %v9781 = vsel %vm9775, %v9716, %v9241
        %v9782 = vsel %vm9775, %v9717, %v9243
        %v9783 = vsel %vm9775, %v9718, %v9245
        %v9784 = vsel %vm9775, %v9719, %v9247
        %v9785 = vsel %vm9775, %v9720, %v9249
        %v9786 = vsel %vm9775, %v9721, %v9251
        %v9787 = vsel %vm9775, %v9722, %v9253
        %v9788 = vsel %vm9775, %v9723, %v9255
        %v9789 = vsel %vm9775, %v9724, %v9257
        %v9790 = vsel %vm9775, %v9725, %v9259
        %v9791 = vsel %vm9775, %v9726, %v9261
        %v9792 = vsel %vm9775, %v9727, %v9263
        %v9793 = vsel %vm9775, %v9728, %v9265
        %v9794 = vsel %vm9775, %v9729, %v9267
        %v9795 = vsel %vm9775, %v9730, %v9269
        %v9796 = vsel %vm9775, %v9731, %v9271
        %v9797 = vsel %vm9775, %v9732, %v9273
        %v9798 = vsel %vm9775, %v9733, %v9275
        %v9799 = vsel %vm9775, %v9734, %v9277
        %v9800 = vsel %vm9775, %v9735, %v9279
        %v9801 = vsel %vm9775, %v9736, %v9281
        %v9802 = vsel %vm9775, %v9737, %v9283
        %v9803 = vsel %vm9775, %v9738, %v9285
        %v9804 = vsel %vm9775, %v9739, %v9287
        %v9805 = vsel %vm9775, %v9740, %v9289
        %v9806 = vsel %vm9775, %v9741, %v9291
        %v9807 = vsel %vm9775, %v9742, %v9293
        %v9808 = vsel %vm9775, %v9743, %v9295
        %v9809 = vsel %vm9775, %v9744, %v9297
        %v9810 = vsel %vm9775, %v9745, %v9299
        %v9811 = vsel %vm9775, %v9746, %v9301
        %v9812 = vsel %vm9775, %v9747, %v9303
        %v9813 = vsel %vm9775, %v9748, %v9305
        %v9814 = vsel %vm9775, %v9749, %v9307
        %v9815 = vsel %vm9775, %v9750, %v9309
        %v9816 = vsel %vm9775, %v9751, %v9311
        %v9817 = vsel %vm9775, %v9752, %v9313
        %v9818 = vsel %vm9775, %v9753, %v9315
        %v9819 = vsel %vm9775, %v9754, %v9317
        %v9820 = vsel %vm9775, %v9755, %v9319
        %v9821 = vsel %vm9775, %v9756, %v9321
        %v9822 = vsel %vm9775, %v9757, %v9323
        %v9823 = vsel %vm9775, %v9758, %v9325
        %v9824 = vsel %vm9775, %v9759, %v9327
        %v9825 = vsel %vm9775, %v9760, %v9329
        %v9826 = vsel %vm9775, %v9761, %v9331
        %v9827 = vsel %vm9775, %v9762, %v9333
        %v9828 = vsel %vm9775, %v9763, %v9335
        %v9829 = vsel %vm9775, %v9764, %v9337
        %v9830 = vsel %vm9775, %v9765, %v9339
        %v9831 = vsel %vm9775, %v9766, %v9341
        %v9832 = vsel %vm9775, %v9767, %v9343
        %v9833 = vsel %vm9775, %v9768, %v9345
        %v9834 = vsel %vm9775, %v9769, %v9347
        %v9835 = vsel %vm9775, %v9770, %v9349
        %v9836 = vsel %vm9775, %v9771, %v9351
        %v9837 = vsel %vm9775, %v9772, %v9353
        %v9838 = vsel %vm9775, %v9773, %v9355
        %v9839 = vsel %vm9775, %v9774, %v9357
        %vm9840 = vcmask 392192
        %v9841 = vsel %vm9840, %v9776, %v9519
        %v9842 = vsel %vm9840, %v9777, %v9521
        %v9843 = vsel %vm9840, %v9778, %v9523
        %v9844 = vsel %vm9840, %v9779, %v9525
        %v9845 = vsel %vm9840, %v9780, %v9527
        %v9846 = vsel %vm9840, %v9781, %v9529
        %v9847 = vsel %vm9840, %v9782, %v9531
        %v9848 = vsel %vm9840, %v9783, %v9533
        %v9849 = vsel %vm9840, %v9784, %v9535
        %v9850 = vsel %vm9840, %v9785, %v9537
        %v9851 = vsel %vm9840, %v9786, %v9539
        %v9852 = vsel %vm9840, %v9787, %v9541
        %v9853 = vsel %vm9840, %v9788, %v9543
        %v9854 = vsel %vm9840, %v9789, %v9545
        %v9855 = vsel %vm9840, %v9790, %v9547
        %v9856 = vsel %vm9840, %v9791, %v9549
        %v9857 = vsel %vm9840, %v9792, %v9551
        %v9858 = vsel %vm9840, %v9793, %v9553
        %v9859 = vsel %vm9840, %v9794, %v9555
        %v9860 = vsel %vm9840, %v9795, %v9557
        %v9861 = vsel %vm9840, %v9796, %v9559
        %v9862 = vsel %vm9840, %v9797, %v9561
        %v9863 = vsel %vm9840, %v9798, %v9563
        %v9864 = vsel %vm9840, %v9799, %v9565
        %v9865 = vsel %vm9840, %v9800, %v9567
        %v9866 = vsel %vm9840, %v9801, %v9569
        %v9867 = vsel %vm9840, %v9802, %v9571
        %v9868 = vsel %vm9840, %v9803, %v9573
        %v9869 = vsel %vm9840, %v9804, %v9575
        %v9870 = vsel %vm9840, %v9805, %v9577
        %v9871 = vsel %vm9840, %v9806, %v9579
        %v9872 = vsel %vm9840, %v9807, %v9581
        %v9873 = vsel %vm9840, %v9808, %v9583
        %v9874 = vsel %vm9840, %v9809, %v9585
        %v9875 = vsel %vm9840, %v9810, %v9587
        %v9876 = vsel %vm9840, %v9811, %v9589
        %v9877 = vsel %vm9840, %v9812, %v9591
        %v9878 = vsel %vm9840, %v9813, %v9593
        %v9879 = vsel %vm9840, %v9814, %v9595
        %v9880 = vsel %vm9840, %v9815, %v9597
        %v9881 = vsel %vm9840, %v9816, %v9599
        %v9882 = vsel %vm9840, %v9817, %v9601
        %v9883 = vsel %vm9840, %v9818, %v9603
        %v9884 = vsel %vm9840, %v9819, %v9605
        %v9885 = vsel %vm9840, %v9820, %v9607
        %v9886 = vsel %vm9840, %v9821, %v9609
        %v9887 = vsel %vm9840, %v9822, %v9611
        %v9888 = vsel %vm9840, %v9823, %v9613
        %v9889 = vsel %vm9840, %v9824, %v9615
        %v9890 = vsel %vm9840, %v9825, %v9617
        %v9891 = vsel %vm9840, %v9826, %v9619
        %v9892 = vsel %vm9840, %v9827, %v9621
        %v9893 = vsel %vm9840, %v9828, %v9623
        %v9894 = vsel %vm9840, %v9829, %v9625
        %v9895 = vsel %vm9840, %v9830, %v9627
        %v9896 = vsel %vm9840, %v9831, %v9629
        %v9897 = vsel %vm9840, %v9832, %v9631
        %v9898 = vsel %vm9840, %v9833, %v9633
        %v9899 = vsel %vm9840, %v9834, %v9635
        %v9900 = vsel %vm9840, %v9835, %v9637
        %v9901 = vsel %vm9840, %v9836, %v9639
        %v9902 = vsel %vm9840, %v9837, %v9641
        %v9903 = vsel %vm9840, %v9838, %v9643
        %v9904 = vsel %vm9840, %v9839, %v9645
        %v9905 = vld [vmem:[%s3] sm:$0xff]
        %v9906 = vld [vmem:[%s3 + $0x8] sm:$0xff]
        %v9907 = vld [vmem:[%s3 + $0x10] sm:$0xff]
        %v9908 = vld [vmem:[%s3 + $0x18] sm:$0xff]
        %v9909 = vld [vmem:[%s3 + $0x20] sm:$0xff]
        %v9910 = vld [vmem:[%s3 + $0x28] sm:$0xff]
        %v9911 = vld [vmem:[%s3 + $0x30] sm:$0xff]
        %v9912 = vld [vmem:[%s3 + $0x38] sm:$0xff]
        %v9913 = vld [vmem:[%s4] sm:$0x1]
        %v9915 = vperm.slane %v9913, 0
        %9981 = vst [vmem:[#allocation1] ss:$4 sm:$0xff] %v9841
        %s9982 = scalar_lea.vmem [#allocation1], 1
        %9983 = vst [vmem:[%s9982] ss:$4 sm:$0xff] %v9842
        %s9984 = scalar_lea.vmem [#allocation1], 2
        %9985 = vst [vmem:[%s9984] ss:$4 sm:$0xff] %v9843
        %s9986 = scalar_lea.vmem [#allocation1], 3
        %9987 = vst [vmem:[%s9986] ss:$4 sm:$0xff] %v9844
        %s9988 = scalar_lea.vmem [#allocation1], 32
        %9989 = vst [vmem:[%s9988] ss:$4 sm:$0xff] %v9845
        %s9990 = scalar_lea.vmem [#allocation1], 33
        %9991 = vst [vmem:[%s9990] ss:$4 sm:$0xff] %v9846
        %s9992 = scalar_lea.vmem [#allocation1], 34
        %9993 = vst [vmem:[%s9992] ss:$4 sm:$0xff] %v9847
        %s9994 = scalar_lea.vmem [#allocation1], 35
        %9995 = vst [vmem:[%s9994] ss:$4 sm:$0xff] %v9848
        %v9996 = vld.sshfl [vmem:[#allocation1] sm:$0xff pattern:$0x73625140]
        %v9997 = vld.sshfl [vmem:[#allocation1 + $0x20] sm:$0xff pattern:$0x73625140]
        %9998 = vst [vmem:[#allocation1] ss:$4 sm:$0xff] %v9849
        %9999 = vst [vmem:[%s9982] ss:$4 sm:$0xff] %v9850
        %10000 = vst [vmem:[%s9984] ss:$4 sm:$0xff] %v9851
        %10001 = vst [vmem:[%s9986] ss:$4 sm:$0xff] %v9852
        %10002 = vst [vmem:[%s9988] ss:$4 sm:$0xff] %v9853
        %10003 = vst [vmem:[%s9990] ss:$4 sm:$0xff] %v9854
        %10004 = vst [vmem:[%s9992] ss:$4 sm:$0xff] %v9855
        %10005 = vst [vmem:[%s9994] ss:$4 sm:$0xff] %v9856
        %v10006 = vld.sshfl [vmem:[#allocation1] sm:$0xff pattern:$0x73625140]
        %v10007 = vld.sshfl [vmem:[#allocation1 + $0x20] sm:$0xff pattern:$0x73625140]
        %10008 = vst [vmem:[#allocation1] ss:$4 sm:$0xff] %v9857
        %10009 = vst [vmem:[%s9982] ss:$4 sm:$0xff] %v9858
        %10010 = vst [vmem:[%s9984] ss:$4 sm:$0xff] %v9859
        %10011 = vst [vmem:[%s9986] ss:$4 sm:$0xff] %v9860
        %10012 = vst [vmem:[%s9988] ss:$4 sm:$0xff] %v9861
        %10013 = vst [vmem:[%s9990] ss:$4 sm:$0xff] %v9862
        %10014 = vst [vmem:[%s9992] ss:$4 sm:$0xff] %v9863
        %10015 = vst [vmem:[%s9994] ss:$4 sm:$0xff] %v9864
        %v10016 = vld.sshfl [vmem:[#allocation1] sm:$0xff pattern:$0x73625140]
        %v10017 = vld.sshfl [vmem:[#allocation1 + $0x20] sm:$0xff pattern:$0x73625140]
        %10018 = vst [vmem:[#allocation1] ss:$4 sm:$0xff] %v9865
        %10019 = vst [vmem:[%s9982] ss:$4 sm:$0xff] %v9866
        %10020 = vst [vmem:[%s9984] ss:$4 sm:$0xff] %v9867
        %10021 = vst [vmem:[%s9986] ss:$4 sm:$0xff] %v9868
        %10022 = vst [vmem:[%s9988] ss:$4 sm:$0xff] %v9869
        %10023 = vst [vmem:[%s9990] ss:$4 sm:$0xff] %v9870
        %10024 = vst [vmem:[%s9992] ss:$4 sm:$0xff] %v9871
        %10025 = vst [vmem:[%s9994] ss:$4 sm:$0xff] %v9872
        %v10026 = vld.sshfl [vmem:[#allocation1] sm:$0xff pattern:$0x73625140]
        %v10027 = vld.sshfl [vmem:[#allocation1 + $0x20] sm:$0xff pattern:$0x73625140]
        %10028 = vst [vmem:[#allocation1] ss:$4 sm:$0xff] %v9873
        %10029 = vst [vmem:[%s9982] ss:$4 sm:$0xff] %v9874
        %10030 = vst [vmem:[%s9984] ss:$4 sm:$0xff] %v9875
        %10031 = vst [vmem:[%s9986] ss:$4 sm:$0xff] %v9876
        %10032 = vst [vmem:[%s9988] ss:$4 sm:$0xff] %v9877
        %10033 = vst [vmem:[%s9990] ss:$4 sm:$0xff] %v9878
        %10034 = vst [vmem:[%s9992] ss:$4 sm:$0xff] %v9879
        %10035 = vst [vmem:[%s9994] ss:$4 sm:$0xff] %v9880
        %v10036 = vld.sshfl [vmem:[#allocation1] sm:$0xff pattern:$0x73625140]
        %v10037 = vld.sshfl [vmem:[#allocation1 + $0x20] sm:$0xff pattern:$0x73625140]
        %10038 = vst [vmem:[#allocation1] ss:$4 sm:$0xff] %v9881
        %10039 = vst [vmem:[%s9982] ss:$4 sm:$0xff] %v9882
        %10040 = vst [vmem:[%s9984] ss:$4 sm:$0xff] %v9883
        %10041 = vst [vmem:[%s9986] ss:$4 sm:$0xff] %v9884
        %10042 = vst [vmem:[%s9988] ss:$4 sm:$0xff] %v9885
        %10043 = vst [vmem:[%s9990] ss:$4 sm:$0xff] %v9886
        %10044 = vst [vmem:[%s9992] ss:$4 sm:$0xff] %v9887
        %10045 = vst [vmem:[%s9994] ss:$4 sm:$0xff] %v9888
        %v10046 = vld.sshfl [vmem:[#allocation1] sm:$0xff pattern:$0x73625140]
        %v10047 = vld.sshfl [vmem:[#allocation1 + $0x20] sm:$0xff pattern:$0x73625140]
        %10048 = vst [vmem:[#allocation1] ss:$4 sm:$0xff] %v9889
        %10049 = vst [vmem:[%s9982] ss:$4 sm:$0xff] %v9890
        %10050 = vst [vmem:[%s9984] ss:$4 sm:$0xff] %v9891
        %10051 = vst [vmem:[%s9986] ss:$4 sm:$0xff] %v9892
        %10052 = vst [vmem:[%s9988] ss:$4 sm:$0xff] %v9893
        %10053 = vst [vmem:[%s9990] ss:$4 sm:$0xff] %v9894
        %10054 = vst [vmem:[%s9992] ss:$4 sm:$0xff] %v9895
        %10055 = vst [vmem:[%s9994] ss:$4 sm:$0xff] %v9896
        %v10056 = vld.sshfl [vmem:[#allocation1] sm:$0xff pattern:$0x73625140]
        %v10057 = vld.sshfl [vmem:[#allocation1 + $0x20] sm:$0xff pattern:$0x73625140]
        %10058 = vst [vmem:[#allocation1] ss:$4 sm:$0xff] %v9897
        %10059 = vst [vmem:[%s9982] ss:$4 sm:$0xff] %v9898
        %10060 = vst [vmem:[%s9984] ss:$4 sm:$0xff] %v9899
        %10061 = vst [vmem:[%s9986] ss:$4 sm:$0xff] %v9900
        %10062 = vst [vmem:[%s9988] ss:$4 sm:$0xff] %v9901
        %10063 = vst [vmem:[%s9990] ss:$4 sm:$0xff] %v9902
        %10064 = vst [vmem:[%s9992] ss:$4 sm:$0xff] %v9903
        %10065 = vst [vmem:[%s9994] ss:$4 sm:$0xff] %v9904
        %v10066 = vld.sshfl [vmem:[#allocation1] sm:$0xff pattern:$0x73625140]
        %v10067 = vld.sshfl [vmem:[#allocation1 + $0x20] sm:$0xff pattern:$0x73625140]
        %vm10068 = vcmask 523264
        %v10069 = vsel %vm10068, %v9996, 0
        %v10071 = vsel %vm10068, %v9997, 0
        %v10073 = vsel %vm10068, %v10006, 0
        %v10075 = vsel %vm10068, %v10007, 0
        %v10077 = vsel %vm10068, %v10016, 0
        %v10079 = vsel %vm10068, %v10017, 0
        %v10081 = vsel %vm10068, %v10026, 0
        %v10083 = vsel %vm10068, %v10027, 0
        %v10085 = vsel %vm10068, %v10036, 0
        %v10087 = vsel %vm10068, %v10037, 0
        %v10089 = vsel %vm10068, %v10046, 0
        %v10091 = vsel %vm10068, %v10047, 0
        %v10093 = vsel %vm10068, %v10056, 0
        %v10095 = vsel %vm10068, %v10057, 0
        %v10097 = vsel %vm10068, %v10066, 0
        %v10099 = vsel %vm10068, %v10067, 0
        %10101 = vmatpush.msra.mxu0 0.0
        %10102 = vmatpush.msra.mxu0 0.0
        %10103 = vmatpush.msra.mxu0 0.0
        %10104 = vmatpush.msra.mxu0 0.0
        %10105 = vmatpush.msra.mxu0 0.0
        %10106 = vmatpush.msra.mxu0 0.0
        %10107 = vmatpush.msra.mxu0 0.0
        %10108 = vmatpush.msra.mxu0 0.0
        %10109 = vmatpush.msra.mxu0 %v9912
        %10110 = vmatpush.msra.mxu0 %v9911
        %10111 = vmatpush.msra.mxu0 %v9910
        %10112 = vmatpush.msra.mxu0 %v9909
        %10113 = vmatpush.msra.mxu0 %v9908
        %10114 = vmatpush.msra.mxu0 %v9907
        %10115 = vmatpush.msra.mxu0 %v9906
        %10116 = vmatpush.msra.mxu0 %v9905
        %10117 = vmatmul.f32.gmra.mxu0 %v10069
        %v10118 = vpop.f32.mrf.mxu0
        %v10119 = vadd.f32 %v9915, %v10118
        %10120 = vmatmul.f32.gmra.mxu0 %v10071
        %v10121 = vpop.f32.mrf.mxu0
        %v10122 = vadd.f32 %v9915, %v10121
        %10123 = vmatmul.f32.gmra.mxu0 %v10073
        %v10124 = vpop.f32.mrf.mxu0
        %v10125 = vadd.f32 %v9915, %v10124
        %10126 = vmatmul.f32.gmra.mxu0 %v10075
        %v10127 = vpop.f32.mrf.mxu0
        %v10128 = vadd.f32 %v9915, %v10127
        %10129 = vmatmul.f32.gmra.mxu0 %v10077
        %v10130 = vpop.f32.mrf.mxu0
        %v10131 = vadd.f32 %v9915, %v10130
        %10132 = vmatmul.f32.gmra.mxu0 %v10079
        %v10133 = vpop.f32.mrf.mxu0
        %v10134 = vadd.f32 %v9915, %v10133
        %10135 = vmatmul.f32.gmra.mxu0 %v10081
        %v10136 = vpop.f32.mrf.mxu0
        %v10137 = vadd.f32 %v9915, %v10136
        %10138 = vmatmul.f32.gmra.mxu0 %v10083
        %v10139 = vpop.f32.mrf.mxu0
        %v10140 = vadd.f32 %v9915, %v10139
        %10141 = vmatmul.f32.gmra.mxu0 %v10085
        %v10142 = vpop.f32.mrf.mxu0
        %v10143 = vadd.f32 %v9915, %v10142
        %10144 = vmatmul.f32.gmra.mxu0 %v10087
        %v10145 = vpop.f32.mrf.mxu0
        %v10146 = vadd.f32 %v9915, %v10145
        %10147 = vmatmul.f32.gmra.mxu0 %v10089
        %v10148 = vpop.f32.mrf.mxu0
        %v10149 = vadd.f32 %v9915, %v10148
        %10150 = vmatmul.f32.gmra.mxu0 %v10091
        %v10151 = vpop.f32.mrf.mxu0
        %v10152 = vadd.f32 %v9915, %v10151
        %10153 = vmatmul.f32.gmra.mxu0 %v10093
        %v10154 = vpop.f32.mrf.mxu0
        %v10155 = vadd.f32 %v9915, %v10154
        %10156 = vmatmul.f32.gmra.mxu0 %v10095
        %v10157 = vpop.f32.mrf.mxu0
        %v10158 = vadd.f32 %v9915, %v10157
        %10159 = vmatmul.f32.gmra.mxu0 %v10097
        %v10160 = vpop.f32.mrf.mxu0
        %v10161 = vadd.f32 %v9915, %v10160
        %10162 = vmatmul.f32.gmra.mxu0 %v10099
        %v10163 = vpop.f32.mrf.mxu0
        %v10164 = vadd.f32 %v9915, %v10163
        %10165 = vdwg.mxu0
        %v10166 = vmax.f32 %v10119, 0.0
        %v10167 = vmax.f32 %v10122, 0.0
        %v10168 = vmax.f32 %v10125, 0.0
        %v10169 = vmax.f32 %v10128, 0.0
        %v10170 = vmax.f32 %v10131, 0.0
        %v10171 = vmax.f32 %v10134, 0.0
        %v10172 = vmax.f32 %v10137, 0.0
        %v10173 = vmax.f32 %v10140, 0.0
        %v10174 = vmax.f32 %v10143, 0.0
        %v10175 = vmax.f32 %v10146, 0.0
        %v10176 = vmax.f32 %v10149, 0.0
        %v10177 = vmax.f32 %v10152, 0.0
        %v10178 = vmax.f32 %v10155, 0.0
        %v10179 = vmax.f32 %v10158, 0.0
        %v10180 = vmax.f32 %v10161, 0.0
        %v10181 = vmax.f32 %v10164, 0.0
        %v10198 = vrot.slane %v10166, 2
        %v10199 = vrot.slane %v10166, 4
        %v10200 = vrot.slane %v10166, 6
        %v10201 = vrot.slane %v10167, 2
        %v10202 = vrot.slane %v10167, 4
        %v10203 = vrot.slane %v10167, 6
        %v10204 = vrot.slane %v10168, 2
        %v10205 = vrot.slane %v10168, 4
        %v10206 = vrot.slane %v10168, 6
        %v10207 = vrot.slane %v10169, 2
        %v10208 = vrot.slane %v10169, 4
        %v10209 = vrot.slane %v10169, 6
        %v10210 = vrot.slane %v10170, 2
        %v10211 = vrot.slane %v10170, 4
        %v10212 = vrot.slane %v10170, 6
        %v10213 = vrot.slane %v10171, 2
        %v10214 = vrot.slane %v10171, 4
        %v10215 = vrot.slane %v10171, 6
        %v10216 = vrot.slane %v10172, 2
        %v10217 = vrot.slane %v10172, 4
        %v10218 = vrot.slane %v10172, 6
        %v10219 = vrot.slane %v10173, 2
        %v10220 = vrot.slane %v10173, 4
        %v10221 = vrot.slane %v10173, 6
        %v10222 = vrot.slane %v10174, 2
        %v10223 = vrot.slane %v10174, 4
        %v10224 = vrot.slane %v10174, 6
        %v10225 = vrot.slane %v10175, 2
        %v10226 = vrot.slane %v10175, 4
        %v10227 = vrot.slane %v10175, 6
        %v10228 = vrot.slane %v10176, 2
        %v10229 = vrot.slane %v10176, 4
        %v10230 = vrot.slane %v10176, 6
        %v10231 = vrot.slane %v10177, 2
        %v10232 = vrot.slane %v10177, 4
        %v10233 = vrot.slane %v10177, 6
        %v10234 = vrot.slane %v10178, 2
        %v10235 = vrot.slane %v10178, 4
        %v10236 = vrot.slane %v10178, 6
        %v10237 = vrot.slane %v10179, 2
        %v10238 = vrot.slane %v10179, 4
        %v10239 = vrot.slane %v10179, 6
        %v10240 = vrot.slane %v10180, 2
        %v10241 = vrot.slane %v10180, 4
        %v10242 = vrot.slane %v10180, 6
        %v10243 = vrot.slane %v10181, 2
        %v10244 = vrot.slane %v10181, 4
        %v10245 = vrot.slane %v10181, 6
        %v10262 = vperm.slane %v10166, 1
        %v10263 = vperm.slane %v10199, 1
        %v10264 = vperm.slane %v10167, 1
        %v10265 = vperm.slane %v10202, 1
        %v10266 = vperm.slane %v10168, 1
        %v10267 = vperm.slane %v10205, 1
        %v10268 = vperm.slane %v10169, 1
        %v10269 = vperm.slane %v10208, 1
        %v10270 = vperm.slane %v10170, 1
        %v10271 = vperm.slane %v10211, 1
        %v10272 = vperm.slane %v10171, 1
        %v10273 = vperm.slane %v10214, 1
        %v10274 = vperm.slane %v10172, 1
        %v10275 = vperm.slane %v10217, 1
        %v10276 = vperm.slane %v10173, 1
        %v10277 = vperm.slane %v10220, 1
        %v10278 = vperm.slane %v10174, 1
        %v10279 = vperm.slane %v10223, 1
        %v10280 = vperm.slane %v10175, 1
        %v10281 = vperm.slane %v10226, 1
        %v10282 = vperm.slane %v10176, 1
        %v10283 = vperm.slane %v10229, 1
        %v10284 = vperm.slane %v10177, 1
        %v10285 = vperm.slane %v10232, 1
        %v10286 = vperm.slane %v10178, 1
        %v10287 = vperm.slane %v10235, 1
        %v10288 = vperm.slane %v10179, 1
        %v10289 = vperm.slane %v10238, 1
        %v10290 = vperm.slane %v10180, 1
        %v10291 = vperm.slane %v10241, 1
        %v10292 = vperm.slane %v10181, 1
        %v10293 = vperm.slane %v10244, 1
        %10294 = vrot.lane.b32.xlu0 %v10262, 32
        %v10295 = vpop.permute.xlu0 %10294
        %10296 = vrot.lane.b32.xlu0 %v10263, 32
        %v10297 = vpop.permute.xlu0 %10296
        %10298 = vrot.lane.b32.xlu0 %v10264, 32
        %v10299 = vpop.permute.xlu0 %10298
        %10300 = vrot.lane.b32.xlu0 %v10265, 32
        %v10301 = vpop.permute.xlu0 %10300
        %10302 = vrot.lane.b32.xlu0 %v10266, 32
        %v10303 = vpop.permute.xlu0 %10302
        %10304 = vrot.lane.b32.xlu0 %v10267, 32
        %v10305 = vpop.permute.xlu0 %10304
        %10306 = vrot.lane.b32.xlu0 %v10268, 32
        %v10307 = vpop.permute.xlu0 %10306
        %10308 = vrot.lane.b32.xlu0 %v10269, 32
        %v10309 = vpop.permute.xlu0 %10308
        %10310 = vrot.lane.b32.xlu0 %v10270, 32
        %v10311 = vpop.permute.xlu0 %10310
        %10312 = vrot.lane.b32.xlu0 %v10271, 32
        %v10313 = vpop.permute.xlu0 %10312
        %10314 = vrot.lane.b32.xlu0 %v10272, 32
        %v10315 = vpop.permute.xlu0 %10314
        %10316 = vrot.lane.b32.xlu0 %v10273, 32
        %v10317 = vpop.permute.xlu0 %10316
        %10318 = vrot.lane.b32.xlu0 %v10274, 32
        %v10319 = vpop.permute.xlu0 %10318
        %10320 = vrot.lane.b32.xlu0 %v10275, 32
        %v10321 = vpop.permute.xlu0 %10320
        %10322 = vrot.lane.b32.xlu0 %v10276, 32
        %v10323 = vpop.permute.xlu0 %10322
        %10324 = vrot.lane.b32.xlu0 %v10277, 32
        %v10325 = vpop.permute.xlu0 %10324
        %10326 = vrot.lane.b32.xlu0 %v10278, 32
        %v10327 = vpop.permute.xlu0 %10326
        %10328 = vrot.lane.b32.xlu0 %v10279, 32
        %v10329 = vpop.permute.xlu0 %10328
        %10330 = vrot.lane.b32.xlu0 %v10280, 32
        %v10331 = vpop.permute.xlu0 %10330
        %10332 = vrot.lane.b32.xlu0 %v10281, 32
        %v10333 = vpop.permute.xlu0 %10332
        %10334 = vrot.lane.b32.xlu0 %v10282, 32
        %v10335 = vpop.permute.xlu0 %10334
        %10336 = vrot.lane.b32.xlu0 %v10283, 32
        %v10337 = vpop.permute.xlu0 %10336
        %10338 = vrot.lane.b32.xlu0 %v10284, 32
        %v10339 = vpop.permute.xlu0 %10338
        %10340 = vrot.lane.b32.xlu0 %v10285, 32
        %v10341 = vpop.permute.xlu0 %10340
        %10342 = vrot.lane.b32.xlu0 %v10286, 32
        %v10343 = vpop.permute.xlu0 %10342
        %10344 = vrot.lane.b32.xlu0 %v10287, 32
        %v10345 = vpop.permute.xlu0 %10344
        %10346 = vrot.lane.b32.xlu0 %v10288, 32
        %v10347 = vpop.permute.xlu0 %10346
        %10348 = vrot.lane.b32.xlu0 %v10289, 32
        %v10349 = vpop.permute.xlu0 %10348
        %10350 = vrot.lane.b32.xlu0 %v10290, 32
        %v10351 = vpop.permute.xlu0 %10350
        %10352 = vrot.lane.b32.xlu0 %v10291, 32
        %v10353 = vpop.permute.xlu0 %10352
        %10354 = vrot.lane.b32.xlu0 %v10292, 32
        %v10355 = vpop.permute.xlu0 %10354
        %10356 = vrot.lane.b32.xlu0 %v10293, 32
        %v10357 = vpop.permute.xlu0 %10356
        %v10390 = vperm.slane %v10198, 0
        %v10391 = vperm.slane %v10200, 0
        %v10392 = vperm.slane %v10201, 0
        %v10393 = vperm.slane %v10203, 0
        %v10394 = vperm.slane %v10204, 0
        %v10395 = vperm.slane %v10206, 0
        %v10396 = vperm.slane %v10207, 0
        %v10397 = vperm.slane %v10209, 0
        %v10398 = vperm.slane %v10210, 0
        %v10399 = vperm.slane %v10212, 0
        %v10400 = vperm.slane %v10213, 0
        %v10401 = vperm.slane %v10215, 0
        %v10402 = vperm.slane %v10216, 0
        %v10403 = vperm.slane %v10218, 0
        %v10404 = vperm.slane %v10219, 0
        %v10405 = vperm.slane %v10221, 0
        %v10406 = vperm.slane %v10222, 0
        %v10407 = vperm.slane %v10224, 0
        %v10408 = vperm.slane %v10225, 0
        %v10409 = vperm.slane %v10227, 0
        %v10410 = vperm.slane %v10228, 0
        %v10411 = vperm.slane %v10230, 0
        %v10412 = vperm.slane %v10231, 0
        %v10413 = vperm.slane %v10233, 0
        %v10414 = vperm.slane %v10234, 0
        %v10415 = vperm.slane %v10236, 0
        %v10416 = vperm.slane %v10237, 0
        %v10417 = vperm.slane %v10239, 0
        %v10418 = vperm.slane %v10240, 0
        %v10419 = vperm.slane %v10242, 0
        %v10420 = vperm.slane %v10243, 0
        %v10421 = vperm.slane %v10245, 0
        %10422 = vrot.lane.b32.xlu0 %v10390, 64
        %v10423 = vpop.permute.xlu0 %10422
        %10424 = vrot.lane.b32.xlu0 %v10391, 64
        %v10425 = vpop.permute.xlu0 %10424
        %10426 = vrot.lane.b32.xlu0 %v10392, 64
        %v10427 = vpop.permute.xlu0 %10426
        %10428 = vrot.lane.b32.xlu0 %v10393, 64
        %v10429 = vpop.permute.xlu0 %10428
        %10430 = vrot.lane.b32.xlu0 %v10394, 64
        %v10431 = vpop.permute.xlu0 %10430
        %10432 = vrot.lane.b32.xlu0 %v10395, 64
        %v10433 = vpop.permute.xlu0 %10432
        %10434 = vrot.lane.b32.xlu0 %v10396, 64
        %v10435 = vpop.permute.xlu0 %10434
        %10436 = vrot.lane.b32.xlu0 %v10397, 64
        %v10437 = vpop.permute.xlu0 %10436
        %10438 = vrot.lane.b32.xlu0 %v10398, 64
        %v10439 = vpop.permute.xlu0 %10438
        %10440 = vrot.lane.b32.xlu0 %v10399, 64
        %v10441 = vpop.permute.xlu0 %10440
        %10442 = vrot.lane.b32.xlu0 %v10400, 64
        %v10443 = vpop.permute.xlu0 %10442
        %10444 = vrot.lane.b32.xlu0 %v10401, 64
        %v10445 = vpop.permute.xlu0 %10444
        %10446 = vrot.lane.b32.xlu0 %v10402, 64
        %v10447 = vpop.permute.xlu0 %10446
        %10448 = vrot.lane.b32.xlu0 %v10403, 64
        %v10449 = vpop.permute.xlu0 %10448
        %10450 = vrot.lane.b32.xlu0 %v10404, 64
        %v10451 = vpop.permute.xlu0 %10450
        %10452 = vrot.lane.b32.xlu0 %v10405, 64
        %v10453 = vpop.permute.xlu0 %10452
        %10454 = vrot.lane.b32.xlu0 %v10406, 64
        %v10455 = vpop.permute.xlu0 %10454
        %10456 = vrot.lane.b32.xlu0 %v10407, 64
        %v10457 = vpop.permute.xlu0 %10456
        %10458 = vrot.lane.b32.xlu0 %v10408, 64
        %v10459 = vpop.permute.xlu0 %10458
        %10460 = vrot.lane.b32.xlu0 %v10409, 64
        %v10461 = vpop.permute.xlu0 %10460
        %10462 = vrot.lane.b32.xlu0 %v10410, 64
        %v10463 = vpop.permute.xlu0 %10462
        %10464 = vrot.lane.b32.xlu0 %v10411, 64
        %v10465 = vpop.permute.xlu0 %10464
        %10466 = vrot.lane.b32.xlu0 %v10412, 64
        %v10467 = vpop.permute.xlu0 %10466
        %10468 = vrot.lane.b32.xlu0 %v10413, 64
        %v10469 = vpop.permute.xlu0 %10468
        %10470 = vrot.lane.b32.xlu0 %v10414, 64
        %v10471 = vpop.permute.xlu0 %10470
        %10472 = vrot.lane.b32.xlu0 %v10415, 64
        %v10473 = vpop.permute.xlu0 %10472
        %10474 = vrot.lane.b32.xlu0 %v10416, 64
        %v10475 = vpop.permute.xlu0 %10474
        %10476 = vrot.lane.b32.xlu0 %v10417, 64
        %v10477 = vpop.permute.xlu0 %10476
        %10478 = vrot.lane.b32.xlu0 %v10418, 64
        %v10479 = vpop.permute.xlu0 %10478
        %10480 = vrot.lane.b32.xlu0 %v10419, 64
        %v10481 = vpop.permute.xlu0 %10480
        %10482 = vrot.lane.b32.xlu0 %v10420, 64
        %v10483 = vpop.permute.xlu0 %10482
        %10484 = vrot.lane.b32.xlu0 %v10421, 64
        %v10485 = vpop.permute.xlu0 %10484
        %v10518 = vperm.slane %v10198, 1
        %v10519 = vperm.slane %v10200, 1
        %v10520 = vperm.slane %v10201, 1
        %v10521 = vperm.slane %v10203, 1
        %v10522 = vperm.slane %v10204, 1
        %v10523 = vperm.slane %v10206, 1
        %v10524 = vperm.slane %v10207, 1
        %v10525 = vperm.slane %v10209, 1
        %v10526 = vperm.slane %v10210, 1
        %v10527 = vperm.slane %v10212, 1
        %v10528 = vperm.slane %v10213, 1
        %v10529 = vperm.slane %v10215, 1
        %v10530 = vperm.slane %v10216, 1
        %v10531 = vperm.slane %v10218, 1
        %v10532 = vperm.slane %v10219, 1
        %v10533 = vperm.slane %v10221, 1
        %v10534 = vperm.slane %v10222, 1
        %v10535 = vperm.slane %v10224, 1
        %v10536 = vperm.slane %v10225, 1
        %v10537 = vperm.slane %v10227, 1
        %v10538 = vperm.slane %v10228, 1
        %v10539 = vperm.slane %v10230, 1
        %v10540 = vperm.slane %v10231, 1
        %v10541 = vperm.slane %v10233, 1
        %v10542 = vperm.slane %v10234, 1
        %v10543 = vperm.slane %v10236, 1
        %v10544 = vperm.slane %v10237, 1
        %v10545 = vperm.slane %v10239, 1
        %v10546 = vperm.slane %v10240, 1
        %v10547 = vperm.slane %v10242, 1
        %v10548 = vperm.slane %v10243, 1
        %v10549 = vperm.slane %v10245, 1
        %10550 = vrot.lane.b32.xlu0 %v10518, 96
        %v10551 = vpop.permute.xlu0 %10550
        %10552 = vrot.lane.b32.xlu0 %v10519, 96
        %v10553 = vpop.permute.xlu0 %10552
        %10554 = vrot.lane.b32.xlu0 %v10520, 96
        %v10555 = vpop.permute.xlu0 %10554
        %10556 = vrot.lane.b32.xlu0 %v10521, 96
        %v10557 = vpop.permute.xlu0 %10556
        %10558 = vrot.lane.b32.xlu0 %v10522, 96
        %v10559 = vpop.permute.xlu0 %10558
        %10560 = vrot.lane.b32.xlu0 %v10523, 96
        %v10561 = vpop.permute.xlu0 %10560
        %10562 = vrot.lane.b32.xlu0 %v10524, 96
        %v10563 = vpop.permute.xlu0 %10562
        %10564 = vrot.lane.b32.xlu0 %v10525, 96
        %v10565 = vpop.permute.xlu0 %10564
        %10566 = vrot.lane.b32.xlu0 %v10526, 96
        %v10567 = vpop.permute.xlu0 %10566
        %10568 = vrot.lane.b32.xlu0 %v10527, 96
        %v10569 = vpop.permute.xlu0 %10568
        %10570 = vrot.lane.b32.xlu0 %v10528, 96
        %v10571 = vpop.permute.xlu0 %10570
        %10572 = vrot.lane.b32.xlu0 %v10529, 96
        %v10573 = vpop.permute.xlu0 %10572
        %10574 = vrot.lane.b32.xlu0 %v10530, 96
        %v10575 = vpop.permute.xlu0 %10574
        %10576 = vrot.lane.b32.xlu0 %v10531, 96
        %v10577 = vpop.permute.xlu0 %10576
        %10578 = vrot.lane.b32.xlu0 %v10532, 96
        %v10579 = vpop.permute.xlu0 %10578
        %10580 = vrot.lane.b32.xlu0 %v10533, 96
        %v10581 = vpop.permute.xlu0 %10580
        %10582 = vrot.lane.b32.xlu0 %v10534, 96
        %v10583 = vpop.permute.xlu0 %10582
        %10584 = vrot.lane.b32.xlu0 %v10535, 96
        %v10585 = vpop.permute.xlu0 %10584
        %10586 = vrot.lane.b32.xlu0 %v10536, 96
        %v10587 = vpop.permute.xlu0 %10586
        %10588 = vrot.lane.b32.xlu0 %v10537, 96
        %v10589 = vpop.permute.xlu0 %10588
        %10590 = vrot.lane.b32.xlu0 %v10538, 96
        %v10591 = vpop.permute.xlu0 %10590
        %10592 = vrot.lane.b32.xlu0 %v10539, 96
        %v10593 = vpop.permute.xlu0 %10592
        %10594 = vrot.lane.b32.xlu0 %v10540, 96
        %v10595 = vpop.permute.xlu0 %10594
        %10596 = vrot.lane.b32.xlu0 %v10541, 96
        %v10597 = vpop.permute.xlu0 %10596
        %10598 = vrot.lane.b32.xlu0 %v10542, 96
        %v10599 = vpop.permute.xlu0 %10598
        %10600 = vrot.lane.b32.xlu0 %v10543, 96
        %v10601 = vpop.permute.xlu0 %10600
        %10602 = vrot.lane.b32.xlu0 %v10544, 96
        %v10603 = vpop.permute.xlu0 %10602
        %10604 = vrot.lane.b32.xlu0 %v10545, 96
        %v10605 = vpop.permute.xlu0 %10604
        %10606 = vrot.lane.b32.xlu0 %v10546, 96
        %v10607 = vpop.permute.xlu0 %10606
        %10608 = vrot.lane.b32.xlu0 %v10547, 96
        %v10609 = vpop.permute.xlu0 %10608
        %10610 = vrot.lane.b32.xlu0 %v10548, 96
        %v10611 = vpop.permute.xlu0 %10610
        %10612 = vrot.lane.b32.xlu0 %v10549, 96
        %v10613 = vpop.permute.xlu0 %10612
        %v10646 = vsel %vm9775, %v10166, %v10295
        %v10647 = vsel %vm9775, %v10199, %v10297
        %v10648 = vsel %vm9775, %v10167, %v10299
        %v10649 = vsel %vm9775, %v10202, %v10301
        %v10650 = vsel %vm9775, %v10168, %v10303
        %v10651 = vsel %vm9775, %v10205, %v10305
        %v10652 = vsel %vm9775, %v10169, %v10307
        %v10653 = vsel %vm9775, %v10208, %v10309
        %v10654 = vsel %vm9775, %v10170, %v10311
        %v10655 = vsel %vm9775, %v10211, %v10313
        %v10656 = vsel %vm9775, %v10171, %v10315
        %v10657 = vsel %vm9775, %v10214, %v10317
        %v10658 = vsel %vm9775, %v10172, %v10319
        %v10659 = vsel %vm9775, %v10217, %v10321
        %v10660 = vsel %vm9775, %v10173, %v10323
        %v10661 = vsel %vm9775, %v10220, %v10325
        %v10662 = vsel %vm9775, %v10174, %v10327
        %v10663 = vsel %vm9775, %v10223, %v10329
        %v10664 = vsel %vm9775, %v10175, %v10331
        %v10665 = vsel %vm9775, %v10226, %v10333
        %v10666 = vsel %vm9775, %v10176, %v10335
        %v10667 = vsel %vm9775, %v10229, %v10337
        %v10668 = vsel %vm9775, %v10177, %v10339
        %v10669 = vsel %vm9775, %v10232, %v10341
        %v10670 = vsel %vm9775, %v10178, %v10343
        %v10671 = vsel %vm9775, %v10235, %v10345
        %v10672 = vsel %vm9775, %v10179, %v10347
        %v10673 = vsel %vm9775, %v10238, %v10349
        %v10674 = vsel %vm9775, %v10180, %v10351
        %v10675 = vsel %vm9775, %v10241, %v10353
        %v10676 = vsel %vm9775, %v10181, %v10355
        %v10677 = vsel %vm9775, %v10244, %v10357
        %v10678 = vsel %vm10068, %v10646, %v10423
        %v10679 = vsel %vm10068, %v10647, %v10425
        %v10680 = vsel %vm10068, %v10648, %v10427
        %v10681 = vsel %vm10068, %v10649, %v10429
        %v10682 = vsel %vm10068, %v10650, %v10431
        %v10683 = vsel %vm10068, %v10651, %v10433
        %v10684 = vsel %vm10068, %v10652, %v10435
        %v10685 = vsel %vm10068, %v10653, %v10437
        %v10686 = vsel %vm10068, %v10654, %v10439
        %v10687 = vsel %vm10068, %v10655, %v10441
        %v10688 = vsel %vm10068, %v10656, %v10443
        %v10689 = vsel %vm10068, %v10657, %v10445
        %v10690 = vsel %vm10068, %v10658, %v10447
        %v10691 = vsel %vm10068, %v10659, %v10449
        %v10692 = vsel %vm10068, %v10660, %v10451
        %v10693 = vsel %vm10068, %v10661, %v10453
        %v10694 = vsel %vm10068, %v10662, %v10455
        %v10695 = vsel %vm10068, %v10663, %v10457
        %v10696 = vsel %vm10068, %v10664, %v10459
        %v10697 = vsel %vm10068, %v10665, %v10461
        %v10698 = vsel %vm10068, %v10666, %v10463
        %v10699 = vsel %vm10068, %v10667, %v10465
        %v10700 = vsel %vm10068, %v10668, %v10467
        %v10701 = vsel %vm10068, %v10669, %v10469
        %v10702 = vsel %vm10068, %v10670, %v10471
        %v10703 = vsel %vm10068, %v10671, %v10473
        %v10704 = vsel %vm10068, %v10672, %v10475
        %v10705 = vsel %vm10068, %v10673, %v10477
        %v10706 = vsel %vm10068, %v10674, %v10479
        %v10707 = vsel %vm10068, %v10675, %v10481
        %v10708 = vsel %vm10068, %v10676, %v10483
        %v10709 = vsel %vm10068, %v10677, %v10485
        %vm10710 = vcmask 785408
        %v10711 = vsel %vm10710, %v10678, %v10551
        %v10712 = vsel %vm10710, %v10679, %v10553
        %v10713 = vsel %vm10710, %v10680, %v10555
        %v10714 = vsel %vm10710, %v10681, %v10557
        %v10715 = vsel %vm10710, %v10682, %v10559
        %v10716 = vsel %vm10710, %v10683, %v10561
        %v10717 = vsel %vm10710, %v10684, %v10563
        %v10718 = vsel %vm10710, %v10685, %v10565
        %v10719 = vsel %vm10710, %v10686, %v10567
        %v10720 = vsel %vm10710, %v10687, %v10569
        %v10721 = vsel %vm10710, %v10688, %v10571
        %v10722 = vsel %vm10710, %v10689, %v10573
        %v10723 = vsel %vm10710, %v10690, %v10575
        %v10724 = vsel %vm10710, %v10691, %v10577
        %v10725 = vsel %vm10710, %v10692, %v10579
        %v10726 = vsel %vm10710, %v10693, %v10581
        %v10727 = vsel %vm10710, %v10694, %v10583
        %v10728 = vsel %vm10710, %v10695, %v10585
        %v10729 = vsel %vm10710, %v10696, %v10587
        %v10730 = vsel %vm10710, %v10697, %v10589
        %v10731 = vsel %vm10710, %v10698, %v10591
        %v10732 = vsel %vm10710, %v10699, %v10593
        %v10733 = vsel %vm10710, %v10700, %v10595
        %v10734 = vsel %vm10710, %v10701, %v10597
        %v10735 = vsel %vm10710, %v10702, %v10599
        %v10736 = vsel %vm10710, %v10703, %v10601
        %v10737 = vsel %vm10710, %v10704, %v10603
        %v10738 = vsel %vm10710, %v10705, %v10605
        %v10739 = vsel %vm10710, %v10706, %v10607
        %v10740 = vsel %vm10710, %v10707, %v10609
        %v10741 = vsel %vm10710, %v10708, %v10611
        %v10742 = vsel %vm10710, %v10709, %v10613
        %v10743 = vld [vmem:[%s5] sm:$0xff]
        %v10744 = vld [vmem:[%s5 + $0x8] sm:$0xff]
        %v10745 = vld [vmem:[%s5 + $0x10] sm:$0xff]
        %v10746 = vld [vmem:[%s5 + $0x18] sm:$0xff]
        %v10747 = vld [vmem:[%s5 + $0x20] sm:$0xff]
        %v10748 = vld [vmem:[%s5 + $0x28] sm:$0xff]
        %v10749 = vld [vmem:[%s5 + $0x30] sm:$0xff]
        %v10750 = vld [vmem:[%s5 + $0x38] sm:$0xff]
        %v10751 = vld [vmem:[%s5 + $0x40] sm:$0xff]
        %v10752 = vld [vmem:[%s5 + $0x48] sm:$0xff]
        %v10753 = vld [vmem:[%s5 + $0x50] sm:$0xff]
        %v10754 = vld [vmem:[%s5 + $0x58] sm:$0xff]
        %v10755 = vld [vmem:[%s5 + $0x60] sm:$0xff]
        %v10756 = vld [vmem:[%s5 + $0x68] sm:$0xff]
        %v10757 = vld [vmem:[%s5 + $0x70] sm:$0xff]
        %v10758 = vld [vmem:[%s5 + $0x78] sm:$0xff]
        %v10759 = vld [vmem:[%s6] sm:$0x1]
        %v10761 = vperm.slane %v10759, 0
        %v10795 = vrot.slane %v10712, 7
        %v10796 = vsel %vm8557, %v10795, %v10711
        %v10797 = vrot.slane %v10713, 6
        %vm10798 = vcmask 1042434
        %v10799 = vsel %vm10798, %v10797, %v10796
        %v10800 = vrot.slane %v10714, 5
        %vm10801 = vcmask 1043459
        %v10802 = vsel %vm10801, %v10800, %v10799
        %v10803 = vrot.slane %v10715, 4
        %vm10804 = vcmask 1044484
        %v10805 = vsel %vm10804, %v10803, %v10802
        %v10806 = vrot.slane %v10716, 3
        %vm10807 = vcmask 1045509
        %v10808 = vsel %vm10807, %v10806, %v10805
        %v10809 = vrot.slane %v10717, 2
        %vm10810 = vcmask 1046534
        %v10811 = vsel %vm10810, %v10809, %v10808
        %v10812 = vrot.slane %v10718, 1
        %vm10813 = vcmask 1047559
        %v10814 = vsel %vm10813, %v10812, %v10811
        %v10815 = vrot.slane %v10720, 7
        %v10816 = vsel %vm8557, %v10815, %v10719
        %v10817 = vrot.slane %v10721, 6
        %v10818 = vsel %vm10798, %v10817, %v10816
        %v10819 = vrot.slane %v10722, 5
        %v10820 = vsel %vm10801, %v10819, %v10818
        %v10821 = vrot.slane %v10723, 4
        %v10822 = vsel %vm10804, %v10821, %v10820
        %v10823 = vrot.slane %v10724, 3
        %v10824 = vsel %vm10807, %v10823, %v10822
        %v10825 = vrot.slane %v10725, 2
        %v10826 = vsel %vm10810, %v10825, %v10824
        %v10827 = vrot.slane %v10726, 1
        %v10828 = vsel %vm10813, %v10827, %v10826
        %v10829 = vrot.slane %v10728, 7
        %v10830 = vsel %vm8557, %v10829, %v10727
        %v10831 = vrot.slane %v10729, 6
        %v10832 = vsel %vm10798, %v10831, %v10830
        %v10833 = vrot.slane %v10730, 5
        %v10834 = vsel %vm10801, %v10833, %v10832
        %v10835 = vrot.slane %v10731, 4
        %v10836 = vsel %vm10804, %v10835, %v10834
        %v10837 = vrot.slane %v10732, 3
        %v10838 = vsel %vm10807, %v10837, %v10836
        %v10839 = vrot.slane %v10733, 2
        %v10840 = vsel %vm10810, %v10839, %v10838
        %v10841 = vrot.slane %v10734, 1
        %v10842 = vsel %vm10813, %v10841, %v10840
        %v10843 = vrot.slane %v10736, 7
        %v10844 = vsel %vm8557, %v10843, %v10735
        %v10845 = vrot.slane %v10737, 6
        %v10846 = vsel %vm10798, %v10845, %v10844
        %v10847 = vrot.slane %v10738, 5
        %v10848 = vsel %vm10801, %v10847, %v10846
        %v10849 = vrot.slane %v10739, 4
        %v10850 = vsel %vm10804, %v10849, %v10848
        %v10851 = vrot.slane %v10740, 3
        %v10852 = vsel %vm10807, %v10851, %v10850
        %v10853 = vrot.slane %v10741, 2
        %v10854 = vsel %vm10810, %v10853, %v10852
        %v10855 = vrot.slane %v10742, 1
        %v10856 = vsel %vm10813, %v10855, %v10854
        %10861 = vmatpush.msra.mxu0 %v10758
        %10862 = vmatpush.msra.mxu0 %v10757
        %10863 = vmatpush.msra.mxu0 %v10756
        %10864 = vmatpush.msra.mxu0 %v10755
        %10865 = vmatpush.msra.mxu0 %v10754
        %10866 = vmatpush.msra.mxu0 %v10753
        %10867 = vmatpush.msra.mxu0 %v10752
        %10868 = vmatpush.msra.mxu0 %v10751
        %10869 = vmatpush.msra.mxu0 %v10750
        %10870 = vmatpush.msra.mxu0 %v10749
        %10871 = vmatpush.msra.mxu0 %v10748
        %10872 = vmatpush.msra.mxu0 %v10747
        %10873 = vmatpush.msra.mxu0 %v10746
        %10874 = vmatpush.msra.mxu0 %v10745
        %10875 = vmatpush.msra.mxu0 %v10744
        %10876 = vmatpush.msra.mxu0 %v10743
        %10877 = vmatmul.f32.gmra.mxu0 %v10814
        %v10878 = vpop.f32.mrf.mxu0
        %v10879 = vadd.f32 %v10761, %v10878
        %10880 = vmatmul.f32.gmra.mxu0 %v10828
        %v10881 = vpop.f32.mrf.mxu0
        %v10882 = vadd.f32 %v10761, %v10881
        %10883 = vmatmul.f32.gmra.mxu0 %v10842
        %v10884 = vpop.f32.mrf.mxu0
        %v10885 = vadd.f32 %v10761, %v10884
        %10886 = vmatmul.f32.gmra.mxu0 %v10856
        %v10887 = vpop.f32.mrf.mxu0
        %v10888 = vadd.f32 %v10761, %v10887
        %10889 = vdwg.mxu0
        %v10890 = vmax.f32 %v10879, 0.0
        %v10891 = vmax.f32 %v10882, 0.0
        %v10892 = vmax.f32 %v10885, 0.0
        %v10893 = vmax.f32 %v10888, 0.0
        %v10894 = vld [vmem:[%s7] sm:$0xff]
        %v10895 = vld [vmem:[%s7 + $0x8] sm:$0xff]
        %v10896 = vld [vmem:[%s7 + $0x10] sm:$0xff]
        %v10897 = vld [vmem:[%s7 + $0x18] sm:$0xff]
        %v10898 = vld [vmem:[%s7 + $0x20] sm:$0xff]
        %v10899 = vld [vmem:[%s7 + $0x28] sm:$0xff]
        %v10900 = vld [vmem:[%s7 + $0x30] sm:$0xff]
        %v10901 = vld [vmem:[%s7 + $0x38] sm:$0xff]
        %v10902 = vld [vmem:[%s8] sm:$0x1]
        %v10904 = vperm.slane %v10902, 0
        %v10907 = vsel %vm10068, %v10890, 0
        %v10910 = vsel %vm10068, %v10891, 0
        %v10913 = vsel %vm10068, %v10892, 0
        %v10916 = vsel %vm10068, %v10893, 0
        %10918 = vmatpush.msra.mxu0 0.0
        %10919 = vmatpush.msra.mxu0 0.0
        %10920 = vmatpush.msra.mxu0 0.0
        %10921 = vmatpush.msra.mxu0 0.0
        %10922 = vmatpush.msra.mxu0 0.0
        %10923 = vmatpush.msra.mxu0 0.0
        %10924 = vmatpush.msra.mxu0 0.0
        %10925 = vmatpush.msra.mxu0 0.0
        %10926 = vmatpush.msra.mxu0 %v10901
        %10927 = vmatpush.msra.mxu0 %v10900
        %10928 = vmatpush.msra.mxu0 %v10899
        %10929 = vmatpush.msra.mxu0 %v10898
        %10930 = vmatpush.msra.mxu0 %v10897
        %10931 = vmatpush.msra.mxu0 %v10896
        %10932 = vmatpush.msra.mxu0 %v10895
        %10933 = vmatpush.msra.mxu0 %v10894
        %10934 = vmatmul.f32.gmra.mxu0 %v10907
        %v10935 = vpop.f32.mrf.mxu0
        %v10936 = vadd.f32 %v10904, %v10935
        %10937 = vmatmul.f32.gmra.mxu0 %v10910
        %v10938 = vpop.f32.mrf.mxu0
        %v10939 = vadd.f32 %v10904, %v10938
        %10940 = vmatmul.f32.gmra.mxu0 %v10913
        %v10941 = vpop.f32.mrf.mxu0
        %v10942 = vadd.f32 %v10904, %v10941
        %10943 = vmatmul.f32.gmra.mxu0 %v10916
        %v10944 = vpop.f32.mrf.mxu0
        %v10945 = vadd.f32 %v10904, %v10944
        %10946 = vdwg.mxu0
        %v10947 = vtanh.pop %v10936
        %v10948 = vtanh.pop %v10939
        %v10949 = vtanh.pop %v10942
        %v10950 = vtanh.pop %v10945
        %v10951 = vld [vmem:[%s9] sm:$0xff]
        %v10952 = vld [vmem:[%s9 + $0x8] sm:$0xff]
        %v10953 = vld [vmem:[%s9 + $0x10] sm:$0xff]
        %v10954 = vld [vmem:[%s9 + $0x18] sm:$0xff]
        %v10955 = vld [vmem:[%s9 + $0x20] sm:$0xff]
        %v10956 = vld [vmem:[%s9 + $0x28] sm:$0xff]
        %v10957 = vld [vmem:[%s9 + $0x30] sm:$0xff]
        %v10958 = vld [vmem:[%s9 + $0x38] sm:$0xff]
        %v10959 = vld [vmem:[%s9 + $0x40] sm:$0xff]
        %v10960 = vld [vmem:[%s9 + $0x48] sm:$0xff]
        %v10961 = vld [vmem:[%s9 + $0x50] sm:$0xff]
        %v10962 = vld [vmem:[%s9 + $0x58] sm:$0xff]
        %v10963 = vld [vmem:[%s9 + $0x60] sm:$0xff]
        %v10964 = vld [vmem:[%s9 + $0x68] sm:$0xff]
        %v10965 = vld [vmem:[%s9 + $0x70] sm:$0xff]
        %v10966 = vld [vmem:[%s9 + $0x78] sm:$0xff]
        %v10967 = vld [vmem:[%s10] sm:$0x1]
        %v10969 = vperm.slane %v10967, 0
        %10971 = vmatpush.msra.mxu0 %v10966
        %10972 = vmatpush.msra.mxu0 %v10965
        %10973 = vmatpush.msra.mxu0 %v10964
        %10974 = vmatpush.msra.mxu0 %v10963
        %10975 = vmatpush.msra.mxu0 %v10962
        %10976 = vmatpush.msra.mxu0 %v10961
        %10977 = vmatpush.msra.mxu0 %v10960
        %10978 = vmatpush.msra.mxu0 %v10959
        %10979 = vmatpush.msra.mxu0 %v10958
        %10980 = vmatpush.msra.mxu0 %v10957
        %10981 = vmatpush.msra.mxu0 %v10956
        %10982 = vmatpush.msra.mxu0 %v10955
        %10983 = vmatpush.msra.mxu0 %v10954
        %10984 = vmatpush.msra.mxu0 %v10953
        %10985 = vmatpush.msra.mxu0 %v10952
        %10986 = vmatpush.msra.mxu0 %v10951
        %10987 = vmatmul.f32.gmra.mxu0 %v10947
        %v10988 = vpop.f32.mrf.mxu0
        %v10989 = vadd.f32 %v10969, %v10988
        %10990 = vmatmul.f32.gmra.mxu0 %v10948
        %v10991 = vpop.f32.mrf.mxu0
        %v10992 = vadd.f32 %v10969, %v10991
        %10993 = vmatmul.f32.gmra.mxu0 %v10949
        %v10994 = vpop.f32.mrf.mxu0
        %v10995 = vadd.f32 %v10969, %v10994
        %10996 = vmatmul.f32.gmra.mxu0 %v10950
        %v10997 = vpop.f32.mrf.mxu0
        %v10998 = vadd.f32 %v10969, %v10997
        %10999 = vdwg.mxu0
        %v11000 = vlaneseq
        %v11001 = vand.u32 %v11000, 127
        %vm11002 = vcmp.lt.s32.totalorder %v11001, 5
        %v11003 = vsel %vm11002, %v10989, -1e+30
        %v11004 = vsel %vm11002, %v10992, -1e+30
        %v11005 = vsel %vm11002, %v10995, -1e+30
        %v11006 = vsel %vm11002, %v10998, -1e+30
        %11007 = vmax.xlane.f32.xlu0 %v11003
        %v11008 = vpop.xlane.xlu0 %11007
        %11009 = vmax.xlane.f32.xlu0 %v11004
        %v11010 = vpop.xlane.xlu0 %11009
        %11011 = vmax.xlane.f32.xlu0 %v11005
        %v11012 = vpop.xlane.xlu0 %11011
        %11013 = vmax.xlane.f32.xlu0 %v11006
        %v11014 = vpop.xlane.xlu0 %11013
        %v11015 = vsub.f32 %v11003, %v11008
        %v11016 = vsub.f32 %v11004, %v11010
        %v11017 = vsub.f32 %v11005, %v11012
        %v11018 = vsub.f32 %v11006, %v11014
        %v11019 = vmul.f32 %v11015, 1.442695
        %v11020 = vpow.pop %v11019
        %v11021 = vmul.f32 %v11016, 1.442695
        %v11022 = vpow.pop %v11021
        %v11023 = vmul.f32 %v11017, 1.442695
        %v11024 = vpow.pop %v11023
        %v11025 = vmul.f32 %v11018, 1.442695
        %v11026 = vpow.pop %v11025
        %11027 = vadd.xlane.f32.xlu0 %v11020
        %v11028 = vpop.xlane.xlu0 %11027
        %11029 = vadd.xlane.f32.xlu0 %v11022
        %v11030 = vpop.xlane.xlu0 %11029
        %11031 = vadd.xlane.f32.xlu0 %v11024
        %v11032 = vpop.xlane.xlu0 %11031
        %11033 = vadd.xlane.f32.xlu0 %v11026
        %v11034 = vpop.xlane.xlu0 %11033
        %v11035 = vlog2.pop %v11028
        %v11036 = vmul.f32 %v11035, 0.6931472
        %v11037 = vlog2.pop %v11030
        %v11038 = vmul.f32 %v11037, 0.6931472
        %v11039 = vlog2.pop %v11032
        %v11040 = vmul.f32 %v11039, 0.6931472
        %v11041 = vlog2.pop %v11034
        %v11042 = vmul.f32 %v11041, 0.6931472
        %v11043 = vadd.f32 %v11008, %v11036
        %v11044 = vadd.f32 %v11010, %v11038
        %v11045 = vadd.f32 %v11012, %v11040
        %v11046 = vadd.f32 %v11014, %v11042
        %v11047 = vsub.f32 %v10989, %v11043
        %v11048 = vsub.f32 %v10992, %v11044
        %v11049 = vsub.f32 %v10995, %v11045
        %v11050 = vsub.f32 %v10998, %v11046
        %vm11051 = vcmp.eq.s32.totalorder %v11001, 5
        %v11052 = vsel %vm11051, %v10989, 0.0
        %v11053 = vsel %vm11051, %v10992, 0.0
        %v11054 = vsel %vm11051, %v10995, 0.0
        %v11055 = vsel %vm11051, %v10998, 0.0
        %v11056 = vsel %vm11002, %v11047, %v11052
        %v11057 = vsel %vm11002, %v11048, %v11053
        %v11058 = vsel %vm11002, %v11049, %v11054
        %v11059 = vsel %vm11002, %v11050, %v11055
        %11060 = vst [vmem:[%s382] sm:$0xff] %v11056
        %11061 = vst [vmem:[%s382 + $0x8] sm:$0xff] %v11057
        %11062 = vst [vmem:[%s382 + $0x10] sm:$0xff] %v11058
        %11063 = vst [vmem:[%s382 + $0x18] sm:$0xff] %v11059
        %s11064 = sand.u32 %s269, 1
        %s11065 = scalar_lea.sflag [#allocation3], %s11064
        %s11066 = sand.u32 %s269, 1
        %s11067 = smul.addr %s11066, 32
        %s11068 = scalar_lea.vmem [#allocation2], %s11067
        // Predicated region
        $region65: #{tpu_custom_call.1} parent=63 // pred_check
          %p11069 = pneg %p279
        $region66: #{tpu_custom_call.1} parent=63 // pred_check_branch
          %11071 = sbr.rel (%p11069) target = $region68
        $region67: #{tpu_custom_call.1} parent=63 // pred_region
          %s11072 = smul.u32 4, %s25
          %11074 = vsyncadd %s11065, 0
          %s11075 = smul.addr %s11072, 8
          %s11076 = scalar_lea.hbm %s11, %s11075
          %s11077 = sshll.u32 %s11068, 4
          %s11078 = int_to_ptr.vmem [resolvable:$true] %s11077
          %s11079 = sshll.u32 %s11076, 4
          %s11080 = int_to_ptr.hbm [resolvable:$true] %s11079
          %11085 = dma.vmem_to_hbm [thread:$0]  %s11078, 512, %s11080, %s11065, 128, 128, 8
        $region68: #{tpu_custom_call.1} parent=63 // pred_fallthru
          _
      $region64: #{tpu_custom_call.1} parent=5 // pred_fallthru
        _
      %p11086 = scmp.le.s32.totalorder 2, %s20
      // Predicated region
      $region69: #{tpu_custom_call.1} parent=5 // pred_check
        %p11087 = pneg %p11086
      $region70: #{tpu_custom_call.1} parent=5 // pred_check_branch
        %11089 = sbr.rel (%p11087) target = $region72
      $region71: #{tpu_custom_call.1} parent=5 // pred_region
        %s11090 = ssub.s32 %s20, 2
        // Predicated region
        $region73: #{tpu_custom_call.1} parent=71 // pred_check
          %p11091 = pneg %p285
        $region74: #{tpu_custom_call.1} parent=71 // pred_check_branch
          %11093 = sbr.rel (%p11091) target = $region76
        $region75: #{tpu_custom_call.1} parent=71 // pred_region
          %s11094 = sand.u32 %s270, 1
          %s11095 = scalar_lea.sflag [#allocation3], %s11094
          %s11096 = sand.u32 %s270, 1
          %s11097 = smul.addr %s11096, 32
          %s11098 = scalar_lea.vmem [#allocation2], %s11097
          %11100 = dma.done %s11095, 512
        $region76: #{tpu_custom_call.1} parent=71 // pred_fallthru
          _
      $region72: #{tpu_custom_call.1} parent=5 // pred_fallthru
        _
    $region6: #{tpu_custom_call.1} parent=1 // loop_footer
      %s24 = sadd.s32 1, %s20
    $region7: #{tpu_custom_call.1} parent=1 // loop_footer_branch
      %19 = sbr.rel target = $region3
    $region8: #{tpu_custom_call.1} parent=1 // loop_exit
      _
    %11101 = vsyncpa [#allocation3], 1
    %s11102 = scalar_lea.sflag [#allocation3], 1
    %11103 = vsyncpa %s11102, 1

</llo_original>
